<compile_context>
chip_gen: v7x
topology: tpu7x:2x2x1
jax: 0.10.0
libtpu: 0.0.40
codegen_flags: <defaults>
</compile_context>

<pallas_src>
import functools

import jax
import jax.numpy as jnp
from jax import lax
from jax.experimental import pallas as pl
from jax.experimental.pallas import tpu as pltpu

EPS = 1e-5

# Scoped-VMEM request: 32 MiB is safe on every current chip (v5e default scoped
# is 16 MiB, v6e/v7x 32 MiB; v7x physical VMEM is only 64 MiB, so tile budgets
# must be re-derived before raising this further).
VMEM_LIMIT_BYTES = 32 * 1024 * 1024


# -----------------------------------------------------------------------------
# Kernel 1 / 2: 3x3 conv (+ optional fused BN-apply+ReLU on the input, + optional
# fused 1x1 projection shortcut), emitting per-image partial BN statistics.
# -----------------------------------------------------------------------------
def _conv_block_kernel(stride, has_affine, has_sc, *refs):
    refs = list(refs)
    x_ref = refs.pop(0)                                # (1, h, w, cin)  bf16
    scale_ref = refs.pop(0) if has_affine else None    # (1, cin) f32
    shift_ref = refs.pop(0) if has_affine else None    # (1, cin) f32
    w_ref = refs.pop(0)                                # (3, 3*cin, cout) bf16
    wsc_ref = refs.pop(0) if has_sc else None          # (cin, cout) bf16
    y_ref = refs.pop(0)                                # (1, ho, wo, cout) bf16
    st_ref = refs.pop(0)                               # (1, 2, cout) f32
    ysc_ref = refs.pop(0) if has_sc else None
    stsc_ref = refs.pop(0) if has_sc else None
    pad_ref = refs.pop(0)                              # (h+2, w+2, cin) bf16 scratch

    h, w, cin = x_ref.shape[1], x_ref.shape[2], x_ref.shape[3]
    ho, wo, cout = y_ref.shape[1], y_ref.shape[2], y_ref.shape[3]

    x_in = x_ref[0]                                    # (h, w, cin) bf16
    if has_affine:
        # fused BatchNorm apply (precomputed per-channel scale/shift) + ReLU in
        # f32 (v5e has no bf16 VPU), cast once to bf16 for the MXU.
        x = jnp.maximum(x_in.astype(jnp.float32) * scale_ref[...]
                        + shift_ref[...], 0.0).astype(jnp.bfloat16)
    else:
        x = x_in                                       # already bf16: no round trip

    # 1-pixel zero halo in a bf16 VMEM scratch: zero only the 4 border strips
    # (the interior is overwritten every grid step, and per-core scratch must not
    # rely on cross-iteration state under "parallel" megacore sharding).
    pad_ref[0:1, :, :] = jnp.zeros((1, w + 2, cin), jnp.bfloat16)
    pad_ref[h + 1:h + 2, :, :] = jnp.zeros((1, w + 2, cin), jnp.bfloat16)
    pad_ref[:, 0:1, :] = jnp.zeros((h + 2, 1, cin), jnp.bfloat16)
    pad_ref[:, w + 1:w + 2, :] = jnp.zeros((h + 2, 1, cin), jnp.bfloat16)
    pad_ref[1:h + 1, 1:w + 1, :] = x

    # kx-expanded patch built once per tile: (h+2, wo, 3*cin).  The two unaligned
    # W-shifted windows are materialized once here and reused for all three ky
    # (ky shifts below are pure row offsets).  Column stride is folded in here
    # for stride != 1 blocks (one de-interleave instead of per-tap strided slices).
    if stride == 1:
        cols = [pad_ref[:, kx:kx + wo, :] for kx in range(3)]
    else:
        cols = [pad_ref[:, pl.ds(kx, wo, stride), :] for kx in range(3)]
    xe = jnp.concatenate(cols, axis=-1)                # (h+2, wo, 3*cin) bf16

    # 3x3 conv as 3 matmuls with contraction depth K = 3*cin (vs 9 matmuls with
    # K = cin): bf16 operands, f32 accumulation in a live value (no VMEM scratch).
    acc = None
    for ky in range(3):
        if stride == 1:
            tap = xe[ky:ky + ho]
        else:
            tap = xe[ky:ky + (ho - 1) * stride + 1:stride]
        part = jnp.dot(tap.reshape(ho * wo, 3 * cin), w_ref[ky],
                       preferred_element_type=jnp.float32)
        acc = part if acc is None else acc + part      # (ho*wo, cout) f32

    y_ref[0] = acc.reshape(ho, wo, cout).astype(y_ref.dtype)
    # one-pass per-image partial BN statistics (sum, sum of squares) per channel,
    # computed from the f32 accumulator (not the bf16-rounded output).
    # TODO(synk): E[x^2]-E[x]^2 in f32 can lose precision at production pixel
    # counts; a per-tile-mean-shifted or Welford combine would be safer there.
    st_ref[0, 0:1, :] = jnp.sum(acc, axis=0, keepdims=True)
    st_ref[0, 1:2, :] = jnp.sum(acc * acc, axis=0, keepdims=True)

    if has_sc:
        # fused 1x1 projection shortcut reading the same input tile
        xs = x_in if stride == 1 else x_in[::stride, ::stride, :]
        ysc = jnp.dot(xs.reshape(ho * wo, cin), wsc_ref[...],
                      preferred_element_type=jnp.float32)
        ysc_ref[0] = ysc.reshape(ho, wo, cout).astype(ysc_ref.dtype)
        stsc_ref[0, 0:1, :] = jnp.sum(ysc, axis=0, keepdims=True)
        stsc_ref[0, 1:2, :] = jnp.sum(ysc * ysc, axis=0, keepdims=True)


def _conv_block(x, w_hwio, stride, scale=None, shift=None, w_sc=None):
    """3x3 conv (+optional fused affine/ReLU on input, +optional 1x1 shortcut).

    x is bf16 NHWC.  Returns (y_bf16, stats_f32[, y_sc_bf16, stats_sc_f32]);
    stats are per-image (sum, sum^2) per channel."""
    n, h, wd, cin = x.shape
    cout = w_hwio.shape[-1]
    ho = (h - 1) // stride + 1
    wo = (wd - 1) // stride + 1
    has_affine = scale is not None
    has_sc = w_sc is not None

    # (3, 3*cin, cout): ky-major, then kx-major, then cin -- matches the
    # kx-concatenated patch layout used inside the kernel.
    wr = w_hwio.reshape(3, 3 * cin, cout).astype(jnp.bfloat16)

    in_arrays = [x]
    in_specs = [pl.BlockSpec((1, h, wd, cin), lambda i: (i, 0, 0, 0))]
    if has_affine:
        in_arrays += [scale, shift]
        in_specs += [pl.BlockSpec((1, cin), lambda i: (0, 0))] * 2
    in_arrays.append(wr)
    in_specs.append(pl.BlockSpec((3, 3 * cin, cout), lambda i: (0, 0, 0)))
    if has_sc:
        in_arrays.append(w_sc.astype(jnp.bfloat16))
        in_specs.append(pl.BlockSpec((cin, cout), lambda i: (0, 0)))

    y_shape = jax.ShapeDtypeStruct((n, ho, wo, cout), jnp.bfloat16)
    st_shape = jax.ShapeDtypeStruct((n, 2, cout), jnp.float32)
    y_spec = pl.BlockSpec((1, ho, wo, cout), lambda i: (i, 0, 0, 0))
    st_spec = pl.BlockSpec((1, 2, cout), lambda i: (i, 0, 0))
    out_shapes = [y_shape, st_shape]
    out_specs = [y_spec, st_spec]
    if has_sc:
        out_shapes += [y_shape, st_shape]
        out_specs += [y_spec, st_spec]

    return pl.pallas_call(
        functools.partial(_conv_block_kernel, stride, has_affine, has_sc),
        grid=(n,),
        in_specs=in_specs,
        out_specs=tuple(out_specs),
        out_shape=tuple(out_shapes),
        scratch_shapes=[pltpu.VMEM((h + 2, wd + 2, cin), jnp.bfloat16)],
        compiler_params=pltpu.CompilerParams(
            dimension_semantics=("parallel",),
            vmem_limit_bytes=VMEM_LIMIT_BYTES),
    )(*in_arrays)


# -----------------------------------------------------------------------------
# Kernel 3: bn2-apply + shortcut-BN-apply + residual add + final ReLU,
# over large flattened (rows, C) blocks (HBM-bandwidth bound).
# -----------------------------------------------------------------------------
def _bn_add_relu_kernel(y2_ref, sc_ref, s2_ref, b2_ref, ssc_ref, bsc_ref, o_ref):
    y2 = y2_ref[...].astype(jnp.float32)
    sc = sc_ref[...].astype(jnp.float32)
    out = y2 * s2_ref[...] + b2_ref[...] + sc * ssc_ref[...] + bsc_ref[...]
    o_ref[...] = jnp.maximum(out, 0.0)


def _pick_row_block(m, c, target_bytes=2 << 20):
    """Largest multiple-of-8 divisor of m whose f32 block is <= target_bytes."""
    target = max(8, target_bytes // (c * 4))
    if m <= target:
        return m
    cand = (min(m, target) // 8) * 8
    while cand >= 8:
        if m % cand == 0:
            return cand
        cand -= 8
    return m          # fall back to the full extent (always a legal block)


def _bn_add_relu(y2, sc, scale2, shift2, scale_sc, shift_sc):
    n, ho, wo, c = y2.shape
    m = n * ho * wo
    y2f = y2.reshape(m, c)
    scf = sc.reshape(m, c)
    tm = _pick_row_block(m, c)
    row = lambda i: (i, 0)
    vec = lambda i: (0, 0)
    out = pl.pallas_call(
        _bn_add_relu_kernel,
        grid=(m // tm,),
        in_specs=[pl.BlockSpec((tm, c), row),
                  pl.BlockSpec((tm, c), row),
                  pl.BlockSpec((1, c), vec),
                  pl.BlockSpec((1, c), vec),
                  pl.BlockSpec((1, c), vec),
                  pl.BlockSpec((1, c), vec)],
        out_specs=pl.BlockSpec((tm, c), row),
        out_shape=jax.ShapeDtypeStruct((m, c), jnp.float32),
        compiler_params=pltpu.CompilerParams(
            dimension_semantics=("parallel",),
            vmem_limit_bytes=VMEM_LIMIT_BYTES),
    )(y2f, scf, scale2, shift2, scale_sc, shift_sc)
    return out.reshape(n, ho, wo, c)


# -----------------------------------------------------------------------------
# Tiny glue: combine per-image partial statistics -> BN scale/shift vectors.
# -----------------------------------------------------------------------------
def _bn_scale_shift(stats, gamma, beta, count):
    s = jnp.sum(stats, axis=0)                    # (2, C): combine partials
    mean = s[0] / count
    var = s[1] / count - mean * mean              # biased variance (BN forward)
    scale = gamma * lax.rsqrt(var + EPS)
    shift = beta - mean * scale
    return (scale.reshape(1, -1).astype(jnp.float32),
            shift.reshape(1, -1).astype(jnp.float32))


# -----------------------------------------------------------------------------
# Public wrapper: BasicBlock forward (NCHW in / NCHW out, like PyTorch).
# (If the surrounding model can consume NHWC, drop these transposes.)
# -----------------------------------------------------------------------------
def basic_block(x_nchw, params, stride=1):
    x = jnp.transpose(x_nchw, (0, 2, 3, 1)).astype(jnp.float32)   # NCHW -> NHWC
    n, h, w, cin = x.shape
    cout = params["w1"].shape[-1]
    has_sc = "w_sc" in params
    if not has_sc:
        assert stride == 1 and cin == cout, "identity shortcut needs matching shapes"
    xb = x.astype(jnp.bfloat16)                   # bf16 activations for the MXU

    # K1: conv1 (+ fused 1x1 projection shortcut) + partial BN stats
    if has_sc:
        y1, st1, ysc, stsc = _conv_block(xb, params["w1"], stride,
                                         w_sc=params["w_sc"])
    else:
        y1, st1 = _conv_block(xb, params["w1"], stride)

    ho, wo = y1.shape[1], y1.shape[2]
    cnt = float(n * ho * wo)
    scale1, shift1 = _bn_scale_shift(st1, params["bn1_gamma"], params["bn1_beta"], cnt)

    # K2: bn1-apply + ReLU fused into conv2, + partial bn2 stats
    y2, st2 = _conv_block(y1, params["w2"], 1, scale=scale1, shift=shift1)
    scale2, shift2 = _bn_scale_shift(st2, params["bn2_gamma"], params["bn2_beta"], cnt)

    if has_sc:
        scale_sc, shift_sc = _bn_scale_shift(
            stsc, params["bnsc_gamma"], params["bnsc_beta"], cnt)
        sc = ysc                                  # bf16 projection shortcut
    else:
        scale_sc = jnp.ones((1, cout), jnp.float32)
        shift_sc = jnp.zeros((1, cout), jnp.float32)
        sc = xb                                   # identity shortcut (bf16)

    # K3: bn2 + shortcut-BN + residual add + final ReLU
    out = _bn_add_relu(y2, sc, scale2, shift2, scale_sc, shift_sc)
    return jnp.transpose(out, (0, 3, 1, 2))       # NHWC -> NCHW


# -----------------------------------------------------------------------------
# Pure-JAX reference (same semantics, bf16 conv operands, f32 intermediates).
# -----------------------------------------------------------------------------
def basic_block_ref(x_nchw, params, stride=1):
    dn = ("NHWC", "HWIO", "NHWC")
    x = jnp.transpose(x_nchw, (0, 2, 3, 1)).astype(jnp.float32)

    def conv(v, w, s, pad):
        return lax.conv_general_dilated(
            v.astype(jnp.bfloat16), w.astype(jnp.bfloat16), (s, s), pad,
            dimension_numbers=dn, preferred_element_type=jnp.float32)

    def bn(v, g, b):
        m = jnp.mean(v, axis=(0, 1, 2), keepdims=True)
        var = jnp.mean((v - m) ** 2, axis=(0, 1, 2), keepdims=True)
        return (v - m) * lax.rsqrt(var + EPS) * g + b

    y1 = conv(x, params["w1"], stride, ((1, 1), (1, 1)))
    a1 = jnp.maximum(bn(y1, params["bn1_gamma"], params["bn1_beta"]), 0.0)
    y2 = conv(a1, params["w2"], 1, ((1, 1), (1, 1)))
    b2 = bn(y2, params["bn2_gamma"], params["bn2_beta"])
    if "w_sc" in params:
        wsc = params["w_sc"].reshape(1, 1, *params["w_sc"].shape)
        ysc = conv(x, wsc, stride, "VALID")
        sc = bn(ysc, params["bnsc_gamma"], params["bnsc_beta"])
    else:
        sc = x
    return jnp.transpose(jnp.maximum(b2 + sc, 0.0), (0, 3, 1, 2))


if __name__ == "__main__":
    # TODO(synk): spectral_normalization=True (spectral_norm weight parametrization)
    # is not implemented; the module defaults to False.
    # TODO(synk): BatchNorm running-stat buffer updates are not modeled; the forward
    # uses training-mode batch statistics (fresh nn.BatchNorm2d forward).
    def make_params(key, cin, cout, has_sc):
        ks = jax.random.split(key, 9)
        p = {
            # PyTorch conv weight is (Cout, Cin, kh, kw); stored here as HWIO.
            "w1": 0.1 * jax.random.normal(ks[0], (3, 3, cin, cout), jnp.float32),
            "bn1_gamma": 1.0 + 0.1 * jax.random.normal(ks[1], (cout,), jnp.float32),
            "bn1_beta": 0.1 * jax.random.normal(ks[2], (cout,), jnp.float32),
            "w2": 0.1 * jax.random.normal(ks[3], (3, 3, cout, cout), jnp.float32),
            "bn2_gamma": 1.0 + 0.1 * jax.random.normal(ks[4], (cout,), jnp.float32),
            "bn2_beta": 0.1 * jax.random.normal(ks[5], (cout,), jnp.float32),
        }
        if has_sc:
            p["w_sc"] = 0.1 * jax.random.normal(ks[6], (cin, cout), jnp.float32)
            p["bnsc_gamma"] = 1.0 + 0.1 * jax.random.normal(ks[7], (cout,), jnp.float32)
            p["bnsc_beta"] = 0.1 * jax.random.normal(ks[8], (cout,), jnp.float32)
        return p

    N, H, W = 2, 16, 16
    configs = [
        (4, 8, 1),   # in_planes != planes -> 1x1-conv + BN projection shortcut
        (8, 8, 1),   # identity shortcut
    ]
    fwd = jax.jit(basic_block, static_argnames=("stride",))

    key = jax.random.PRNGKey(0)
    for cin, cout, stride in configs:
        key, kp, kx = jax.random.split(key, 3)
        has_sc = (stride != 1) or (cin != cout)
        params = make_params(kp, cin, cout, has_sc)
        x = jax.random.normal(kx, (N, cin, H, W), jnp.float32)   # NCHW like PyTorch

        out = jax.block_until_ready(fwd(x, params, stride=stride))
        ref = jax.block_until_ready(basic_block_ref(x, params, stride))

        ho = (H - 1) // stride + 1
        assert out.shape == (N, cout, ho, ho), out.shape
        err = float(jnp.max(jnp.abs(out - ref)))
        # bf16 intermediate storage (y1/y2/shortcut) adds ~1-2 extra bf16 roundings
        # vs the f32-intermediate reference -> 2e-2 tolerance.
        assert jnp.allclose(out, ref, atol=2e-2, rtol=2e-2), (cin, cout, stride, err)

    print("KERNEL_OK")
</pallas_src>

<mosaic_0001>
module attributes {stable_mosaic.version = 11 : i64} {
  func.func @_conv_block_kernel(%arg0: i32, %arg1: memref<1x16x16x8xbf16, #tpu.memory_space<vmem>>, %arg2: memref<1x8xf32, #tpu.memory_space<vmem>>, %arg3: memref<1x8xf32, #tpu.memory_space<vmem>>, %arg4: memref<3x24x8xbf16, #tpu.memory_space<vmem>>, %arg5: memref<1x16x16x8xbf16, #tpu.memory_space<vmem>>, %arg6: memref<1x2x8xf32, #tpu.memory_space<vmem>>, %arg7: memref<18x18x8xbf16, #tpu.memory_space<vmem>>) attributes {dimension_semantics = [#tpu.dimension_semantics<parallel>], iteration_bounds = array<i64: 2>, scalar_prefetch = 0 : i64, scratch_operands = 1 : i64, tpu.core_type = #tpu.core_type<tc>, window_params = [{transform_indices = @transform_0, window_bounds = array<i64: 1, 16, 16, 8>}, {pipeline_mode = #tpu.pipeline_mode<synchronous>, transform_indices = @transform_1, window_bounds = array<i64: 1, 8>}, {pipeline_mode = #tpu.pipeline_mode<synchronous>, transform_indices = @transform_2, window_bounds = array<i64: 1, 8>}, {pipeline_mode = #tpu.pipeline_mode<synchronous>, transform_indices = @transform_3, window_bounds = array<i64: 3, 24, 8>}, {transform_indices = @transform_4, window_bounds = array<i64: 1, 16, 16, 8>}, {transform_indices = @transform_5, window_bounds = array<i64: 1, 2, 8>}]} {
    %c0 = arith.constant 0 : index
    %c0_0 = arith.constant 0 : index
    %c0_1 = arith.constant 0 : index
    %c0_2 = arith.constant 0 : index
    %0 = vector.load %arg1[%c0, %c0_0, %c0_1, %c0_2] : memref<1x16x16x8xbf16, #tpu.memory_space<vmem>>, vector<1x16x16x8xbf16>
    %1 = vector.shape_cast %0 : vector<1x16x16x8xbf16> to vector<16x16x8xbf16>
    %2 = arith.extf %1 : vector<16x16x8xbf16> to vector<16x16x8xf32>
    %c0_3 = arith.constant 0 : index
    %c0_4 = arith.constant 0 : index
    %3 = vector.load %arg2[%c0_3, %c0_4] : memref<1x8xf32, #tpu.memory_space<vmem>>, vector<1x8xf32>
    %4 = vector.shape_cast %3 : vector<1x8xf32> to vector<1x1x8xf32>
    %5 = vector.broadcast %4 : vector<1x1x8xf32> to vector<16x16x8xf32>
    %6 = arith.mulf %2, %5 : vector<16x16x8xf32>
    %c0_5 = arith.constant 0 : index
    %c0_6 = arith.constant 0 : index
    %7 = vector.load %arg3[%c0_5, %c0_6] : memref<1x8xf32, #tpu.memory_space<vmem>>, vector<1x8xf32>
    %8 = vector.shape_cast %7 : vector<1x8xf32> to vector<1x1x8xf32>
    %9 = vector.broadcast %8 : vector<1x1x8xf32> to vector<16x16x8xf32>
    %10 = arith.addf %6, %9 : vector<16x16x8xf32>
    %cst = arith.constant 0.000000e+00 : f32
    %11 = vector.broadcast %cst : f32 to vector<16x16x8xf32>
    %12 = arith.maximumf %10, %11 : vector<16x16x8xf32>
    %13 = arith.truncf %12 : vector<16x16x8xf32> to vector<16x16x8xbf16>
    %cst_7 = arith.constant 0.000000e+00 : bf16
    %14 = vector.broadcast %cst_7 : bf16 to vector<1x18x8xbf16>
    %c0_8 = arith.constant 0 : index
    %c0_9 = arith.constant 0 : index
    %c0_10 = arith.constant 0 : index
    %15 = vector.load %arg7[%c0_8, %c0_9, %c0_10] : memref<18x18x8xbf16, #tpu.memory_space<vmem>>, vector<1x18x8xbf16>
    tpu.vector_store %arg7[%c0_8, %c0_9, %c0_10], %14 {strides = array<i32>} : memref<18x18x8xbf16, #tpu.memory_space<vmem>>, vector<1x18x8xbf16>,
    %cst_11 = arith.constant 0.000000e+00 : bf16
    %16 = vector.broadcast %cst_11 : bf16 to vector<1x18x8xbf16>
    %c17 = arith.constant 17 : index
    %c0_12 = arith.constant 0 : index
    %c0_13 = arith.constant 0 : index
    %17 = vector.load %arg7[%c17, %c0_12, %c0_13] : memref<18x18x8xbf16, #tpu.memory_space<vmem>>, vector<1x18x8xbf16>
    tpu.vector_store %arg7[%c17, %c0_12, %c0_13], %16 {strides = array<i32>} : memref<18x18x8xbf16, #tpu.memory_space<vmem>>, vector<1x18x8xbf16>,
    %cst_14 = arith.constant 0.000000e+00 : bf16
    %18 = vector.broadcast %cst_14 : bf16 to vector<18x1x8xbf16>
    %c0_15 = arith.constant 0 : index
    %c0_16 = arith.constant 0 : index
    %c0_17 = arith.constant 0 : index
    %19 = vector.load %arg7[%c0_15, %c0_16, %c0_17] : memref<18x18x8xbf16, #tpu.memory_space<vmem>>, vector<18x1x8xbf16>
    tpu.vector_store %arg7[%c0_15, %c0_16, %c0_17], %18 {strides = array<i32>} : memref<18x18x8xbf16, #tpu.memory_space<vmem>>, vector<18x1x8xbf16>,
    %cst_18 = arith.constant 0.000000e+00 : bf16
    %20 = vector.broadcast %cst_18 : bf16 to vector<18x1x8xbf16>
    %c0_19 = arith.constant 0 : index
    %c17_20 = arith.constant 17 : index
    %c0_21 = arith.constant 0 : index
    %21 = vector.load %arg7[%c0_19, %c17_20, %c0_21] : memref<18x18x8xbf16, #tpu.memory_space<vmem>>, vector<18x1x8xbf16>
    tpu.vector_store %arg7[%c0_19, %c17_20, %c0_21], %20 {strides = array<i32>} : memref<18x18x8xbf16, #tpu.memory_space<vmem>>, vector<18x1x8xbf16>,
    %c1 = arith.constant 1 : index
    %c1_22 = arith.constant 1 : index
    %c0_23 = arith.constant 0 : index
    %22 = vector.load %arg7[%c1, %c1_22, %c0_23] : memref<18x18x8xbf16, #tpu.memory_space<vmem>>, vector<16x16x8xbf16>
    tpu.vector_store %arg7[%c1, %c1_22, %c0_23], %13 {strides = array<i32>} : memref<18x18x8xbf16, #tpu.memory_space<vmem>>, vector<16x16x8xbf16>,
    %c0_24 = arith.constant 0 : index
    %c0_25 = arith.constant 0 : index
    %c0_26 = arith.constant 0 : index
    %23 = vector.load %arg7[%c0_24, %c0_25, %c0_26] : memref<18x18x8xbf16, #tpu.memory_space<vmem>>, vector<18x16x8xbf16>
    %c0_27 = arith.constant 0 : index
    %c1_28 = arith.constant 1 : index
    %c0_29 = arith.constant 0 : index
    %24 = vector.load %arg7[%c0_27, %c1_28, %c0_29] : memref<18x18x8xbf16, #tpu.memory_space<vmem>>, vector<18x16x8xbf16>
    %c0_30 = arith.constant 0 : index
    %c2 = arith.constant 2 : index
    %c0_31 = arith.constant 0 : index
    %25 = vector.load %arg7[%c0_30, %c2, %c0_31] : memref<18x18x8xbf16, #tpu.memory_space<vmem>>, vector<18x16x8xbf16>
    %26 = tpu.concatenate %23, %24, %25 in 2 : vector<18x16x8xbf16>, vector<18x16x8xbf16>, vector<18x16x8xbf16> -> vector<18x16x24xbf16>
    %27 = vector.extract_strided_slice %26 {offsets = [0, 0, 0], sizes = [16, 16, 24], strides = [1, 1, 1]} : vector<18x16x24xbf16> to vector<16x16x24xbf16>
    %28 = vector.shape_cast %27 : vector<16x16x24xbf16> to vector<256x24xbf16>
    %c0_32 = arith.constant 0 : index
    %c0_33 = arith.constant 0 : index
    %c0_34 = arith.constant 0 : index
    %29 = vector.load %arg4[%c0_32, %c0_33, %c0_34] : memref<3x24x8xbf16, #tpu.memory_space<vmem>>, vector<1x24x8xbf16>
    %30 = vector.shape_cast %29 : vector<1x24x8xbf16> to vector<24x8xbf16>
    %cst_35 = arith.constant dense<0.000000e+00> : vector<256x8xf32>
    %31 = tpu.matmul %28, %30, %cst_35 {dimension_numbers = #tpu.dot_dimension_numbers<[1], [0], [0], [1], [0, 0, 1, 1], [], []>} : vector<256x24xbf16>, vector<24x8xbf16>, vector<256x8xf32> -> vector<256x8xf32>
    %32 = vector.extract_strided_slice %26 {offsets = [1, 0, 0], sizes = [16, 16, 24], strides = [1, 1, 1]} : vector<18x16x24xbf16> to vector<16x16x24xbf16>
    %33 = vector.shape_cast %32 : vector<16x16x24xbf16> to vector<256x24xbf16>
    %c1_36 = arith.constant 1 : index
    %c0_37 = arith.constant 0 : index
    %c0_38 = arith.constant 0 : index
    %34 = vector.load %arg4[%c1_36, %c0_37, %c0_38] : memref<3x24x8xbf16, #tpu.memory_space<vmem>>, vector<1x24x8xbf16>
    %35 = vector.shape_cast %34 : vector<1x24x8xbf16> to vector<24x8xbf16>
    %cst_39 = arith.constant dense<0.000000e+00> : vector<256x8xf32>
    %36 = tpu.matmul %33, %35, %cst_39 {dimension_numbers = #tpu.dot_dimension_numbers<[1], [0], [0], [1], [0, 0, 1, 1], [], []>} : vector<256x24xbf16>, vector<24x8xbf16>, vector<256x8xf32> -> vector<256x8xf32>
    %37 = arith.addf %31, %36 : vector<256x8xf32>
    %38 = vector.extract_strided_slice %26 {offsets = [2, 0, 0], sizes = [16, 16, 24], strides = [1, 1, 1]} : vector<18x16x24xbf16> to vector<16x16x24xbf16>
    %39 = vector.shape_cast %38 : vector<16x16x24xbf16> to vector<256x24xbf16>
    %c2_40 = arith.constant 2 : index
    %c0_41 = arith.constant 0 : index
    %c0_42 = arith.constant 0 : index
    %40 = vector.load %arg4[%c2_40, %c0_41, %c0_42] : memref<3x24x8xbf16, #tpu.memory_space<vmem>>, vector<1x24x8xbf16>
    %41 = vector.shape_cast %40 : vector<1x24x8xbf16> to vector<24x8xbf16>
    %cst_43 = arith.constant dense<0.000000e+00> : vector<256x8xf32>
    %42 = tpu.matmul %39, %41, %cst_43 {dimension_numbers = #tpu.dot_dimension_numbers<[1], [0], [0], [1], [0, 0, 1, 1], [], []>} : vector<256x24xbf16>, vector<24x8xbf16>, vector<256x8xf32> -> vector<256x8xf32>
    %43 = arith.addf %37, %42 : vector<256x8xf32>
    %44 = vector.shape_cast %43 : vector<256x8xf32> to vector<16x16x8xf32>
    %45 = arith.truncf %44 : vector<16x16x8xf32> to vector<16x16x8xbf16>
    %c0_44 = arith.constant 0 : index
    %c0_45 = arith.constant 0 : index
    %c0_46 = arith.constant 0 : index
    %c0_47 = arith.constant 0 : index
    %46 = vector.load %arg5[%c0_44, %c0_45, %c0_46, %c0_47] : memref<1x16x16x8xbf16, #tpu.memory_space<vmem>>, vector<1x16x16x8xbf16>
    %47 = vector.shape_cast %46 : vector<1x16x16x8xbf16> to vector<16x16x8xbf16>
    %48 = vector.shape_cast %45 : vector<16x16x8xbf16> to vector<1x16x16x8xbf16>
    tpu.vector_store %arg5[%c0_44, %c0_45, %c0_46, %c0_47], %48 {strides = array<i32>} : memref<1x16x16x8xbf16, #tpu.memory_space<vmem>>, vector<1x16x16x8xbf16>,
    %cst_48 = arith.constant dense<0.000000e+00> : vector<8xf32>
    %49 = vector.multi_reduction <add>, %43, %cst_48 [0] : vector<256x8xf32> to vector<8xf32>
    %50 = vector.shape_cast %49 : vector<8xf32> to vector<1x8xf32>
    %c0_49 = arith.constant 0 : index
    %c0_50 = arith.constant 0 : index
    %c0_51 = arith.constant 0 : index
    %51 = vector.load %arg6[%c0_49, %c0_50, %c0_51] : memref<1x2x8xf32, #tpu.memory_space<vmem>>, vector<1x1x8xf32>
    %52 = vector.shape_cast %51 : vector<1x1x8xf32> to vector<1x8xf32>
    %53 = vector.shape_cast %50 : vector<1x8xf32> to vector<1x1x8xf32>
    tpu.vector_store %arg6[%c0_49, %c0_50, %c0_51], %53 {strides = array<i32>} : memref<1x2x8xf32, #tpu.memory_space<vmem>>, vector<1x1x8xf32>,
    %54 = arith.mulf %43, %43 : vector<256x8xf32>
    %cst_52 = arith.constant dense<0.000000e+00> : vector<8xf32>
    %55 = vector.multi_reduction <add>, %54, %cst_52 [0] : vector<256x8xf32> to vector<8xf32>
    %56 = vector.shape_cast %55 : vector<8xf32> to vector<1x8xf32>
    %c0_53 = arith.constant 0 : index
    %c1_54 = arith.constant 1 : index
    %c0_55 = arith.constant 0 : index
    %57 = vector.load %arg6[%c0_53, %c1_54, %c0_55] : memref<1x2x8xf32, #tpu.memory_space<vmem>>, vector<1x1x8xf32>
    %58 = vector.shape_cast %57 : vector<1x1x8xf32> to vector<1x8xf32>
    %59 = vector.shape_cast %56 : vector<1x8xf32> to vector<1x1x8xf32>
    tpu.vector_store %arg6[%c0_53, %c1_54, %c0_55], %59 {strides = array<i32>} : memref<1x2x8xf32, #tpu.memory_space<vmem>>, vector<1x1x8xf32>,
    return
  }
  func.func @transform_0(%arg0: i32) -> (i32, i32, i32, i32) {
    %c0_i32 = arith.constant 0 : i32
    %c0_i32_0 = arith.constant 0 : i32
    %c0_i32_1 = arith.constant 0 : i32
    %c0_i32_2 = arith.constant 0 : i32
    return %arg0, %c0_i32, %c0_i32_0, %c0_i32_1 : i32, i32, i32, i32
  }
  func.func @transform_1(%arg0: i32) -> (i32, i32) {
    %c0_i32 = arith.constant 0 : i32
    %c0_i32_0 = arith.constant 0 : i32
    %c0_i32_1 = arith.constant 0 : i32
    return %c0_i32, %c0_i32_0 : i32, i32
  }
  func.func @transform_2(%arg0: i32) -> (i32, i32) {
    %c0_i32 = arith.constant 0 : i32
    %c0_i32_0 = arith.constant 0 : i32
    %c0_i32_1 = arith.constant 0 : i32
    return %c0_i32, %c0_i32_0 : i32, i32
  }
  func.func @transform_3(%arg0: i32) -> (i32, i32, i32) {
    %c0_i32 = arith.constant 0 : i32
    %c0_i32_0 = arith.constant 0 : i32
    %c0_i32_1 = arith.constant 0 : i32
    %c0_i32_2 = arith.constant 0 : i32
    return %c0_i32, %c0_i32_0, %c0_i32_1 : i32, i32, i32
  }
  func.func @transform_4(%arg0: i32) -> (i32, i32, i32, i32) {
    %c0_i32 = arith.constant 0 : i32
    %c0_i32_0 = arith.constant 0 : i32
    %c0_i32_1 = arith.constant 0 : i32
    %c0_i32_2 = arith.constant 0 : i32
    return %arg0, %c0_i32, %c0_i32_0, %c0_i32_1 : i32, i32, i32, i32
  }
  func.func @transform_5(%arg0: i32) -> (i32, i32, i32) {
    %c0_i32 = arith.constant 0 : i32
    %c0_i32_0 = arith.constant 0 : i32
    %c0_i32_1 = arith.constant 0 : i32
    return %arg0, %c0_i32, %c0_i32_0 : i32, i32, i32
  }
}

module attributes {stable_mosaic.version = 11 : i64} {
  func.func @_conv_block_kernel(%arg0: i32, %arg1: memref<1x16x16x4xbf16, #tpu.memory_space<vmem>>, %arg2: memref<3x12x8xbf16, #tpu.memory_space<vmem>>, %arg3: memref<4x8xbf16, #tpu.memory_space<vmem>>, %arg4: memref<1x16x16x8xbf16, #tpu.memory_space<vmem>>, %arg5: memref<1x2x8xf32, #tpu.memory_space<vmem>>, %arg6: memref<1x16x16x8xbf16, #tpu.memory_space<vmem>>, %arg7: memref<1x2x8xf32, #tpu.memory_space<vmem>>, %arg8: memref<18x18x4xbf16, #tpu.memory_space<vmem>>) attributes {dimension_semantics = [#tpu.dimension_semantics<parallel>], iteration_bounds = array<i64: 2>, scalar_prefetch = 0 : i64, scratch_operands = 1 : i64, tpu.core_type = #tpu.core_type<tc>, window_params = [{transform_indices = @transform_0, window_bounds = array<i64: 1, 16, 16, 4>}, {pipeline_mode = #tpu.pipeline_mode<synchronous>, transform_indices = @transform_1, window_bounds = array<i64: 3, 12, 8>}, {pipeline_mode = #tpu.pipeline_mode<synchronous>, transform_indices = @transform_2, window_bounds = array<i64: 4, 8>}, {transform_indices = @transform_3, window_bounds = array<i64: 1, 16, 16, 8>}, {transform_indices = @transform_4, window_bounds = array<i64: 1, 2, 8>}, {transform_indices = @transform_5, window_bounds = array<i64: 1, 16, 16, 8>}, {transform_indices = @transform_6, window_bounds = array<i64: 1, 2, 8>}]} {
    %c0 = arith.constant 0 : index
    %c0_0 = arith.constant 0 : index
    %c0_1 = arith.constant 0 : index
    %c0_2 = arith.constant 0 : index
    %0 = vector.load %arg1[%c0, %c0_0, %c0_1, %c0_2] : memref<1x16x16x4xbf16, #tpu.memory_space<vmem>>, vector<1x16x16x4xbf16>
    %1 = vector.shape_cast %0 : vector<1x16x16x4xbf16> to vector<16x16x4xbf16>
    %cst = arith.constant 0.000000e+00 : bf16
    %2 = vector.broadcast %cst : bf16 to vector<1x18x4xbf16>
    %c0_3 = arith.constant 0 : index
    %c0_4 = arith.constant 0 : index
    %c0_5 = arith.constant 0 : index
    %3 = vector.load %arg8[%c0_3, %c0_4, %c0_5] : memref<18x18x4xbf16, #tpu.memory_space<vmem>>, vector<1x18x4xbf16>
    tpu.vector_store %arg8[%c0_3, %c0_4, %c0_5], %2 {strides = array<i32>} : memref<18x18x4xbf16, #tpu.memory_space<vmem>>, vector<1x18x4xbf16>,
    %cst_6 = arith.constant 0.000000e+00 : bf16
    %4 = vector.broadcast %cst_6 : bf16 to vector<1x18x4xbf16>
    %c17 = arith.constant 17 : index
    %c0_7 = arith.constant 0 : index
    %c0_8 = arith.constant 0 : index
    %5 = vector.load %arg8[%c17, %c0_7, %c0_8] : memref<18x18x4xbf16, #tpu.memory_space<vmem>>, vector<1x18x4xbf16>
    tpu.vector_store %arg8[%c17, %c0_7, %c0_8], %4 {strides = array<i32>} : memref<18x18x4xbf16, #tpu.memory_space<vmem>>, vector<1x18x4xbf16>,
    %cst_9 = arith.constant 0.000000e+00 : bf16
    %6 = vector.broadcast %cst_9 : bf16 to vector<18x1x4xbf16>
    %c0_10 = arith.constant 0 : index
    %c0_11 = arith.constant 0 : index
    %c0_12 = arith.constant 0 : index
    %7 = vector.load %arg8[%c0_10, %c0_11, %c0_12] : memref<18x18x4xbf16, #tpu.memory_space<vmem>>, vector<18x1x4xbf16>
    tpu.vector_store %arg8[%c0_10, %c0_11, %c0_12], %6 {strides = array<i32>} : memref<18x18x4xbf16, #tpu.memory_space<vmem>>, vector<18x1x4xbf16>,
    %cst_13 = arith.constant 0.000000e+00 : bf16
    %8 = vector.broadcast %cst_13 : bf16 to vector<18x1x4xbf16>
    %c0_14 = arith.constant 0 : index
    %c17_15 = arith.constant 17 : index
    %c0_16 = arith.constant 0 : index
    %9 = vector.load %arg8[%c0_14, %c17_15, %c0_16] : memref<18x18x4xbf16, #tpu.memory_space<vmem>>, vector<18x1x4xbf16>
    tpu.vector_store %arg8[%c0_14, %c17_15, %c0_16], %8 {strides = array<i32>} : memref<18x18x4xbf16, #tpu.memory_space<vmem>>, vector<18x1x4xbf16>,
    %c1 = arith.constant 1 : index
    %c1_17 = arith.constant 1 : index
    %c0_18 = arith.constant 0 : index
    %10 = vector.load %arg8[%c1, %c1_17, %c0_18] : memref<18x18x4xbf16, #tpu.memory_space<vmem>>, vector<16x16x4xbf16>
    tpu.vector_store %arg8[%c1, %c1_17, %c0_18], %1 {strides = array<i32>} : memref<18x18x4xbf16, #tpu.memory_space<vmem>>, vector<16x16x4xbf16>,
    %c0_19 = arith.constant 0 : index
    %c0_20 = arith.constant 0 : index
    %c0_21 = arith.constant 0 : index
    %11 = vector.load %arg8[%c0_19, %c0_20, %c0_21] : memref<18x18x4xbf16, #tpu.memory_space<vmem>>, vector<18x16x4xbf16>
    %c0_22 = arith.constant 0 : index
    %c1_23 = arith.constant 1 : index
    %c0_24 = arith.constant 0 : index
    %12 = vector.load %arg8[%c0_22, %c1_23, %c0_24] : memref<18x18x4xbf16, #tpu.memory_space<vmem>>, vector<18x16x4xbf16>
    %c0_25 = arith.constant 0 : index
    %c2 = arith.constant 2 : index
    %c0_26 = arith.constant 0 : index
    %13 = vector.load %arg8[%c0_25, %c2, %c0_26] : memref<18x18x4xbf16, #tpu.memory_space<vmem>>, vector<18x16x4xbf16>
    %14 = tpu.concatenate %11, %12, %13 in 2 : vector<18x16x4xbf16>, vector<18x16x4xbf16>, vector<18x16x4xbf16> -> vector<18x16x12xbf16>
    %15 = vector.extract_strided_slice %14 {offsets = [0, 0, 0], sizes = [16, 16, 12], strides = [1, 1, 1]} : vector<18x16x12xbf16> to vector<16x16x12xbf16>
    %16 = vector.shape_cast %15 : vector<16x16x12xbf16> to vector<256x12xbf16>
    %c0_27 = arith.constant 0 : index
    %c0_28 = arith.constant 0 : index
    %c0_29 = arith.constant 0 : index
    %17 = vector.load %arg2[%c0_27, %c0_28, %c0_29] : memref<3x12x8xbf16, #tpu.memory_space<vmem>>, vector<1x12x8xbf16>
    %18 = vector.shape_cast %17 : vector<1x12x8xbf16> to vector<12x8xbf16>
    %cst_30 = arith.constant dense<0.000000e+00> : vector<256x8xf32>
    %19 = tpu.matmul %16, %18, %cst_30 {dimension_numbers = #tpu.dot_dimension_numbers<[1], [0], [0], [1], [0, 0, 1, 1], [], []>} : vector<256x12xbf16>, vector<12x8xbf16>, vector<256x8xf32> -> vector<256x8xf32>
    %20 = vector.extract_strided_slice %14 {offsets = [1, 0, 0], sizes = [16, 16, 12], strides = [1, 1, 1]} : vector<18x16x12xbf16> to vector<16x16x12xbf16>
    %21 = vector.shape_cast %20 : vector<16x16x12xbf16> to vector<256x12xbf16>
    %c1_31 = arith.constant 1 : index
    %c0_32 = arith.constant 0 : index
    %c0_33 = arith.constant 0 : index
    %22 = vector.load %arg2[%c1_31, %c0_32, %c0_33] : memref<3x12x8xbf16, #tpu.memory_space<vmem>>, vector<1x12x8xbf16>
    %23 = vector.shape_cast %22 : vector<1x12x8xbf16> to vector<12x8xbf16>
    %cst_34 = arith.constant dense<0.000000e+00> : vector<256x8xf32>
    %24 = tpu.matmul %21, %23, %cst_34 {dimension_numbers = #tpu.dot_dimension_numbers<[1], [0], [0], [1], [0, 0, 1, 1], [], []>} : vector<256x12xbf16>, vector<12x8xbf16>, vector<256x8xf32> -> vector<256x8xf32>
    %25 = arith.addf %19, %24 : vector<256x8xf32>
    %26 = vector.extract_strided_slice %14 {offsets = [2, 0, 0], sizes = [16, 16, 12], strides = [1, 1, 1]} : vector<18x16x12xbf16> to vector<16x16x12xbf16>
    %27 = vector.shape_cast %26 : vector<16x16x12xbf16> to vector<256x12xbf16>
    %c2_35 = arith.constant 2 : index
    %c0_36 = arith.constant 0 : index
    %c0_37 = arith.constant 0 : index
    %28 = vector.load %arg2[%c2_35, %c0_36, %c0_37] : memref<3x12x8xbf16, #tpu.memory_space<vmem>>, vector<1x12x8xbf16>
    %29 = vector.shape_cast %28 : vector<1x12x8xbf16> to vector<12x8xbf16>
    %cst_38 = arith.constant dense<0.000000e+00> : vector<256x8xf32>
    %30 = tpu.matmul %27, %29, %cst_38 {dimension_numbers = #tpu.dot_dimension_numbers<[1], [0], [0], [1], [0, 0, 1, 1], [], []>} : vector<256x12xbf16>, vector<12x8xbf16>, vector<256x8xf32> -> vector<256x8xf32>
    %31 = arith.addf %25, %30 : vector<256x8xf32>
    %32 = vector.shape_cast %31 : vector<256x8xf32> to vector<16x16x8xf32>
    %33 = arith.truncf %32 : vector<16x16x8xf32> to vector<16x16x8xbf16>
    %c0_39 = arith.constant 0 : index
    %c0_40 = arith.constant 0 : index
    %c0_41 = arith.constant 0 : index
    %c0_42 = arith.constant 0 : index
    %34 = vector.load %arg4[%c0_39, %c0_40, %c0_41, %c0_42] : memref<1x16x16x8xbf16, #tpu.memory_space<vmem>>, vector<1x16x16x8xbf16>
    %35 = vector.shape_cast %34 : vector<1x16x16x8xbf16> to vector<16x16x8xbf16>
    %36 = vector.shape_cast %33 : vector<16x16x8xbf16> to vector<1x16x16x8xbf16>
    tpu.vector_store %arg4[%c0_39, %c0_40, %c0_41, %c0_42], %36 {strides = array<i32>} : memref<1x16x16x8xbf16, #tpu.memory_space<vmem>>, vector<1x16x16x8xbf16>,
    %cst_43 = arith.constant dense<0.000000e+00> : vector<8xf32>
    %37 = vector.multi_reduction <add>, %31, %cst_43 [0] : vector<256x8xf32> to vector<8xf32>
    %38 = vector.shape_cast %37 : vector<8xf32> to vector<1x8xf32>
    %c0_44 = arith.constant 0 : index
    %c0_45 = arith.constant 0 : index
    %c0_46 = arith.constant 0 : index
    %39 = vector.load %arg5[%c0_44, %c0_45, %c0_46] : memref<1x2x8xf32, #tpu.memory_space<vmem>>, vector<1x1x8xf32>
    %40 = vector.shape_cast %39 : vector<1x1x8xf32> to vector<1x8xf32>
    %41 = vector.shape_cast %38 : vector<1x8xf32> to vector<1x1x8xf32>
    tpu.vector_store %arg5[%c0_44, %c0_45, %c0_46], %41 {strides = array<i32>} : memref<1x2x8xf32, #tpu.memory_space<vmem>>, vector<1x1x8xf32>,
    %42 = arith.mulf %31, %31 : vector<256x8xf32>
    %cst_47 = arith.constant dense<0.000000e+00> : vector<8xf32>
    %43 = vector.multi_reduction <add>, %42, %cst_47 [0] : vector<256x8xf32> to vector<8xf32>
    %44 = vector.shape_cast %43 : vector<8xf32> to vector<1x8xf32>
    %c0_48 = arith.constant 0 : index
    %c1_49 = arith.constant 1 : index
    %c0_50 = arith.constant 0 : index
    %45 = vector.load %arg5[%c0_48, %c1_49, %c0_50] : memref<1x2x8xf32, #tpu.memory_space<vmem>>, vector<1x1x8xf32>
    %46 = vector.shape_cast %45 : vector<1x1x8xf32> to vector<1x8xf32>
    %47 = vector.shape_cast %44 : vector<1x8xf32> to vector<1x1x8xf32>
    tpu.vector_store %arg5[%c0_48, %c1_49, %c0_50], %47 {strides = array<i32>} : memref<1x2x8xf32, #tpu.memory_space<vmem>>, vector<1x1x8xf32>,
    %48 = vector.shape_cast %1 : vector<16x16x4xbf16> to vector<256x4xbf16>
    %c0_51 = arith.constant 0 : index
    %c0_52 = arith.constant 0 : index
    %49 = vector.load %arg3[%c0_51, %c0_52] : memref<4x8xbf16, #tpu.memory_space<vmem>>, vector<4x8xbf16>
    %cst_53 = arith.constant dense<0.000000e+00> : vector<256x8xf32>
    %50 = tpu.matmul %48, %49, %cst_53 {dimension_numbers = #tpu.dot_dimension_numbers<[1], [0], [0], [1], [0, 0, 1, 1], [], []>} : vector<256x4xbf16>, vector<4x8xbf16>, vector<256x8xf32> -> vector<256x8xf32>
    %51 = vector.shape_cast %50 : vector<256x8xf32> to vector<16x16x8xf32>
    %52 = arith.truncf %51 : vector<16x16x8xf32> to vector<16x16x8xbf16>
    %c0_54 = arith.constant 0 : index
    %c0_55 = arith.constant 0 : index
    %c0_56 = arith.constant 0 : index
    %c0_57 = arith.constant 0 : index
    %53 = vector.load %arg6[%c0_54, %c0_55, %c0_56, %c0_57] : memref<1x16x16x8xbf16, #tpu.memory_space<vmem>>, vector<1x16x16x8xbf16>
    %54 = vector.shape_cast %53 : vector<1x16x16x8xbf16> to vector<16x16x8xbf16>
    %55 = vector.shape_cast %52 : vector<16x16x8xbf16> to vector<1x16x16x8xbf16>
    tpu.vector_store %arg6[%c0_54, %c0_55, %c0_56, %c0_57], %55 {strides = array<i32>} : memref<1x16x16x8xbf16, #tpu.memory_space<vmem>>, vector<1x16x16x8xbf16>,
    %cst_58 = arith.constant dense<0.000000e+00> : vector<8xf32>
    %56 = vector.multi_reduction <add>, %50, %cst_58 [0] : vector<256x8xf32> to vector<8xf32>
    %57 = vector.shape_cast %56 : vector<8xf32> to vector<1x8xf32>
    %c0_59 = arith.constant 0 : index
    %c0_60 = arith.constant 0 : index
    %c0_61 = arith.constant 0 : index
    %58 = vector.load %arg7[%c0_59, %c0_60, %c0_61] : memref<1x2x8xf32, #tpu.memory_space<vmem>>, vector<1x1x8xf32>
    %59 = vector.shape_cast %58 : vector<1x1x8xf32> to vector<1x8xf32>
    %60 = vector.shape_cast %57 : vector<1x8xf32> to vector<1x1x8xf32>
    tpu.vector_store %arg7[%c0_59, %c0_60, %c0_61], %60 {strides = array<i32>} : memref<1x2x8xf32, #tpu.memory_space<vmem>>, vector<1x1x8xf32>,
    %61 = arith.mulf %50, %50 : vector<256x8xf32>
    %cst_62 = arith.constant dense<0.000000e+00> : vector<8xf32>
    %62 = vector.multi_reduction <add>, %61, %cst_62 [0] : vector<256x8xf32> to vector<8xf32>
    %63 = vector.shape_cast %62 : vector<8xf32> to vector<1x8xf32>
    %c0_63 = arith.constant 0 : index
    %c1_64 = arith.constant 1 : index
    %c0_65 = arith.constant 0 : index
    %64 = vector.load %arg7[%c0_63, %c1_64, %c0_65] : memref<1x2x8xf32, #tpu.memory_space<vmem>>, vector<1x1x8xf32>
    %65 = vector.shape_cast %64 : vector<1x1x8xf32> to vector<1x8xf32>
    %66 = vector.shape_cast %63 : vector<1x8xf32> to vector<1x1x8xf32>
    tpu.vector_store %arg7[%c0_63, %c1_64, %c0_65], %66 {strides = array<i32>} : memref<1x2x8xf32, #tpu.memory_space<vmem>>, vector<1x1x8xf32>,
    return
  }
  func.func @transform_0(%arg0: i32) -> (i32, i32, i32, i32) {
    %c0_i32 = arith.constant 0 : i32
    %c0_i32_0 = arith.constant 0 : i32
    %c0_i32_1 = arith.constant 0 : i32
    %c0_i32_2 = arith.constant 0 : i32
    return %arg0, %c0_i32, %c0_i32_0, %c0_i32_1 : i32, i32, i32, i32
  }
  func.func @transform_1(%arg0: i32) -> (i32, i32, i32) {
    %c0_i32 = arith.constant 0 : i32
    %c0_i32_0 = arith.constant 0 : i32
    %c0_i32_1 = arith.constant 0 : i32
    %c0_i32_2 = arith.constant 0 : i32
    return %c0_i32, %c0_i32_0, %c0_i32_1 : i32, i32, i32
  }
  func.func @transform_2(%arg0: i32) -> (i32, i32) {
    %c0_i32 = arith.constant 0 : i32
    %c0_i32_0 = arith.constant 0 : i32
    %c0_i32_1 = arith.constant 0 : i32
    return %c0_i32, %c0_i32_0 : i32, i32
  }
  func.func @transform_3(%arg0: i32) -> (i32, i32, i32, i32) {
    %c0_i32 = arith.constant 0 : i32
    %c0_i32_0 = arith.constant 0 : i32
    %c0_i32_1 = arith.constant 0 : i32
    %c0_i32_2 = arith.constant 0 : i32
    return %arg0, %c0_i32, %c0_i32_0, %c0_i32_1 : i32, i32, i32, i32
  }
  func.func @transform_4(%arg0: i32) -> (i32, i32, i32) {
    %c0_i32 = arith.constant 0 : i32
    %c0_i32_0 = arith.constant 0 : i32
    %c0_i32_1 = arith.constant 0 : i32
    return %arg0, %c0_i32, %c0_i32_0 : i32, i32, i32
  }
  func.func @transform_5(%arg0: i32) -> (i32, i32, i32, i32) {
    %c0_i32 = arith.constant 0 : i32
    %c0_i32_0 = arith.constant 0 : i32
    %c0_i32_1 = arith.constant 0 : i32
    %c0_i32_2 = arith.constant 0 : i32
    return %arg0, %c0_i32, %c0_i32_0, %c0_i32_1 : i32, i32, i32, i32
  }
  func.func @transform_6(%arg0: i32) -> (i32, i32, i32) {
    %c0_i32 = arith.constant 0 : i32
    %c0_i32_0 = arith.constant 0 : i32
    %c0_i32_1 = arith.constant 0 : i32
    return %arg0, %c0_i32, %c0_i32_0 : i32, i32, i32
  }
}

module attributes {stable_mosaic.version = 11 : i64} {
  func.func @_bn_add_relu_kernel(%arg0: i32, %arg1: memref<512x8xbf16, #tpu.memory_space<vmem>>, %arg2: memref<512x8xbf16, #tpu.memory_space<vmem>>, %arg3: memref<1x8xf32, #tpu.memory_space<vmem>>, %arg4: memref<1x8xf32, #tpu.memory_space<vmem>>, %arg5: memref<1x8xf32, #tpu.memory_space<vmem>>, %arg6: memref<1x8xf32, #tpu.memory_space<vmem>>, %arg7: memref<512x8xf32, #tpu.memory_space<vmem>>) attributes {dimension_semantics = [#tpu.dimension_semantics<parallel>], iteration_bounds = array<i64: 1>, scalar_prefetch = 0 : i64, scratch_operands = 0 : i64, tpu.core_type = #tpu.core_type<tc>, window_params = [{transform_indices = @transform_0, window_bounds = array<i64: 512, 8>}, {transform_indices = @transform_1, window_bounds = array<i64: 512, 8>}, {pipeline_mode = #tpu.pipeline_mode<synchronous>, transform_indices = @transform_2, window_bounds = array<i64: 1, 8>}, {pipeline_mode = #tpu.pipeline_mode<synchronous>, transform_indices = @transform_3, window_bounds = array<i64: 1, 8>}, {pipeline_mode = #tpu.pipeline_mode<synchronous>, transform_indices = @transform_4, window_bounds = array<i64: 1, 8>}, {pipeline_mode = #tpu.pipeline_mode<synchronous>, transform_indices = @transform_5, window_bounds = array<i64: 1, 8>}, {transform_indices = @transform_6, window_bounds = array<i64: 512, 8>}]} {
    %c0 = arith.constant 0 : index
    %c0_0 = arith.constant 0 : index
    %0 = vector.load %arg1[%c0, %c0_0] : memref<512x8xbf16, #tpu.memory_space<vmem>>, vector<512x8xbf16>
    %1 = arith.extf %0 : vector<512x8xbf16> to vector<512x8xf32>
    %c0_1 = arith.constant 0 : index
    %c0_2 = arith.constant 0 : index
    %2 = vector.load %arg2[%c0_1, %c0_2] : memref<512x8xbf16, #tpu.memory_space<vmem>>, vector<512x8xbf16>
    %3 = arith.extf %2 : vector<512x8xbf16> to vector<512x8xf32>
    %c0_3 = arith.constant 0 : index
    %c0_4 = arith.constant 0 : index
    %4 = vector.load %arg3[%c0_3, %c0_4] : memref<1x8xf32, #tpu.memory_space<vmem>>, vector<1x8xf32>
    %5 = vector.broadcast %4 : vector<1x8xf32> to vector<512x8xf32>
    %6 = arith.mulf %1, %5 : vector<512x8xf32>
    %c0_5 = arith.constant 0 : index
    %c0_6 = arith.constant 0 : index
    %7 = vector.load %arg4[%c0_5, %c0_6] : memref<1x8xf32, #tpu.memory_space<vmem>>, vector<1x8xf32>
    %8 = vector.broadcast %7 : vector<1x8xf32> to vector<512x8xf32>
    %9 = arith.addf %6, %8 : vector<512x8xf32>
    %c0_7 = arith.constant 0 : index
    %c0_8 = arith.constant 0 : index
    %10 = vector.load %arg5[%c0_7, %c0_8] : memref<1x8xf32, #tpu.memory_space<vmem>>, vector<1x8xf32>
    %11 = vector.broadcast %10 : vector<1x8xf32> to vector<512x8xf32>
    %12 = arith.mulf %3, %11 : vector<512x8xf32>
    %13 = arith.addf %9, %12 : vector<512x8xf32>
    %c0_9 = arith.constant 0 : index
    %c0_10 = arith.constant 0 : index
    %14 = vector.load %arg6[%c0_9, %c0_10] : memref<1x8xf32, #tpu.memory_space<vmem>>, vector<1x8xf32>
    %15 = vector.broadcast %14 : vector<1x8xf32> to vector<512x8xf32>
    %16 = arith.addf %13, %15 : vector<512x8xf32>
    %cst = arith.constant 0.000000e+00 : f32
    %17 = vector.broadcast %cst : f32 to vector<512x8xf32>
    %18 = arith.maximumf %16, %17 : vector<512x8xf32>
    %c0_11 = arith.constant 0 : index
    %c0_12 = arith.constant 0 : index
    %19 = vector.load %arg7[%c0_11, %c0_12] : memref<512x8xf32, #tpu.memory_space<vmem>>, vector<512x8xf32>
    tpu.vector_store %arg7[%c0_11, %c0_12], %18 {strides = array<i32>} : memref<512x8xf32, #tpu.memory_space<vmem>>, vector<512x8xf32>,
    return
  }
  func.func @transform_0(%arg0: i32) -> (i32, i32) {
    %c0_i32 = arith.constant 0 : i32
    %c0_i32_0 = arith.constant 0 : i32
    return %arg0, %c0_i32 : i32, i32
  }
  func.func @transform_1(%arg0: i32) -> (i32, i32) {
    %c0_i32 = arith.constant 0 : i32
    %c0_i32_0 = arith.constant 0 : i32
    return %arg0, %c0_i32 : i32, i32
  }
  func.func @transform_2(%arg0: i32) -> (i32, i32) {
    %c0_i32 = arith.constant 0 : i32
    %c0_i32_0 = arith.constant 0 : i32
    %c0_i32_1 = arith.constant 0 : i32
    return %c0_i32, %c0_i32_0 : i32, i32
  }
  func.func @transform_3(%arg0: i32) -> (i32, i32) {
    %c0_i32 = arith.constant 0 : i32
    %c0_i32_0 = arith.constant 0 : i32
    %c0_i32_1 = arith.constant 0 : i32
    return %c0_i32, %c0_i32_0 : i32, i32
  }
  func.func @transform_4(%arg0: i32) -> (i32, i32) {
    %c0_i32 = arith.constant 0 : i32
    %c0_i32_0 = arith.constant 0 : i32
    %c0_i32_1 = arith.constant 0 : i32
    return %c0_i32, %c0_i32_0 : i32, i32
  }
  func.func @transform_5(%arg0: i32) -> (i32, i32) {
    %c0_i32 = arith.constant 0 : i32
    %c0_i32_0 = arith.constant 0 : i32
    %c0_i32_1 = arith.constant 0 : i32
    return %c0_i32, %c0_i32_0 : i32, i32
  }
  func.func @transform_6(%arg0: i32) -> (i32, i32) {
    %c0_i32 = arith.constant 0 : i32
    %c0_i32_0 = arith.constant 0 : i32
    return %arg0, %c0_i32 : i32, i32
  }
}

</mosaic_0001>

<llo_original>
// kernel: basic_block.5
$region0: #{basic_block.5}
  #allocation0 [shape = 'u32[]', space=smem, size = 0x4, offset = 0x4, fixed_abs, tag = 'smem constant byte address 0x4 - core index']
  #allocation1 [shape = 'u32[144,128]{1,0:T(1,128)}', space=vmem, size = 0x12000, scoped, tag = 'internal scratch']
  %s0 = inlined_call_operand.vmem [shape: bf16[512,8], index: 0, kind: input, shape index: {}]
  %s1 = inlined_call_operand.vmem [shape: bf16[512,8], index: 1, kind: input, shape index: {}]
  %s2 = inlined_call_operand.vmem [shape: f32[1,8], index: 2, kind: input, shape index: {}]
  %s3 = inlined_call_operand.vmem [shape: f32[1,8], index: 3, kind: input, shape index: {}]
  %s4 = inlined_call_operand.vmem [shape: f32[1,8], index: 4, kind: input, shape index: {}]
  %s5 = inlined_call_operand.vmem [shape: f32[1,8], index: 5, kind: input, shape index: {}]
  %s6 = inlined_call_operand.vmem [shape: f32[512,8], index: 6, kind: output, shape index: {}]
  %s7 = sld [smem:[#allocation0]]
  $region34: #{basic_block.5} parent=0
    _
  %s9 = ssub.s32 1, %s7
  %s10 = scalar_select 0, %s9, %s7
  // Predicated region
  $region2: #{basic_block.5} parent=0 // pred_check
    _
  $region3: #{basic_block.5} parent=0 // pred_check_branch
    %12 = sbr.rel (0) target = $region5
  $region4: #{basic_block.5} parent=0 // pred_region
    _
  $region5: #{basic_block.5} parent=0 // pred_fallthru
    _
  // Predicated region
  $region6: #{basic_block.5} parent=0 // pred_check
    _
  $region7: #{basic_block.5} parent=0 // pred_check_branch
    %14 = sbr.rel (0) target = $region9
  $region8: #{basic_block.5} parent=0 // pred_region
    _
  $region9: #{basic_block.5} parent=0 // pred_fallthru
    _
  // Predicated region
  $region10: #{basic_block.5} parent=0 // pred_check
    _
  $region11: #{basic_block.5} parent=0 // pred_check_branch
    %16 = sbr.rel (0) target = $region13
  $region12: #{basic_block.5} parent=0 // pred_region
    _
  $region13: #{basic_block.5} parent=0 // pred_fallthru
    _
  // Predicated region
  $region14: #{basic_block.5} parent=0 // pred_check
    _
  $region15: #{basic_block.5} parent=0 // pred_check_branch
    %18 = sbr.rel (0) target = $region17
  $region16: #{basic_block.5} parent=0 // pred_region
    _
  $region17: #{basic_block.5} parent=0 // pred_fallthru
    _
  // Predicated region
  $region18: #{basic_block.5} parent=0 // pred_check
    _
  $region19: #{basic_block.5} parent=0 // pred_check_branch
    %20 = sbr.rel (0) target = $region21
  $region20: #{basic_block.5} parent=0 // pred_region
    _
  $region21: #{basic_block.5} parent=0 // pred_fallthru
    _
  // Predicated region
  $region22: #{basic_block.5} parent=0 // pred_check
    _
  $region23: #{basic_block.5} parent=0 // pred_check_branch
    %22 = sbr.rel (0) target = $region25
  $region24: #{basic_block.5} parent=0 // pred_region
    _
  $region25: #{basic_block.5} parent=0 // pred_fallthru
    _
  %v23 = vld [vmem:[%s0] sm:$0xf]
  %v24 = vld [vmem:[%s0 + $0x4] sm:$0xf]
  %v25 = vld [vmem:[%s0 + $0x8] sm:$0xf]
  %v26 = vld [vmem:[%s0 + $0xc] sm:$0xf]
  %v27 = vld [vmem:[%s0 + $0x10] sm:$0xf]
  %v28 = vld [vmem:[%s0 + $0x14] sm:$0xf]
  %v29 = vld [vmem:[%s0 + $0x18] sm:$0xf]
  %v30 = vld [vmem:[%s0 + $0x1c] sm:$0xf]
  %v31 = vld [vmem:[%s0 + $0x20] sm:$0xf]
  %v32 = vld [vmem:[%s0 + $0x24] sm:$0xf]
  %v33 = vld [vmem:[%s0 + $0x28] sm:$0xf]
  %v34 = vld [vmem:[%s0 + $0x2c] sm:$0xf]
  %v35 = vld [vmem:[%s0 + $0x30] sm:$0xf]
  %v36 = vld [vmem:[%s0 + $0x34] sm:$0xf]
  %v37 = vld [vmem:[%s0 + $0x38] sm:$0xf]
  %v38 = vld [vmem:[%s0 + $0x3c] sm:$0xf]
  %v39 = vld [vmem:[%s0 + $0x40] sm:$0xf]
  %v40 = vld [vmem:[%s0 + $0x44] sm:$0xf]
  %v41 = vld [vmem:[%s0 + $0x48] sm:$0xf]
  %v42 = vld [vmem:[%s0 + $0x4c] sm:$0xf]
  %v43 = vld [vmem:[%s0 + $0x50] sm:$0xf]
  %v44 = vld [vmem:[%s0 + $0x54] sm:$0xf]
  %v45 = vld [vmem:[%s0 + $0x58] sm:$0xf]
  %v46 = vld [vmem:[%s0 + $0x5c] sm:$0xf]
  %v47 = vld [vmem:[%s0 + $0x60] sm:$0xf]
  %v48 = vld [vmem:[%s0 + $0x64] sm:$0xf]
  %v49 = vld [vmem:[%s0 + $0x68] sm:$0xf]
  %v50 = vld [vmem:[%s0 + $0x6c] sm:$0xf]
  %v51 = vld [vmem:[%s0 + $0x70] sm:$0xf]
  %v52 = vld [vmem:[%s0 + $0x74] sm:$0xf]
  %v53 = vld [vmem:[%s0 + $0x78] sm:$0xf]
  %v54 = vld [vmem:[%s0 + $0x7c] sm:$0xf]
  %v55 = vld [vmem:[%s0 + $0x80] sm:$0xf]
  %v56 = vld [vmem:[%s0 + $0x84] sm:$0xf]
  %v57 = vld [vmem:[%s0 + $0x88] sm:$0xf]
  %v58 = vld [vmem:[%s0 + $0x8c] sm:$0xf]
  %v59 = vld [vmem:[%s0 + $0x90] sm:$0xf]
  %v60 = vld [vmem:[%s0 + $0x94] sm:$0xf]
  %v61 = vld [vmem:[%s0 + $0x98] sm:$0xf]
  %v62 = vld [vmem:[%s0 + $0x9c] sm:$0xf]
  %v63 = vld [vmem:[%s0 + $0xa0] sm:$0xf]
  %v64 = vld [vmem:[%s0 + $0xa4] sm:$0xf]
  %v65 = vld [vmem:[%s0 + $0xa8] sm:$0xf]
  %v66 = vld [vmem:[%s0 + $0xac] sm:$0xf]
  %v67 = vld [vmem:[%s0 + $0xb0] sm:$0xf]
  %v68 = vld [vmem:[%s0 + $0xb4] sm:$0xf]
  %v69 = vld [vmem:[%s0 + $0xb8] sm:$0xf]
  %v70 = vld [vmem:[%s0 + $0xbc] sm:$0xf]
  %v71 = vld [vmem:[%s0 + $0xc0] sm:$0xf]
  %v72 = vld [vmem:[%s0 + $0xc4] sm:$0xf]
  %v73 = vld [vmem:[%s0 + $0xc8] sm:$0xf]
  %v74 = vld [vmem:[%s0 + $0xcc] sm:$0xf]
  %v75 = vld [vmem:[%s0 + $0xd0] sm:$0xf]
  %v76 = vld [vmem:[%s0 + $0xd4] sm:$0xf]
  %v77 = vld [vmem:[%s0 + $0xd8] sm:$0xf]
  %v78 = vld [vmem:[%s0 + $0xdc] sm:$0xf]
  %v79 = vld [vmem:[%s0 + $0xe0] sm:$0xf]
  %v80 = vld [vmem:[%s0 + $0xe4] sm:$0xf]
  %v81 = vld [vmem:[%s0 + $0xe8] sm:$0xf]
  %v82 = vld [vmem:[%s0 + $0xec] sm:$0xf]
  %v83 = vld [vmem:[%s0 + $0xf0] sm:$0xf]
  %v84 = vld [vmem:[%s0 + $0xf4] sm:$0xf]
  %v85 = vld [vmem:[%s0 + $0xf8] sm:$0xf]
  %v86 = vld [vmem:[%s0 + $0xfc] sm:$0xf]
  %v87 = vunpack.c.l.bf16 %v23
  %v88 = vunpack.c.l.bf16 %v24
  %v89 = vunpack.c.l.bf16 %v25
  %v90 = vunpack.c.l.bf16 %v26
  %v91 = vunpack.c.l.bf16 %v27
  %v92 = vunpack.c.l.bf16 %v28
  %v93 = vunpack.c.l.bf16 %v29
  %v94 = vunpack.c.l.bf16 %v30
  %v95 = vunpack.c.l.bf16 %v31
  %v96 = vunpack.c.l.bf16 %v32
  %v97 = vunpack.c.l.bf16 %v33
  %v98 = vunpack.c.l.bf16 %v34
  %v99 = vunpack.c.l.bf16 %v35
  %v100 = vunpack.c.l.bf16 %v36
  %v101 = vunpack.c.l.bf16 %v37
  %v102 = vunpack.c.l.bf16 %v38
  %v103 = vunpack.c.l.bf16 %v39
  %v104 = vunpack.c.l.bf16 %v40
  %v105 = vunpack.c.l.bf16 %v41
  %v106 = vunpack.c.l.bf16 %v42
  %v107 = vunpack.c.l.bf16 %v43
  %v108 = vunpack.c.l.bf16 %v44
  %v109 = vunpack.c.l.bf16 %v45
  %v110 = vunpack.c.l.bf16 %v46
  %v111 = vunpack.c.l.bf16 %v47
  %v112 = vunpack.c.l.bf16 %v48
  %v113 = vunpack.c.l.bf16 %v49
  %v114 = vunpack.c.l.bf16 %v50
  %v115 = vunpack.c.l.bf16 %v51
  %v116 = vunpack.c.l.bf16 %v52
  %v117 = vunpack.c.l.bf16 %v53
  %v118 = vunpack.c.l.bf16 %v54
  %v119 = vunpack.c.l.bf16 %v55
  %v120 = vunpack.c.l.bf16 %v56
  %v121 = vunpack.c.l.bf16 %v57
  %v122 = vunpack.c.l.bf16 %v58
  %v123 = vunpack.c.l.bf16 %v59
  %v124 = vunpack.c.l.bf16 %v60
  %v125 = vunpack.c.l.bf16 %v61
  %v126 = vunpack.c.l.bf16 %v62
  %v127 = vunpack.c.l.bf16 %v63
  %v128 = vunpack.c.l.bf16 %v64
  %v129 = vunpack.c.l.bf16 %v65
  %v130 = vunpack.c.l.bf16 %v66
  %v131 = vunpack.c.l.bf16 %v67
  %v132 = vunpack.c.l.bf16 %v68
  %v133 = vunpack.c.l.bf16 %v69
  %v134 = vunpack.c.l.bf16 %v70
  %v135 = vunpack.c.l.bf16 %v71
  %v136 = vunpack.c.l.bf16 %v72
  %v137 = vunpack.c.l.bf16 %v73
  %v138 = vunpack.c.l.bf16 %v74
  %v139 = vunpack.c.l.bf16 %v75
  %v140 = vunpack.c.l.bf16 %v76
  %v141 = vunpack.c.l.bf16 %v77
  %v142 = vunpack.c.l.bf16 %v78
  %v143 = vunpack.c.l.bf16 %v79
  %v144 = vunpack.c.l.bf16 %v80
  %v145 = vunpack.c.l.bf16 %v81
  %v146 = vunpack.c.l.bf16 %v82
  %v147 = vunpack.c.l.bf16 %v83
  %v148 = vunpack.c.l.bf16 %v84
  %v149 = vunpack.c.l.bf16 %v85
  %v150 = vunpack.c.l.bf16 %v86
  %v151 = vld [vmem:[%s1] sm:$0xf]
  %v152 = vld [vmem:[%s1 + $0x4] sm:$0xf]
  %v153 = vld [vmem:[%s1 + $0x8] sm:$0xf]
  %v154 = vld [vmem:[%s1 + $0xc] sm:$0xf]
  %v155 = vld [vmem:[%s1 + $0x10] sm:$0xf]
  %v156 = vld [vmem:[%s1 + $0x14] sm:$0xf]
  %v157 = vld [vmem:[%s1 + $0x18] sm:$0xf]
  %v158 = vld [vmem:[%s1 + $0x1c] sm:$0xf]
  %v159 = vld [vmem:[%s1 + $0x20] sm:$0xf]
  %v160 = vld [vmem:[%s1 + $0x24] sm:$0xf]
  %v161 = vld [vmem:[%s1 + $0x28] sm:$0xf]
  %v162 = vld [vmem:[%s1 + $0x2c] sm:$0xf]
  %v163 = vld [vmem:[%s1 + $0x30] sm:$0xf]
  %v164 = vld [vmem:[%s1 + $0x34] sm:$0xf]
  %v165 = vld [vmem:[%s1 + $0x38] sm:$0xf]
  %v166 = vld [vmem:[%s1 + $0x3c] sm:$0xf]
  %v167 = vld [vmem:[%s1 + $0x40] sm:$0xf]
  %v168 = vld [vmem:[%s1 + $0x44] sm:$0xf]
  %v169 = vld [vmem:[%s1 + $0x48] sm:$0xf]
  %v170 = vld [vmem:[%s1 + $0x4c] sm:$0xf]
  %v171 = vld [vmem:[%s1 + $0x50] sm:$0xf]
  %v172 = vld [vmem:[%s1 + $0x54] sm:$0xf]
  %v173 = vld [vmem:[%s1 + $0x58] sm:$0xf]
  %v174 = vld [vmem:[%s1 + $0x5c] sm:$0xf]
  %v175 = vld [vmem:[%s1 + $0x60] sm:$0xf]
  %v176 = vld [vmem:[%s1 + $0x64] sm:$0xf]
  %v177 = vld [vmem:[%s1 + $0x68] sm:$0xf]
  %v178 = vld [vmem:[%s1 + $0x6c] sm:$0xf]
  %v179 = vld [vmem:[%s1 + $0x70] sm:$0xf]
  %v180 = vld [vmem:[%s1 + $0x74] sm:$0xf]
  %v181 = vld [vmem:[%s1 + $0x78] sm:$0xf]
  %v182 = vld [vmem:[%s1 + $0x7c] sm:$0xf]
  %v183 = vld [vmem:[%s1 + $0x80] sm:$0xf]
  %v184 = vld [vmem:[%s1 + $0x84] sm:$0xf]
  %v185 = vld [vmem:[%s1 + $0x88] sm:$0xf]
  %v186 = vld [vmem:[%s1 + $0x8c] sm:$0xf]
  %v187 = vld [vmem:[%s1 + $0x90] sm:$0xf]
  %v188 = vld [vmem:[%s1 + $0x94] sm:$0xf]
  %v189 = vld [vmem:[%s1 + $0x98] sm:$0xf]
  %v190 = vld [vmem:[%s1 + $0x9c] sm:$0xf]
  %v191 = vld [vmem:[%s1 + $0xa0] sm:$0xf]
  %v192 = vld [vmem:[%s1 + $0xa4] sm:$0xf]
  %v193 = vld [vmem:[%s1 + $0xa8] sm:$0xf]
  %v194 = vld [vmem:[%s1 + $0xac] sm:$0xf]
  %v195 = vld [vmem:[%s1 + $0xb0] sm:$0xf]
  %v196 = vld [vmem:[%s1 + $0xb4] sm:$0xf]
  %v197 = vld [vmem:[%s1 + $0xb8] sm:$0xf]
  %v198 = vld [vmem:[%s1 + $0xbc] sm:$0xf]
  %v199 = vld [vmem:[%s1 + $0xc0] sm:$0xf]
  %v200 = vld [vmem:[%s1 + $0xc4] sm:$0xf]
  %v201 = vld [vmem:[%s1 + $0xc8] sm:$0xf]
  %v202 = vld [vmem:[%s1 + $0xcc] sm:$0xf]
  %v203 = vld [vmem:[%s1 + $0xd0] sm:$0xf]
  %v204 = vld [vmem:[%s1 + $0xd4] sm:$0xf]
  %v205 = vld [vmem:[%s1 + $0xd8] sm:$0xf]
  %v206 = vld [vmem:[%s1 + $0xdc] sm:$0xf]
  %v207 = vld [vmem:[%s1 + $0xe0] sm:$0xf]
  %v208 = vld [vmem:[%s1 + $0xe4] sm:$0xf]
  %v209 = vld [vmem:[%s1 + $0xe8] sm:$0xf]
  %v210 = vld [vmem:[%s1 + $0xec] sm:$0xf]
  %v211 = vld [vmem:[%s1 + $0xf0] sm:$0xf]
  %v212 = vld [vmem:[%s1 + $0xf4] sm:$0xf]
  %v213 = vld [vmem:[%s1 + $0xf8] sm:$0xf]
  %v214 = vld [vmem:[%s1 + $0xfc] sm:$0xf]
  %v215 = vunpack.c.l.bf16 %v151
  %v216 = vunpack.c.l.bf16 %v152
  %v217 = vunpack.c.l.bf16 %v153
  %v218 = vunpack.c.l.bf16 %v154
  %v219 = vunpack.c.l.bf16 %v155
  %v220 = vunpack.c.l.bf16 %v156
  %v221 = vunpack.c.l.bf16 %v157
  %v222 = vunpack.c.l.bf16 %v158
  %v223 = vunpack.c.l.bf16 %v159
  %v224 = vunpack.c.l.bf16 %v160
  %v225 = vunpack.c.l.bf16 %v161
  %v226 = vunpack.c.l.bf16 %v162
  %v227 = vunpack.c.l.bf16 %v163
  %v228 = vunpack.c.l.bf16 %v164
  %v229 = vunpack.c.l.bf16 %v165
  %v230 = vunpack.c.l.bf16 %v166
  %v231 = vunpack.c.l.bf16 %v167
  %v232 = vunpack.c.l.bf16 %v168
  %v233 = vunpack.c.l.bf16 %v169
  %v234 = vunpack.c.l.bf16 %v170
  %v235 = vunpack.c.l.bf16 %v171
  %v236 = vunpack.c.l.bf16 %v172
  %v237 = vunpack.c.l.bf16 %v173
  %v238 = vunpack.c.l.bf16 %v174
  %v239 = vunpack.c.l.bf16 %v175
  %v240 = vunpack.c.l.bf16 %v176
  %v241 = vunpack.c.l.bf16 %v177
  %v242 = vunpack.c.l.bf16 %v178
  %v243 = vunpack.c.l.bf16 %v179
  %v244 = vunpack.c.l.bf16 %v180
  %v245 = vunpack.c.l.bf16 %v181
  %v246 = vunpack.c.l.bf16 %v182
  %v247 = vunpack.c.l.bf16 %v183
  %v248 = vunpack.c.l.bf16 %v184
  %v249 = vunpack.c.l.bf16 %v185
  %v250 = vunpack.c.l.bf16 %v186
  %v251 = vunpack.c.l.bf16 %v187
  %v252 = vunpack.c.l.bf16 %v188
  %v253 = vunpack.c.l.bf16 %v189
  %v254 = vunpack.c.l.bf16 %v190
  %v255 = vunpack.c.l.bf16 %v191
  %v256 = vunpack.c.l.bf16 %v192
  %v257 = vunpack.c.l.bf16 %v193
  %v258 = vunpack.c.l.bf16 %v194
  %v259 = vunpack.c.l.bf16 %v195
  %v260 = vunpack.c.l.bf16 %v196
  %v261 = vunpack.c.l.bf16 %v197
  %v262 = vunpack.c.l.bf16 %v198
  %v263 = vunpack.c.l.bf16 %v199
  %v264 = vunpack.c.l.bf16 %v200
  %v265 = vunpack.c.l.bf16 %v201
  %v266 = vunpack.c.l.bf16 %v202
  %v267 = vunpack.c.l.bf16 %v203
  %v268 = vunpack.c.l.bf16 %v204
  %v269 = vunpack.c.l.bf16 %v205
  %v270 = vunpack.c.l.bf16 %v206
  %v271 = vunpack.c.l.bf16 %v207
  %v272 = vunpack.c.l.bf16 %v208
  %v273 = vunpack.c.l.bf16 %v209
  %v274 = vunpack.c.l.bf16 %v210
  %v275 = vunpack.c.l.bf16 %v211
  %v276 = vunpack.c.l.bf16 %v212
  %v277 = vunpack.c.l.bf16 %v213
  %v278 = vunpack.c.l.bf16 %v214
  %v279 = vld [vmem:[%s2] sm:$0x1]
  %v281 = vlaneseq
  %v282 = vshrl.u32 %v281, 7
  %v283 = vsub.s32 0, %v282
  %v284 = vrot.slane %v279, %v283
  %v286 = vmul.f32 %v87, %v284
  %v287 = vmul.f32 %v88, %v284
  %v288 = vmul.f32 %v89, %v284
  %v289 = vmul.f32 %v90, %v284
  %v290 = vmul.f32 %v91, %v284
  %v291 = vmul.f32 %v92, %v284
  %v292 = vmul.f32 %v93, %v284
  %v293 = vmul.f32 %v94, %v284
  %v294 = vmul.f32 %v95, %v284
  %v295 = vmul.f32 %v96, %v284
  %v296 = vmul.f32 %v97, %v284
  %v297 = vmul.f32 %v98, %v284
  %v298 = vmul.f32 %v99, %v284
  %v299 = vmul.f32 %v100, %v284
  %v300 = vmul.f32 %v101, %v284
  %v301 = vmul.f32 %v102, %v284
  %v302 = vmul.f32 %v103, %v284
  %v303 = vmul.f32 %v104, %v284
  %v304 = vmul.f32 %v105, %v284
  %v305 = vmul.f32 %v106, %v284
  %v306 = vmul.f32 %v107, %v284
  %v307 = vmul.f32 %v108, %v284
  %v308 = vmul.f32 %v109, %v284
  %v309 = vmul.f32 %v110, %v284
  %v310 = vmul.f32 %v111, %v284
  %v311 = vmul.f32 %v112, %v284
  %v312 = vmul.f32 %v113, %v284
  %v313 = vmul.f32 %v114, %v284
  %v314 = vmul.f32 %v115, %v284
  %v315 = vmul.f32 %v116, %v284
  %v316 = vmul.f32 %v117, %v284
  %v317 = vmul.f32 %v118, %v284
  %v318 = vmul.f32 %v119, %v284
  %v319 = vmul.f32 %v120, %v284
  %v320 = vmul.f32 %v121, %v284
  %v321 = vmul.f32 %v122, %v284
  %v322 = vmul.f32 %v123, %v284
  %v323 = vmul.f32 %v124, %v284
  %v324 = vmul.f32 %v125, %v284
  %v325 = vmul.f32 %v126, %v284
  %v326 = vmul.f32 %v127, %v284
  %v327 = vmul.f32 %v128, %v284
  %v328 = vmul.f32 %v129, %v284
  %v329 = vmul.f32 %v130, %v284
  %v330 = vmul.f32 %v131, %v284
  %v331 = vmul.f32 %v132, %v284
  %v332 = vmul.f32 %v133, %v284
  %v333 = vmul.f32 %v134, %v284
  %v334 = vmul.f32 %v135, %v284
  %v335 = vmul.f32 %v136, %v284
  %v336 = vmul.f32 %v137, %v284
  %v337 = vmul.f32 %v138, %v284
  %v338 = vmul.f32 %v139, %v284
  %v339 = vmul.f32 %v140, %v284
  %v340 = vmul.f32 %v141, %v284
  %v341 = vmul.f32 %v142, %v284
  %v342 = vmul.f32 %v143, %v284
  %v343 = vmul.f32 %v144, %v284
  %v344 = vmul.f32 %v145, %v284
  %v345 = vmul.f32 %v146, %v284
  %v346 = vmul.f32 %v147, %v284
  %v347 = vmul.f32 %v148, %v284
  %v348 = vmul.f32 %v149, %v284
  %v349 = vmul.f32 %v150, %v284
  %v350 = vld [vmem:[%s3] sm:$0x1]
  %v352 = vlaneseq
  %v353 = vshrl.u32 %v352, 7
  %v354 = vsub.s32 0, %v353
  %v355 = vrot.slane %v350, %v354
  %v357 = vadd.f32 %v286, %v355
  %v358 = vadd.f32 %v287, %v355
  %v359 = vadd.f32 %v288, %v355
  %v360 = vadd.f32 %v289, %v355
  %v361 = vadd.f32 %v290, %v355
  %v362 = vadd.f32 %v291, %v355
  %v363 = vadd.f32 %v292, %v355
  %v364 = vadd.f32 %v293, %v355
  %v365 = vadd.f32 %v294, %v355
  %v366 = vadd.f32 %v295, %v355
  %v367 = vadd.f32 %v296, %v355
  %v368 = vadd.f32 %v297, %v355
  %v369 = vadd.f32 %v298, %v355
  %v370 = vadd.f32 %v299, %v355
  %v371 = vadd.f32 %v300, %v355
  %v372 = vadd.f32 %v301, %v355
  %v373 = vadd.f32 %v302, %v355
  %v374 = vadd.f32 %v303, %v355
  %v375 = vadd.f32 %v304, %v355
  %v376 = vadd.f32 %v305, %v355
  %v377 = vadd.f32 %v306, %v355
  %v378 = vadd.f32 %v307, %v355
  %v379 = vadd.f32 %v308, %v355
  %v380 = vadd.f32 %v309, %v355
  %v381 = vadd.f32 %v310, %v355
  %v382 = vadd.f32 %v311, %v355
  %v383 = vadd.f32 %v312, %v355
  %v384 = vadd.f32 %v313, %v355
  %v385 = vadd.f32 %v314, %v355
  %v386 = vadd.f32 %v315, %v355
  %v387 = vadd.f32 %v316, %v355
  %v388 = vadd.f32 %v317, %v355
  %v389 = vadd.f32 %v318, %v355
  %v390 = vadd.f32 %v319, %v355
  %v391 = vadd.f32 %v320, %v355
  %v392 = vadd.f32 %v321, %v355
  %v393 = vadd.f32 %v322, %v355
  %v394 = vadd.f32 %v323, %v355
  %v395 = vadd.f32 %v324, %v355
  %v396 = vadd.f32 %v325, %v355
  %v397 = vadd.f32 %v326, %v355
  %v398 = vadd.f32 %v327, %v355
  %v399 = vadd.f32 %v328, %v355
  %v400 = vadd.f32 %v329, %v355
  %v401 = vadd.f32 %v330, %v355
  %v402 = vadd.f32 %v331, %v355
  %v403 = vadd.f32 %v332, %v355
  %v404 = vadd.f32 %v333, %v355
  %v405 = vadd.f32 %v334, %v355
  %v406 = vadd.f32 %v335, %v355
  %v407 = vadd.f32 %v336, %v355
  %v408 = vadd.f32 %v337, %v355
  %v409 = vadd.f32 %v338, %v355
  %v410 = vadd.f32 %v339, %v355
  %v411 = vadd.f32 %v340, %v355
  %v412 = vadd.f32 %v341, %v355
  %v413 = vadd.f32 %v342, %v355
  %v414 = vadd.f32 %v343, %v355
  %v415 = vadd.f32 %v344, %v355
  %v416 = vadd.f32 %v345, %v355
  %v417 = vadd.f32 %v346, %v355
  %v418 = vadd.f32 %v347, %v355
  %v419 = vadd.f32 %v348, %v355
  %v420 = vadd.f32 %v349, %v355
  %v421 = vld [vmem:[%s4] sm:$0x1]
  %v423 = vlaneseq
  %v424 = vshrl.u32 %v423, 7
  %v425 = vsub.s32 0, %v424
  %v426 = vrot.slane %v421, %v425
  %v428 = vmul.f32 %v215, %v426
  %v429 = vmul.f32 %v216, %v426
  %v430 = vmul.f32 %v217, %v426
  %v431 = vmul.f32 %v218, %v426
  %v432 = vmul.f32 %v219, %v426
  %v433 = vmul.f32 %v220, %v426
  %v434 = vmul.f32 %v221, %v426
  %v435 = vmul.f32 %v222, %v426
  %v436 = vmul.f32 %v223, %v426
  %v437 = vmul.f32 %v224, %v426
  %v438 = vmul.f32 %v225, %v426
  %v439 = vmul.f32 %v226, %v426
  %v440 = vmul.f32 %v227, %v426
  %v441 = vmul.f32 %v228, %v426
  %v442 = vmul.f32 %v229, %v426
  %v443 = vmul.f32 %v230, %v426
  %v444 = vmul.f32 %v231, %v426
  %v445 = vmul.f32 %v232, %v426
  %v446 = vmul.f32 %v233, %v426
  %v447 = vmul.f32 %v234, %v426
  %v448 = vmul.f32 %v235, %v426
  %v449 = vmul.f32 %v236, %v426
  %v450 = vmul.f32 %v237, %v426
  %v451 = vmul.f32 %v238, %v426
  %v452 = vmul.f32 %v239, %v426
  %v453 = vmul.f32 %v240, %v426
  %v454 = vmul.f32 %v241, %v426
  %v455 = vmul.f32 %v242, %v426
  %v456 = vmul.f32 %v243, %v426
  %v457 = vmul.f32 %v244, %v426
  %v458 = vmul.f32 %v245, %v426
  %v459 = vmul.f32 %v246, %v426
  %v460 = vmul.f32 %v247, %v426
  %v461 = vmul.f32 %v248, %v426
  %v462 = vmul.f32 %v249, %v426
  %v463 = vmul.f32 %v250, %v426
  %v464 = vmul.f32 %v251, %v426
  %v465 = vmul.f32 %v252, %v426
  %v466 = vmul.f32 %v253, %v426
  %v467 = vmul.f32 %v254, %v426
  %v468 = vmul.f32 %v255, %v426
  %v469 = vmul.f32 %v256, %v426
  %v470 = vmul.f32 %v257, %v426
  %v471 = vmul.f32 %v258, %v426
  %v472 = vmul.f32 %v259, %v426
  %v473 = vmul.f32 %v260, %v426
  %v474 = vmul.f32 %v261, %v426
  %v475 = vmul.f32 %v262, %v426
  %v476 = vmul.f32 %v263, %v426
  %v477 = vmul.f32 %v264, %v426
  %v478 = vmul.f32 %v265, %v426
  %v479 = vmul.f32 %v266, %v426
  %v480 = vmul.f32 %v267, %v426
  %v481 = vmul.f32 %v268, %v426
  %v482 = vmul.f32 %v269, %v426
  %v483 = vmul.f32 %v270, %v426
  %v484 = vmul.f32 %v271, %v426
  %v485 = vmul.f32 %v272, %v426
  %v486 = vmul.f32 %v273, %v426
  %v487 = vmul.f32 %v274, %v426
  %v488 = vmul.f32 %v275, %v426
  %v489 = vmul.f32 %v276, %v426
  %v490 = vmul.f32 %v277, %v426
  %v491 = vmul.f32 %v278, %v426
  %v492 = vadd.f32 %v357, %v428
  %v493 = vadd.f32 %v358, %v429
  %v494 = vadd.f32 %v359, %v430
  %v495 = vadd.f32 %v360, %v431
  %v496 = vadd.f32 %v361, %v432
  %v497 = vadd.f32 %v362, %v433
  %v498 = vadd.f32 %v363, %v434
  %v499 = vadd.f32 %v364, %v435
  %v500 = vadd.f32 %v365, %v436
  %v501 = vadd.f32 %v366, %v437
  %v502 = vadd.f32 %v367, %v438
  %v503 = vadd.f32 %v368, %v439
  %v504 = vadd.f32 %v369, %v440
  %v505 = vadd.f32 %v370, %v441
  %v506 = vadd.f32 %v371, %v442
  %v507 = vadd.f32 %v372, %v443
  %v508 = vadd.f32 %v373, %v444
  %v509 = vadd.f32 %v374, %v445
  %v510 = vadd.f32 %v375, %v446
  %v511 = vadd.f32 %v376, %v447
  %v512 = vadd.f32 %v377, %v448
  %v513 = vadd.f32 %v378, %v449
  %v514 = vadd.f32 %v379, %v450
  %v515 = vadd.f32 %v380, %v451
  %v516 = vadd.f32 %v381, %v452
  %v517 = vadd.f32 %v382, %v453
  %v518 = vadd.f32 %v383, %v454
  %v519 = vadd.f32 %v384, %v455
  %v520 = vadd.f32 %v385, %v456
  %v521 = vadd.f32 %v386, %v457
  %v522 = vadd.f32 %v387, %v458
  %v523 = vadd.f32 %v388, %v459
  %v524 = vadd.f32 %v389, %v460
  %v525 = vadd.f32 %v390, %v461
  %v526 = vadd.f32 %v391, %v462
  %v527 = vadd.f32 %v392, %v463
  %v528 = vadd.f32 %v393, %v464
  %v529 = vadd.f32 %v394, %v465
  %v530 = vadd.f32 %v395, %v466
  %v531 = vadd.f32 %v396, %v467
  %v532 = vadd.f32 %v397, %v468
  %v533 = vadd.f32 %v398, %v469
  %v534 = vadd.f32 %v399, %v470
  %v535 = vadd.f32 %v400, %v471
  %v536 = vadd.f32 %v401, %v472
  %v537 = vadd.f32 %v402, %v473
  %v538 = vadd.f32 %v403, %v474
  %v539 = vadd.f32 %v404, %v475
  %v540 = vadd.f32 %v405, %v476
  %v541 = vadd.f32 %v406, %v477
  %v542 = vadd.f32 %v407, %v478
  %v543 = vadd.f32 %v408, %v479
  %v544 = vadd.f32 %v409, %v480
  %v545 = vadd.f32 %v410, %v481
  %v546 = vadd.f32 %v411, %v482
  %v547 = vadd.f32 %v412, %v483
  %v548 = vadd.f32 %v413, %v484
  %v549 = vadd.f32 %v414, %v485
  %v550 = vadd.f32 %v415, %v486
  %v551 = vadd.f32 %v416, %v487
  %v552 = vadd.f32 %v417, %v488
  %v553 = vadd.f32 %v418, %v489
  %v554 = vadd.f32 %v419, %v490
  %v555 = vadd.f32 %v420, %v491
  %v556 = vld [vmem:[%s5] sm:$0x1]
  %v558 = vlaneseq
  %v559 = vshrl.u32 %v558, 7
  %v560 = vsub.s32 0, %v559
  %v561 = vrot.slane %v556, %v560
  %v563 = vadd.f32 %v492, %v561
  %v564 = vadd.f32 %v493, %v561
  %v565 = vadd.f32 %v494, %v561
  %v566 = vadd.f32 %v495, %v561
  %v567 = vadd.f32 %v496, %v561
  %v568 = vadd.f32 %v497, %v561
  %v569 = vadd.f32 %v498, %v561
  %v570 = vadd.f32 %v499, %v561
  %v571 = vadd.f32 %v500, %v561
  %v572 = vadd.f32 %v501, %v561
  %v573 = vadd.f32 %v502, %v561
  %v574 = vadd.f32 %v503, %v561
  %v575 = vadd.f32 %v504, %v561
  %v576 = vadd.f32 %v505, %v561
  %v577 = vadd.f32 %v506, %v561
  %v578 = vadd.f32 %v507, %v561
  %v579 = vadd.f32 %v508, %v561
  %v580 = vadd.f32 %v509, %v561
  %v581 = vadd.f32 %v510, %v561
  %v582 = vadd.f32 %v511, %v561
  %v583 = vadd.f32 %v512, %v561
  %v584 = vadd.f32 %v513, %v561
  %v585 = vadd.f32 %v514, %v561
  %v586 = vadd.f32 %v515, %v561
  %v587 = vadd.f32 %v516, %v561
  %v588 = vadd.f32 %v517, %v561
  %v589 = vadd.f32 %v518, %v561
  %v590 = vadd.f32 %v519, %v561
  %v591 = vadd.f32 %v520, %v561
  %v592 = vadd.f32 %v521, %v561
  %v593 = vadd.f32 %v522, %v561
  %v594 = vadd.f32 %v523, %v561
  %v595 = vadd.f32 %v524, %v561
  %v596 = vadd.f32 %v525, %v561
  %v597 = vadd.f32 %v526, %v561
  %v598 = vadd.f32 %v527, %v561
  %v599 = vadd.f32 %v528, %v561
  %v600 = vadd.f32 %v529, %v561
  %v601 = vadd.f32 %v530, %v561
  %v602 = vadd.f32 %v531, %v561
  %v603 = vadd.f32 %v532, %v561
  %v604 = vadd.f32 %v533, %v561
  %v605 = vadd.f32 %v534, %v561
  %v606 = vadd.f32 %v535, %v561
  %v607 = vadd.f32 %v536, %v561
  %v608 = vadd.f32 %v537, %v561
  %v609 = vadd.f32 %v538, %v561
  %v610 = vadd.f32 %v539, %v561
  %v611 = vadd.f32 %v540, %v561
  %v612 = vadd.f32 %v541, %v561
  %v613 = vadd.f32 %v542, %v561
  %v614 = vadd.f32 %v543, %v561
  %v615 = vadd.f32 %v544, %v561
  %v616 = vadd.f32 %v545, %v561
  %v617 = vadd.f32 %v546, %v561
  %v618 = vadd.f32 %v547, %v561
  %v619 = vadd.f32 %v548, %v561
  %v620 = vadd.f32 %v549, %v561
  %v621 = vadd.f32 %v550, %v561
  %v622 = vadd.f32 %v551, %v561
  %v623 = vadd.f32 %v552, %v561
  %v624 = vadd.f32 %v553, %v561
  %v625 = vadd.f32 %v554, %v561
  %v626 = vadd.f32 %v555, %v561
  %v627 = vmax.f32 %v563, 0.0
  %v628 = vmax.f32 %v564, 0.0
  %v629 = vmax.f32 %v565, 0.0
  %v630 = vmax.f32 %v566, 0.0
  %v631 = vmax.f32 %v567, 0.0
  %v632 = vmax.f32 %v568, 0.0
  %v633 = vmax.f32 %v569, 0.0
  %v634 = vmax.f32 %v570, 0.0
  %v635 = vmax.f32 %v571, 0.0
  %v636 = vmax.f32 %v572, 0.0
  %v637 = vmax.f32 %v573, 0.0
  %v638 = vmax.f32 %v574, 0.0
  %v639 = vmax.f32 %v575, 0.0
  %v640 = vmax.f32 %v576, 0.0
  %v641 = vmax.f32 %v577, 0.0
  %v642 = vmax.f32 %v578, 0.0
  %v643 = vmax.f32 %v579, 0.0
  %v644 = vmax.f32 %v580, 0.0
  %v645 = vmax.f32 %v581, 0.0
  %v646 = vmax.f32 %v582, 0.0
  %v647 = vmax.f32 %v583, 0.0
  %v648 = vmax.f32 %v584, 0.0
  %v649 = vmax.f32 %v585, 0.0
  %v650 = vmax.f32 %v586, 0.0
  %v651 = vmax.f32 %v587, 0.0
  %v652 = vmax.f32 %v588, 0.0
  %v653 = vmax.f32 %v589, 0.0
  %v654 = vmax.f32 %v590, 0.0
  %v655 = vmax.f32 %v591, 0.0
  %v656 = vmax.f32 %v592, 0.0
  %v657 = vmax.f32 %v593, 0.0
  %v658 = vmax.f32 %v594, 0.0
  %v659 = vmax.f32 %v595, 0.0
  %v660 = vmax.f32 %v596, 0.0
  %v661 = vmax.f32 %v597, 0.0
  %v662 = vmax.f32 %v598, 0.0
  %v663 = vmax.f32 %v599, 0.0
  %v664 = vmax.f32 %v600, 0.0
  %v665 = vmax.f32 %v601, 0.0
  %v666 = vmax.f32 %v602, 0.0
  %v667 = vmax.f32 %v603, 0.0
  %v668 = vmax.f32 %v604, 0.0
  %v669 = vmax.f32 %v605, 0.0
  %v670 = vmax.f32 %v606, 0.0
  %v671 = vmax.f32 %v607, 0.0
  %v672 = vmax.f32 %v608, 0.0
  %v673 = vmax.f32 %v609, 0.0
  %v674 = vmax.f32 %v610, 0.0
  %v675 = vmax.f32 %v611, 0.0
  %v676 = vmax.f32 %v612, 0.0
  %v677 = vmax.f32 %v613, 0.0
  %v678 = vmax.f32 %v614, 0.0
  %v679 = vmax.f32 %v615, 0.0
  %v680 = vmax.f32 %v616, 0.0
  %v681 = vmax.f32 %v617, 0.0
  %v682 = vmax.f32 %v618, 0.0
  %v683 = vmax.f32 %v619, 0.0
  %v684 = vmax.f32 %v620, 0.0
  %v685 = vmax.f32 %v621, 0.0
  %v686 = vmax.f32 %v622, 0.0
  %v687 = vmax.f32 %v623, 0.0
  %v688 = vmax.f32 %v624, 0.0
  %v689 = vmax.f32 %v625, 0.0
  %v690 = vmax.f32 %v626, 0.0
  %vm691 = vcmask 64512
  %692 = vst.msk [vmem:[%s6] sm:$0xff] %vm691, %v627
  %693 = vst.msk [vmem:[%s6 + $0x8] sm:$0xff] %vm691, %v628
  %694 = vst.msk [vmem:[%s6 + $0x10] sm:$0xff] %vm691, %v629
  %695 = vst.msk [vmem:[%s6 + $0x18] sm:$0xff] %vm691, %v630
  %696 = vst.msk [vmem:[%s6 + $0x20] sm:$0xff] %vm691, %v631
  %697 = vst.msk [vmem:[%s6 + $0x28] sm:$0xff] %vm691, %v632
  %698 = vst.msk [vmem:[%s6 + $0x30] sm:$0xff] %vm691, %v633
  %699 = vst.msk [vmem:[%s6 + $0x38] sm:$0xff] %vm691, %v634
  %700 = vst.msk [vmem:[%s6 + $0x40] sm:$0xff] %vm691, %v635
  %701 = vst.msk [vmem:[%s6 + $0x48] sm:$0xff] %vm691, %v636
  %702 = vst.msk [vmem:[%s6 + $0x50] sm:$0xff] %vm691, %v637
  %703 = vst.msk [vmem:[%s6 + $0x58] sm:$0xff] %vm691, %v638
  %704 = vst.msk [vmem:[%s6 + $0x60] sm:$0xff] %vm691, %v639
  %705 = vst.msk [vmem:[%s6 + $0x68] sm:$0xff] %vm691, %v640
  %706 = vst.msk [vmem:[%s6 + $0x70] sm:$0xff] %vm691, %v641
  %707 = vst.msk [vmem:[%s6 + $0x78] sm:$0xff] %vm691, %v642
  %708 = vst.msk [vmem:[%s6 + $0x80] sm:$0xff] %vm691, %v643
  %709 = vst.msk [vmem:[%s6 + $0x88] sm:$0xff] %vm691, %v644
  %710 = vst.msk [vmem:[%s6 + $0x90] sm:$0xff] %vm691, %v645
  %711 = vst.msk [vmem:[%s6 + $0x98] sm:$0xff] %vm691, %v646
  %712 = vst.msk [vmem:[%s6 + $0xa0] sm:$0xff] %vm691, %v647
  %713 = vst.msk [vmem:[%s6 + $0xa8] sm:$0xff] %vm691, %v648
  %714 = vst.msk [vmem:[%s6 + $0xb0] sm:$0xff] %vm691, %v649
  %715 = vst.msk [vmem:[%s6 + $0xb8] sm:$0xff] %vm691, %v650
  %716 = vst.msk [vmem:[%s6 + $0xc0] sm:$0xff] %vm691, %v651
  %717 = vst.msk [vmem:[%s6 + $0xc8] sm:$0xff] %vm691, %v652
  %718 = vst.msk [vmem:[%s6 + $0xd0] sm:$0xff] %vm691, %v653
  %719 = vst.msk [vmem:[%s6 + $0xd8] sm:$0xff] %vm691, %v654
  %720 = vst.msk [vmem:[%s6 + $0xe0] sm:$0xff] %vm691, %v655
  %721 = vst.msk [vmem:[%s6 + $0xe8] sm:$0xff] %vm691, %v656
  %722 = vst.msk [vmem:[%s6 + $0xf0] sm:$0xff] %vm691, %v657
  %723 = vst.msk [vmem:[%s6 + $0xf8] sm:$0xff] %vm691, %v658
  %724 = vst.msk [vmem:[%s6 + $0x100] sm:$0xff] %vm691, %v659
  %725 = vst.msk [vmem:[%s6 + $0x108] sm:$0xff] %vm691, %v660
  %726 = vst.msk [vmem:[%s6 + $0x110] sm:$0xff] %vm691, %v661
  %727 = vst.msk [vmem:[%s6 + $0x118] sm:$0xff] %vm691, %v662
  %728 = vst.msk [vmem:[%s6 + $0x120] sm:$0xff] %vm691, %v663
  %729 = vst.msk [vmem:[%s6 + $0x128] sm:$0xff] %vm691, %v664
  %730 = vst.msk [vmem:[%s6 + $0x130] sm:$0xff] %vm691, %v665
  %731 = vst.msk [vmem:[%s6 + $0x138] sm:$0xff] %vm691, %v666
  %732 = vst.msk [vmem:[%s6 + $0x140] sm:$0xff] %vm691, %v667
  %733 = vst.msk [vmem:[%s6 + $0x148] sm:$0xff] %vm691, %v668
  %734 = vst.msk [vmem:[%s6 + $0x150] sm:$0xff] %vm691, %v669
  %735 = vst.msk [vmem:[%s6 + $0x158] sm:$0xff] %vm691, %v670
  %736 = vst.msk [vmem:[%s6 + $0x160] sm:$0xff] %vm691, %v671
  %737 = vst.msk [vmem:[%s6 + $0x168] sm:$0xff] %vm691, %v672
  %738 = vst.msk [vmem:[%s6 + $0x170] sm:$0xff] %vm691, %v673
  %739 = vst.msk [vmem:[%s6 + $0x178] sm:$0xff] %vm691, %v674
  %740 = vst.msk [vmem:[%s6 + $0x180] sm:$0xff] %vm691, %v675
  %741 = vst.msk [vmem:[%s6 + $0x188] sm:$0xff] %vm691, %v676
  %742 = vst.msk [vmem:[%s6 + $0x190] sm:$0xff] %vm691, %v677
  %743 = vst.msk [vmem:[%s6 + $0x198] sm:$0xff] %vm691, %v678
  %744 = vst.msk [vmem:[%s6 + $0x1a0] sm:$0xff] %vm691, %v679
  %745 = vst.msk [vmem:[%s6 + $0x1a8] sm:$0xff] %vm691, %v680
  %746 = vst.msk [vmem:[%s6 + $0x1b0] sm:$0xff] %vm691, %v681
  %747 = vst.msk [vmem:[%s6 + $0x1b8] sm:$0xff] %vm691, %v682
  %748 = vst.msk [vmem:[%s6 + $0x1c0] sm:$0xff] %vm691, %v683
  %749 = vst.msk [vmem:[%s6 + $0x1c8] sm:$0xff] %vm691, %v684
  %750 = vst.msk [vmem:[%s6 + $0x1d0] sm:$0xff] %vm691, %v685
  %751 = vst.msk [vmem:[%s6 + $0x1d8] sm:$0xff] %vm691, %v686
  %752 = vst.msk [vmem:[%s6 + $0x1e0] sm:$0xff] %vm691, %v687
  %753 = vst.msk [vmem:[%s6 + $0x1e8] sm:$0xff] %vm691, %v688
  %754 = vst.msk [vmem:[%s6 + $0x1f0] sm:$0xff] %vm691, %v689
  %755 = vst.msk [vmem:[%s6 + $0x1f8] sm:$0xff] %vm691, %v690
  // Predicated region
  $region26: #{basic_block.5} parent=0 // pred_check
    _
  $region27: #{basic_block.5} parent=0 // pred_check_branch
    %757 = sbr.rel (0) target = $region29
  $region28: #{basic_block.5} parent=0 // pred_region
    _
  $region29: #{basic_block.5} parent=0 // pred_fallthru
    _
  // Predicated region
  $region30: #{basic_block.5} parent=0 // pred_check
    _
  $region31: #{basic_block.5} parent=0 // pred_check_branch
    %759 = sbr.rel (0) target = $region33
  $region32: #{basic_block.5} parent=0 // pred_region
    _
  $region33: #{basic_block.5} parent=0 // pred_fallthru
    _

// kernel: basic_block.4
$region0: #{basic_block.4}
  #allocation0 [shape = 'u32[]', space=smem, size = 0x4, offset = 0x4, fixed_abs, tag = 'smem constant byte address 0x4 - core index']
  #allocation1 [shape = 'u32[144,128]{1,0:T(1,128)}', space=vmem, size = 0x12000, scoped, tag = 'internal scratch']
  #allocation2 [shape = 'bf16[18,18,8]{2,1,0:T(8,128)(2,1)}', space=vmem, size = 0x1b000, scoped, tag = 'scratch operand']
  %s0 = inlined_call_operand.vmem [shape: bf16[2,16,16,8], index: 0, kind: input, shape index: {}]
  %s1 = inlined_call_operand.vmem [shape: f32[1,8], index: 1, kind: input, shape index: {}]
  %s2 = inlined_call_operand.vmem [shape: f32[1,8], index: 2, kind: input, shape index: {}]
  %s3 = inlined_call_operand.vmem [shape: bf16[3,24,8], index: 3, kind: input, shape index: {}]
  %s4 = inlined_call_operand.vmem [shape: bf16[2,16,16,8], index: 4, kind: output, shape index: {0}]
  %s5 = inlined_call_operand.vmem [shape: f32[2,2,8], index: 5, kind: output, shape index: {1}]
  %6 = xla_tuple %s4, %s5
  %s7 = sld [smem:[#allocation0]]
  $region57: #{basic_block.4} parent=0
    _
  %s9 = ssub.s32 1, %s7
  %s10 = scalar_select 0, %s9, %s7
  loop: start=0, step=1, limit=4
  $region2: #{basic_block.4} parent=0 // loop_pre_header
    _
  $region3: #{basic_block.4} parent=0 // loop_header
    %s12 = sphi 0, %s16
    %p13 = scmp.ge.s32.totalorder %s12, 4
    %s22 = sphi 0, %s24
    %s25 = sphi 0, %s22
    %s26 = sphi 0, %s25
    %s42 = sphi 0, %s26
    %s46 = sphi 0, %s46
    %s48 = sphi 0, %s46
    %s49 = sphi 0, %s48
    %s63 = sphi 0, %s49
    %s67 = sphi 0, %s67
    %s69 = sphi 0, %s67
    %s70 = sphi 0, %s69
    %s84 = sphi 0, %s70
    %s88 = sphi 0, %s88
    %s90 = sphi 0, %s88
    %s91 = sphi 0, %s90
    %s105 = sphi 0, %s91
    %s111 = sphi 0, %s113
    %s114 = sphi 0, %s111
    %s115 = sphi 0, %s114
    %s131 = sphi 0, %s115
    %s137 = sphi 0, %s139
    %s140 = sphi 0, %s137
    %s141 = sphi 0, %s140
    %s157 = sphi 0, %s141
  $region4: #{basic_block.4} parent=0 // loop_header_branch
    %15 = sbr.rel (%p13) target = $region8
  $region5: #{basic_block.4} parent=0 // loop_body
    %s17 = ssub.s32 %s12, 1
    %s18 = ssub.s32 %s12, 2
    %s19 = sadd.s32 %s12, 1
    %s20 = ssub.s32 %s12, %s19
    %p21 = scmp.eq.s32.totalorder %s20, 0
    %s23 = sadd.s32 %s22, 1
    %s24 = scalar_select %p21, %s22, %s23
    %p27 = pneg %p21
    %p28 = scmp.eq.s32.totalorder %s12, 1
    %p29 = por %p27, %p28
    %p30 = scmp.ne.s32.totalorder %s22, %s25
    %p31 = scmp.eq.s32.totalorder %s12, 0
    %p32 = por %p30, %p31
    %p33 = scmp.ne.s32.totalorder %s22, %s25
    %p34 = scmp.eq.s32.totalorder %s17, 1
    %p35 = por %p33, %p34
    %p36 = scmp.ne.s32.totalorder %s25, %s26
    %p37 = scmp.eq.s32.totalorder %s17, 0
    %p38 = por %p36, %p37
    %p39 = scmp.ne.s32.totalorder %s25, %s26
    %p40 = scmp.eq.s32.totalorder %s18, 1
    %p41 = por %p39, %p40
    %p43 = scmp.ne.s32.totalorder %s26, %s42
    %p44 = scmp.eq.s32.totalorder %s18, 0
    %p45 = por %p43, %p44
    %s47 = sadd.s32 %s46, 1
    %p50 = scmp.eq.s32.totalorder %s12, 1
    %p51 = scmp.ne.s32.totalorder %s46, %s48
    %p52 = scmp.eq.s32.totalorder %s12, 0
    %p53 = por %p51, %p52
    %p54 = scmp.ne.s32.totalorder %s46, %s48
    %p55 = scmp.eq.s32.totalorder %s17, 1
    %p56 = por %p54, %p55
    %p57 = scmp.ne.s32.totalorder %s48, %s49
    %p58 = scmp.eq.s32.totalorder %s17, 0
    %p59 = por %p57, %p58
    %p60 = scmp.ne.s32.totalorder %s48, %s49
    %p61 = scmp.eq.s32.totalorder %s18, 1
    %p62 = por %p60, %p61
    %p64 = scmp.ne.s32.totalorder %s49, %s63
    %p65 = scmp.eq.s32.totalorder %s18, 0
    %p66 = por %p64, %p65
    %s68 = sadd.s32 %s67, 1
    %p71 = scmp.eq.s32.totalorder %s12, 1
    %p72 = scmp.ne.s32.totalorder %s67, %s69
    %p73 = scmp.eq.s32.totalorder %s12, 0
    %p74 = por %p72, %p73
    %p75 = scmp.ne.s32.totalorder %s67, %s69
    %p76 = scmp.eq.s32.totalorder %s17, 1
    %p77 = por %p75, %p76
    %p78 = scmp.ne.s32.totalorder %s69, %s70
    %p79 = scmp.eq.s32.totalorder %s17, 0
    %p80 = por %p78, %p79
    %p81 = scmp.ne.s32.totalorder %s69, %s70
    %p82 = scmp.eq.s32.totalorder %s18, 1
    %p83 = por %p81, %p82
    %p85 = scmp.ne.s32.totalorder %s70, %s84
    %p86 = scmp.eq.s32.totalorder %s18, 0
    %p87 = por %p85, %p86
    %s89 = sadd.s32 %s88, 1
    %p92 = scmp.eq.s32.totalorder %s12, 1
    %p93 = scmp.ne.s32.totalorder %s88, %s90
    %p94 = scmp.eq.s32.totalorder %s12, 0
    %p95 = por %p93, %p94
    %p96 = scmp.ne.s32.totalorder %s88, %s90
    %p97 = scmp.eq.s32.totalorder %s17, 1
    %p98 = por %p96, %p97
    %p99 = scmp.ne.s32.totalorder %s90, %s91
    %p100 = scmp.eq.s32.totalorder %s17, 0
    %p101 = por %p99, %p100
    %p102 = scmp.ne.s32.totalorder %s90, %s91
    %p103 = scmp.eq.s32.totalorder %s18, 1
    %p104 = por %p102, %p103
    %p106 = scmp.ne.s32.totalorder %s91, %s105
    %p107 = scmp.eq.s32.totalorder %s18, 0
    %p108 = por %p106, %p107
    %s109 = ssub.s32 %s12, %s19
    %p110 = scmp.eq.s32.totalorder %s109, 0
    %s112 = sadd.s32 %s111, 1
    %s113 = scalar_select %p110, %s111, %s112
    %p116 = pneg %p110
    %p117 = scmp.eq.s32.totalorder %s12, 1
    %p118 = por %p116, %p117
    %p119 = scmp.ne.s32.totalorder %s111, %s114
    %p120 = scmp.eq.s32.totalorder %s12, 0
    %p121 = por %p119, %p120
    %p122 = scmp.ne.s32.totalorder %s111, %s114
    %p123 = scmp.eq.s32.totalorder %s17, 1
    %p124 = por %p122, %p123
    %p125 = scmp.ne.s32.totalorder %s114, %s115
    %p126 = scmp.eq.s32.totalorder %s17, 0
    %p127 = por %p125, %p126
    %p128 = scmp.ne.s32.totalorder %s114, %s115
    %p129 = scmp.eq.s32.totalorder %s18, 1
    %p130 = por %p128, %p129
    %p132 = scmp.ne.s32.totalorder %s115, %s131
    %p133 = scmp.eq.s32.totalorder %s18, 0
    %p134 = por %p132, %p133
    %s135 = ssub.s32 %s12, %s19
    %p136 = scmp.eq.s32.totalorder %s135, 0
    %s138 = sadd.s32 %s137, 1
    %s139 = scalar_select %p136, %s137, %s138
    %p142 = pneg %p136
    %p143 = scmp.eq.s32.totalorder %s12, 1
    %p144 = por %p142, %p143
    %p145 = scmp.ne.s32.totalorder %s137, %s140
    %p146 = scmp.eq.s32.totalorder %s12, 0
    %p147 = por %p145, %p146
    %p148 = scmp.ne.s32.totalorder %s137, %s140
    %p149 = scmp.eq.s32.totalorder %s17, 1
    %p150 = por %p148, %p149
    %p151 = scmp.ne.s32.totalorder %s140, %s141
    %p152 = scmp.eq.s32.totalorder %s17, 0
    %p153 = por %p151, %p152
    %p154 = scmp.ne.s32.totalorder %s140, %s141
    %p155 = scmp.eq.s32.totalorder %s18, 1
    %p156 = por %p154, %p155
    %p158 = scmp.ne.s32.totalorder %s141, %s157
    %p159 = scmp.eq.s32.totalorder %s18, 0
    %p160 = por %p158, %p159
    %p161 = scmp.le.s32.totalorder 1, %s12
    %p162 = scmp.lt.s32.totalorder %s12, 3
    %p163 = pnand %p161, %p162
    %p164 = pneg %p163
    // Predicated region
    $region9: #{basic_block.4} parent=5 // pred_check
      _
    $region10: #{basic_block.4} parent=5 // pred_check_branch
      %166 = sbr.rel (%p163) target = $region12
    $region11: #{basic_block.4} parent=5 // pred_region
      %s167 = ssub.s32 %s12, 1
      // Predicated region
      $region13: #{basic_block.4} parent=11 // pred_check
        %p168 = pneg %p59
      $region14: #{basic_block.4} parent=11 // pred_check_branch
        %170 = sbr.rel (%p168) target = $region16
      $region15: #{basic_block.4} parent=11 // pred_region
        _
      $region16: #{basic_block.4} parent=11 // pred_fallthru
        _
      // Predicated region
      $region17: #{basic_block.4} parent=11 // pred_check
        %p171 = pneg %p80
      $region18: #{basic_block.4} parent=11 // pred_check_branch
        %173 = sbr.rel (%p171) target = $region20
      $region19: #{basic_block.4} parent=11 // pred_region
        _
      $region20: #{basic_block.4} parent=11 // pred_fallthru
        _
      // Predicated region
      $region21: #{basic_block.4} parent=11 // pred_check
        %p174 = pneg %p101
      $region22: #{basic_block.4} parent=11 // pred_check_branch
        %176 = sbr.rel (%p174) target = $region24
      $region23: #{basic_block.4} parent=11 // pred_region
        _
      $region24: #{basic_block.4} parent=11 // pred_fallthru
        _
    $region12: #{basic_block.4} parent=5 // pred_fallthru
      _
    %p177 = scmp.lt.s32.totalorder %s12, 2
    // Predicated region
    $region25: #{basic_block.4} parent=5 // pred_check
      %p178 = pneg %p177
    $region26: #{basic_block.4} parent=5 // pred_check_branch
      %180 = sbr.rel (%p178) target = $region28
    $region27: #{basic_block.4} parent=5 // pred_region
      // Predicated region
      $region29: #{basic_block.4} parent=27 // pred_check
        %p181 = pneg %p32
      $region30: #{basic_block.4} parent=27 // pred_check_branch
        %183 = sbr.rel (%p181) target = $region32
      $region31: #{basic_block.4} parent=27 // pred_region
        %p184 = scmp.lt.s32.totalorder %s12, 1
        %s185 = scalar_select %p184, %s12, 1
        %s186 = smul.addr %s185, 32
        %s187 = smul.addr %s186, 4
        %s188 = scalar_lea.vmem %s0, %s187
      $region32: #{basic_block.4} parent=27 // pred_fallthru
        _
    $region28: #{basic_block.4} parent=5 // pred_fallthru
      _
    %p189 = scmp.le.s32.totalorder 1, %s12
    %p190 = scmp.lt.s32.totalorder %s12, 3
    %p191 = pnand %p189, %p190
    %p192 = pneg %p191
    // Predicated region
    $region33: #{basic_block.4} parent=5 // pred_check
      _
    $region34: #{basic_block.4} parent=5 // pred_check_branch
      %194 = sbr.rel (%p191) target = $region36
    $region35: #{basic_block.4} parent=5 // pred_region
      %s195 = ssub.s32 %s12, 1
      %p196 = scmp.lt.s32.totalorder %s17, 1
      %s197 = scalar_select %p196, %s17, 1
      %s198 = smul.addr %s197, 32
      %s199 = smul.addr %s198, 4
      %s200 = scalar_lea.vmem %s0, %s199
      %p201 = pneg %p38
      %p202 = pneg %p35
      %p203 = pneg %p59
      %p204 = pneg %p56
      %p205 = pneg %p80
      %p206 = pneg %p77
      %p207 = pneg %p101
      %p208 = pneg %p98
      %p209 = pneg %p127
      %p210 = pneg %p124
      %p211 = scmp.lt.s32.totalorder %s17, 1
      %s212 = scalar_select %p211, %s17, 1
      %s213 = smul.addr %s212, 32
      %s214 = smul.addr %s213, 4
      %s215 = scalar_lea.vmem %s4, %s214
      %p216 = pneg %p153
      %p217 = pneg %p150
      %p218 = scmp.lt.s32.totalorder %s17, 1
      %s219 = scalar_select %p218, %s17, 1
      %s220 = smul.addr %s219, 2
      %s221 = scalar_lea.vmem %s5, %s220
      %p222 = scmp.lt.s32.totalorder %s17, 1
      %s223 = scalar_select %p222, %s17, 1
      %s224 = smul.addr %s223, 32
      %s225 = smul.addr %s224, 4
      %s226 = scalar_lea.vmem %s0, %s225
      %p227 = scmp.lt.s32.totalorder %s17, 1
      %s228 = scalar_select %p227, %s17, 1
      %s229 = smul.addr %s228, 32
      %s230 = smul.addr %s229, 4
      %s231 = scalar_lea.vmem %s4, %s230
      %p232 = scmp.lt.s32.totalorder %s17, 1
      %s233 = scalar_select %p232, %s17, 1
      %s234 = smul.addr %s233, 2
      %s235 = scalar_lea.vmem %s5, %s234
      %v237 = vld [vmem:[%s226] sm:$0xf]
      %v238 = vld [vmem:[%s226 + $0x4] sm:$0xf]
      %v239 = vld [vmem:[%s226 + $0x8] sm:$0xf]
      %v240 = vld [vmem:[%s226 + $0xc] sm:$0xf]
      %v241 = vld [vmem:[%s226 + $0x10] sm:$0xf]
      %v242 = vld [vmem:[%s226 + $0x14] sm:$0xf]
      %v243 = vld [vmem:[%s226 + $0x18] sm:$0xf]
      %v244 = vld [vmem:[%s226 + $0x1c] sm:$0xf]
      %v245 = vld [vmem:[%s226 + $0x20] sm:$0xf]
      %v246 = vld [vmem:[%s226 + $0x24] sm:$0xf]
      %v247 = vld [vmem:[%s226 + $0x28] sm:$0xf]
      %v248 = vld [vmem:[%s226 + $0x2c] sm:$0xf]
      %v249 = vld [vmem:[%s226 + $0x30] sm:$0xf]
      %v250 = vld [vmem:[%s226 + $0x34] sm:$0xf]
      %v251 = vld [vmem:[%s226 + $0x38] sm:$0xf]
      %v252 = vld [vmem:[%s226 + $0x3c] sm:$0xf]
      %v253 = vld [vmem:[%s226 + $0x40] sm:$0xf]
      %v254 = vld [vmem:[%s226 + $0x44] sm:$0xf]
      %v255 = vld [vmem:[%s226 + $0x48] sm:$0xf]
      %v256 = vld [vmem:[%s226 + $0x4c] sm:$0xf]
      %v257 = vld [vmem:[%s226 + $0x50] sm:$0xf]
      %v258 = vld [vmem:[%s226 + $0x54] sm:$0xf]
      %v259 = vld [vmem:[%s226 + $0x58] sm:$0xf]
      %v260 = vld [vmem:[%s226 + $0x5c] sm:$0xf]
      %v261 = vld [vmem:[%s226 + $0x60] sm:$0xf]
      %v262 = vld [vmem:[%s226 + $0x64] sm:$0xf]
      %v263 = vld [vmem:[%s226 + $0x68] sm:$0xf]
      %v264 = vld [vmem:[%s226 + $0x6c] sm:$0xf]
      %v265 = vld [vmem:[%s226 + $0x70] sm:$0xf]
      %v266 = vld [vmem:[%s226 + $0x74] sm:$0xf]
      %v267 = vld [vmem:[%s226 + $0x78] sm:$0xf]
      %v268 = vld [vmem:[%s226 + $0x7c] sm:$0xf]
      %v269 = vunpack.c.l.bf16 %v237
      %v270 = vunpack.c.l.bf16 %v238
      %v271 = vunpack.c.l.bf16 %v239
      %v272 = vunpack.c.l.bf16 %v240
      %v273 = vunpack.c.l.bf16 %v241
      %v274 = vunpack.c.l.bf16 %v242
      %v275 = vunpack.c.l.bf16 %v243
      %v276 = vunpack.c.l.bf16 %v244
      %v277 = vunpack.c.l.bf16 %v245
      %v278 = vunpack.c.l.bf16 %v246
      %v279 = vunpack.c.l.bf16 %v247
      %v280 = vunpack.c.l.bf16 %v248
      %v281 = vunpack.c.l.bf16 %v249
      %v282 = vunpack.c.l.bf16 %v250
      %v283 = vunpack.c.l.bf16 %v251
      %v284 = vunpack.c.l.bf16 %v252
      %v285 = vunpack.c.l.bf16 %v253
      %v286 = vunpack.c.l.bf16 %v254
      %v287 = vunpack.c.l.bf16 %v255
      %v288 = vunpack.c.l.bf16 %v256
      %v289 = vunpack.c.l.bf16 %v257
      %v290 = vunpack.c.l.bf16 %v258
      %v291 = vunpack.c.l.bf16 %v259
      %v292 = vunpack.c.l.bf16 %v260
      %v293 = vunpack.c.l.bf16 %v261
      %v294 = vunpack.c.l.bf16 %v262
      %v295 = vunpack.c.l.bf16 %v263
      %v296 = vunpack.c.l.bf16 %v264
      %v297 = vunpack.c.l.bf16 %v265
      %v298 = vunpack.c.l.bf16 %v266
      %v299 = vunpack.c.l.bf16 %v267
      %v300 = vunpack.c.l.bf16 %v268
      %v301 = vld [vmem:[%s1] sm:$0x1]
      %v303 = vlaneseq
      %v304 = vshrl.u32 %v303, 7
      %v305 = vsub.s32 0, %v304
      %v306 = vrot.slane %v301, %v305
      %v308 = vmul.f32 %v269, %v306
      %v309 = vmul.f32 %v270, %v306
      %v310 = vmul.f32 %v271, %v306
      %v311 = vmul.f32 %v272, %v306
      %v312 = vmul.f32 %v273, %v306
      %v313 = vmul.f32 %v274, %v306
      %v314 = vmul.f32 %v275, %v306
      %v315 = vmul.f32 %v276, %v306
      %v316 = vmul.f32 %v277, %v306
      %v317 = vmul.f32 %v278, %v306
      %v318 = vmul.f32 %v279, %v306
      %v319 = vmul.f32 %v280, %v306
      %v320 = vmul.f32 %v281, %v306
      %v321 = vmul.f32 %v282, %v306
      %v322 = vmul.f32 %v283, %v306
      %v323 = vmul.f32 %v284, %v306
      %v324 = vmul.f32 %v285, %v306
      %v325 = vmul.f32 %v286, %v306
      %v326 = vmul.f32 %v287, %v306
      %v327 = vmul.f32 %v288, %v306
      %v328 = vmul.f32 %v289, %v306
      %v329 = vmul.f32 %v290, %v306
      %v330 = vmul.f32 %v291, %v306
      %v331 = vmul.f32 %v292, %v306
      %v332 = vmul.f32 %v293, %v306
      %v333 = vmul.f32 %v294, %v306
      %v334 = vmul.f32 %v295, %v306
      %v335 = vmul.f32 %v296, %v306
      %v336 = vmul.f32 %v297, %v306
      %v337 = vmul.f32 %v298, %v306
      %v338 = vmul.f32 %v299, %v306
      %v339 = vmul.f32 %v300, %v306
      %v340 = vld [vmem:[%s2] sm:$0x1]
      %v342 = vlaneseq
      %v343 = vshrl.u32 %v342, 7
      %v344 = vsub.s32 0, %v343
      %v345 = vrot.slane %v340, %v344
      %v347 = vadd.f32 %v308, %v345
      %v348 = vadd.f32 %v309, %v345
      %v349 = vadd.f32 %v310, %v345
      %v350 = vadd.f32 %v311, %v345
      %v351 = vadd.f32 %v312, %v345
      %v352 = vadd.f32 %v313, %v345
      %v353 = vadd.f32 %v314, %v345
      %v354 = vadd.f32 %v315, %v345
      %v355 = vadd.f32 %v316, %v345
      %v356 = vadd.f32 %v317, %v345
      %v357 = vadd.f32 %v318, %v345
      %v358 = vadd.f32 %v319, %v345
      %v359 = vadd.f32 %v320, %v345
      %v360 = vadd.f32 %v321, %v345
      %v361 = vadd.f32 %v322, %v345
      %v362 = vadd.f32 %v323, %v345
      %v363 = vadd.f32 %v324, %v345
      %v364 = vadd.f32 %v325, %v345
      %v365 = vadd.f32 %v326, %v345
      %v366 = vadd.f32 %v327, %v345
      %v367 = vadd.f32 %v328, %v345
      %v368 = vadd.f32 %v329, %v345
      %v369 = vadd.f32 %v330, %v345
      %v370 = vadd.f32 %v331, %v345
      %v371 = vadd.f32 %v332, %v345
      %v372 = vadd.f32 %v333, %v345
      %v373 = vadd.f32 %v334, %v345
      %v374 = vadd.f32 %v335, %v345
      %v375 = vadd.f32 %v336, %v345
      %v376 = vadd.f32 %v337, %v345
      %v377 = vadd.f32 %v338, %v345
      %v378 = vadd.f32 %v339, %v345
      %v379 = vmax.f32 %v347, 0.0
      %v380 = vmax.f32 %v348, 0.0
      %v381 = vmax.f32 %v349, 0.0
      %v382 = vmax.f32 %v350, 0.0
      %v383 = vmax.f32 %v351, 0.0
      %v384 = vmax.f32 %v352, 0.0
      %v385 = vmax.f32 %v353, 0.0
      %v386 = vmax.f32 %v354, 0.0
      %v387 = vmax.f32 %v355, 0.0
      %v388 = vmax.f32 %v356, 0.0
      %v389 = vmax.f32 %v357, 0.0
      %v390 = vmax.f32 %v358, 0.0
      %v391 = vmax.f32 %v359, 0.0
      %v392 = vmax.f32 %v360, 0.0
      %v393 = vmax.f32 %v361, 0.0
      %v394 = vmax.f32 %v362, 0.0
      %v395 = vmax.f32 %v363, 0.0
      %v396 = vmax.f32 %v364, 0.0
      %v397 = vmax.f32 %v365, 0.0
      %v398 = vmax.f32 %v366, 0.0
      %v399 = vmax.f32 %v367, 0.0
      %v400 = vmax.f32 %v368, 0.0
      %v401 = vmax.f32 %v369, 0.0
      %v402 = vmax.f32 %v370, 0.0
      %v403 = vmax.f32 %v371, 0.0
      %v404 = vmax.f32 %v372, 0.0
      %v405 = vmax.f32 %v373, 0.0
      %v406 = vmax.f32 %v374, 0.0
      %v407 = vmax.f32 %v375, 0.0
      %v408 = vmax.f32 %v376, 0.0
      %v409 = vmax.f32 %v377, 0.0
      %v410 = vmax.f32 %v378, 0.0
      %v411 = vpack.c.bf16 %v380, %v379
      %v412 = vpack.c.bf16 %v382, %v381
      %v413 = vpack.c.bf16 %v384, %v383
      %v414 = vpack.c.bf16 %v386, %v385
      %v415 = vpack.c.bf16 %v388, %v387
      %v416 = vpack.c.bf16 %v390, %v389
      %v417 = vpack.c.bf16 %v392, %v391
      %v418 = vpack.c.bf16 %v394, %v393
      %v419 = vpack.c.bf16 %v396, %v395
      %v420 = vpack.c.bf16 %v398, %v397
      %v421 = vpack.c.bf16 %v400, %v399
      %v422 = vpack.c.bf16 %v402, %v401
      %v423 = vpack.c.bf16 %v404, %v403
      %v424 = vpack.c.bf16 %v406, %v405
      %v425 = vpack.c.bf16 %v408, %v407
      %v426 = vpack.c.bf16 %v410, %v409
      %vm427 = vcmask 60416
      %428 = vst.msk [vmem:[#allocation2] sm:$0xf] %vm427, 0
      %429 = vst.msk [vmem:[#allocation2 + $0x4] sm:$0xf] %vm427, 0
      %vm430 = vcmask 57344
      %431 = vst.msk [vmem:[#allocation2 + $0x8] sm:$0x1] %vm430, 0
      %s432 = scalar_lea.vmem [#allocation2], 204
      %433 = vst.msk [vmem:[%s432] sm:$0xf] %vm427, 0
      %434 = vst.msk [vmem:[%s432 + $0x4] sm:$0xf] %vm427, 0
      %435 = vst.msk [vmem:[%s432 + $0x8] sm:$0x1] %vm430, 0
      %vm436 = vcmask 57344
      %vm437 = vsmask.f32 256
      %vm438 = vmand %vm436, %vm437
      %v439 = vld [vmem:[#allocation2] sm:$0x1]
      %v440 = vsel %vm438, 0, %v439
      %441 = vst [vmem:[#allocation2] sm:$0x1] %v440
      %v442 = vld [vmem:[#allocation2 + $0xc] sm:$0x1]
      %v443 = vsel %vm438, 0, %v442
      %444 = vst [vmem:[#allocation2 + $0xc] sm:$0x1] %v443
      %v445 = vld [vmem:[#allocation2 + $0x18] sm:$0x1]
      %v446 = vsel %vm438, 0, %v445
      %447 = vst [vmem:[#allocation2 + $0x18] sm:$0x1] %v446
      %v448 = vld [vmem:[#allocation2 + $0x24] sm:$0x1]
      %v449 = vsel %vm438, 0, %v448
      %450 = vst [vmem:[#allocation2 + $0x24] sm:$0x1] %v449
      %v451 = vld [vmem:[#allocation2 + $0x30] sm:$0x1]
      %v452 = vsel %vm438, 0, %v451
      %453 = vst [vmem:[#allocation2 + $0x30] sm:$0x1] %v452
      %v454 = vld [vmem:[#allocation2 + $0x3c] sm:$0x1]
      %v455 = vsel %vm438, 0, %v454
      %456 = vst [vmem:[#allocation2 + $0x3c] sm:$0x1] %v455
      %v457 = vld [vmem:[#allocation2 + $0x48] sm:$0x1]
      %v458 = vsel %vm438, 0, %v457
      %459 = vst [vmem:[#allocation2 + $0x48] sm:$0x1] %v458
      %v460 = vld [vmem:[#allocation2 + $0x54] sm:$0x1]
      %v461 = vsel %vm438, 0, %v460
      %462 = vst [vmem:[#allocation2 + $0x54] sm:$0x1] %v461
      %v463 = vld [vmem:[#allocation2 + $0x60] sm:$0x1]
      %v464 = vsel %vm438, 0, %v463
      %465 = vst [vmem:[#allocation2 + $0x60] sm:$0x1] %v464
      %v466 = vld [vmem:[#allocation2 + $0x6c] sm:$0x1]
      %v467 = vsel %vm438, 0, %v466
      %468 = vst [vmem:[#allocation2 + $0x6c] sm:$0x1] %v467
      %v469 = vld [vmem:[#allocation2 + $0x78] sm:$0x1]
      %v470 = vsel %vm438, 0, %v469
      %471 = vst [vmem:[#allocation2 + $0x78] sm:$0x1] %v470
      %v472 = vld [vmem:[#allocation2 + $0x84] sm:$0x1]
      %v473 = vsel %vm438, 0, %v472
      %474 = vst [vmem:[#allocation2 + $0x84] sm:$0x1] %v473
      %v475 = vld [vmem:[#allocation2 + $0x90] sm:$0x1]
      %v476 = vsel %vm438, 0, %v475
      %477 = vst [vmem:[#allocation2 + $0x90] sm:$0x1] %v476
      %v478 = vld [vmem:[#allocation2 + $0x9c] sm:$0x1]
      %v479 = vsel %vm438, 0, %v478
      %480 = vst [vmem:[#allocation2 + $0x9c] sm:$0x1] %v479
      %v481 = vld [vmem:[#allocation2 + $0xa8] sm:$0x1]
      %v482 = vsel %vm438, 0, %v481
      %483 = vst [vmem:[#allocation2 + $0xa8] sm:$0x1] %v482
      %v484 = vld [vmem:[#allocation2 + $0xb4] sm:$0x1]
      %v485 = vsel %vm438, 0, %v484
      %486 = vst [vmem:[#allocation2 + $0xb4] sm:$0x1] %v485
      %v487 = vld [vmem:[#allocation2 + $0xc0] sm:$0x1]
      %v488 = vsel %vm438, 0, %v487
      %489 = vst [vmem:[#allocation2 + $0xc0] sm:$0x1] %v488
      %v490 = vld [vmem:[#allocation2 + $0xcc] sm:$0x1]
      %v491 = vsel %vm438, 0, %v490
      %492 = vst [vmem:[#allocation2 + $0xcc] sm:$0x1] %v491
      %vm493 = vsmask.f32 7938
      %vm494 = vmand %vm436, %vm493
      %v495 = vld [vmem:[#allocation2 + $0x8] sm:$0x1]
      %v496 = vsel %vm494, 0, %v495
      %497 = vst [vmem:[#allocation2 + $0x8] sm:$0x1] %v496
      %v498 = vld [vmem:[#allocation2 + $0x14] sm:$0x1]
      %v499 = vsel %vm494, 0, %v498
      %500 = vst [vmem:[#allocation2 + $0x14] sm:$0x1] %v499
      %v501 = vld [vmem:[#allocation2 + $0x20] sm:$0x1]
      %v502 = vsel %vm494, 0, %v501
      %503 = vst [vmem:[#allocation2 + $0x20] sm:$0x1] %v502
      %v504 = vld [vmem:[#allocation2 + $0x2c] sm:$0x1]
      %v505 = vsel %vm494, 0, %v504
      %506 = vst [vmem:[#allocation2 + $0x2c] sm:$0x1] %v505
      %v507 = vld [vmem:[#allocation2 + $0x38] sm:$0x1]
      %v508 = vsel %vm494, 0, %v507
      %509 = vst [vmem:[#allocation2 + $0x38] sm:$0x1] %v508
      %v510 = vld [vmem:[#allocation2 + $0x44] sm:$0x1]
      %v511 = vsel %vm494, 0, %v510
      %512 = vst [vmem:[#allocation2 + $0x44] sm:$0x1] %v511
      %v513 = vld [vmem:[#allocation2 + $0x50] sm:$0x1]
      %v514 = vsel %vm494, 0, %v513
      %515 = vst [vmem:[#allocation2 + $0x50] sm:$0x1] %v514
      %v516 = vld [vmem:[#allocation2 + $0x5c] sm:$0x1]
      %v517 = vsel %vm494, 0, %v516
      %518 = vst [vmem:[#allocation2 + $0x5c] sm:$0x1] %v517
      %v519 = vld [vmem:[#allocation2 + $0x68] sm:$0x1]
      %v520 = vsel %vm494, 0, %v519
      %521 = vst [vmem:[#allocation2 + $0x68] sm:$0x1] %v520
      %v522 = vld [vmem:[#allocation2 + $0x74] sm:$0x1]
      %v523 = vsel %vm494, 0, %v522
      %524 = vst [vmem:[#allocation2 + $0x74] sm:$0x1] %v523
      %v525 = vld [vmem:[#allocation2 + $0x80] sm:$0x1]
      %v526 = vsel %vm494, 0, %v525
      %527 = vst [vmem:[#allocation2 + $0x80] sm:$0x1] %v526
      %v528 = vld [vmem:[#allocation2 + $0x8c] sm:$0x1]
      %v529 = vsel %vm494, 0, %v528
      %530 = vst [vmem:[#allocation2 + $0x8c] sm:$0x1] %v529
      %v531 = vld [vmem:[#allocation2 + $0x98] sm:$0x1]
      %v532 = vsel %vm494, 0, %v531
      %533 = vst [vmem:[#allocation2 + $0x98] sm:$0x1] %v532
      %v534 = vld [vmem:[#allocation2 + $0xa4] sm:$0x1]
      %v535 = vsel %vm494, 0, %v534
      %536 = vst [vmem:[#allocation2 + $0xa4] sm:$0x1] %v535
      %v537 = vld [vmem:[#allocation2 + $0xb0] sm:$0x1]
      %v538 = vsel %vm494, 0, %v537
      %539 = vst [vmem:[#allocation2 + $0xb0] sm:$0x1] %v538
      %v540 = vld [vmem:[#allocation2 + $0xbc] sm:$0x1]
      %v541 = vsel %vm494, 0, %v540
      %542 = vst [vmem:[#allocation2 + $0xbc] sm:$0x1] %v541
      %v543 = vld [vmem:[#allocation2 + $0xc8] sm:$0x1]
      %v544 = vsel %vm494, 0, %v543
      %545 = vst [vmem:[#allocation2 + $0xc8] sm:$0x1] %v544
      %v546 = vld [vmem:[#allocation2 + $0xd4] sm:$0x1]
      %v547 = vsel %vm494, 0, %v546
      %548 = vst [vmem:[#allocation2 + $0xd4] sm:$0x1] %v547
      %v565 = vunpack.c.l.b16 %v411
      %v566 = vunpack.c.h.b16 %v411
      %v567 = vunpack.c.l.b16 %v412
      %v568 = vunpack.c.h.b16 %v412
      %v569 = vunpack.c.l.b16 %v413
      %v570 = vunpack.c.h.b16 %v413
      %v571 = vunpack.c.l.b16 %v414
      %v572 = vunpack.c.h.b16 %v414
      %v573 = vunpack.c.l.b16 %v415
      %v574 = vunpack.c.h.b16 %v415
      %v575 = vunpack.c.l.b16 %v416
      %v576 = vunpack.c.h.b16 %v416
      %v577 = vunpack.c.l.b16 %v417
      %v578 = vunpack.c.h.b16 %v417
      %v579 = vunpack.c.l.b16 %v418
      %v580 = vunpack.c.h.b16 %v418
      %v581 = vunpack.c.l.b16 %v419
      %v582 = vunpack.c.h.b16 %v419
      %v583 = vunpack.c.l.b16 %v420
      %v584 = vunpack.c.h.b16 %v420
      %v585 = vunpack.c.l.b16 %v421
      %v586 = vunpack.c.h.b16 %v421
      %v587 = vunpack.c.l.b16 %v422
      %v588 = vunpack.c.h.b16 %v422
      %v589 = vunpack.c.l.b16 %v423
      %v590 = vunpack.c.h.b16 %v423
      %v591 = vunpack.c.l.b16 %v424
      %v592 = vunpack.c.h.b16 %v424
      %v593 = vunpack.c.l.b16 %v425
      %v594 = vunpack.c.h.b16 %v425
      %v595 = vunpack.c.l.b16 %v426
      %v596 = vunpack.c.h.b16 %v426
      %v597 = vpack.c.b16 %v565, %v565
      %v598 = vpack.c.b16 %v566, %v566
      %v599 = vpack.c.b16 %v567, %v567
      %v600 = vpack.c.b16 %v568, %v568
      %v601 = vpack.c.b16 %v569, %v569
      %v602 = vpack.c.b16 %v570, %v570
      %v603 = vpack.c.b16 %v571, %v571
      %v604 = vpack.c.b16 %v572, %v572
      %v605 = vpack.c.b16 %v573, %v573
      %v606 = vpack.c.b16 %v574, %v574
      %v607 = vpack.c.b16 %v575, %v575
      %v608 = vpack.c.b16 %v576, %v576
      %v609 = vpack.c.b16 %v577, %v577
      %v610 = vpack.c.b16 %v578, %v578
      %v611 = vpack.c.b16 %v579, %v579
      %v612 = vpack.c.b16 %v580, %v580
      %v613 = vpack.c.b16 %v581, %v581
      %v614 = vpack.c.b16 %v582, %v582
      %v615 = vpack.c.b16 %v583, %v583
      %v616 = vpack.c.b16 %v584, %v584
      %v617 = vpack.c.b16 %v585, %v585
      %v618 = vpack.c.b16 %v586, %v586
      %v619 = vpack.c.b16 %v587, %v587
      %v620 = vpack.c.b16 %v588, %v588
      %v621 = vpack.c.b16 %v589, %v589
      %v622 = vpack.c.b16 %v590, %v590
      %v623 = vpack.c.b16 %v591, %v591
      %v624 = vpack.c.b16 %v592, %v592
      %v625 = vpack.c.b16 %v593, %v593
      %v626 = vpack.c.b16 %v594, %v594
      %v627 = vpack.c.b16 %v595, %v595
      %v628 = vpack.c.b16 %v596, %v596
      %vm629 = vsmask.f32 4368
      %vm630 = vmor %vm437, %vm629
      %v632 = vshrl.u32 %v597, 16
      %v634 = vrot.slane %v632, 7
      %v635 = vshll.u32 %v597, 16
      %v637 = vor.u32 %v634, %v635
      %v638 = vrot.slane %v634, 4
      %v640 = vshrl.u32 %v598, 16
      %v642 = vrot.slane %v640, 7
      %v643 = vshll.u32 %v598, 16
      %v645 = vor.u32 %v642, %v643
      %v646 = vsel %vm630, %v638, %v645
      %v647 = vrot.slane %v642, 4
      %v649 = vshrl.u32 %v599, 16
      %v651 = vrot.slane %v649, 7
      %v652 = vshll.u32 %v599, 16
      %v654 = vor.u32 %v651, %v652
      %v655 = vrot.slane %v651, 4
      %v657 = vshrl.u32 %v600, 16
      %v659 = vrot.slane %v657, 7
      %v660 = vshll.u32 %v600, 16
      %v662 = vor.u32 %v659, %v660
      %v663 = vsel %vm630, %v655, %v662
      %v664 = vrot.slane %v659, 4
      %v666 = vshrl.u32 %v601, 16
      %v668 = vrot.slane %v666, 7
      %v669 = vshll.u32 %v601, 16
      %v671 = vor.u32 %v668, %v669
      %v672 = vrot.slane %v668, 4
      %v674 = vshrl.u32 %v602, 16
      %v676 = vrot.slane %v674, 7
      %v677 = vshll.u32 %v602, 16
      %v679 = vor.u32 %v676, %v677
      %v680 = vsel %vm630, %v672, %v679
      %v681 = vrot.slane %v676, 4
      %v683 = vshrl.u32 %v603, 16
      %v685 = vrot.slane %v683, 7
      %v686 = vshll.u32 %v603, 16
      %v688 = vor.u32 %v685, %v686
      %v689 = vrot.slane %v685, 4
      %v691 = vshrl.u32 %v604, 16
      %v693 = vrot.slane %v691, 7
      %v694 = vshll.u32 %v604, 16
      %v696 = vor.u32 %v693, %v694
      %v697 = vsel %vm630, %v689, %v696
      %v698 = vrot.slane %v693, 4
      %v700 = vshrl.u32 %v605, 16
      %v702 = vrot.slane %v700, 7
      %v703 = vshll.u32 %v605, 16
      %v705 = vor.u32 %v702, %v703
      %v706 = vrot.slane %v702, 4
      %v708 = vshrl.u32 %v606, 16
      %v710 = vrot.slane %v708, 7
      %v711 = vshll.u32 %v606, 16
      %v713 = vor.u32 %v710, %v711
      %v714 = vsel %vm630, %v706, %v713
      %v715 = vrot.slane %v710, 4
      %v717 = vshrl.u32 %v607, 16
      %v719 = vrot.slane %v717, 7
      %v720 = vshll.u32 %v607, 16
      %v722 = vor.u32 %v719, %v720
      %v723 = vrot.slane %v719, 4
      %v725 = vshrl.u32 %v608, 16
      %v727 = vrot.slane %v725, 7
      %v728 = vshll.u32 %v608, 16
      %v730 = vor.u32 %v727, %v728
      %v731 = vsel %vm630, %v723, %v730
      %v732 = vrot.slane %v727, 4
      %v734 = vshrl.u32 %v609, 16
      %v736 = vrot.slane %v734, 7
      %v737 = vshll.u32 %v609, 16
      %v739 = vor.u32 %v736, %v737
      %v740 = vrot.slane %v736, 4
      %v742 = vshrl.u32 %v610, 16
      %v744 = vrot.slane %v742, 7
      %v745 = vshll.u32 %v610, 16
      %v747 = vor.u32 %v744, %v745
      %v748 = vsel %vm630, %v740, %v747
      %v749 = vrot.slane %v744, 4
      %v751 = vshrl.u32 %v611, 16
      %v753 = vrot.slane %v751, 7
      %v754 = vshll.u32 %v611, 16
      %v756 = vor.u32 %v753, %v754
      %v757 = vrot.slane %v753, 4
      %v759 = vshrl.u32 %v612, 16
      %v761 = vrot.slane %v759, 7
      %v762 = vshll.u32 %v612, 16
      %v764 = vor.u32 %v761, %v762
      %v765 = vsel %vm630, %v757, %v764
      %v766 = vrot.slane %v761, 4
      %v768 = vshrl.u32 %v613, 16
      %v770 = vrot.slane %v768, 7
      %v771 = vshll.u32 %v613, 16
      %v773 = vor.u32 %v770, %v771
      %v774 = vrot.slane %v770, 4
      %v776 = vshrl.u32 %v614, 16
      %v778 = vrot.slane %v776, 7
      %v779 = vshll.u32 %v614, 16
      %v781 = vor.u32 %v778, %v779
      %v782 = vsel %vm630, %v774, %v781
      %v783 = vrot.slane %v778, 4
      %v785 = vshrl.u32 %v615, 16
      %v787 = vrot.slane %v785, 7
      %v788 = vshll.u32 %v615, 16
      %v790 = vor.u32 %v787, %v788
      %v791 = vrot.slane %v787, 4
      %v793 = vshrl.u32 %v616, 16
      %v795 = vrot.slane %v793, 7
      %v796 = vshll.u32 %v616, 16
      %v798 = vor.u32 %v795, %v796
      %v799 = vsel %vm630, %v791, %v798
      %v800 = vrot.slane %v795, 4
      %v802 = vshrl.u32 %v617, 16
      %v804 = vrot.slane %v802, 7
      %v805 = vshll.u32 %v617, 16
      %v807 = vor.u32 %v804, %v805
      %v808 = vrot.slane %v804, 4
      %v810 = vshrl.u32 %v618, 16
      %v812 = vrot.slane %v810, 7
      %v813 = vshll.u32 %v618, 16
      %v815 = vor.u32 %v812, %v813
      %v816 = vsel %vm630, %v808, %v815
      %v817 = vrot.slane %v812, 4
      %v819 = vshrl.u32 %v619, 16
      %v821 = vrot.slane %v819, 7
      %v822 = vshll.u32 %v619, 16
      %v824 = vor.u32 %v821, %v822
      %v825 = vrot.slane %v821, 4
      %v827 = vshrl.u32 %v620, 16
      %v829 = vrot.slane %v827, 7
      %v830 = vshll.u32 %v620, 16
      %v832 = vor.u32 %v829, %v830
      %v833 = vsel %vm630, %v825, %v832
      %v834 = vrot.slane %v829, 4
      %v836 = vshrl.u32 %v621, 16
      %v838 = vrot.slane %v836, 7
      %v839 = vshll.u32 %v621, 16
      %v841 = vor.u32 %v838, %v839
      %v842 = vrot.slane %v838, 4
      %v844 = vshrl.u32 %v622, 16
      %v846 = vrot.slane %v844, 7
      %v847 = vshll.u32 %v622, 16
      %v849 = vor.u32 %v846, %v847
      %v850 = vsel %vm630, %v842, %v849
      %v851 = vrot.slane %v846, 4
      %v853 = vshrl.u32 %v623, 16
      %v855 = vrot.slane %v853, 7
      %v856 = vshll.u32 %v623, 16
      %v858 = vor.u32 %v855, %v856
      %v859 = vrot.slane %v855, 4
      %v861 = vshrl.u32 %v624, 16
      %v863 = vrot.slane %v861, 7
      %v864 = vshll.u32 %v624, 16
      %v866 = vor.u32 %v863, %v864
      %v867 = vsel %vm630, %v859, %v866
      %v868 = vrot.slane %v863, 4
      %v870 = vshrl.u32 %v625, 16
      %v872 = vrot.slane %v870, 7
      %v873 = vshll.u32 %v625, 16
      %v875 = vor.u32 %v872, %v873
      %v876 = vrot.slane %v872, 4
      %v878 = vshrl.u32 %v626, 16
      %v880 = vrot.slane %v878, 7
      %v881 = vshll.u32 %v626, 16
      %v883 = vor.u32 %v880, %v881
      %v884 = vsel %vm630, %v876, %v883
      %v885 = vrot.slane %v880, 4
      %v887 = vshrl.u32 %v627, 16
      %v889 = vrot.slane %v887, 7
      %v890 = vshll.u32 %v627, 16
      %v892 = vor.u32 %v889, %v890
      %v893 = vrot.slane %v889, 4
      %v895 = vshrl.u32 %v628, 16
      %v897 = vrot.slane %v895, 7
      %v898 = vshll.u32 %v628, 16
      %v900 = vor.u32 %v897, %v898
      %v901 = vsel %vm630, %v893, %v900
      %v902 = vrot.slane %v897, 4
      %s951 = scalar_lea.vmem [#allocation2], 12
      %vm952 = vcmask 60416
      %vm953 = vmand %vm952, %vm493
      %v954 = vld [vmem:[%s951] sm:$0xf]
      %v955 = vsel %vm953, %v637, %v954
      %956 = vst [vmem:[%s951] sm:$0xf] %v955
      %957 = vst.msk [vmem:[%s951 + $0x4] sm:$0xf] %vm427, %v646
      %v958 = vld [vmem:[%s951 + $0x8] sm:$0x1]
      %v959 = vsel %vm438, %v647, %v958
      %960 = vst [vmem:[%s951 + $0x8] sm:$0x1] %v959
      %v961 = vld [vmem:[%s951 + $0xc] sm:$0xf]
      %v962 = vsel %vm953, %v654, %v961
      %963 = vst [vmem:[%s951 + $0xc] sm:$0xf] %v962
      %964 = vst.msk [vmem:[%s951 + $0x10] sm:$0xf] %vm427, %v663
      %v965 = vld [vmem:[%s951 + $0x14] sm:$0x1]
      %v966 = vsel %vm438, %v664, %v965
      %967 = vst [vmem:[%s951 + $0x14] sm:$0x1] %v966
      %v968 = vld [vmem:[%s951 + $0x18] sm:$0xf]
      %v969 = vsel %vm953, %v671, %v968
      %970 = vst [vmem:[%s951 + $0x18] sm:$0xf] %v969
      %971 = vst.msk [vmem:[%s951 + $0x1c] sm:$0xf] %vm427, %v680
      %v972 = vld [vmem:[%s951 + $0x20] sm:$0x1]
      %v973 = vsel %vm438, %v681, %v972
      %974 = vst [vmem:[%s951 + $0x20] sm:$0x1] %v973
      %v975 = vld [vmem:[%s951 + $0x24] sm:$0xf]
      %v976 = vsel %vm953, %v688, %v975
      %977 = vst [vmem:[%s951 + $0x24] sm:$0xf] %v976
      %978 = vst.msk [vmem:[%s951 + $0x28] sm:$0xf] %vm427, %v697
      %v979 = vld [vmem:[%s951 + $0x2c] sm:$0x1]
      %v980 = vsel %vm438, %v698, %v979
      %981 = vst [vmem:[%s951 + $0x2c] sm:$0x1] %v980
      %v982 = vld [vmem:[%s951 + $0x30] sm:$0xf]
      %v983 = vsel %vm953, %v705, %v982
      %984 = vst [vmem:[%s951 + $0x30] sm:$0xf] %v983
      %985 = vst.msk [vmem:[%s951 + $0x34] sm:$0xf] %vm427, %v714
      %v986 = vld [vmem:[%s951 + $0x38] sm:$0x1]
      %v987 = vsel %vm438, %v715, %v986
      %988 = vst [vmem:[%s951 + $0x38] sm:$0x1] %v987
      %v989 = vld [vmem:[%s951 + $0x3c] sm:$0xf]
      %v990 = vsel %vm953, %v722, %v989
      %991 = vst [vmem:[%s951 + $0x3c] sm:$0xf] %v990
      %992 = vst.msk [vmem:[%s951 + $0x40] sm:$0xf] %vm427, %v731
      %v993 = vld [vmem:[%s951 + $0x44] sm:$0x1]
      %v994 = vsel %vm438, %v732, %v993
      %995 = vst [vmem:[%s951 + $0x44] sm:$0x1] %v994
      %v996 = vld [vmem:[%s951 + $0x48] sm:$0xf]
      %v997 = vsel %vm953, %v739, %v996
      %998 = vst [vmem:[%s951 + $0x48] sm:$0xf] %v997
      %999 = vst.msk [vmem:[%s951 + $0x4c] sm:$0xf] %vm427, %v748
      %v1000 = vld [vmem:[%s951 + $0x50] sm:$0x1]
      %v1001 = vsel %vm438, %v749, %v1000
      %1002 = vst [vmem:[%s951 + $0x50] sm:$0x1] %v1001
      %v1003 = vld [vmem:[%s951 + $0x54] sm:$0xf]
      %v1004 = vsel %vm953, %v756, %v1003
      %1005 = vst [vmem:[%s951 + $0x54] sm:$0xf] %v1004
      %1006 = vst.msk [vmem:[%s951 + $0x58] sm:$0xf] %vm427, %v765
      %v1007 = vld [vmem:[%s951 + $0x5c] sm:$0x1]
      %v1008 = vsel %vm438, %v766, %v1007
      %1009 = vst [vmem:[%s951 + $0x5c] sm:$0x1] %v1008
      %v1010 = vld [vmem:[%s951 + $0x60] sm:$0xf]
      %v1011 = vsel %vm953, %v773, %v1010
      %1012 = vst [vmem:[%s951 + $0x60] sm:$0xf] %v1011
      %1013 = vst.msk [vmem:[%s951 + $0x64] sm:$0xf] %vm427, %v782
      %v1014 = vld [vmem:[%s951 + $0x68] sm:$0x1]
      %v1015 = vsel %vm438, %v783, %v1014
      %1016 = vst [vmem:[%s951 + $0x68] sm:$0x1] %v1015
      %v1017 = vld [vmem:[%s951 + $0x6c] sm:$0xf]
      %v1018 = vsel %vm953, %v790, %v1017
      %1019 = vst [vmem:[%s951 + $0x6c] sm:$0xf] %v1018
      %1020 = vst.msk [vmem:[%s951 + $0x70] sm:$0xf] %vm427, %v799
      %v1021 = vld [vmem:[%s951 + $0x74] sm:$0x1]
      %v1022 = vsel %vm438, %v800, %v1021
      %1023 = vst [vmem:[%s951 + $0x74] sm:$0x1] %v1022
      %v1024 = vld [vmem:[%s951 + $0x78] sm:$0xf]
      %v1025 = vsel %vm953, %v807, %v1024
      %1026 = vst [vmem:[%s951 + $0x78] sm:$0xf] %v1025
      %1027 = vst.msk [vmem:[%s951 + $0x7c] sm:$0xf] %vm427, %v816
      %v1028 = vld [vmem:[%s951 + $0x80] sm:$0x1]
      %v1029 = vsel %vm438, %v817, %v1028
      %1030 = vst [vmem:[%s951 + $0x80] sm:$0x1] %v1029
      %v1031 = vld [vmem:[%s951 + $0x84] sm:$0xf]
      %v1032 = vsel %vm953, %v824, %v1031
      %1033 = vst [vmem:[%s951 + $0x84] sm:$0xf] %v1032
      %1034 = vst.msk [vmem:[%s951 + $0x88] sm:$0xf] %vm427, %v833
      %v1035 = vld [vmem:[%s951 + $0x8c] sm:$0x1]
      %v1036 = vsel %vm438, %v834, %v1035
      %1037 = vst [vmem:[%s951 + $0x8c] sm:$0x1] %v1036
      %v1038 = vld [vmem:[%s951 + $0x90] sm:$0xf]
      %v1039 = vsel %vm953, %v841, %v1038
      %1040 = vst [vmem:[%s951 + $0x90] sm:$0xf] %v1039
      %1041 = vst.msk [vmem:[%s951 + $0x94] sm:$0xf] %vm427, %v850
      %v1042 = vld [vmem:[%s951 + $0x98] sm:$0x1]
      %v1043 = vsel %vm438, %v851, %v1042
      %1044 = vst [vmem:[%s951 + $0x98] sm:$0x1] %v1043
      %v1045 = vld [vmem:[%s951 + $0x9c] sm:$0xf]
      %v1046 = vsel %vm953, %v858, %v1045
      %1047 = vst [vmem:[%s951 + $0x9c] sm:$0xf] %v1046
      %1048 = vst.msk [vmem:[%s951 + $0xa0] sm:$0xf] %vm427, %v867
      %v1049 = vld [vmem:[%s951 + $0xa4] sm:$0x1]
      %v1050 = vsel %vm438, %v868, %v1049
      %1051 = vst [vmem:[%s951 + $0xa4] sm:$0x1] %v1050
      %v1052 = vld [vmem:[%s951 + $0xa8] sm:$0xf]
      %v1053 = vsel %vm953, %v875, %v1052
      %1054 = vst [vmem:[%s951 + $0xa8] sm:$0xf] %v1053
      %1055 = vst.msk [vmem:[%s951 + $0xac] sm:$0xf] %vm427, %v884
      %v1056 = vld [vmem:[%s951 + $0xb0] sm:$0x1]
      %v1057 = vsel %vm438, %v885, %v1056
      %1058 = vst [vmem:[%s951 + $0xb0] sm:$0x1] %v1057
      %v1059 = vld [vmem:[%s951 + $0xb4] sm:$0xf]
      %v1060 = vsel %vm953, %v892, %v1059
      %1061 = vst [vmem:[%s951 + $0xb4] sm:$0xf] %v1060
      %1062 = vst.msk [vmem:[%s951 + $0xb8] sm:$0xf] %vm427, %v901
      %v1063 = vld [vmem:[%s951 + $0xbc] sm:$0x1]
      %v1064 = vsel %vm438, %v902, %v1063
      %1065 = vst [vmem:[%s951 + $0xbc] sm:$0x1] %v1064
      %v1066 = vld [vmem:[#allocation2] sm:$0xf]
      %v1067 = vld [vmem:[#allocation2 + $0x4] sm:$0xf]
      %v1068 = vld [vmem:[#allocation2 + $0xc] sm:$0xf]
      %v1069 = vld [vmem:[#allocation2 + $0x10] sm:$0xf]
      %v1070 = vld [vmem:[#allocation2 + $0x18] sm:$0xf]
      %v1071 = vld [vmem:[#allocation2 + $0x1c] sm:$0xf]
      %v1072 = vld [vmem:[#allocation2 + $0x24] sm:$0xf]
      %v1073 = vld [vmem:[#allocation2 + $0x28] sm:$0xf]
      %v1074 = vld [vmem:[#allocation2 + $0x30] sm:$0xf]
      %v1075 = vld [vmem:[#allocation2 + $0x34] sm:$0xf]
      %v1076 = vld [vmem:[#allocation2 + $0x3c] sm:$0xf]
      %v1077 = vld [vmem:[#allocation2 + $0x40] sm:$0xf]
      %v1078 = vld [vmem:[#allocation2 + $0x48] sm:$0xf]
      %v1079 = vld [vmem:[#allocation2 + $0x4c] sm:$0xf]
      %v1080 = vld [vmem:[#allocation2 + $0x54] sm:$0xf]
      %v1081 = vld [vmem:[#allocation2 + $0x58] sm:$0xf]
      %v1082 = vld [vmem:[#allocation2 + $0x60] sm:$0xf]
      %v1083 = vld [vmem:[#allocation2 + $0x64] sm:$0xf]
      %v1084 = vld [vmem:[#allocation2 + $0x6c] sm:$0xf]
      %v1085 = vld [vmem:[#allocation2 + $0x70] sm:$0xf]
      %v1086 = vld [vmem:[#allocation2 + $0x78] sm:$0xf]
      %v1087 = vld [vmem:[#allocation2 + $0x7c] sm:$0xf]
      %v1088 = vld [vmem:[#allocation2 + $0x84] sm:$0xf]
      %v1089 = vld [vmem:[#allocation2 + $0x88] sm:$0xf]
      %v1090 = vld [vmem:[#allocation2 + $0x90] sm:$0xf]
      %v1091 = vld [vmem:[#allocation2 + $0x94] sm:$0xf]
      %v1092 = vld [vmem:[#allocation2 + $0x9c] sm:$0xf]
      %v1093 = vld [vmem:[#allocation2 + $0xa0] sm:$0xf]
      %v1094 = vld [vmem:[#allocation2 + $0xa8] sm:$0xf]
      %v1095 = vld [vmem:[#allocation2 + $0xac] sm:$0xf]
      %v1096 = vld [vmem:[#allocation2 + $0xb4] sm:$0xf]
      %v1097 = vld [vmem:[#allocation2 + $0xb8] sm:$0xf]
      %v1098 = vld [vmem:[#allocation2 + $0xc0] sm:$0xf]
      %v1099 = vld [vmem:[#allocation2 + $0xc4] sm:$0xf]
      %v1100 = vld [vmem:[#allocation2 + $0xcc] sm:$0xf]
      %v1101 = vld [vmem:[#allocation2 + $0xd0] sm:$0xf]
      %v1102 = vld [vmem:[#allocation2 + $0x8] sm:$0x1]
      %v1103 = vld [vmem:[#allocation2 + $0x14] sm:$0x1]
      %v1104 = vld [vmem:[#allocation2 + $0x20] sm:$0x1]
      %v1105 = vld [vmem:[#allocation2 + $0x2c] sm:$0x1]
      %v1106 = vld [vmem:[#allocation2 + $0x38] sm:$0x1]
      %v1107 = vld [vmem:[#allocation2 + $0x44] sm:$0x1]
      %v1108 = vld [vmem:[#allocation2 + $0x50] sm:$0x1]
      %v1109 = vld [vmem:[#allocation2 + $0x5c] sm:$0x1]
      %v1110 = vld [vmem:[#allocation2 + $0x68] sm:$0x1]
      %v1111 = vld [vmem:[#allocation2 + $0x74] sm:$0x1]
      %v1112 = vld [vmem:[#allocation2 + $0x80] sm:$0x1]
      %v1113 = vld [vmem:[#allocation2 + $0x8c] sm:$0x1]
      %v1114 = vld [vmem:[#allocation2 + $0x98] sm:$0x1]
      %v1115 = vld [vmem:[#allocation2 + $0xa4] sm:$0x1]
      %v1116 = vld [vmem:[#allocation2 + $0xb0] sm:$0x1]
      %v1117 = vld [vmem:[#allocation2 + $0xbc] sm:$0x1]
      %v1118 = vld [vmem:[#allocation2 + $0xc8] sm:$0x1]
      %v1119 = vld [vmem:[#allocation2 + $0xd4] sm:$0x1]
      %v1120 = vld [vmem:[#allocation2] sm:$0xe]
      %v1121 = vld [vmem:[#allocation2 + $0xc] sm:$0xe]
      %v1122 = vld [vmem:[#allocation2 + $0x18] sm:$0xe]
      %v1123 = vld [vmem:[#allocation2 + $0x24] sm:$0xe]
      %v1124 = vld [vmem:[#allocation2 + $0x30] sm:$0xe]
      %v1125 = vld [vmem:[#allocation2 + $0x3c] sm:$0xe]
      %v1126 = vld [vmem:[#allocation2 + $0x48] sm:$0xe]
      %v1127 = vld [vmem:[#allocation2 + $0x54] sm:$0xe]
      %v1128 = vld [vmem:[#allocation2 + $0x60] sm:$0xe]
      %v1129 = vld [vmem:[#allocation2 + $0x6c] sm:$0xe]
      %v1130 = vld [vmem:[#allocation2 + $0x78] sm:$0xe]
      %v1131 = vld [vmem:[#allocation2 + $0x84] sm:$0xe]
      %v1132 = vld [vmem:[#allocation2 + $0x90] sm:$0xe]
      %v1133 = vld [vmem:[#allocation2 + $0x9c] sm:$0xe]
      %v1134 = vld [vmem:[#allocation2 + $0xa8] sm:$0xe]
      %v1135 = vld [vmem:[#allocation2 + $0xb4] sm:$0xe]
      %v1136 = vld [vmem:[#allocation2 + $0xc0] sm:$0xe]
      %v1137 = vld [vmem:[#allocation2 + $0xcc] sm:$0xe]
      %v1174 = vunpack.c.l.b16 %v1066
      %v1175 = vunpack.c.l.b16 %v1067
      %v1176 = vunpack.c.l.b16 %v1068
      %v1177 = vunpack.c.l.b16 %v1069
      %v1178 = vunpack.c.l.b16 %v1070
      %v1179 = vunpack.c.l.b16 %v1071
      %v1180 = vunpack.c.l.b16 %v1072
      %v1181 = vunpack.c.l.b16 %v1073
      %v1182 = vunpack.c.l.b16 %v1074
      %v1183 = vunpack.c.l.b16 %v1075
      %v1184 = vunpack.c.l.b16 %v1076
      %v1185 = vunpack.c.l.b16 %v1077
      %v1186 = vunpack.c.l.b16 %v1078
      %v1187 = vunpack.c.l.b16 %v1079
      %v1188 = vunpack.c.l.b16 %v1080
      %v1189 = vunpack.c.l.b16 %v1081
      %v1190 = vunpack.c.l.b16 %v1082
      %v1191 = vunpack.c.l.b16 %v1083
      %v1192 = vunpack.c.l.b16 %v1084
      %v1193 = vunpack.c.l.b16 %v1085
      %v1194 = vunpack.c.l.b16 %v1086
      %v1195 = vunpack.c.l.b16 %v1087
      %v1196 = vunpack.c.l.b16 %v1088
      %v1197 = vunpack.c.l.b16 %v1089
      %v1198 = vunpack.c.l.b16 %v1090
      %v1199 = vunpack.c.l.b16 %v1091
      %v1200 = vunpack.c.l.b16 %v1092
      %v1201 = vunpack.c.l.b16 %v1093
      %v1202 = vunpack.c.l.b16 %v1094
      %v1203 = vunpack.c.l.b16 %v1095
      %v1204 = vunpack.c.l.b16 %v1096
      %v1205 = vunpack.c.l.b16 %v1097
      %v1206 = vunpack.c.l.b16 %v1098
      %v1207 = vunpack.c.l.b16 %v1099
      %v1208 = vunpack.c.l.b16 %v1100
      %v1209 = vunpack.c.l.b16 %v1101
      %v1210 = vpack.c.b16 %v1175, %v1174
      %v1211 = vpack.c.b16 %v1177, %v1176
      %v1212 = vpack.c.b16 %v1179, %v1178
      %v1213 = vpack.c.b16 %v1181, %v1180
      %v1214 = vpack.c.b16 %v1183, %v1182
      %v1215 = vpack.c.b16 %v1185, %v1184
      %v1216 = vpack.c.b16 %v1187, %v1186
      %v1217 = vpack.c.b16 %v1189, %v1188
      %v1218 = vpack.c.b16 %v1191, %v1190
      %v1219 = vpack.c.b16 %v1193, %v1192
      %v1220 = vpack.c.b16 %v1195, %v1194
      %v1221 = vpack.c.b16 %v1197, %v1196
      %v1222 = vpack.c.b16 %v1199, %v1198
      %v1223 = vpack.c.b16 %v1201, %v1200
      %v1224 = vpack.c.b16 %v1203, %v1202
      %v1225 = vpack.c.b16 %v1205, %v1204
      %v1226 = vpack.c.b16 %v1207, %v1206
      %v1227 = vpack.c.b16 %v1209, %v1208
      %v1246 = vunpack.c.l.b16 %v1102
      %v1247 = vunpack.c.l.b16 %v1103
      %v1248 = vunpack.c.l.b16 %v1104
      %v1249 = vunpack.c.l.b16 %v1105
      %v1250 = vunpack.c.l.b16 %v1106
      %v1251 = vunpack.c.l.b16 %v1107
      %v1252 = vunpack.c.l.b16 %v1108
      %v1253 = vunpack.c.l.b16 %v1109
      %v1254 = vunpack.c.l.b16 %v1110
      %v1255 = vunpack.c.l.b16 %v1111
      %v1256 = vunpack.c.l.b16 %v1112
      %v1257 = vunpack.c.l.b16 %v1113
      %v1258 = vunpack.c.l.b16 %v1114
      %v1259 = vunpack.c.l.b16 %v1115
      %v1260 = vunpack.c.l.b16 %v1116
      %v1261 = vunpack.c.l.b16 %v1117
      %v1262 = vunpack.c.l.b16 %v1118
      %v1263 = vunpack.c.l.b16 %v1119
      %v1264 = vpack.c.b16 %v1246, %v1246
      %v1265 = vpack.c.b16 %v1247, %v1247
      %v1266 = vpack.c.b16 %v1248, %v1248
      %v1267 = vpack.c.b16 %v1249, %v1249
      %v1268 = vpack.c.b16 %v1250, %v1250
      %v1269 = vpack.c.b16 %v1251, %v1251
      %v1270 = vpack.c.b16 %v1252, %v1252
      %v1271 = vpack.c.b16 %v1253, %v1253
      %v1272 = vpack.c.b16 %v1254, %v1254
      %v1273 = vpack.c.b16 %v1255, %v1255
      %v1274 = vpack.c.b16 %v1256, %v1256
      %v1275 = vpack.c.b16 %v1257, %v1257
      %v1276 = vpack.c.b16 %v1258, %v1258
      %v1277 = vpack.c.b16 %v1259, %v1259
      %v1278 = vpack.c.b16 %v1260, %v1260
      %v1279 = vpack.c.b16 %v1261, %v1261
      %v1280 = vpack.c.b16 %v1262, %v1262
      %v1281 = vpack.c.b16 %v1263, %v1263
      %vm1282 = vsmask.f32 7424
      %v1284 = vshrl.u32 %v1210, 16
      %v1286 = vshll.u32 %v1210, 16
      %v1288 = vrot.slane %v1286, 1
      %v1289 = vor.u32 %v1284, %v1288
      %v1291 = vshll.u32 %v1264, 16
      %v1293 = vrot.slane %v1291, 1
      %v1294 = vsel %vm1282, %v1289, %v1293
      %v1296 = vshrl.u32 %v1211, 16
      %v1298 = vshll.u32 %v1211, 16
      %v1300 = vrot.slane %v1298, 1
      %v1301 = vor.u32 %v1296, %v1300
      %v1303 = vshll.u32 %v1265, 16
      %v1305 = vrot.slane %v1303, 1
      %v1306 = vsel %vm1282, %v1301, %v1305
      %v1308 = vshrl.u32 %v1212, 16
      %v1310 = vshll.u32 %v1212, 16
      %v1312 = vrot.slane %v1310, 1
      %v1313 = vor.u32 %v1308, %v1312
      %v1315 = vshll.u32 %v1266, 16
      %v1317 = vrot.slane %v1315, 1
      %v1318 = vsel %vm1282, %v1313, %v1317
      %v1320 = vshrl.u32 %v1213, 16
      %v1322 = vshll.u32 %v1213, 16
      %v1324 = vrot.slane %v1322, 1
      %v1325 = vor.u32 %v1320, %v1324
      %v1327 = vshll.u32 %v1267, 16
      %v1329 = vrot.slane %v1327, 1
      %v1330 = vsel %vm1282, %v1325, %v1329
      %v1332 = vshrl.u32 %v1214, 16
      %v1334 = vshll.u32 %v1214, 16
      %v1336 = vrot.slane %v1334, 1
      %v1337 = vor.u32 %v1332, %v1336
      %v1339 = vshll.u32 %v1268, 16
      %v1341 = vrot.slane %v1339, 1
      %v1342 = vsel %vm1282, %v1337, %v1341
      %v1344 = vshrl.u32 %v1215, 16
      %v1346 = vshll.u32 %v1215, 16
      %v1348 = vrot.slane %v1346, 1
      %v1349 = vor.u32 %v1344, %v1348
      %v1351 = vshll.u32 %v1269, 16
      %v1353 = vrot.slane %v1351, 1
      %v1354 = vsel %vm1282, %v1349, %v1353
      %v1356 = vshrl.u32 %v1216, 16
      %v1358 = vshll.u32 %v1216, 16
      %v1360 = vrot.slane %v1358, 1
      %v1361 = vor.u32 %v1356, %v1360
      %v1363 = vshll.u32 %v1270, 16
      %v1365 = vrot.slane %v1363, 1
      %v1366 = vsel %vm1282, %v1361, %v1365
      %v1368 = vshrl.u32 %v1217, 16
      %v1370 = vshll.u32 %v1217, 16
      %v1372 = vrot.slane %v1370, 1
      %v1373 = vor.u32 %v1368, %v1372
      %v1375 = vshll.u32 %v1271, 16
      %v1377 = vrot.slane %v1375, 1
      %v1378 = vsel %vm1282, %v1373, %v1377
      %v1380 = vshrl.u32 %v1218, 16
      %v1382 = vshll.u32 %v1218, 16
      %v1384 = vrot.slane %v1382, 1
      %v1385 = vor.u32 %v1380, %v1384
      %v1387 = vshll.u32 %v1272, 16
      %v1389 = vrot.slane %v1387, 1
      %v1390 = vsel %vm1282, %v1385, %v1389
      %v1392 = vshrl.u32 %v1219, 16
      %v1394 = vshll.u32 %v1219, 16
      %v1396 = vrot.slane %v1394, 1
      %v1397 = vor.u32 %v1392, %v1396
      %v1399 = vshll.u32 %v1273, 16
      %v1401 = vrot.slane %v1399, 1
      %v1402 = vsel %vm1282, %v1397, %v1401
      %v1404 = vshrl.u32 %v1220, 16
      %v1406 = vshll.u32 %v1220, 16
      %v1408 = vrot.slane %v1406, 1
      %v1409 = vor.u32 %v1404, %v1408
      %v1411 = vshll.u32 %v1274, 16
      %v1413 = vrot.slane %v1411, 1
      %v1414 = vsel %vm1282, %v1409, %v1413
      %v1416 = vshrl.u32 %v1221, 16
      %v1418 = vshll.u32 %v1221, 16
      %v1420 = vrot.slane %v1418, 1
      %v1421 = vor.u32 %v1416, %v1420
      %v1423 = vshll.u32 %v1275, 16
      %v1425 = vrot.slane %v1423, 1
      %v1426 = vsel %vm1282, %v1421, %v1425
      %v1428 = vshrl.u32 %v1222, 16
      %v1430 = vshll.u32 %v1222, 16
      %v1432 = vrot.slane %v1430, 1
      %v1433 = vor.u32 %v1428, %v1432
      %v1435 = vshll.u32 %v1276, 16
      %v1437 = vrot.slane %v1435, 1
      %v1438 = vsel %vm1282, %v1433, %v1437
      %v1440 = vshrl.u32 %v1223, 16
      %v1442 = vshll.u32 %v1223, 16
      %v1444 = vrot.slane %v1442, 1
      %v1445 = vor.u32 %v1440, %v1444
      %v1447 = vshll.u32 %v1277, 16
      %v1449 = vrot.slane %v1447, 1
      %v1450 = vsel %vm1282, %v1445, %v1449
      %v1452 = vshrl.u32 %v1224, 16
      %v1454 = vshll.u32 %v1224, 16
      %v1456 = vrot.slane %v1454, 1
      %v1457 = vor.u32 %v1452, %v1456
      %v1459 = vshll.u32 %v1278, 16
      %v1461 = vrot.slane %v1459, 1
      %v1462 = vsel %vm1282, %v1457, %v1461
      %v1464 = vshrl.u32 %v1225, 16
      %v1466 = vshll.u32 %v1225, 16
      %v1468 = vrot.slane %v1466, 1
      %v1469 = vor.u32 %v1464, %v1468
      %v1471 = vshll.u32 %v1279, 16
      %v1473 = vrot.slane %v1471, 1
      %v1474 = vsel %vm1282, %v1469, %v1473
      %v1476 = vshrl.u32 %v1226, 16
      %v1478 = vshll.u32 %v1226, 16
      %v1480 = vrot.slane %v1478, 1
      %v1481 = vor.u32 %v1476, %v1480
      %v1483 = vshll.u32 %v1280, 16
      %v1485 = vrot.slane %v1483, 1
      %v1486 = vsel %vm1282, %v1481, %v1485
      %v1488 = vshrl.u32 %v1227, 16
      %v1490 = vshll.u32 %v1227, 16
      %v1492 = vrot.slane %v1490, 1
      %v1493 = vor.u32 %v1488, %v1492
      %v1495 = vshll.u32 %v1281, 16
      %v1497 = vrot.slane %v1495, 1
      %v1498 = vsel %vm1282, %v1493, %v1497
      %1499 = vrot.lane.b32.xlu0 %v1294, 8
      %v1500 = vpop.permute.xlu0 %1499
      %1501 = vrot.lane.b32.xlu0 %v1306, 8
      %v1502 = vpop.permute.xlu0 %1501
      %1503 = vrot.lane.b32.xlu0 %v1318, 8
      %v1504 = vpop.permute.xlu0 %1503
      %1505 = vrot.lane.b32.xlu0 %v1330, 8
      %v1506 = vpop.permute.xlu0 %1505
      %1507 = vrot.lane.b32.xlu0 %v1342, 8
      %v1508 = vpop.permute.xlu0 %1507
      %1509 = vrot.lane.b32.xlu0 %v1354, 8
      %v1510 = vpop.permute.xlu0 %1509
      %1511 = vrot.lane.b32.xlu0 %v1366, 8
      %v1512 = vpop.permute.xlu0 %1511
      %1513 = vrot.lane.b32.xlu0 %v1378, 8
      %v1514 = vpop.permute.xlu0 %1513
      %1515 = vrot.lane.b32.xlu0 %v1390, 8
      %v1516 = vpop.permute.xlu0 %1515
      %1517 = vrot.lane.b32.xlu0 %v1402, 8
      %v1518 = vpop.permute.xlu0 %1517
      %1519 = vrot.lane.b32.xlu0 %v1414, 8
      %v1520 = vpop.permute.xlu0 %1519
      %1521 = vrot.lane.b32.xlu0 %v1426, 8
      %v1522 = vpop.permute.xlu0 %1521
      %1523 = vrot.lane.b32.xlu0 %v1438, 8
      %v1524 = vpop.permute.xlu0 %1523
      %1525 = vrot.lane.b32.xlu0 %v1450, 8
      %v1526 = vpop.permute.xlu0 %1525
      %1527 = vrot.lane.b32.xlu0 %v1462, 8
      %v1528 = vpop.permute.xlu0 %1527
      %1529 = vrot.lane.b32.xlu0 %v1474, 8
      %v1530 = vpop.permute.xlu0 %1529
      %1531 = vrot.lane.b32.xlu0 %v1486, 8
      %v1532 = vpop.permute.xlu0 %1531
      %1533 = vrot.lane.b32.xlu0 %v1498, 8
      %v1534 = vpop.permute.xlu0 %1533
      %v1553 = vunpack.c.l.b16 %v1120
      %v1554 = vunpack.c.l.b16 %v1121
      %v1555 = vunpack.c.l.b16 %v1122
      %v1556 = vunpack.c.l.b16 %v1123
      %v1557 = vunpack.c.l.b16 %v1124
      %v1558 = vunpack.c.l.b16 %v1125
      %v1559 = vunpack.c.l.b16 %v1126
      %v1560 = vunpack.c.l.b16 %v1127
      %v1561 = vunpack.c.l.b16 %v1128
      %v1562 = vunpack.c.l.b16 %v1129
      %v1563 = vunpack.c.l.b16 %v1130
      %v1564 = vunpack.c.l.b16 %v1131
      %v1565 = vunpack.c.l.b16 %v1132
      %v1566 = vunpack.c.l.b16 %v1133
      %v1567 = vunpack.c.l.b16 %v1134
      %v1568 = vunpack.c.l.b16 %v1135
      %v1569 = vunpack.c.l.b16 %v1136
      %v1570 = vunpack.c.l.b16 %v1137
      %v1571 = vpack.c.b16 %v1175, %v1553
      %v1572 = vpack.c.b16 %v1177, %v1554
      %v1573 = vpack.c.b16 %v1179, %v1555
      %v1574 = vpack.c.b16 %v1181, %v1556
      %v1575 = vpack.c.b16 %v1183, %v1557
      %v1576 = vpack.c.b16 %v1185, %v1558
      %v1577 = vpack.c.b16 %v1187, %v1559
      %v1578 = vpack.c.b16 %v1189, %v1560
      %v1579 = vpack.c.b16 %v1191, %v1561
      %v1580 = vpack.c.b16 %v1193, %v1562
      %v1581 = vpack.c.b16 %v1195, %v1563
      %v1582 = vpack.c.b16 %v1197, %v1564
      %v1583 = vpack.c.b16 %v1199, %v1565
      %v1584 = vpack.c.b16 %v1201, %v1566
      %v1585 = vpack.c.b16 %v1203, %v1567
      %v1586 = vpack.c.b16 %v1205, %v1568
      %v1587 = vpack.c.b16 %v1207, %v1569
      %v1588 = vpack.c.b16 %v1209, %v1570
      %vm1589 = vcmask 1046528
      %v1590 = vrot.slane %v1571, 1
      %v1591 = vrot.slane %v1264, 1
      %v1592 = vsel %vm1589, %v1590, %v1591
      %v1593 = vrot.slane %v1572, 1
      %v1594 = vrot.slane %v1265, 1
      %v1595 = vsel %vm1589, %v1593, %v1594
      %v1596 = vrot.slane %v1573, 1
      %v1597 = vrot.slane %v1266, 1
      %v1598 = vsel %vm1589, %v1596, %v1597
      %v1599 = vrot.slane %v1574, 1
      %v1600 = vrot.slane %v1267, 1
      %v1601 = vsel %vm1589, %v1599, %v1600
      %v1602 = vrot.slane %v1575, 1
      %v1603 = vrot.slane %v1268, 1
      %v1604 = vsel %vm1589, %v1602, %v1603
      %v1605 = vrot.slane %v1576, 1
      %v1606 = vrot.slane %v1269, 1
      %v1607 = vsel %vm1589, %v1605, %v1606
      %v1608 = vrot.slane %v1577, 1
      %v1609 = vrot.slane %v1270, 1
      %v1610 = vsel %vm1589, %v1608, %v1609
      %v1611 = vrot.slane %v1578, 1
      %v1612 = vrot.slane %v1271, 1
      %v1613 = vsel %vm1589, %v1611, %v1612
      %v1614 = vrot.slane %v1579, 1
      %v1615 = vrot.slane %v1272, 1
      %v1616 = vsel %vm1589, %v1614, %v1615
      %v1617 = vrot.slane %v1580, 1
      %v1618 = vrot.slane %v1273, 1
      %v1619 = vsel %vm1589, %v1617, %v1618
      %v1620 = vrot.slane %v1581, 1
      %v1621 = vrot.slane %v1274, 1
      %v1622 = vsel %vm1589, %v1620, %v1621
      %v1623 = vrot.slane %v1582, 1
      %v1624 = vrot.slane %v1275, 1
      %v1625 = vsel %vm1589, %v1623, %v1624
      %v1626 = vrot.slane %v1583, 1
      %v1627 = vrot.slane %v1276, 1
      %v1628 = vsel %vm1589, %v1626, %v1627
      %v1629 = vrot.slane %v1584, 1
      %v1630 = vrot.slane %v1277, 1
      %v1631 = vsel %vm1589, %v1629, %v1630
      %v1632 = vrot.slane %v1585, 1
      %v1633 = vrot.slane %v1278, 1
      %v1634 = vsel %vm1589, %v1632, %v1633
      %v1635 = vrot.slane %v1586, 1
      %v1636 = vrot.slane %v1279, 1
      %v1637 = vsel %vm1589, %v1635, %v1636
      %v1638 = vrot.slane %v1587, 1
      %v1639 = vrot.slane %v1280, 1
      %v1640 = vsel %vm1589, %v1638, %v1639
      %v1641 = vrot.slane %v1588, 1
      %v1642 = vrot.slane %v1281, 1
      %v1643 = vsel %vm1589, %v1641, %v1642
      %1644 = vrot.lane.b32.xlu0 %v1592, 16
      %v1645 = vpop.permute.xlu0 %1644
      %1646 = vrot.lane.b32.xlu0 %v1595, 16
      %v1647 = vpop.permute.xlu0 %1646
      %1648 = vrot.lane.b32.xlu0 %v1598, 16
      %v1649 = vpop.permute.xlu0 %1648
      %1650 = vrot.lane.b32.xlu0 %v1601, 16
      %v1651 = vpop.permute.xlu0 %1650
      %1652 = vrot.lane.b32.xlu0 %v1604, 16
      %v1653 = vpop.permute.xlu0 %1652
      %1654 = vrot.lane.b32.xlu0 %v1607, 16
      %v1655 = vpop.permute.xlu0 %1654
      %1656 = vrot.lane.b32.xlu0 %v1610, 16
      %v1657 = vpop.permute.xlu0 %1656
      %1658 = vrot.lane.b32.xlu0 %v1613, 16
      %v1659 = vpop.permute.xlu0 %1658
      %1660 = vrot.lane.b32.xlu0 %v1616, 16
      %v1661 = vpop.permute.xlu0 %1660
      %1662 = vrot.lane.b32.xlu0 %v1619, 16
      %v1663 = vpop.permute.xlu0 %1662
      %1664 = vrot.lane.b32.xlu0 %v1622, 16
      %v1665 = vpop.permute.xlu0 %1664
      %1666 = vrot.lane.b32.xlu0 %v1625, 16
      %v1667 = vpop.permute.xlu0 %1666
      %1668 = vrot.lane.b32.xlu0 %v1628, 16
      %v1669 = vpop.permute.xlu0 %1668
      %1670 = vrot.lane.b32.xlu0 %v1631, 16
      %v1671 = vpop.permute.xlu0 %1670
      %1672 = vrot.lane.b32.xlu0 %v1634, 16
      %v1673 = vpop.permute.xlu0 %1672
      %1674 = vrot.lane.b32.xlu0 %v1637, 16
      %v1675 = vpop.permute.xlu0 %1674
      %1676 = vrot.lane.b32.xlu0 %v1640, 16
      %v1677 = vpop.permute.xlu0 %1676
      %1678 = vrot.lane.b32.xlu0 %v1643, 16
      %v1679 = vpop.permute.xlu0 %1678
      %vm1680 = vcmask 64512
      %v1682 = vsel %vm1680, %v1210, %v1500
      %v1684 = vsel %vm1680, %v1211, %v1502
      %v1686 = vsel %vm1680, %v1212, %v1504
      %v1688 = vsel %vm1680, %v1213, %v1506
      %v1690 = vsel %vm1680, %v1214, %v1508
      %v1692 = vsel %vm1680, %v1215, %v1510
      %v1694 = vsel %vm1680, %v1216, %v1512
      %v1696 = vsel %vm1680, %v1217, %v1514
      %v1698 = vsel %vm1680, %v1218, %v1516
      %v1700 = vsel %vm1680, %v1219, %v1518
      %v1702 = vsel %vm1680, %v1220, %v1520
      %v1704 = vsel %vm1680, %v1221, %v1522
      %v1706 = vsel %vm1680, %v1222, %v1524
      %v1708 = vsel %vm1680, %v1223, %v1526
      %v1710 = vsel %vm1680, %v1224, %v1528
      %v1712 = vsel %vm1680, %v1225, %v1530
      %v1714 = vsel %vm1680, %v1226, %v1532
      %v1716 = vsel %vm1680, %v1227, %v1534
      %vm1717 = vcmask 130048
      %v1719 = vsel %vm1717, %v1682, %v1645
      %v1721 = vsel %vm1717, %v1684, %v1647
      %v1723 = vsel %vm1717, %v1686, %v1649
      %v1725 = vsel %vm1717, %v1688, %v1651
      %v1727 = vsel %vm1717, %v1690, %v1653
      %v1729 = vsel %vm1717, %v1692, %v1655
      %v1731 = vsel %vm1717, %v1694, %v1657
      %v1733 = vsel %vm1717, %v1696, %v1659
      %v1735 = vsel %vm1717, %v1698, %v1661
      %v1737 = vsel %vm1717, %v1700, %v1663
      %v1739 = vsel %vm1717, %v1702, %v1665
      %v1741 = vsel %vm1717, %v1704, %v1667
      %v1743 = vsel %vm1717, %v1706, %v1669
      %v1745 = vsel %vm1717, %v1708, %v1671
      %v1747 = vsel %vm1717, %v1710, %v1673
      %v1749 = vsel %vm1717, %v1712, %v1675
      %v1751 = vsel %vm1717, %v1714, %v1677
      %v1753 = vsel %vm1717, %v1716, %v1679
      %v1754 = vld [vmem:[%s3] sm:$0xf]
      %v1755 = vld [vmem:[%s3 + $0x4] sm:$0xf]
      %v1756 = vld [vmem:[%s3 + $0x8] sm:$0xf]
      %s1757 = scalar_lea.vmem %s3, 12
      %v1758 = vld [vmem:[%s1757] sm:$0xf]
      %v1759 = vld [vmem:[%s1757 + $0x4] sm:$0xf]
      %v1760 = vld [vmem:[%s1757 + $0x8] sm:$0xf]
      %v1764 = vunpack.c.l.b16 %v1758
      %v1765 = vunpack.c.l.b16 %v1759
      %v1766 = vunpack.c.l.b16 %v1760
      %v1767 = vpack.c.b16 %v1765, %v1764
      %v1768 = vpack.c.b16 %v1766, %v1766
      %vm1770 = vcmask 195584
      %v1771 = vsel %vm1770, %v1721, 0
      %v1773 = vsel %vm1770, %v1723, 0
      %v1775 = vsel %vm1770, %v1725, 0
      %v1777 = vsel %vm1770, %v1727, 0
      %v1779 = vsel %vm1770, %v1729, 0
      %v1781 = vsel %vm1770, %v1731, 0
      %v1783 = vsel %vm1770, %v1733, 0
      %v1785 = vsel %vm1770, %v1735, 0
      %v1787 = vsel %vm1770, %v1737, 0
      %v1789 = vsel %vm1770, %v1739, 0
      %v1791 = vsel %vm1770, %v1741, 0
      %v1793 = vsel %vm1770, %v1743, 0
      %v1795 = vsel %vm1770, %v1745, 0
      %v1797 = vsel %vm1770, %v1747, 0
      %v1799 = vsel %vm1770, %v1749, 0
      %v1801 = vsel %vm1770, %v1751, 0
      %vm1803 = vcmask 1043456
      %v1805 = vsel %vm1803, %v1768, 0
      %1807 = vmatprep.subr.bf16.mxu0 0
      %1808 = vmatpush1.bf16.msra.mxu0 %v1767
      %1809 = vmatprep.subr.bf16.mxu0 0
      %1810 = vmatpush1.bf16.msra.mxu0 %v1805
      %1811 = vmatprep.subr.bf16.mxu0 0
      %1812 = vmatpush1.bf16.msra.mxu0 0
      %1813 = vmatprep.subr.bf16.mxu0 0
      %1814 = vmatpush1.bf16.msra.mxu0 0
      %1815 = vmatprep.subr.bf16.mxu0 0
      %1816 = vmatpush1.bf16.msra.mxu0 0
      %1817 = vmatprep.subr.bf16.mxu0 0
      %1818 = vmatpush1.bf16.msra.mxu0 0
      %1819 = vmatprep.subr.bf16.mxu0 0
      %1820 = vmatpush1.bf16.msra.mxu0 0
      %1821 = vmatprep.subr.bf16.mxu0 0
      %1822 = vmatpush1.bf16.msra.mxu0 0
      %1823 = vmatprep.subr.bf16.mxu0 0
      %1824 = vmatpush1.bf16.msra.mxu0 0
      %1825 = vmatprep.subr.bf16.mxu0 0
      %1826 = vmatpush1.bf16.msra.mxu0 0
      %1827 = vmatprep.subr.bf16.mxu0 0
      %1828 = vmatpush1.bf16.msra.mxu0 0
      %1829 = vmatprep.subr.bf16.mxu0 0
      %1830 = vmatpush1.bf16.msra.mxu0 0
      %1831 = vmatprep.subr.bf16.mxu0 0
      %1832 = vmatpush1.bf16.msra.mxu0 0
      %1833 = vmatprep.subr.bf16.mxu0 0
      %1834 = vmatpush1.bf16.msra.mxu0 0
      %1835 = vmatprep.subr.bf16.mxu0 0
      %1836 = vmatpush1.bf16.msra.mxu0 0
      %1837 = vmatprep.subr.bf16.mxu0 0
      %1838 = vmatpush1.bf16.msra.mxu0 0
      %1839 = vmatprep.mubr.bf16.mxu0 0
      %1840 = vmatmul.mubr.bf16.gmra.mrb[0].mxu0 %v1771
      %v1841 = vpop.f32.mrb[0].mxu0
      %v1842 = vadd.f32 0.0, %v1841
      %v1843 = vpop.f32.mrb[0].mxu0
      %v1844 = vpop.f32.mrb[0].mxu0
      %v1845 = vadd.f32 0.0, %v1844
      %v1846 = vpop.f32.mrb[0].mxu0
      %1847 = vmatprep.mubr.bf16.mxu0 0
      %1848 = vmatmul.mubr.bf16.gmra.mrb[0].mxu0 %v1773
      %v1849 = vpop.f32.mrb[0].mxu0
      %v1850 = vadd.f32 0.0, %v1849
      %v1851 = vpop.f32.mrb[0].mxu0
      %v1852 = vpop.f32.mrb[0].mxu0
      %v1853 = vadd.f32 0.0, %v1852
      %v1854 = vpop.f32.mrb[0].mxu0
      %1855 = vmatprep.mubr.bf16.mxu0 0
      %1856 = vmatmul.mubr.bf16.gmra.mrb[0].mxu0 %v1775
      %v1857 = vpop.f32.mrb[0].mxu0
      %v1858 = vadd.f32 0.0, %v1857
      %v1859 = vpop.f32.mrb[0].mxu0
      %v1860 = vpop.f32.mrb[0].mxu0
      %v1861 = vadd.f32 0.0, %v1860
      %v1862 = vpop.f32.mrb[0].mxu0
      %1863 = vmatprep.mubr.bf16.mxu0 0
      %1864 = vmatmul.mubr.bf16.gmra.mrb[0].mxu0 %v1777
      %v1865 = vpop.f32.mrb[0].mxu0
      %v1866 = vadd.f32 0.0, %v1865
      %v1867 = vpop.f32.mrb[0].mxu0
      %v1868 = vpop.f32.mrb[0].mxu0
      %v1869 = vadd.f32 0.0, %v1868
      %v1870 = vpop.f32.mrb[0].mxu0
      %1871 = vmatprep.mubr.bf16.mxu0 0
      %1872 = vmatmul.mubr.bf16.gmra.mrb[0].mxu0 %v1779
      %v1873 = vpop.f32.mrb[0].mxu0
      %v1874 = vadd.f32 0.0, %v1873
      %v1875 = vpop.f32.mrb[0].mxu0
      %v1876 = vpop.f32.mrb[0].mxu0
      %v1877 = vadd.f32 0.0, %v1876
      %v1878 = vpop.f32.mrb[0].mxu0
      %1879 = vmatprep.mubr.bf16.mxu0 0
      %1880 = vmatmul.mubr.bf16.gmra.mrb[0].mxu0 %v1781
      %v1881 = vpop.f32.mrb[0].mxu0
      %v1882 = vadd.f32 0.0, %v1881
      %v1883 = vpop.f32.mrb[0].mxu0
      %v1884 = vpop.f32.mrb[0].mxu0
      %v1885 = vadd.f32 0.0, %v1884
      %v1886 = vpop.f32.mrb[0].mxu0
      %1887 = vmatprep.mubr.bf16.mxu0 0
      %1888 = vmatmul.mubr.bf16.gmra.mrb[0].mxu0 %v1783
      %v1889 = vpop.f32.mrb[0].mxu0
      %v1890 = vadd.f32 0.0, %v1889
      %v1891 = vpop.f32.mrb[0].mxu0
      %v1892 = vpop.f32.mrb[0].mxu0
      %v1893 = vadd.f32 0.0, %v1892
      %v1894 = vpop.f32.mrb[0].mxu0
      %1895 = vmatprep.mubr.bf16.mxu0 0
      %1896 = vmatmul.mubr.bf16.gmra.mrb[0].mxu0 %v1785
      %v1897 = vpop.f32.mrb[0].mxu0
      %v1898 = vadd.f32 0.0, %v1897
      %v1899 = vpop.f32.mrb[0].mxu0
      %v1900 = vpop.f32.mrb[0].mxu0
      %v1901 = vadd.f32 0.0, %v1900
      %v1902 = vpop.f32.mrb[0].mxu0
      %1903 = vmatprep.mubr.bf16.mxu0 0
      %1904 = vmatmul.mubr.bf16.gmra.mrb[0].mxu0 %v1787
      %v1905 = vpop.f32.mrb[0].mxu0
      %v1906 = vadd.f32 0.0, %v1905
      %v1907 = vpop.f32.mrb[0].mxu0
      %v1908 = vpop.f32.mrb[0].mxu0
      %v1909 = vadd.f32 0.0, %v1908
      %v1910 = vpop.f32.mrb[0].mxu0
      %1911 = vmatprep.mubr.bf16.mxu0 0
      %1912 = vmatmul.mubr.bf16.gmra.mrb[0].mxu0 %v1789
      %v1913 = vpop.f32.mrb[0].mxu0
      %v1914 = vadd.f32 0.0, %v1913
      %v1915 = vpop.f32.mrb[0].mxu0
      %v1916 = vpop.f32.mrb[0].mxu0
      %v1917 = vadd.f32 0.0, %v1916
      %v1918 = vpop.f32.mrb[0].mxu0
      %1919 = vmatprep.mubr.bf16.mxu0 0
      %1920 = vmatmul.mubr.bf16.gmra.mrb[0].mxu0 %v1791
      %v1921 = vpop.f32.mrb[0].mxu0
      %v1922 = vadd.f32 0.0, %v1921
      %v1923 = vpop.f32.mrb[0].mxu0
      %v1924 = vpop.f32.mrb[0].mxu0
      %v1925 = vadd.f32 0.0, %v1924
      %v1926 = vpop.f32.mrb[0].mxu0
      %1927 = vmatprep.mubr.bf16.mxu0 0
      %1928 = vmatmul.mubr.bf16.gmra.mrb[0].mxu0 %v1793
      %v1929 = vpop.f32.mrb[0].mxu0
      %v1930 = vadd.f32 0.0, %v1929
      %v1931 = vpop.f32.mrb[0].mxu0
      %v1932 = vpop.f32.mrb[0].mxu0
      %v1933 = vadd.f32 0.0, %v1932
      %v1934 = vpop.f32.mrb[0].mxu0
      %1935 = vmatprep.mubr.bf16.mxu0 0
      %1936 = vmatmul.mubr.bf16.gmra.mrb[0].mxu0 %v1795
      %v1937 = vpop.f32.mrb[0].mxu0
      %v1938 = vadd.f32 0.0, %v1937
      %v1939 = vpop.f32.mrb[0].mxu0
      %v1940 = vpop.f32.mrb[0].mxu0
      %v1941 = vadd.f32 0.0, %v1940
      %v1942 = vpop.f32.mrb[0].mxu0
      %1943 = vmatprep.mubr.bf16.mxu0 0
      %1944 = vmatmul.mubr.bf16.gmra.mrb[0].mxu0 %v1797
      %v1945 = vpop.f32.mrb[0].mxu0
      %v1946 = vadd.f32 0.0, %v1945
      %v1947 = vpop.f32.mrb[0].mxu0
      %v1948 = vpop.f32.mrb[0].mxu0
      %v1949 = vadd.f32 0.0, %v1948
      %v1950 = vpop.f32.mrb[0].mxu0
      %1951 = vmatprep.mubr.bf16.mxu0 0
      %1952 = vmatmul.mubr.bf16.gmra.mrb[0].mxu0 %v1799
      %v1953 = vpop.f32.mrb[0].mxu0
      %v1954 = vadd.f32 0.0, %v1953
      %v1955 = vpop.f32.mrb[0].mxu0
      %v1956 = vpop.f32.mrb[0].mxu0
      %v1957 = vadd.f32 0.0, %v1956
      %v1958 = vpop.f32.mrb[0].mxu0
      %1959 = vmatprep.mubr.bf16.mxu0 0
      %1960 = vmatmul.mubr.bf16.gmra.mrb[0].mxu0 %v1801
      %v1961 = vpop.f32.mrb[0].mxu0
      %v1962 = vadd.f32 0.0, %v1961
      %v1963 = vpop.f32.mrb[0].mxu0
      %v1964 = vpop.f32.mrb[0].mxu0
      %v1965 = vadd.f32 0.0, %v1964
      %v1966 = vpop.f32.mrb[0].mxu0
      %1967 = vdwg.mxu0
      %v1971 = vunpack.c.l.b16 %v1754
      %v1972 = vunpack.c.l.b16 %v1755
      %v1973 = vunpack.c.l.b16 %v1756
      %v1974 = vpack.c.b16 %v1972, %v1971
      %v1975 = vpack.c.b16 %v1973, %v1973
      %v1977 = vsel %vm1770, %v1719, 0
      %v1980 = vsel %vm1803, %v1975, 0
      %1982 = vmatprep.subr.bf16.mxu0 0
      %1983 = vmatpush1.bf16.msra.mxu0 %v1974
      %1984 = vmatprep.subr.bf16.mxu0 0
      %1985 = vmatpush1.bf16.msra.mxu0 %v1980
      %1986 = vmatprep.subr.bf16.mxu0 0
      %1987 = vmatpush1.bf16.msra.mxu0 0
      %1988 = vmatprep.subr.bf16.mxu0 0
      %1989 = vmatpush1.bf16.msra.mxu0 0
      %1990 = vmatprep.subr.bf16.mxu0 0
      %1991 = vmatpush1.bf16.msra.mxu0 0
      %1992 = vmatprep.subr.bf16.mxu0 0
      %1993 = vmatpush1.bf16.msra.mxu0 0
      %1994 = vmatprep.subr.bf16.mxu0 0
      %1995 = vmatpush1.bf16.msra.mxu0 0
      %1996 = vmatprep.subr.bf16.mxu0 0
      %1997 = vmatpush1.bf16.msra.mxu0 0
      %1998 = vmatprep.subr.bf16.mxu0 0
      %1999 = vmatpush1.bf16.msra.mxu0 0
      %2000 = vmatprep.subr.bf16.mxu0 0
      %2001 = vmatpush1.bf16.msra.mxu0 0
      %2002 = vmatprep.subr.bf16.mxu0 0
      %2003 = vmatpush1.bf16.msra.mxu0 0
      %2004 = vmatprep.subr.bf16.mxu0 0
      %2005 = vmatpush1.bf16.msra.mxu0 0
      %2006 = vmatprep.subr.bf16.mxu0 0
      %2007 = vmatpush1.bf16.msra.mxu0 0
      %2008 = vmatprep.subr.bf16.mxu0 0
      %2009 = vmatpush1.bf16.msra.mxu0 0
      %2010 = vmatprep.subr.bf16.mxu0 0
      %2011 = vmatpush1.bf16.msra.mxu0 0
      %2012 = vmatprep.subr.bf16.mxu0 0
      %2013 = vmatpush1.bf16.msra.mxu0 0
      %2014 = vmatprep.mubr.bf16.mxu0 0
      %2015 = vmatmul.mubr.bf16.gmra.mrb[0].mxu0 %v1977
      %v2016 = vpop.f32.mrb[0].mxu0
      %v2017 = vadd.f32 %v1842, %v2016
      %v2018 = vpop.f32.mrb[0].mxu0
      %v2019 = vpop.f32.mrb[0].mxu0
      %v2020 = vadd.f32 %v1845, %v2019
      %v2021 = vpop.f32.mrb[0].mxu0
      %2022 = vmatprep.mubr.bf16.mxu0 0
      %2023 = vmatmul.mubr.bf16.gmra.mrb[0].mxu0 %v1771
      %v2024 = vpop.f32.mrb[0].mxu0
      %v2025 = vadd.f32 %v1850, %v2024
      %v2026 = vpop.f32.mrb[0].mxu0
      %v2027 = vpop.f32.mrb[0].mxu0
      %v2028 = vadd.f32 %v1853, %v2027
      %v2029 = vpop.f32.mrb[0].mxu0
      %2030 = vmatprep.mubr.bf16.mxu0 0
      %2031 = vmatmul.mubr.bf16.gmra.mrb[0].mxu0 %v1773
      %v2032 = vpop.f32.mrb[0].mxu0
      %v2033 = vadd.f32 %v1858, %v2032
      %v2034 = vpop.f32.mrb[0].mxu0
      %v2035 = vpop.f32.mrb[0].mxu0
      %v2036 = vadd.f32 %v1861, %v2035
      %v2037 = vpop.f32.mrb[0].mxu0
      %2038 = vmatprep.mubr.bf16.mxu0 0
      %2039 = vmatmul.mubr.bf16.gmra.mrb[0].mxu0 %v1775
      %v2040 = vpop.f32.mrb[0].mxu0
      %v2041 = vadd.f32 %v1866, %v2040
      %v2042 = vpop.f32.mrb[0].mxu0
      %v2043 = vpop.f32.mrb[0].mxu0
      %v2044 = vadd.f32 %v1869, %v2043
      %v2045 = vpop.f32.mrb[0].mxu0
      %2046 = vmatprep.mubr.bf16.mxu0 0
      %2047 = vmatmul.mubr.bf16.gmra.mrb[0].mxu0 %v1777
      %v2048 = vpop.f32.mrb[0].mxu0
      %v2049 = vadd.f32 %v1874, %v2048
      %v2050 = vpop.f32.mrb[0].mxu0
      %v2051 = vpop.f32.mrb[0].mxu0
      %v2052 = vadd.f32 %v1877, %v2051
      %v2053 = vpop.f32.mrb[0].mxu0
      %2054 = vmatprep.mubr.bf16.mxu0 0
      %2055 = vmatmul.mubr.bf16.gmra.mrb[0].mxu0 %v1779
      %v2056 = vpop.f32.mrb[0].mxu0
      %v2057 = vadd.f32 %v1882, %v2056
      %v2058 = vpop.f32.mrb[0].mxu0
      %v2059 = vpop.f32.mrb[0].mxu0
      %v2060 = vadd.f32 %v1885, %v2059
      %v2061 = vpop.f32.mrb[0].mxu0
      %2062 = vmatprep.mubr.bf16.mxu0 0
      %2063 = vmatmul.mubr.bf16.gmra.mrb[0].mxu0 %v1781
      %v2064 = vpop.f32.mrb[0].mxu0
      %v2065 = vadd.f32 %v1890, %v2064
      %v2066 = vpop.f32.mrb[0].mxu0
      %v2067 = vpop.f32.mrb[0].mxu0
      %v2068 = vadd.f32 %v1893, %v2067
      %v2069 = vpop.f32.mrb[0].mxu0
      %2070 = vmatprep.mubr.bf16.mxu0 0
      %2071 = vmatmul.mubr.bf16.gmra.mrb[0].mxu0 %v1783
      %v2072 = vpop.f32.mrb[0].mxu0
      %v2073 = vadd.f32 %v1898, %v2072
      %v2074 = vpop.f32.mrb[0].mxu0
      %v2075 = vpop.f32.mrb[0].mxu0
      %v2076 = vadd.f32 %v1901, %v2075
      %v2077 = vpop.f32.mrb[0].mxu0
      %2078 = vmatprep.mubr.bf16.mxu0 0
      %2079 = vmatmul.mubr.bf16.gmra.mrb[0].mxu0 %v1785
      %v2080 = vpop.f32.mrb[0].mxu0
      %v2081 = vadd.f32 %v1906, %v2080
      %v2082 = vpop.f32.mrb[0].mxu0
      %v2083 = vpop.f32.mrb[0].mxu0
      %v2084 = vadd.f32 %v1909, %v2083
      %v2085 = vpop.f32.mrb[0].mxu0
      %2086 = vmatprep.mubr.bf16.mxu0 0
      %2087 = vmatmul.mubr.bf16.gmra.mrb[0].mxu0 %v1787
      %v2088 = vpop.f32.mrb[0].mxu0
      %v2089 = vadd.f32 %v1914, %v2088
      %v2090 = vpop.f32.mrb[0].mxu0
      %v2091 = vpop.f32.mrb[0].mxu0
      %v2092 = vadd.f32 %v1917, %v2091
      %v2093 = vpop.f32.mrb[0].mxu0
      %2094 = vmatprep.mubr.bf16.mxu0 0
      %2095 = vmatmul.mubr.bf16.gmra.mrb[0].mxu0 %v1789
      %v2096 = vpop.f32.mrb[0].mxu0
      %v2097 = vadd.f32 %v1922, %v2096
      %v2098 = vpop.f32.mrb[0].mxu0
      %v2099 = vpop.f32.mrb[0].mxu0
      %v2100 = vadd.f32 %v1925, %v2099
      %v2101 = vpop.f32.mrb[0].mxu0
      %2102 = vmatprep.mubr.bf16.mxu0 0
      %2103 = vmatmul.mubr.bf16.gmra.mrb[0].mxu0 %v1791
      %v2104 = vpop.f32.mrb[0].mxu0
      %v2105 = vadd.f32 %v1930, %v2104
      %v2106 = vpop.f32.mrb[0].mxu0
      %v2107 = vpop.f32.mrb[0].mxu0
      %v2108 = vadd.f32 %v1933, %v2107
      %v2109 = vpop.f32.mrb[0].mxu0
      %2110 = vmatprep.mubr.bf16.mxu0 0
      %2111 = vmatmul.mubr.bf16.gmra.mrb[0].mxu0 %v1793
      %v2112 = vpop.f32.mrb[0].mxu0
      %v2113 = vadd.f32 %v1938, %v2112
      %v2114 = vpop.f32.mrb[0].mxu0
      %v2115 = vpop.f32.mrb[0].mxu0
      %v2116 = vadd.f32 %v1941, %v2115
      %v2117 = vpop.f32.mrb[0].mxu0
      %2118 = vmatprep.mubr.bf16.mxu0 0
      %2119 = vmatmul.mubr.bf16.gmra.mrb[0].mxu0 %v1795
      %v2120 = vpop.f32.mrb[0].mxu0
      %v2121 = vadd.f32 %v1946, %v2120
      %v2122 = vpop.f32.mrb[0].mxu0
      %v2123 = vpop.f32.mrb[0].mxu0
      %v2124 = vadd.f32 %v1949, %v2123
      %v2125 = vpop.f32.mrb[0].mxu0
      %2126 = vmatprep.mubr.bf16.mxu0 0
      %2127 = vmatmul.mubr.bf16.gmra.mrb[0].mxu0 %v1797
      %v2128 = vpop.f32.mrb[0].mxu0
      %v2129 = vadd.f32 %v1954, %v2128
      %v2130 = vpop.f32.mrb[0].mxu0
      %v2131 = vpop.f32.mrb[0].mxu0
      %v2132 = vadd.f32 %v1957, %v2131
      %v2133 = vpop.f32.mrb[0].mxu0
      %2134 = vmatprep.mubr.bf16.mxu0 0
      %2135 = vmatmul.mubr.bf16.gmra.mrb[0].mxu0 %v1799
      %v2136 = vpop.f32.mrb[0].mxu0
      %v2137 = vadd.f32 %v1962, %v2136
      %v2138 = vpop.f32.mrb[0].mxu0
      %v2139 = vpop.f32.mrb[0].mxu0
      %v2140 = vadd.f32 %v1965, %v2139
      %v2141 = vpop.f32.mrb[0].mxu0
      %2142 = vdwg.mxu0
      %s2143 = scalar_lea.vmem %s3, 24
      %v2144 = vld [vmem:[%s2143] sm:$0xf]
      %v2145 = vld [vmem:[%s2143 + $0x4] sm:$0xf]
      %v2146 = vld [vmem:[%s2143 + $0x8] sm:$0xf]
      %v2150 = vunpack.c.l.b16 %v2144
      %v2151 = vunpack.c.l.b16 %v2145
      %v2152 = vunpack.c.l.b16 %v2146
      %v2153 = vpack.c.b16 %v2151, %v2150
      %v2154 = vpack.c.b16 %v2152, %v2152
      %v2156 = vsel %vm1770, %v1753, 0
      %v2159 = vsel %vm1803, %v2154, 0
      %2161 = vmatprep.subr.bf16.mxu0 0
      %2162 = vmatpush1.bf16.msra.mxu0 %v2153
      %2163 = vmatprep.subr.bf16.mxu0 0
      %2164 = vmatpush1.bf16.msra.mxu0 %v2159
      %2165 = vmatprep.subr.bf16.mxu0 0
      %2166 = vmatpush1.bf16.msra.mxu0 0
      %2167 = vmatprep.subr.bf16.mxu0 0
      %2168 = vmatpush1.bf16.msra.mxu0 0
      %2169 = vmatprep.subr.bf16.mxu0 0
      %2170 = vmatpush1.bf16.msra.mxu0 0
      %2171 = vmatprep.subr.bf16.mxu0 0
      %2172 = vmatpush1.bf16.msra.mxu0 0
      %2173 = vmatprep.subr.bf16.mxu0 0
      %2174 = vmatpush1.bf16.msra.mxu0 0
      %2175 = vmatprep.subr.bf16.mxu0 0
      %2176 = vmatpush1.bf16.msra.mxu0 0
      %2177 = vmatprep.subr.bf16.mxu0 0
      %2178 = vmatpush1.bf16.msra.mxu0 0
      %2179 = vmatprep.subr.bf16.mxu0 0
      %2180 = vmatpush1.bf16.msra.mxu0 0
      %2181 = vmatprep.subr.bf16.mxu0 0
      %2182 = vmatpush1.bf16.msra.mxu0 0
      %2183 = vmatprep.subr.bf16.mxu0 0
      %2184 = vmatpush1.bf16.msra.mxu0 0
      %2185 = vmatprep.subr.bf16.mxu0 0
      %2186 = vmatpush1.bf16.msra.mxu0 0
      %2187 = vmatprep.subr.bf16.mxu0 0
      %2188 = vmatpush1.bf16.msra.mxu0 0
      %2189 = vmatprep.subr.bf16.mxu0 0
      %2190 = vmatpush1.bf16.msra.mxu0 0
      %2191 = vmatprep.subr.bf16.mxu0 0
      %2192 = vmatpush1.bf16.msra.mxu0 0
      %2193 = vmatprep.mubr.bf16.mxu0 0
      %2194 = vmatmul.mubr.bf16.gmra.mrb[0].mxu0 %v1773
      %v2195 = vpop.f32.mrb[0].mxu0
      %v2196 = vadd.f32 0.0, %v2195
      %v2197 = vpop.f32.mrb[0].mxu0
      %v2198 = vpop.f32.mrb[0].mxu0
      %v2199 = vadd.f32 0.0, %v2198
      %v2200 = vpop.f32.mrb[0].mxu0
      %2201 = vmatprep.mubr.bf16.mxu0 0
      %2202 = vmatmul.mubr.bf16.gmra.mrb[0].mxu0 %v1775
      %v2203 = vpop.f32.mrb[0].mxu0
      %v2204 = vadd.f32 0.0, %v2203
      %v2205 = vpop.f32.mrb[0].mxu0
      %v2206 = vpop.f32.mrb[0].mxu0
      %v2207 = vadd.f32 0.0, %v2206
      %v2208 = vpop.f32.mrb[0].mxu0
      %2209 = vmatprep.mubr.bf16.mxu0 0
      %2210 = vmatmul.mubr.bf16.gmra.mrb[0].mxu0 %v1777
      %v2211 = vpop.f32.mrb[0].mxu0
      %v2212 = vadd.f32 0.0, %v2211
      %v2213 = vpop.f32.mrb[0].mxu0
      %v2214 = vpop.f32.mrb[0].mxu0
      %v2215 = vadd.f32 0.0, %v2214
      %v2216 = vpop.f32.mrb[0].mxu0
      %2217 = vmatprep.mubr.bf16.mxu0 0
      %2218 = vmatmul.mubr.bf16.gmra.mrb[0].mxu0 %v1779
      %v2219 = vpop.f32.mrb[0].mxu0
      %v2220 = vadd.f32 0.0, %v2219
      %v2221 = vpop.f32.mrb[0].mxu0
      %v2222 = vpop.f32.mrb[0].mxu0
      %v2223 = vadd.f32 0.0, %v2222
      %v2224 = vpop.f32.mrb[0].mxu0
      %2225 = vmatprep.mubr.bf16.mxu0 0
      %2226 = vmatmul.mubr.bf16.gmra.mrb[0].mxu0 %v1781
      %v2227 = vpop.f32.mrb[0].mxu0
      %v2228 = vadd.f32 0.0, %v2227
      %v2229 = vpop.f32.mrb[0].mxu0
      %v2230 = vpop.f32.mrb[0].mxu0
      %v2231 = vadd.f32 0.0, %v2230
      %v2232 = vpop.f32.mrb[0].mxu0
      %2233 = vmatprep.mubr.bf16.mxu0 0
      %2234 = vmatmul.mubr.bf16.gmra.mrb[0].mxu0 %v1783
      %v2235 = vpop.f32.mrb[0].mxu0
      %v2236 = vadd.f32 0.0, %v2235
      %v2237 = vpop.f32.mrb[0].mxu0
      %v2238 = vpop.f32.mrb[0].mxu0
      %v2239 = vadd.f32 0.0, %v2238
      %v2240 = vpop.f32.mrb[0].mxu0
      %2241 = vmatprep.mubr.bf16.mxu0 0
      %2242 = vmatmul.mubr.bf16.gmra.mrb[0].mxu0 %v1785
      %v2243 = vpop.f32.mrb[0].mxu0
      %v2244 = vadd.f32 0.0, %v2243
      %v2245 = vpop.f32.mrb[0].mxu0
      %v2246 = vpop.f32.mrb[0].mxu0
      %v2247 = vadd.f32 0.0, %v2246
      %v2248 = vpop.f32.mrb[0].mxu0
      %2249 = vmatprep.mubr.bf16.mxu0 0
      %2250 = vmatmul.mubr.bf16.gmra.mrb[0].mxu0 %v1787
      %v2251 = vpop.f32.mrb[0].mxu0
      %v2252 = vadd.f32 0.0, %v2251
      %v2253 = vpop.f32.mrb[0].mxu0
      %v2254 = vpop.f32.mrb[0].mxu0
      %v2255 = vadd.f32 0.0, %v2254
      %v2256 = vpop.f32.mrb[0].mxu0
      %2257 = vmatprep.mubr.bf16.mxu0 0
      %2258 = vmatmul.mubr.bf16.gmra.mrb[0].mxu0 %v1789
      %v2259 = vpop.f32.mrb[0].mxu0
      %v2260 = vadd.f32 0.0, %v2259
      %v2261 = vpop.f32.mrb[0].mxu0
      %v2262 = vpop.f32.mrb[0].mxu0
      %v2263 = vadd.f32 0.0, %v2262
      %v2264 = vpop.f32.mrb[0].mxu0
      %2265 = vmatprep.mubr.bf16.mxu0 0
      %2266 = vmatmul.mubr.bf16.gmra.mrb[0].mxu0 %v1791
      %v2267 = vpop.f32.mrb[0].mxu0
      %v2268 = vadd.f32 0.0, %v2267
      %v2269 = vpop.f32.mrb[0].mxu0
      %v2270 = vpop.f32.mrb[0].mxu0
      %v2271 = vadd.f32 0.0, %v2270
      %v2272 = vpop.f32.mrb[0].mxu0
      %2273 = vmatprep.mubr.bf16.mxu0 0
      %2274 = vmatmul.mubr.bf16.gmra.mrb[0].mxu0 %v1793
      %v2275 = vpop.f32.mrb[0].mxu0
      %v2276 = vadd.f32 0.0, %v2275
      %v2277 = vpop.f32.mrb[0].mxu0
      %v2278 = vpop.f32.mrb[0].mxu0
      %v2279 = vadd.f32 0.0, %v2278
      %v2280 = vpop.f32.mrb[0].mxu0
      %2281 = vmatprep.mubr.bf16.mxu0 0
      %2282 = vmatmul.mubr.bf16.gmra.mrb[0].mxu0 %v1795
      %v2283 = vpop.f32.mrb[0].mxu0
      %v2284 = vadd.f32 0.0, %v2283
      %v2285 = vpop.f32.mrb[0].mxu0
      %v2286 = vpop.f32.mrb[0].mxu0
      %v2287 = vadd.f32 0.0, %v2286
      %v2288 = vpop.f32.mrb[0].mxu0
      %2289 = vmatprep.mubr.bf16.mxu0 0
      %2290 = vmatmul.mubr.bf16.gmra.mrb[0].mxu0 %v1797
      %v2291 = vpop.f32.mrb[0].mxu0
      %v2292 = vadd.f32 0.0, %v2291
      %v2293 = vpop.f32.mrb[0].mxu0
      %v2294 = vpop.f32.mrb[0].mxu0
      %v2295 = vadd.f32 0.0, %v2294
      %v2296 = vpop.f32.mrb[0].mxu0
      %2297 = vmatprep.mubr.bf16.mxu0 0
      %2298 = vmatmul.mubr.bf16.gmra.mrb[0].mxu0 %v1799
      %v2299 = vpop.f32.mrb[0].mxu0
      %v2300 = vadd.f32 0.0, %v2299
      %v2301 = vpop.f32.mrb[0].mxu0
      %v2302 = vpop.f32.mrb[0].mxu0
      %v2303 = vadd.f32 0.0, %v2302
      %v2304 = vpop.f32.mrb[0].mxu0
      %2305 = vmatprep.mubr.bf16.mxu0 0
      %2306 = vmatmul.mubr.bf16.gmra.mrb[0].mxu0 %v1801
      %v2307 = vpop.f32.mrb[0].mxu0
      %v2308 = vadd.f32 0.0, %v2307
      %v2309 = vpop.f32.mrb[0].mxu0
      %v2310 = vpop.f32.mrb[0].mxu0
      %v2311 = vadd.f32 0.0, %v2310
      %v2312 = vpop.f32.mrb[0].mxu0
      %2313 = vmatprep.mubr.bf16.mxu0 0
      %2314 = vmatmul.mubr.bf16.gmra.mrb[0].mxu0 %v2156
      %v2315 = vpop.f32.mrb[0].mxu0
      %v2316 = vadd.f32 0.0, %v2315
      %v2317 = vpop.f32.mrb[0].mxu0
      %v2318 = vpop.f32.mrb[0].mxu0
      %v2319 = vadd.f32 0.0, %v2318
      %v2320 = vpop.f32.mrb[0].mxu0
      %2321 = vdwg.mxu0
      %v2322 = vadd.f32 %v2017, %v2196
      %v2323 = vadd.f32 %v2020, %v2199
      %v2324 = vadd.f32 %v2025, %v2204
      %v2325 = vadd.f32 %v2028, %v2207
      %v2326 = vadd.f32 %v2033, %v2212
      %v2327 = vadd.f32 %v2036, %v2215
      %v2328 = vadd.f32 %v2041, %v2220
      %v2329 = vadd.f32 %v2044, %v2223
      %v2330 = vadd.f32 %v2049, %v2228
      %v2331 = vadd.f32 %v2052, %v2231
      %v2332 = vadd.f32 %v2057, %v2236
      %v2333 = vadd.f32 %v2060, %v2239
      %v2334 = vadd.f32 %v2065, %v2244
      %v2335 = vadd.f32 %v2068, %v2247
      %v2336 = vadd.f32 %v2073, %v2252
      %v2337 = vadd.f32 %v2076, %v2255
      %v2338 = vadd.f32 %v2081, %v2260
      %v2339 = vadd.f32 %v2084, %v2263
      %v2340 = vadd.f32 %v2089, %v2268
      %v2341 = vadd.f32 %v2092, %v2271
      %v2342 = vadd.f32 %v2097, %v2276
      %v2343 = vadd.f32 %v2100, %v2279
      %v2344 = vadd.f32 %v2105, %v2284
      %v2345 = vadd.f32 %v2108, %v2287
      %v2346 = vadd.f32 %v2113, %v2292
      %v2347 = vadd.f32 %v2116, %v2295
      %v2348 = vadd.f32 %v2121, %v2300
      %v2349 = vadd.f32 %v2124, %v2303
      %v2350 = vadd.f32 %v2129, %v2308
      %v2351 = vadd.f32 %v2132, %v2311
      %v2352 = vadd.f32 %v2137, %v2316
      %v2353 = vadd.f32 %v2140, %v2319
      %v2354 = vpack.c.bf16 %v2323, %v2322
      %v2355 = vpack.c.bf16 %v2325, %v2324
      %v2356 = vpack.c.bf16 %v2327, %v2326
      %v2357 = vpack.c.bf16 %v2329, %v2328
      %v2358 = vpack.c.bf16 %v2331, %v2330
      %v2359 = vpack.c.bf16 %v2333, %v2332
      %v2360 = vpack.c.bf16 %v2335, %v2334
      %v2361 = vpack.c.bf16 %v2337, %v2336
      %v2362 = vpack.c.bf16 %v2339, %v2338
      %v2363 = vpack.c.bf16 %v2341, %v2340
      %v2364 = vpack.c.bf16 %v2343, %v2342
      %v2365 = vpack.c.bf16 %v2345, %v2344
      %v2366 = vpack.c.bf16 %v2347, %v2346
      %v2367 = vpack.c.bf16 %v2349, %v2348
      %v2368 = vpack.c.bf16 %v2351, %v2350
      %v2369 = vpack.c.bf16 %v2353, %v2352
      %v2386 = vunpack.c.l.b16 %v2354
      %v2387 = vunpack.c.h.b16 %v2354
      %v2388 = vunpack.c.l.b16 %v2355
      %v2389 = vunpack.c.h.b16 %v2355
      %v2390 = vunpack.c.l.b16 %v2356
      %v2391 = vunpack.c.h.b16 %v2356
      %v2392 = vunpack.c.l.b16 %v2357
      %v2393 = vunpack.c.h.b16 %v2357
      %v2394 = vunpack.c.l.b16 %v2358
      %v2395 = vunpack.c.h.b16 %v2358
      %v2396 = vunpack.c.l.b16 %v2359
      %v2397 = vunpack.c.h.b16 %v2359
      %v2398 = vunpack.c.l.b16 %v2360
      %v2399 = vunpack.c.h.b16 %v2360
      %v2400 = vunpack.c.l.b16 %v2361
      %v2401 = vunpack.c.h.b16 %v2361
      %v2402 = vunpack.c.l.b16 %v2362
      %v2403 = vunpack.c.h.b16 %v2362
      %v2404 = vunpack.c.l.b16 %v2363
      %v2405 = vunpack.c.h.b16 %v2363
      %v2406 = vunpack.c.l.b16 %v2364
      %v2407 = vunpack.c.h.b16 %v2364
      %v2408 = vunpack.c.l.b16 %v2365
      %v2409 = vunpack.c.h.b16 %v2365
      %v2410 = vunpack.c.l.b16 %v2366
      %v2411 = vunpack.c.h.b16 %v2366
      %v2412 = vunpack.c.l.b16 %v2367
      %v2413 = vunpack.c.h.b16 %v2367
      %v2414 = vunpack.c.l.b16 %v2368
      %v2415 = vunpack.c.h.b16 %v2368
      %v2416 = vunpack.c.l.b16 %v2369
      %v2417 = vunpack.c.h.b16 %v2369
      %v2418 = vpack.c.b16 %v2386, %v2386
      %v2419 = vpack.c.b16 %v2387, %v2387
      %v2420 = vpack.c.b16 %v2388, %v2388
      %v2421 = vpack.c.b16 %v2389, %v2389
      %v2422 = vpack.c.b16 %v2390, %v2390
      %v2423 = vpack.c.b16 %v2391, %v2391
      %v2424 = vpack.c.b16 %v2392, %v2392
      %v2425 = vpack.c.b16 %v2393, %v2393
      %v2426 = vpack.c.b16 %v2394, %v2394
      %v2427 = vpack.c.b16 %v2395, %v2395
      %v2428 = vpack.c.b16 %v2396, %v2396
      %v2429 = vpack.c.b16 %v2397, %v2397
      %v2430 = vpack.c.b16 %v2398, %v2398
      %v2431 = vpack.c.b16 %v2399, %v2399
      %v2432 = vpack.c.b16 %v2400, %v2400
      %v2433 = vpack.c.b16 %v2401, %v2401
      %v2434 = vpack.c.b16 %v2402, %v2402
      %v2435 = vpack.c.b16 %v2403, %v2403
      %v2436 = vpack.c.b16 %v2404, %v2404
      %v2437 = vpack.c.b16 %v2405, %v2405
      %v2438 = vpack.c.b16 %v2406, %v2406
      %v2439 = vpack.c.b16 %v2407, %v2407
      %v2440 = vpack.c.b16 %v2408, %v2408
      %v2441 = vpack.c.b16 %v2409, %v2409
      %v2442 = vpack.c.b16 %v2410, %v2410
      %v2443 = vpack.c.b16 %v2411, %v2411
      %v2444 = vpack.c.b16 %v2412, %v2412
      %v2445 = vpack.c.b16 %v2413, %v2413
      %v2446 = vpack.c.b16 %v2414, %v2414
      %v2447 = vpack.c.b16 %v2415, %v2415
      %v2448 = vpack.c.b16 %v2416, %v2416
      %v2449 = vpack.c.b16 %v2417, %v2417
      %2482 = vst.msk [vmem:[%s231] sm:$0xf] %vm427, %v2418
      %2483 = vst.msk [vmem:[%s231 + $0x4] sm:$0xf] %vm427, %v2419
      %2484 = vst.msk [vmem:[%s231 + $0x8] sm:$0xf] %vm427, %v2420
      %2485 = vst.msk [vmem:[%s231 + $0xc] sm:$0xf] %vm427, %v2421
      %2486 = vst.msk [vmem:[%s231 + $0x10] sm:$0xf] %vm427, %v2422
      %2487 = vst.msk [vmem:[%s231 + $0x14] sm:$0xf] %vm427, %v2423
      %2488 = vst.msk [vmem:[%s231 + $0x18] sm:$0xf] %vm427, %v2424
      %2489 = vst.msk [vmem:[%s231 + $0x1c] sm:$0xf] %vm427, %v2425
      %2490 = vst.msk [vmem:[%s231 + $0x20] sm:$0xf] %vm427, %v2426
      %2491 = vst.msk [vmem:[%s231 + $0x24] sm:$0xf] %vm427, %v2427
      %2492 = vst.msk [vmem:[%s231 + $0x28] sm:$0xf] %vm427, %v2428
      %2493 = vst.msk [vmem:[%s231 + $0x2c] sm:$0xf] %vm427, %v2429
      %2494 = vst.msk [vmem:[%s231 + $0x30] sm:$0xf] %vm427, %v2430
      %2495 = vst.msk [vmem:[%s231 + $0x34] sm:$0xf] %vm427, %v2431
      %2496 = vst.msk [vmem:[%s231 + $0x38] sm:$0xf] %vm427, %v2432
      %2497 = vst.msk [vmem:[%s231 + $0x3c] sm:$0xf] %vm427, %v2433
      %2498 = vst.msk [vmem:[%s231 + $0x40] sm:$0xf] %vm427, %v2434
      %2499 = vst.msk [vmem:[%s231 + $0x44] sm:$0xf] %vm427, %v2435
      %2500 = vst.msk [vmem:[%s231 + $0x48] sm:$0xf] %vm427, %v2436
      %2501 = vst.msk [vmem:[%s231 + $0x4c] sm:$0xf] %vm427, %v2437
      %2502 = vst.msk [vmem:[%s231 + $0x50] sm:$0xf] %vm427, %v2438
      %2503 = vst.msk [vmem:[%s231 + $0x54] sm:$0xf] %vm427, %v2439
      %2504 = vst.msk [vmem:[%s231 + $0x58] sm:$0xf] %vm427, %v2440
      %2505 = vst.msk [vmem:[%s231 + $0x5c] sm:$0xf] %vm427, %v2441
      %2506 = vst.msk [vmem:[%s231 + $0x60] sm:$0xf] %vm427, %v2442
      %2507 = vst.msk [vmem:[%s231 + $0x64] sm:$0xf] %vm427, %v2443
      %2508 = vst.msk [vmem:[%s231 + $0x68] sm:$0xf] %vm427, %v2444
      %2509 = vst.msk [vmem:[%s231 + $0x6c] sm:$0xf] %vm427, %v2445
      %2510 = vst.msk [vmem:[%s231 + $0x70] sm:$0xf] %vm427, %v2446
      %2511 = vst.msk [vmem:[%s231 + $0x74] sm:$0xf] %vm427, %v2447
      %2512 = vst.msk [vmem:[%s231 + $0x78] sm:$0xf] %vm427, %v2448
      %2513 = vst.msk [vmem:[%s231 + $0x7c] sm:$0xf] %vm427, %v2449
      %v2514 = vsel %vm1680, %v2322, 0.0
      %v2515 = vsel %vm1680, %v2323, 0.0
      %v2516 = vadd.f32 %v2514, %v2515
      %v2517 = vsel %vm1680, %v2324, 0.0
      %v2518 = vadd.f32 %v2516, %v2517
      %v2519 = vsel %vm1680, %v2325, 0.0
      %v2520 = vadd.f32 %v2518, %v2519
      %v2521 = vsel %vm1680, %v2326, 0.0
      %v2522 = vadd.f32 %v2520, %v2521
      %v2523 = vsel %vm1680, %v2327, 0.0
      %v2524 = vadd.f32 %v2522, %v2523
      %v2525 = vsel %vm1680, %v2328, 0.0
      %v2526 = vadd.f32 %v2524, %v2525
      %v2527 = vsel %vm1680, %v2329, 0.0
      %v2528 = vadd.f32 %v2526, %v2527
      %v2529 = vsel %vm1680, %v2330, 0.0
      %v2530 = vadd.f32 %v2528, %v2529
      %v2531 = vsel %vm1680, %v2331, 0.0
      %v2532 = vadd.f32 %v2530, %v2531
      %v2533 = vsel %vm1680, %v2332, 0.0
      %v2534 = vadd.f32 %v2532, %v2533
      %v2535 = vsel %vm1680, %v2333, 0.0
      %v2536 = vadd.f32 %v2534, %v2535
      %v2537 = vsel %vm1680, %v2334, 0.0
      %v2538 = vadd.f32 %v2536, %v2537
      %v2539 = vsel %vm1680, %v2335, 0.0
      %v2540 = vadd.f32 %v2538, %v2539
      %v2541 = vsel %vm1680, %v2336, 0.0
      %v2542 = vadd.f32 %v2540, %v2541
      %v2543 = vsel %vm1680, %v2337, 0.0
      %v2544 = vadd.f32 %v2542, %v2543
      %v2545 = vsel %vm1680, %v2338, 0.0
      %v2546 = vadd.f32 %v2544, %v2545
      %v2547 = vsel %vm1680, %v2339, 0.0
      %v2548 = vadd.f32 %v2546, %v2547
      %v2549 = vsel %vm1680, %v2340, 0.0
      %v2550 = vadd.f32 %v2548, %v2549
      %v2551 = vsel %vm1680, %v2341, 0.0
      %v2552 = vadd.f32 %v2550, %v2551
      %v2553 = vsel %vm1680, %v2342, 0.0
      %v2554 = vadd.f32 %v2552, %v2553
      %v2555 = vsel %vm1680, %v2343, 0.0
      %v2556 = vadd.f32 %v2554, %v2555
      %v2557 = vsel %vm1680, %v2344, 0.0
      %v2558 = vadd.f32 %v2556, %v2557
      %v2559 = vsel %vm1680, %v2345, 0.0
      %v2560 = vadd.f32 %v2558, %v2559
      %v2561 = vsel %vm1680, %v2346, 0.0
      %v2562 = vadd.f32 %v2560, %v2561
      %v2563 = vsel %vm1680, %v2347, 0.0
      %v2564 = vadd.f32 %v2562, %v2563
      %v2565 = vsel %vm1680, %v2348, 0.0
      %v2566 = vadd.f32 %v2564, %v2565
      %v2567 = vsel %vm1680, %v2349, 0.0
      %v2568 = vadd.f32 %v2566, %v2567
      %v2569 = vsel %vm1680, %v2350, 0.0
      %v2570 = vadd.f32 %v2568, %v2569
      %v2571 = vsel %vm1680, %v2351, 0.0
      %v2572 = vadd.f32 %v2570, %v2571
      %v2573 = vsel %vm1680, %v2352, 0.0
      %v2574 = vadd.f32 %v2572, %v2573
      %v2575 = vsel %vm1680, %v2353, 0.0
      %v2576 = vadd.f32 %v2574, %v2575
      %v2577 = vrot.slane %v2576, 4
      %v2578 = vadd.f32 %v2576, %v2577
      %v2579 = vrot.slane %v2578, 2
      %v2580 = vadd.f32 %v2578, %v2579
      %v2581 = vrot.slane %v2580, 1
      %v2582 = vadd.f32 %v2580, %v2581
      %2583 = vst.msk [vmem:[%s235] sm:$0x1] %vm430, %v2582
      %v2584 = vmul.f32 %v2322, %v2322
      %v2585 = vmul.f32 %v2323, %v2323
      %v2586 = vmul.f32 %v2324, %v2324
      %v2587 = vmul.f32 %v2325, %v2325
      %v2588 = vmul.f32 %v2326, %v2326
      %v2589 = vmul.f32 %v2327, %v2327
      %v2590 = vmul.f32 %v2328, %v2328
      %v2591 = vmul.f32 %v2329, %v2329
      %v2592 = vmul.f32 %v2330, %v2330
      %v2593 = vmul.f32 %v2331, %v2331
      %v2594 = vmul.f32 %v2332, %v2332
      %v2595 = vmul.f32 %v2333, %v2333
      %v2596 = vmul.f32 %v2334, %v2334
      %v2597 = vmul.f32 %v2335, %v2335
      %v2598 = vmul.f32 %v2336, %v2336
      %v2599 = vmul.f32 %v2337, %v2337
      %v2600 = vmul.f32 %v2338, %v2338
      %v2601 = vmul.f32 %v2339, %v2339
      %v2602 = vmul.f32 %v2340, %v2340
      %v2603 = vmul.f32 %v2341, %v2341
      %v2604 = vmul.f32 %v2342, %v2342
      %v2605 = vmul.f32 %v2343, %v2343
      %v2606 = vmul.f32 %v2344, %v2344
      %v2607 = vmul.f32 %v2345, %v2345
      %v2608 = vmul.f32 %v2346, %v2346
      %v2609 = vmul.f32 %v2347, %v2347
      %v2610 = vmul.f32 %v2348, %v2348
      %v2611 = vmul.f32 %v2349, %v2349
      %v2612 = vmul.f32 %v2350, %v2350
      %v2613 = vmul.f32 %v2351, %v2351
      %v2614 = vmul.f32 %v2352, %v2352
      %v2615 = vmul.f32 %v2353, %v2353
      %v2616 = vsel %vm1680, %v2584, 0.0
      %v2617 = vsel %vm1680, %v2585, 0.0
      %v2618 = vadd.f32 %v2616, %v2617
      %v2619 = vsel %vm1680, %v2586, 0.0
      %v2620 = vadd.f32 %v2618, %v2619
      %v2621 = vsel %vm1680, %v2587, 0.0
      %v2622 = vadd.f32 %v2620, %v2621
      %v2623 = vsel %vm1680, %v2588, 0.0
      %v2624 = vadd.f32 %v2622, %v2623
      %v2625 = vsel %vm1680, %v2589, 0.0
      %v2626 = vadd.f32 %v2624, %v2625
      %v2627 = vsel %vm1680, %v2590, 0.0
      %v2628 = vadd.f32 %v2626, %v2627
      %v2629 = vsel %vm1680, %v2591, 0.0
      %v2630 = vadd.f32 %v2628, %v2629
      %v2631 = vsel %vm1680, %v2592, 0.0
      %v2632 = vadd.f32 %v2630, %v2631
      %v2633 = vsel %vm1680, %v2593, 0.0
      %v2634 = vadd.f32 %v2632, %v2633
      %v2635 = vsel %vm1680, %v2594, 0.0
      %v2636 = vadd.f32 %v2634, %v2635
      %v2637 = vsel %vm1680, %v2595, 0.0
      %v2638 = vadd.f32 %v2636, %v2637
      %v2639 = vsel %vm1680, %v2596, 0.0
      %v2640 = vadd.f32 %v2638, %v2639
      %v2641 = vsel %vm1680, %v2597, 0.0
      %v2642 = vadd.f32 %v2640, %v2641
      %v2643 = vsel %vm1680, %v2598, 0.0
      %v2644 = vadd.f32 %v2642, %v2643
      %v2645 = vsel %vm1680, %v2599, 0.0
      %v2646 = vadd.f32 %v2644, %v2645
      %v2647 = vsel %vm1680, %v2600, 0.0
      %v2648 = vadd.f32 %v2646, %v2647
      %v2649 = vsel %vm1680, %v2601, 0.0
      %v2650 = vadd.f32 %v2648, %v2649
      %v2651 = vsel %vm1680, %v2602, 0.0
      %v2652 = vadd.f32 %v2650, %v2651
      %v2653 = vsel %vm1680, %v2603, 0.0
      %v2654 = vadd.f32 %v2652, %v2653
      %v2655 = vsel %vm1680, %v2604, 0.0
      %v2656 = vadd.f32 %v2654, %v2655
      %v2657 = vsel %vm1680, %v2605, 0.0
      %v2658 = vadd.f32 %v2656, %v2657
      %v2659 = vsel %vm1680, %v2606, 0.0
      %v2660 = vadd.f32 %v2658, %v2659
      %v2661 = vsel %vm1680, %v2607, 0.0
      %v2662 = vadd.f32 %v2660, %v2661
      %v2663 = vsel %vm1680, %v2608, 0.0
      %v2664 = vadd.f32 %v2662, %v2663
      %v2665 = vsel %vm1680, %v2609, 0.0
      %v2666 = vadd.f32 %v2664, %v2665
      %v2667 = vsel %vm1680, %v2610, 0.0
      %v2668 = vadd.f32 %v2666, %v2667
      %v2669 = vsel %vm1680, %v2611, 0.0
      %v2670 = vadd.f32 %v2668, %v2669
      %v2671 = vsel %vm1680, %v2612, 0.0
      %v2672 = vadd.f32 %v2670, %v2671
      %v2673 = vsel %vm1680, %v2613, 0.0
      %v2674 = vadd.f32 %v2672, %v2673
      %v2675 = vsel %vm1680, %v2614, 0.0
      %v2676 = vadd.f32 %v2674, %v2675
      %v2677 = vsel %vm1680, %v2615, 0.0
      %v2678 = vadd.f32 %v2676, %v2677
      %v2679 = vrot.slane %v2678, 4
      %v2680 = vadd.f32 %v2678, %v2679
      %v2681 = vrot.slane %v2680, 2
      %v2682 = vadd.f32 %v2680, %v2681
      %v2683 = vrot.slane %v2682, 1
      %v2684 = vadd.f32 %v2682, %v2683
      %2685 = vst.msk [vmem:[%s235 + $0x1] sm:$0x1] %vm430, %v2684
      %p2686 = scmp.lt.s32.totalorder %s17, 1
      %s2687 = scalar_select %p2686, %s17, 1
      %s2688 = smul.addr %s2687, 32
      %s2689 = smul.addr %s2688, 4
      %s2690 = scalar_lea.vmem %s4, %s2689
      %p2691 = scmp.lt.s32.totalorder %s17, 1
      %s2692 = scalar_select %p2691, %s17, 1
      %s2693 = smul.addr %s2692, 2
      %s2694 = scalar_lea.vmem %s5, %s2693
      // Predicated region
      $region37: #{basic_block.4} parent=35 // pred_check
        %p2695 = pneg %p124
      $region38: #{basic_block.4} parent=35 // pred_check_branch
        %2697 = sbr.rel (%p2695) target = $region40
      $region39: #{basic_block.4} parent=35 // pred_region
        _
      $region40: #{basic_block.4} parent=35 // pred_fallthru
        _
      // Predicated region
      $region41: #{basic_block.4} parent=35 // pred_check
        %p2698 = pneg %p150
      $region42: #{basic_block.4} parent=35 // pred_check_branch
        %2700 = sbr.rel (%p2698) target = $region44
      $region43: #{basic_block.4} parent=35 // pred_region
        _
      $region44: #{basic_block.4} parent=35 // pred_fallthru
        _
    $region36: #{basic_block.4} parent=5 // pred_fallthru
      _
    %p2701 = scmp.le.s32.totalorder 2, %s12
    // Predicated region
    $region45: #{basic_block.4} parent=5 // pred_check
      %p2702 = pneg %p2701
    $region46: #{basic_block.4} parent=5 // pred_check_branch
      %2704 = sbr.rel (%p2702) target = $region48
    $region47: #{basic_block.4} parent=5 // pred_region
      %s2705 = ssub.s32 %s12, 2
      // Predicated region
      $region49: #{basic_block.4} parent=47 // pred_check
        %p2706 = pneg %p130
      $region50: #{basic_block.4} parent=47 // pred_check_branch
        %2708 = sbr.rel (%p2706) target = $region52
      $region51: #{basic_block.4} parent=47 // pred_region
        %p2709 = scmp.lt.s32.totalorder %s18, 1
        %s2710 = scalar_select %p2709, %s18, 1
        %s2711 = smul.addr %s2710, 32
        %s2712 = smul.addr %s2711, 4
        %s2713 = scalar_lea.vmem %s4, %s2712
      $region52: #{basic_block.4} parent=47 // pred_fallthru
        _
      // Predicated region
      $region53: #{basic_block.4} parent=47 // pred_check
        %p2714 = pneg %p156
      $region54: #{basic_block.4} parent=47 // pred_check_branch
        %2716 = sbr.rel (%p2714) target = $region56
      $region55: #{basic_block.4} parent=47 // pred_region
        %p2717 = scmp.lt.s32.totalorder %s18, 1
        %s2718 = scalar_select %p2717, %s18, 1
        %s2719 = smul.addr %s2718, 2
        %s2720 = scalar_lea.vmem %s5, %s2719
      $region56: #{basic_block.4} parent=47 // pred_fallthru
        _
    $region48: #{basic_block.4} parent=5 // pred_fallthru
      _
  $region6: #{basic_block.4} parent=0 // loop_footer
    %s16 = sadd.s32 1, %s12
  $region7: #{basic_block.4} parent=0 // loop_footer_branch
    %11 = sbr.rel target = $region3
  $region8: #{basic_block.4} parent=0 // loop_exit
    _

// kernel: basic_block.3
$region0: #{basic_block.3}
  #allocation0 [shape = 'u32[]', space=smem, size = 0x4, offset = 0x4, fixed_abs, tag = 'smem constant byte address 0x4 - core index']
  #allocation1 [shape = 'u32[144,128]{1,0:T(1,128)}', space=vmem, size = 0x12000, scoped, tag = 'internal scratch']
  #allocation2 [shape = 'bf16[18,18,4]{2,1,0:T(8,128)(2,1)}', space=vmem, size = 0x1b000, scoped, tag = 'scratch operand']
  %s0 = inlined_call_operand.vmem [shape: bf16[2,16,16,4], index: 0, kind: input, shape index: {}]
  %s1 = inlined_call_operand.vmem [shape: bf16[3,12,8], index: 1, kind: input, shape index: {}]
  %s2 = inlined_call_operand.vmem [shape: bf16[4,8], index: 2, kind: input, shape index: {}]
  %s3 = inlined_call_operand.vmem [shape: bf16[2,16,16,8], index: 3, kind: output, shape index: {0}]
  %s4 = inlined_call_operand.vmem [shape: f32[2,2,8], index: 4, kind: output, shape index: {1}]
  %s5 = inlined_call_operand.vmem [shape: bf16[2,16,16,8], index: 5, kind: output, shape index: {2}]
  %s6 = inlined_call_operand.vmem [shape: f32[2,2,8], index: 6, kind: output, shape index: {3}]
  %7 = xla_tuple %s3, %s4, %s5, %s6
  %s8 = sld [smem:[#allocation0]]
  $region69: #{basic_block.3} parent=0
    _
  %s10 = ssub.s32 1, %s8
  %s11 = scalar_select 0, %s10, %s8
  loop: start=0, step=1, limit=4
  $region2: #{basic_block.3} parent=0 // loop_pre_header
    _
  $region3: #{basic_block.3} parent=0 // loop_header
    %s13 = sphi 0, %s17
    %p14 = scmp.ge.s32.totalorder %s13, 4
    %s23 = sphi 0, %s25
    %s26 = sphi 0, %s23
    %s27 = sphi 0, %s26
    %s43 = sphi 0, %s27
    %s47 = sphi 0, %s47
    %s49 = sphi 0, %s47
    %s50 = sphi 0, %s49
    %s64 = sphi 0, %s50
    %s68 = sphi 0, %s68
    %s70 = sphi 0, %s68
    %s71 = sphi 0, %s70
    %s85 = sphi 0, %s71
    %s91 = sphi 0, %s93
    %s94 = sphi 0, %s91
    %s95 = sphi 0, %s94
    %s111 = sphi 0, %s95
    %s117 = sphi 0, %s119
    %s120 = sphi 0, %s117
    %s121 = sphi 0, %s120
    %s137 = sphi 0, %s121
    %s143 = sphi 0, %s145
    %s146 = sphi 0, %s143
    %s147 = sphi 0, %s146
    %s163 = sphi 0, %s147
    %s169 = sphi 0, %s171
    %s172 = sphi 0, %s169
    %s173 = sphi 0, %s172
    %s189 = sphi 0, %s173
  $region4: #{basic_block.3} parent=0 // loop_header_branch
    %16 = sbr.rel (%p14) target = $region8
  $region5: #{basic_block.3} parent=0 // loop_body
    %s18 = ssub.s32 %s13, 1
    %s19 = ssub.s32 %s13, 2
    %s20 = sadd.s32 %s13, 1
    %s21 = ssub.s32 %s13, %s20
    %p22 = scmp.eq.s32.totalorder %s21, 0
    %s24 = sadd.s32 %s23, 1
    %s25 = scalar_select %p22, %s23, %s24
    %p28 = pneg %p22
    %p29 = scmp.eq.s32.totalorder %s13, 1
    %p30 = por %p28, %p29
    %p31 = scmp.ne.s32.totalorder %s23, %s26
    %p32 = scmp.eq.s32.totalorder %s13, 0
    %p33 = por %p31, %p32
    %p34 = scmp.ne.s32.totalorder %s23, %s26
    %p35 = scmp.eq.s32.totalorder %s18, 1
    %p36 = por %p34, %p35
    %p37 = scmp.ne.s32.totalorder %s26, %s27
    %p38 = scmp.eq.s32.totalorder %s18, 0
    %p39 = por %p37, %p38
    %p40 = scmp.ne.s32.totalorder %s26, %s27
    %p41 = scmp.eq.s32.totalorder %s19, 1
    %p42 = por %p40, %p41
    %p44 = scmp.ne.s32.totalorder %s27, %s43
    %p45 = scmp.eq.s32.totalorder %s19, 0
    %p46 = por %p44, %p45
    %s48 = sadd.s32 %s47, 1
    %p51 = scmp.eq.s32.totalorder %s13, 1
    %p52 = scmp.ne.s32.totalorder %s47, %s49
    %p53 = scmp.eq.s32.totalorder %s13, 0
    %p54 = por %p52, %p53
    %p55 = scmp.ne.s32.totalorder %s47, %s49
    %p56 = scmp.eq.s32.totalorder %s18, 1
    %p57 = por %p55, %p56
    %p58 = scmp.ne.s32.totalorder %s49, %s50
    %p59 = scmp.eq.s32.totalorder %s18, 0
    %p60 = por %p58, %p59
    %p61 = scmp.ne.s32.totalorder %s49, %s50
    %p62 = scmp.eq.s32.totalorder %s19, 1
    %p63 = por %p61, %p62
    %p65 = scmp.ne.s32.totalorder %s50, %s64
    %p66 = scmp.eq.s32.totalorder %s19, 0
    %p67 = por %p65, %p66
    %s69 = sadd.s32 %s68, 1
    %p72 = scmp.eq.s32.totalorder %s13, 1
    %p73 = scmp.ne.s32.totalorder %s68, %s70
    %p74 = scmp.eq.s32.totalorder %s13, 0
    %p75 = por %p73, %p74
    %p76 = scmp.ne.s32.totalorder %s68, %s70
    %p77 = scmp.eq.s32.totalorder %s18, 1
    %p78 = por %p76, %p77
    %p79 = scmp.ne.s32.totalorder %s70, %s71
    %p80 = scmp.eq.s32.totalorder %s18, 0
    %p81 = por %p79, %p80
    %p82 = scmp.ne.s32.totalorder %s70, %s71
    %p83 = scmp.eq.s32.totalorder %s19, 1
    %p84 = por %p82, %p83
    %p86 = scmp.ne.s32.totalorder %s71, %s85
    %p87 = scmp.eq.s32.totalorder %s19, 0
    %p88 = por %p86, %p87
    %s89 = ssub.s32 %s13, %s20
    %p90 = scmp.eq.s32.totalorder %s89, 0
    %s92 = sadd.s32 %s91, 1
    %s93 = scalar_select %p90, %s91, %s92
    %p96 = pneg %p90
    %p97 = scmp.eq.s32.totalorder %s13, 1
    %p98 = por %p96, %p97
    %p99 = scmp.ne.s32.totalorder %s91, %s94
    %p100 = scmp.eq.s32.totalorder %s13, 0
    %p101 = por %p99, %p100
    %p102 = scmp.ne.s32.totalorder %s91, %s94
    %p103 = scmp.eq.s32.totalorder %s18, 1
    %p104 = por %p102, %p103
    %p105 = scmp.ne.s32.totalorder %s94, %s95
    %p106 = scmp.eq.s32.totalorder %s18, 0
    %p107 = por %p105, %p106
    %p108 = scmp.ne.s32.totalorder %s94, %s95
    %p109 = scmp.eq.s32.totalorder %s19, 1
    %p110 = por %p108, %p109
    %p112 = scmp.ne.s32.totalorder %s95, %s111
    %p113 = scmp.eq.s32.totalorder %s19, 0
    %p114 = por %p112, %p113
    %s115 = ssub.s32 %s13, %s20
    %p116 = scmp.eq.s32.totalorder %s115, 0
    %s118 = sadd.s32 %s117, 1
    %s119 = scalar_select %p116, %s117, %s118
    %p122 = pneg %p116
    %p123 = scmp.eq.s32.totalorder %s13, 1
    %p124 = por %p122, %p123
    %p125 = scmp.ne.s32.totalorder %s117, %s120
    %p126 = scmp.eq.s32.totalorder %s13, 0
    %p127 = por %p125, %p126
    %p128 = scmp.ne.s32.totalorder %s117, %s120
    %p129 = scmp.eq.s32.totalorder %s18, 1
    %p130 = por %p128, %p129
    %p131 = scmp.ne.s32.totalorder %s120, %s121
    %p132 = scmp.eq.s32.totalorder %s18, 0
    %p133 = por %p131, %p132
    %p134 = scmp.ne.s32.totalorder %s120, %s121
    %p135 = scmp.eq.s32.totalorder %s19, 1
    %p136 = por %p134, %p135
    %p138 = scmp.ne.s32.totalorder %s121, %s137
    %p139 = scmp.eq.s32.totalorder %s19, 0
    %p140 = por %p138, %p139
    %s141 = ssub.s32 %s13, %s20
    %p142 = scmp.eq.s32.totalorder %s141, 0
    %s144 = sadd.s32 %s143, 1
    %s145 = scalar_select %p142, %s143, %s144
    %p148 = pneg %p142
    %p149 = scmp.eq.s32.totalorder %s13, 1
    %p150 = por %p148, %p149
    %p151 = scmp.ne.s32.totalorder %s143, %s146
    %p152 = scmp.eq.s32.totalorder %s13, 0
    %p153 = por %p151, %p152
    %p154 = scmp.ne.s32.totalorder %s143, %s146
    %p155 = scmp.eq.s32.totalorder %s18, 1
    %p156 = por %p154, %p155
    %p157 = scmp.ne.s32.totalorder %s146, %s147
    %p158 = scmp.eq.s32.totalorder %s18, 0
    %p159 = por %p157, %p158
    %p160 = scmp.ne.s32.totalorder %s146, %s147
    %p161 = scmp.eq.s32.totalorder %s19, 1
    %p162 = por %p160, %p161
    %p164 = scmp.ne.s32.totalorder %s147, %s163
    %p165 = scmp.eq.s32.totalorder %s19, 0
    %p166 = por %p164, %p165
    %s167 = ssub.s32 %s13, %s20
    %p168 = scmp.eq.s32.totalorder %s167, 0
    %s170 = sadd.s32 %s169, 1
    %s171 = scalar_select %p168, %s169, %s170
    %p174 = pneg %p168
    %p175 = scmp.eq.s32.totalorder %s13, 1
    %p176 = por %p174, %p175
    %p177 = scmp.ne.s32.totalorder %s169, %s172
    %p178 = scmp.eq.s32.totalorder %s13, 0
    %p179 = por %p177, %p178
    %p180 = scmp.ne.s32.totalorder %s169, %s172
    %p181 = scmp.eq.s32.totalorder %s18, 1
    %p182 = por %p180, %p181
    %p183 = scmp.ne.s32.totalorder %s172, %s173
    %p184 = scmp.eq.s32.totalorder %s18, 0
    %p185 = por %p183, %p184
    %p186 = scmp.ne.s32.totalorder %s172, %s173
    %p187 = scmp.eq.s32.totalorder %s19, 1
    %p188 = por %p186, %p187
    %p190 = scmp.ne.s32.totalorder %s173, %s189
    %p191 = scmp.eq.s32.totalorder %s19, 0
    %p192 = por %p190, %p191
    %p193 = scmp.le.s32.totalorder 1, %s13
    %p194 = scmp.lt.s32.totalorder %s13, 3
    %p195 = pnand %p193, %p194
    %p196 = pneg %p195
    // Predicated region
    $region9: #{basic_block.3} parent=5 // pred_check
      _
    $region10: #{basic_block.3} parent=5 // pred_check_branch
      %198 = sbr.rel (%p195) target = $region12
    $region11: #{basic_block.3} parent=5 // pred_region
      %s199 = ssub.s32 %s13, 1
      // Predicated region
      $region13: #{basic_block.3} parent=11 // pred_check
        %p200 = pneg %p60
      $region14: #{basic_block.3} parent=11 // pred_check_branch
        %202 = sbr.rel (%p200) target = $region16
      $region15: #{basic_block.3} parent=11 // pred_region
        _
      $region16: #{basic_block.3} parent=11 // pred_fallthru
        _
      // Predicated region
      $region17: #{basic_block.3} parent=11 // pred_check
        %p203 = pneg %p81
      $region18: #{basic_block.3} parent=11 // pred_check_branch
        %205 = sbr.rel (%p203) target = $region20
      $region19: #{basic_block.3} parent=11 // pred_region
        _
      $region20: #{basic_block.3} parent=11 // pred_fallthru
        _
    $region12: #{basic_block.3} parent=5 // pred_fallthru
      _
    %p206 = scmp.lt.s32.totalorder %s13, 2
    // Predicated region
    $region21: #{basic_block.3} parent=5 // pred_check
      %p207 = pneg %p206
    $region22: #{basic_block.3} parent=5 // pred_check_branch
      %209 = sbr.rel (%p207) target = $region24
    $region23: #{basic_block.3} parent=5 // pred_region
      // Predicated region
      $region25: #{basic_block.3} parent=23 // pred_check
        %p210 = pneg %p33
      $region26: #{basic_block.3} parent=23 // pred_check_branch
        %212 = sbr.rel (%p210) target = $region28
      $region27: #{basic_block.3} parent=23 // pred_region
        %p213 = scmp.lt.s32.totalorder %s13, 1
        %s214 = scalar_select %p213, %s13, 1
        %s215 = smul.addr %s214, 32
        %s216 = smul.addr %s215, 4
        %s217 = scalar_lea.vmem %s0, %s216
      $region28: #{basic_block.3} parent=23 // pred_fallthru
        _
    $region24: #{basic_block.3} parent=5 // pred_fallthru
      _
    %p218 = scmp.le.s32.totalorder 1, %s13
    %p219 = scmp.lt.s32.totalorder %s13, 3
    %p220 = pnand %p218, %p219
    %p221 = pneg %p220
    // Predicated region
    $region29: #{basic_block.3} parent=5 // pred_check
      _
    $region30: #{basic_block.3} parent=5 // pred_check_branch
      %223 = sbr.rel (%p220) target = $region32
    $region31: #{basic_block.3} parent=5 // pred_region
      %s224 = ssub.s32 %s13, 1
      %p225 = scmp.lt.s32.totalorder %s18, 1
      %s226 = scalar_select %p225, %s18, 1
      %s227 = smul.addr %s226, 32
      %s228 = smul.addr %s227, 4
      %s229 = scalar_lea.vmem %s0, %s228
      %p230 = pneg %p39
      %p231 = pneg %p36
      %p232 = pneg %p60
      %p233 = pneg %p57
      %p234 = pneg %p81
      %p235 = pneg %p78
      %p236 = pneg %p107
      %p237 = pneg %p104
      %p238 = scmp.lt.s32.totalorder %s18, 1
      %s239 = scalar_select %p238, %s18, 1
      %s240 = smul.addr %s239, 32
      %s241 = smul.addr %s240, 4
      %s242 = scalar_lea.vmem %s3, %s241
      %p243 = pneg %p133
      %p244 = pneg %p130
      %p245 = scmp.lt.s32.totalorder %s18, 1
      %s246 = scalar_select %p245, %s18, 1
      %s247 = smul.addr %s246, 2
      %s248 = scalar_lea.vmem %s4, %s247
      %p249 = pneg %p159
      %p250 = pneg %p156
      %p251 = scmp.lt.s32.totalorder %s18, 1
      %s252 = scalar_select %p251, %s18, 1
      %s253 = smul.addr %s252, 32
      %s254 = smul.addr %s253, 4
      %s255 = scalar_lea.vmem %s5, %s254
      %p256 = pneg %p185
      %p257 = pneg %p182
      %p258 = scmp.lt.s32.totalorder %s18, 1
      %s259 = scalar_select %p258, %s18, 1
      %s260 = smul.addr %s259, 2
      %s261 = scalar_lea.vmem %s6, %s260
      %p262 = scmp.lt.s32.totalorder %s18, 1
      %s263 = scalar_select %p262, %s18, 1
      %s264 = smul.addr %s263, 32
      %s265 = smul.addr %s264, 4
      %s266 = scalar_lea.vmem %s0, %s265
      %p267 = scmp.lt.s32.totalorder %s18, 1
      %s268 = scalar_select %p267, %s18, 1
      %s269 = smul.addr %s268, 32
      %s270 = smul.addr %s269, 4
      %s271 = scalar_lea.vmem %s3, %s270
      %p272 = scmp.lt.s32.totalorder %s18, 1
      %s273 = scalar_select %p272, %s18, 1
      %s274 = smul.addr %s273, 2
      %s275 = scalar_lea.vmem %s4, %s274
      %p276 = scmp.lt.s32.totalorder %s18, 1
      %s277 = scalar_select %p276, %s18, 1
      %s278 = smul.addr %s277, 32
      %s279 = smul.addr %s278, 4
      %s280 = scalar_lea.vmem %s5, %s279
      %p281 = scmp.lt.s32.totalorder %s18, 1
      %s282 = scalar_select %p281, %s18, 1
      %s283 = smul.addr %s282, 2
      %s284 = scalar_lea.vmem %s6, %s283
      %v286 = vld [vmem:[%s266] sm:$0xf]
      %v287 = vld [vmem:[%s266 + $0x4] sm:$0xf]
      %v288 = vld [vmem:[%s266 + $0x8] sm:$0xf]
      %v289 = vld [vmem:[%s266 + $0xc] sm:$0xf]
      %v290 = vld [vmem:[%s266 + $0x10] sm:$0xf]
      %v291 = vld [vmem:[%s266 + $0x14] sm:$0xf]
      %v292 = vld [vmem:[%s266 + $0x18] sm:$0xf]
      %v293 = vld [vmem:[%s266 + $0x1c] sm:$0xf]
      %v294 = vld [vmem:[%s266 + $0x20] sm:$0xf]
      %v295 = vld [vmem:[%s266 + $0x24] sm:$0xf]
      %v296 = vld [vmem:[%s266 + $0x28] sm:$0xf]
      %v297 = vld [vmem:[%s266 + $0x2c] sm:$0xf]
      %v298 = vld [vmem:[%s266 + $0x30] sm:$0xf]
      %v299 = vld [vmem:[%s266 + $0x34] sm:$0xf]
      %v300 = vld [vmem:[%s266 + $0x38] sm:$0xf]
      %v301 = vld [vmem:[%s266 + $0x3c] sm:$0xf]
      %v302 = vld [vmem:[%s266 + $0x40] sm:$0xf]
      %v303 = vld [vmem:[%s266 + $0x44] sm:$0xf]
      %v304 = vld [vmem:[%s266 + $0x48] sm:$0xf]
      %v305 = vld [vmem:[%s266 + $0x4c] sm:$0xf]
      %v306 = vld [vmem:[%s266 + $0x50] sm:$0xf]
      %v307 = vld [vmem:[%s266 + $0x54] sm:$0xf]
      %v308 = vld [vmem:[%s266 + $0x58] sm:$0xf]
      %v309 = vld [vmem:[%s266 + $0x5c] sm:$0xf]
      %v310 = vld [vmem:[%s266 + $0x60] sm:$0xf]
      %v311 = vld [vmem:[%s266 + $0x64] sm:$0xf]
      %v312 = vld [vmem:[%s266 + $0x68] sm:$0xf]
      %v313 = vld [vmem:[%s266 + $0x6c] sm:$0xf]
      %v314 = vld [vmem:[%s266 + $0x70] sm:$0xf]
      %v315 = vld [vmem:[%s266 + $0x74] sm:$0xf]
      %v316 = vld [vmem:[%s266 + $0x78] sm:$0xf]
      %v317 = vld [vmem:[%s266 + $0x7c] sm:$0xf]
      %vm318 = vcmask 27648
      %319 = vst.msk [vmem:[#allocation2] sm:$0xf] %vm318, 0
      %320 = vst.msk [vmem:[#allocation2 + $0x4] sm:$0xf] %vm318, 0
      %vm321 = vcmask 24576
      %322 = vst.msk [vmem:[#allocation2 + $0x8] sm:$0x1] %vm321, 0
      %s323 = scalar_lea.vmem [#allocation2], 204
      %324 = vst.msk [vmem:[%s323] sm:$0xf] %vm318, 0
      %325 = vst.msk [vmem:[%s323 + $0x4] sm:$0xf] %vm318, 0
      %326 = vst.msk [vmem:[%s323 + $0x8] sm:$0x1] %vm321, 0
      %vm327 = vcmask 24576
      %vm328 = vsmask.f32 256
      %vm329 = vmand %vm327, %vm328
      %v330 = vld [vmem:[#allocation2] sm:$0x1]
      %v331 = vsel %vm329, 0, %v330
      %332 = vst [vmem:[#allocation2] sm:$0x1] %v331
      %v333 = vld [vmem:[#allocation2 + $0xc] sm:$0x1]
      %v334 = vsel %vm329, 0, %v333
      %335 = vst [vmem:[#allocation2 + $0xc] sm:$0x1] %v334
      %v336 = vld [vmem:[#allocation2 + $0x18] sm:$0x1]
      %v337 = vsel %vm329, 0, %v336
      %338 = vst [vmem:[#allocation2 + $0x18] sm:$0x1] %v337
      %v339 = vld [vmem:[#allocation2 + $0x24] sm:$0x1]
      %v340 = vsel %vm329, 0, %v339
      %341 = vst [vmem:[#allocation2 + $0x24] sm:$0x1] %v340
      %v342 = vld [vmem:[#allocation2 + $0x30] sm:$0x1]
      %v343 = vsel %vm329, 0, %v342
      %344 = vst [vmem:[#allocation2 + $0x30] sm:$0x1] %v343
      %v345 = vld [vmem:[#allocation2 + $0x3c] sm:$0x1]
      %v346 = vsel %vm329, 0, %v345
      %347 = vst [vmem:[#allocation2 + $0x3c] sm:$0x1] %v346
      %v348 = vld [vmem:[#allocation2 + $0x48] sm:$0x1]
      %v349 = vsel %vm329, 0, %v348
      %350 = vst [vmem:[#allocation2 + $0x48] sm:$0x1] %v349
      %v351 = vld [vmem:[#allocation2 + $0x54] sm:$0x1]
      %v352 = vsel %vm329, 0, %v351
      %353 = vst [vmem:[#allocation2 + $0x54] sm:$0x1] %v352
      %v354 = vld [vmem:[#allocation2 + $0x60] sm:$0x1]
      %v355 = vsel %vm329, 0, %v354
      %356 = vst [vmem:[#allocation2 + $0x60] sm:$0x1] %v355
      %v357 = vld [vmem:[#allocation2 + $0x6c] sm:$0x1]
      %v358 = vsel %vm329, 0, %v357
      %359 = vst [vmem:[#allocation2 + $0x6c] sm:$0x1] %v358
      %v360 = vld [vmem:[#allocation2 + $0x78] sm:$0x1]
      %v361 = vsel %vm329, 0, %v360
      %362 = vst [vmem:[#allocation2 + $0x78] sm:$0x1] %v361
      %v363 = vld [vmem:[#allocation2 + $0x84] sm:$0x1]
      %v364 = vsel %vm329, 0, %v363
      %365 = vst [vmem:[#allocation2 + $0x84] sm:$0x1] %v364
      %v366 = vld [vmem:[#allocation2 + $0x90] sm:$0x1]
      %v367 = vsel %vm329, 0, %v366
      %368 = vst [vmem:[#allocation2 + $0x90] sm:$0x1] %v367
      %v369 = vld [vmem:[#allocation2 + $0x9c] sm:$0x1]
      %v370 = vsel %vm329, 0, %v369
      %371 = vst [vmem:[#allocation2 + $0x9c] sm:$0x1] %v370
      %v372 = vld [vmem:[#allocation2 + $0xa8] sm:$0x1]
      %v373 = vsel %vm329, 0, %v372
      %374 = vst [vmem:[#allocation2 + $0xa8] sm:$0x1] %v373
      %v375 = vld [vmem:[#allocation2 + $0xb4] sm:$0x1]
      %v376 = vsel %vm329, 0, %v375
      %377 = vst [vmem:[#allocation2 + $0xb4] sm:$0x1] %v376
      %v378 = vld [vmem:[#allocation2 + $0xc0] sm:$0x1]
      %v379 = vsel %vm329, 0, %v378
      %380 = vst [vmem:[#allocation2 + $0xc0] sm:$0x1] %v379
      %v381 = vld [vmem:[#allocation2 + $0xcc] sm:$0x1]
      %v382 = vsel %vm329, 0, %v381
      %383 = vst [vmem:[#allocation2 + $0xcc] sm:$0x1] %v382
      %vm384 = vsmask.f32 7938
      %vm385 = vmand %vm327, %vm384
      %v386 = vld [vmem:[#allocation2 + $0x8] sm:$0x1]
      %v387 = vsel %vm385, 0, %v386
      %388 = vst [vmem:[#allocation2 + $0x8] sm:$0x1] %v387
      %v389 = vld [vmem:[#allocation2 + $0x14] sm:$0x1]
      %v390 = vsel %vm385, 0, %v389
      %391 = vst [vmem:[#allocation2 + $0x14] sm:$0x1] %v390
      %v392 = vld [vmem:[#allocation2 + $0x20] sm:$0x1]
      %v393 = vsel %vm385, 0, %v392
      %394 = vst [vmem:[#allocation2 + $0x20] sm:$0x1] %v393
      %v395 = vld [vmem:[#allocation2 + $0x2c] sm:$0x1]
      %v396 = vsel %vm385, 0, %v395
      %397 = vst [vmem:[#allocation2 + $0x2c] sm:$0x1] %v396
      %v398 = vld [vmem:[#allocation2 + $0x38] sm:$0x1]
      %v399 = vsel %vm385, 0, %v398
      %400 = vst [vmem:[#allocation2 + $0x38] sm:$0x1] %v399
      %v401 = vld [vmem:[#allocation2 + $0x44] sm:$0x1]
      %v402 = vsel %vm385, 0, %v401
      %403 = vst [vmem:[#allocation2 + $0x44] sm:$0x1] %v402
      %v404 = vld [vmem:[#allocation2 + $0x50] sm:$0x1]
      %v405 = vsel %vm385, 0, %v404
      %406 = vst [vmem:[#allocation2 + $0x50] sm:$0x1] %v405
      %v407 = vld [vmem:[#allocation2 + $0x5c] sm:$0x1]
      %v408 = vsel %vm385, 0, %v407
      %409 = vst [vmem:[#allocation2 + $0x5c] sm:$0x1] %v408
      %v410 = vld [vmem:[#allocation2 + $0x68] sm:$0x1]
      %v411 = vsel %vm385, 0, %v410
      %412 = vst [vmem:[#allocation2 + $0x68] sm:$0x1] %v411
      %v413 = vld [vmem:[#allocation2 + $0x74] sm:$0x1]
      %v414 = vsel %vm385, 0, %v413
      %415 = vst [vmem:[#allocation2 + $0x74] sm:$0x1] %v414
      %v416 = vld [vmem:[#allocation2 + $0x80] sm:$0x1]
      %v417 = vsel %vm385, 0, %v416
      %418 = vst [vmem:[#allocation2 + $0x80] sm:$0x1] %v417
      %v419 = vld [vmem:[#allocation2 + $0x8c] sm:$0x1]
      %v420 = vsel %vm385, 0, %v419
      %421 = vst [vmem:[#allocation2 + $0x8c] sm:$0x1] %v420
      %v422 = vld [vmem:[#allocation2 + $0x98] sm:$0x1]
      %v423 = vsel %vm385, 0, %v422
      %424 = vst [vmem:[#allocation2 + $0x98] sm:$0x1] %v423
      %v425 = vld [vmem:[#allocation2 + $0xa4] sm:$0x1]
      %v426 = vsel %vm385, 0, %v425
      %427 = vst [vmem:[#allocation2 + $0xa4] sm:$0x1] %v426
      %v428 = vld [vmem:[#allocation2 + $0xb0] sm:$0x1]
      %v429 = vsel %vm385, 0, %v428
      %430 = vst [vmem:[#allocation2 + $0xb0] sm:$0x1] %v429
      %v431 = vld [vmem:[#allocation2 + $0xbc] sm:$0x1]
      %v432 = vsel %vm385, 0, %v431
      %433 = vst [vmem:[#allocation2 + $0xbc] sm:$0x1] %v432
      %v434 = vld [vmem:[#allocation2 + $0xc8] sm:$0x1]
      %v435 = vsel %vm385, 0, %v434
      %436 = vst [vmem:[#allocation2 + $0xc8] sm:$0x1] %v435
      %v437 = vld [vmem:[#allocation2 + $0xd4] sm:$0x1]
      %v438 = vsel %vm385, 0, %v437
      %439 = vst [vmem:[#allocation2 + $0xd4] sm:$0x1] %v438
      %vm440 = vsmask.f32 4368
      %vm441 = vmor %vm328, %vm440
      %v443 = vshrl.u32 %v286, 16
      %v445 = vrot.slane %v443, 7
      %v446 = vshll.u32 %v286, 16
      %v448 = vor.u32 %v445, %v446
      %v449 = vrot.slane %v445, 4
      %v451 = vshrl.u32 %v287, 16
      %v453 = vrot.slane %v451, 7
      %v454 = vshll.u32 %v287, 16
      %v456 = vor.u32 %v453, %v454
      %v457 = vsel %vm441, %v449, %v456
      %v458 = vrot.slane %v453, 4
      %v460 = vshrl.u32 %v288, 16
      %v462 = vrot.slane %v460, 7
      %v463 = vshll.u32 %v288, 16
      %v465 = vor.u32 %v462, %v463
      %v466 = vrot.slane %v462, 4
      %v468 = vshrl.u32 %v289, 16
      %v470 = vrot.slane %v468, 7
      %v471 = vshll.u32 %v289, 16
      %v473 = vor.u32 %v470, %v471
      %v474 = vsel %vm441, %v466, %v473
      %v475 = vrot.slane %v470, 4
      %v477 = vshrl.u32 %v290, 16
      %v479 = vrot.slane %v477, 7
      %v480 = vshll.u32 %v290, 16
      %v482 = vor.u32 %v479, %v480
      %v483 = vrot.slane %v479, 4
      %v485 = vshrl.u32 %v291, 16
      %v487 = vrot.slane %v485, 7
      %v488 = vshll.u32 %v291, 16
      %v490 = vor.u32 %v487, %v488
      %v491 = vsel %vm441, %v483, %v490
      %v492 = vrot.slane %v487, 4
      %v494 = vshrl.u32 %v292, 16
      %v496 = vrot.slane %v494, 7
      %v497 = vshll.u32 %v292, 16
      %v499 = vor.u32 %v496, %v497
      %v500 = vrot.slane %v496, 4
      %v502 = vshrl.u32 %v293, 16
      %v504 = vrot.slane %v502, 7
      %v505 = vshll.u32 %v293, 16
      %v507 = vor.u32 %v504, %v505
      %v508 = vsel %vm441, %v500, %v507
      %v509 = vrot.slane %v504, 4
      %v511 = vshrl.u32 %v294, 16
      %v513 = vrot.slane %v511, 7
      %v514 = vshll.u32 %v294, 16
      %v516 = vor.u32 %v513, %v514
      %v517 = vrot.slane %v513, 4
      %v519 = vshrl.u32 %v295, 16
      %v521 = vrot.slane %v519, 7
      %v522 = vshll.u32 %v295, 16
      %v524 = vor.u32 %v521, %v522
      %v525 = vsel %vm441, %v517, %v524
      %v526 = vrot.slane %v521, 4
      %v528 = vshrl.u32 %v296, 16
      %v530 = vrot.slane %v528, 7
      %v531 = vshll.u32 %v296, 16
      %v533 = vor.u32 %v530, %v531
      %v534 = vrot.slane %v530, 4
      %v536 = vshrl.u32 %v297, 16
      %v538 = vrot.slane %v536, 7
      %v539 = vshll.u32 %v297, 16
      %v541 = vor.u32 %v538, %v539
      %v542 = vsel %vm441, %v534, %v541
      %v543 = vrot.slane %v538, 4
      %v545 = vshrl.u32 %v298, 16
      %v547 = vrot.slane %v545, 7
      %v548 = vshll.u32 %v298, 16
      %v550 = vor.u32 %v547, %v548
      %v551 = vrot.slane %v547, 4
      %v553 = vshrl.u32 %v299, 16
      %v555 = vrot.slane %v553, 7
      %v556 = vshll.u32 %v299, 16
      %v558 = vor.u32 %v555, %v556
      %v559 = vsel %vm441, %v551, %v558
      %v560 = vrot.slane %v555, 4
      %v562 = vshrl.u32 %v300, 16
      %v564 = vrot.slane %v562, 7
      %v565 = vshll.u32 %v300, 16
      %v567 = vor.u32 %v564, %v565
      %v568 = vrot.slane %v564, 4
      %v570 = vshrl.u32 %v301, 16
      %v572 = vrot.slane %v570, 7
      %v573 = vshll.u32 %v301, 16
      %v575 = vor.u32 %v572, %v573
      %v576 = vsel %vm441, %v568, %v575
      %v577 = vrot.slane %v572, 4
      %v579 = vshrl.u32 %v302, 16
      %v581 = vrot.slane %v579, 7
      %v582 = vshll.u32 %v302, 16
      %v584 = vor.u32 %v581, %v582
      %v585 = vrot.slane %v581, 4
      %v587 = vshrl.u32 %v303, 16
      %v589 = vrot.slane %v587, 7
      %v590 = vshll.u32 %v303, 16
      %v592 = vor.u32 %v589, %v590
      %v593 = vsel %vm441, %v585, %v592
      %v594 = vrot.slane %v589, 4
      %v596 = vshrl.u32 %v304, 16
      %v598 = vrot.slane %v596, 7
      %v599 = vshll.u32 %v304, 16
      %v601 = vor.u32 %v598, %v599
      %v602 = vrot.slane %v598, 4
      %v604 = vshrl.u32 %v305, 16
      %v606 = vrot.slane %v604, 7
      %v607 = vshll.u32 %v305, 16
      %v609 = vor.u32 %v606, %v607
      %v610 = vsel %vm441, %v602, %v609
      %v611 = vrot.slane %v606, 4
      %v613 = vshrl.u32 %v306, 16
      %v615 = vrot.slane %v613, 7
      %v616 = vshll.u32 %v306, 16
      %v618 = vor.u32 %v615, %v616
      %v619 = vrot.slane %v615, 4
      %v621 = vshrl.u32 %v307, 16
      %v623 = vrot.slane %v621, 7
      %v624 = vshll.u32 %v307, 16
      %v626 = vor.u32 %v623, %v624
      %v627 = vsel %vm441, %v619, %v626
      %v628 = vrot.slane %v623, 4
      %v630 = vshrl.u32 %v308, 16
      %v632 = vrot.slane %v630, 7
      %v633 = vshll.u32 %v308, 16
      %v635 = vor.u32 %v632, %v633
      %v636 = vrot.slane %v632, 4
      %v638 = vshrl.u32 %v309, 16
      %v640 = vrot.slane %v638, 7
      %v641 = vshll.u32 %v309, 16
      %v643 = vor.u32 %v640, %v641
      %v644 = vsel %vm441, %v636, %v643
      %v645 = vrot.slane %v640, 4
      %v647 = vshrl.u32 %v310, 16
      %v649 = vrot.slane %v647, 7
      %v650 = vshll.u32 %v310, 16
      %v652 = vor.u32 %v649, %v650
      %v653 = vrot.slane %v649, 4
      %v655 = vshrl.u32 %v311, 16
      %v657 = vrot.slane %v655, 7
      %v658 = vshll.u32 %v311, 16
      %v660 = vor.u32 %v657, %v658
      %v661 = vsel %vm441, %v653, %v660
      %v662 = vrot.slane %v657, 4
      %v664 = vshrl.u32 %v312, 16
      %v666 = vrot.slane %v664, 7
      %v667 = vshll.u32 %v312, 16
      %v669 = vor.u32 %v666, %v667
      %v670 = vrot.slane %v666, 4
      %v672 = vshrl.u32 %v313, 16
      %v674 = vrot.slane %v672, 7
      %v675 = vshll.u32 %v313, 16
      %v677 = vor.u32 %v674, %v675
      %v678 = vsel %vm441, %v670, %v677
      %v679 = vrot.slane %v674, 4
      %v681 = vshrl.u32 %v314, 16
      %v683 = vrot.slane %v681, 7
      %v684 = vshll.u32 %v314, 16
      %v686 = vor.u32 %v683, %v684
      %v687 = vrot.slane %v683, 4
      %v689 = vshrl.u32 %v315, 16
      %v691 = vrot.slane %v689, 7
      %v692 = vshll.u32 %v315, 16
      %v694 = vor.u32 %v691, %v692
      %v695 = vsel %vm441, %v687, %v694
      %v696 = vrot.slane %v691, 4
      %v698 = vshrl.u32 %v316, 16
      %v700 = vrot.slane %v698, 7
      %v701 = vshll.u32 %v316, 16
      %v703 = vor.u32 %v700, %v701
      %v704 = vrot.slane %v700, 4
      %v706 = vshrl.u32 %v317, 16
      %v708 = vrot.slane %v706, 7
      %v709 = vshll.u32 %v317, 16
      %v711 = vor.u32 %v708, %v709
      %v712 = vsel %vm441, %v704, %v711
      %v713 = vrot.slane %v708, 4
      %s762 = scalar_lea.vmem [#allocation2], 12
      %vm763 = vcmask 27648
      %vm764 = vmand %vm763, %vm384
      %v765 = vld [vmem:[%s762] sm:$0xf]
      %v766 = vsel %vm764, %v448, %v765
      %767 = vst [vmem:[%s762] sm:$0xf] %v766
      %768 = vst.msk [vmem:[%s762 + $0x4] sm:$0xf] %vm318, %v457
      %v769 = vld [vmem:[%s762 + $0x8] sm:$0x1]
      %v770 = vsel %vm329, %v458, %v769
      %771 = vst [vmem:[%s762 + $0x8] sm:$0x1] %v770
      %v772 = vld [vmem:[%s762 + $0xc] sm:$0xf]
      %v773 = vsel %vm764, %v465, %v772
      %774 = vst [vmem:[%s762 + $0xc] sm:$0xf] %v773
      %775 = vst.msk [vmem:[%s762 + $0x10] sm:$0xf] %vm318, %v474
      %v776 = vld [vmem:[%s762 + $0x14] sm:$0x1]
      %v777 = vsel %vm329, %v475, %v776
      %778 = vst [vmem:[%s762 + $0x14] sm:$0x1] %v777
      %v779 = vld [vmem:[%s762 + $0x18] sm:$0xf]
      %v780 = vsel %vm764, %v482, %v779
      %781 = vst [vmem:[%s762 + $0x18] sm:$0xf] %v780
      %782 = vst.msk [vmem:[%s762 + $0x1c] sm:$0xf] %vm318, %v491
      %v783 = vld [vmem:[%s762 + $0x20] sm:$0x1]
      %v784 = vsel %vm329, %v492, %v783
      %785 = vst [vmem:[%s762 + $0x20] sm:$0x1] %v784
      %v786 = vld [vmem:[%s762 + $0x24] sm:$0xf]
      %v787 = vsel %vm764, %v499, %v786
      %788 = vst [vmem:[%s762 + $0x24] sm:$0xf] %v787
      %789 = vst.msk [vmem:[%s762 + $0x28] sm:$0xf] %vm318, %v508
      %v790 = vld [vmem:[%s762 + $0x2c] sm:$0x1]
      %v791 = vsel %vm329, %v509, %v790
      %792 = vst [vmem:[%s762 + $0x2c] sm:$0x1] %v791
      %v793 = vld [vmem:[%s762 + $0x30] sm:$0xf]
      %v794 = vsel %vm764, %v516, %v793
      %795 = vst [vmem:[%s762 + $0x30] sm:$0xf] %v794
      %796 = vst.msk [vmem:[%s762 + $0x34] sm:$0xf] %vm318, %v525
      %v797 = vld [vmem:[%s762 + $0x38] sm:$0x1]
      %v798 = vsel %vm329, %v526, %v797
      %799 = vst [vmem:[%s762 + $0x38] sm:$0x1] %v798
      %v800 = vld [vmem:[%s762 + $0x3c] sm:$0xf]
      %v801 = vsel %vm764, %v533, %v800
      %802 = vst [vmem:[%s762 + $0x3c] sm:$0xf] %v801
      %803 = vst.msk [vmem:[%s762 + $0x40] sm:$0xf] %vm318, %v542
      %v804 = vld [vmem:[%s762 + $0x44] sm:$0x1]
      %v805 = vsel %vm329, %v543, %v804
      %806 = vst [vmem:[%s762 + $0x44] sm:$0x1] %v805
      %v807 = vld [vmem:[%s762 + $0x48] sm:$0xf]
      %v808 = vsel %vm764, %v550, %v807
      %809 = vst [vmem:[%s762 + $0x48] sm:$0xf] %v808
      %810 = vst.msk [vmem:[%s762 + $0x4c] sm:$0xf] %vm318, %v559
      %v811 = vld [vmem:[%s762 + $0x50] sm:$0x1]
      %v812 = vsel %vm329, %v560, %v811
      %813 = vst [vmem:[%s762 + $0x50] sm:$0x1] %v812
      %v814 = vld [vmem:[%s762 + $0x54] sm:$0xf]
      %v815 = vsel %vm764, %v567, %v814
      %816 = vst [vmem:[%s762 + $0x54] sm:$0xf] %v815
      %817 = vst.msk [vmem:[%s762 + $0x58] sm:$0xf] %vm318, %v576
      %v818 = vld [vmem:[%s762 + $0x5c] sm:$0x1]
      %v819 = vsel %vm329, %v577, %v818
      %820 = vst [vmem:[%s762 + $0x5c] sm:$0x1] %v819
      %v821 = vld [vmem:[%s762 + $0x60] sm:$0xf]
      %v822 = vsel %vm764, %v584, %v821
      %823 = vst [vmem:[%s762 + $0x60] sm:$0xf] %v822
      %824 = vst.msk [vmem:[%s762 + $0x64] sm:$0xf] %vm318, %v593
      %v825 = vld [vmem:[%s762 + $0x68] sm:$0x1]
      %v826 = vsel %vm329, %v594, %v825
      %827 = vst [vmem:[%s762 + $0x68] sm:$0x1] %v826
      %v828 = vld [vmem:[%s762 + $0x6c] sm:$0xf]
      %v829 = vsel %vm764, %v601, %v828
      %830 = vst [vmem:[%s762 + $0x6c] sm:$0xf] %v829
      %831 = vst.msk [vmem:[%s762 + $0x70] sm:$0xf] %vm318, %v610
      %v832 = vld [vmem:[%s762 + $0x74] sm:$0x1]
      %v833 = vsel %vm329, %v611, %v832
      %834 = vst [vmem:[%s762 + $0x74] sm:$0x1] %v833
      %v835 = vld [vmem:[%s762 + $0x78] sm:$0xf]
      %v836 = vsel %vm764, %v618, %v835
      %837 = vst [vmem:[%s762 + $0x78] sm:$0xf] %v836
      %838 = vst.msk [vmem:[%s762 + $0x7c] sm:$0xf] %vm318, %v627
      %v839 = vld [vmem:[%s762 + $0x80] sm:$0x1]
      %v840 = vsel %vm329, %v628, %v839
      %841 = vst [vmem:[%s762 + $0x80] sm:$0x1] %v840
      %v842 = vld [vmem:[%s762 + $0x84] sm:$0xf]
      %v843 = vsel %vm764, %v635, %v842
      %844 = vst [vmem:[%s762 + $0x84] sm:$0xf] %v843
      %845 = vst.msk [vmem:[%s762 + $0x88] sm:$0xf] %vm318, %v644
      %v846 = vld [vmem:[%s762 + $0x8c] sm:$0x1]
      %v847 = vsel %vm329, %v645, %v846
      %848 = vst [vmem:[%s762 + $0x8c] sm:$0x1] %v847
      %v849 = vld [vmem:[%s762 + $0x90] sm:$0xf]
      %v850 = vsel %vm764, %v652, %v849
      %851 = vst [vmem:[%s762 + $0x90] sm:$0xf] %v850
      %852 = vst.msk [vmem:[%s762 + $0x94] sm:$0xf] %vm318, %v661
      %v853 = vld [vmem:[%s762 + $0x98] sm:$0x1]
      %v854 = vsel %vm329, %v662, %v853
      %855 = vst [vmem:[%s762 + $0x98] sm:$0x1] %v854
      %v856 = vld [vmem:[%s762 + $0x9c] sm:$0xf]
      %v857 = vsel %vm764, %v669, %v856
      %858 = vst [vmem:[%s762 + $0x9c] sm:$0xf] %v857
      %859 = vst.msk [vmem:[%s762 + $0xa0] sm:$0xf] %vm318, %v678
      %v860 = vld [vmem:[%s762 + $0xa4] sm:$0x1]
      %v861 = vsel %vm329, %v679, %v860
      %862 = vst [vmem:[%s762 + $0xa4] sm:$0x1] %v861
      %v863 = vld [vmem:[%s762 + $0xa8] sm:$0xf]
      %v864 = vsel %vm764, %v686, %v863
      %865 = vst [vmem:[%s762 + $0xa8] sm:$0xf] %v864
      %866 = vst.msk [vmem:[%s762 + $0xac] sm:$0xf] %vm318, %v695
      %v867 = vld [vmem:[%s762 + $0xb0] sm:$0x1]
      %v868 = vsel %vm329, %v696, %v867
      %869 = vst [vmem:[%s762 + $0xb0] sm:$0x1] %v868
      %v870 = vld [vmem:[%s762 + $0xb4] sm:$0xf]
      %v871 = vsel %vm764, %v703, %v870
      %872 = vst [vmem:[%s762 + $0xb4] sm:$0xf] %v871
      %873 = vst.msk [vmem:[%s762 + $0xb8] sm:$0xf] %vm318, %v712
      %v874 = vld [vmem:[%s762 + $0xbc] sm:$0x1]
      %v875 = vsel %vm329, %v713, %v874
      %876 = vst [vmem:[%s762 + $0xbc] sm:$0x1] %v875
      %v877 = vld [vmem:[#allocation2] sm:$0xf]
      %v878 = vld [vmem:[#allocation2 + $0x4] sm:$0xf]
      %v879 = vld [vmem:[#allocation2 + $0xc] sm:$0xf]
      %v880 = vld [vmem:[#allocation2 + $0x10] sm:$0xf]
      %v881 = vld [vmem:[#allocation2 + $0x18] sm:$0xf]
      %v882 = vld [vmem:[#allocation2 + $0x1c] sm:$0xf]
      %v883 = vld [vmem:[#allocation2 + $0x24] sm:$0xf]
      %v884 = vld [vmem:[#allocation2 + $0x28] sm:$0xf]
      %v885 = vld [vmem:[#allocation2 + $0x30] sm:$0xf]
      %v886 = vld [vmem:[#allocation2 + $0x34] sm:$0xf]
      %v887 = vld [vmem:[#allocation2 + $0x3c] sm:$0xf]
      %v888 = vld [vmem:[#allocation2 + $0x40] sm:$0xf]
      %v889 = vld [vmem:[#allocation2 + $0x48] sm:$0xf]
      %v890 = vld [vmem:[#allocation2 + $0x4c] sm:$0xf]
      %v891 = vld [vmem:[#allocation2 + $0x54] sm:$0xf]
      %v892 = vld [vmem:[#allocation2 + $0x58] sm:$0xf]
      %v893 = vld [vmem:[#allocation2 + $0x60] sm:$0xf]
      %v894 = vld [vmem:[#allocation2 + $0x64] sm:$0xf]
      %v895 = vld [vmem:[#allocation2 + $0x6c] sm:$0xf]
      %v896 = vld [vmem:[#allocation2 + $0x70] sm:$0xf]
      %v897 = vld [vmem:[#allocation2 + $0x78] sm:$0xf]
      %v898 = vld [vmem:[#allocation2 + $0x7c] sm:$0xf]
      %v899 = vld [vmem:[#allocation2 + $0x84] sm:$0xf]
      %v900 = vld [vmem:[#allocation2 + $0x88] sm:$0xf]
      %v901 = vld [vmem:[#allocation2 + $0x90] sm:$0xf]
      %v902 = vld [vmem:[#allocation2 + $0x94] sm:$0xf]
      %v903 = vld [vmem:[#allocation2 + $0x9c] sm:$0xf]
      %v904 = vld [vmem:[#allocation2 + $0xa0] sm:$0xf]
      %v905 = vld [vmem:[#allocation2 + $0xa8] sm:$0xf]
      %v906 = vld [vmem:[#allocation2 + $0xac] sm:$0xf]
      %v907 = vld [vmem:[#allocation2 + $0xb4] sm:$0xf]
      %v908 = vld [vmem:[#allocation2 + $0xb8] sm:$0xf]
      %v909 = vld [vmem:[#allocation2 + $0xc0] sm:$0xf]
      %v910 = vld [vmem:[#allocation2 + $0xc4] sm:$0xf]
      %v911 = vld [vmem:[#allocation2 + $0xcc] sm:$0xf]
      %v912 = vld [vmem:[#allocation2 + $0xd0] sm:$0xf]
      %v913 = vld [vmem:[#allocation2 + $0x8] sm:$0x1]
      %v914 = vld [vmem:[#allocation2 + $0x14] sm:$0x1]
      %v915 = vld [vmem:[#allocation2 + $0x20] sm:$0x1]
      %v916 = vld [vmem:[#allocation2 + $0x2c] sm:$0x1]
      %v917 = vld [vmem:[#allocation2 + $0x38] sm:$0x1]
      %v918 = vld [vmem:[#allocation2 + $0x44] sm:$0x1]
      %v919 = vld [vmem:[#allocation2 + $0x50] sm:$0x1]
      %v920 = vld [vmem:[#allocation2 + $0x5c] sm:$0x1]
      %v921 = vld [vmem:[#allocation2 + $0x68] sm:$0x1]
      %v922 = vld [vmem:[#allocation2 + $0x74] sm:$0x1]
      %v923 = vld [vmem:[#allocation2 + $0x80] sm:$0x1]
      %v924 = vld [vmem:[#allocation2 + $0x8c] sm:$0x1]
      %v925 = vld [vmem:[#allocation2 + $0x98] sm:$0x1]
      %v926 = vld [vmem:[#allocation2 + $0xa4] sm:$0x1]
      %v927 = vld [vmem:[#allocation2 + $0xb0] sm:$0x1]
      %v928 = vld [vmem:[#allocation2 + $0xbc] sm:$0x1]
      %v929 = vld [vmem:[#allocation2 + $0xc8] sm:$0x1]
      %v930 = vld [vmem:[#allocation2 + $0xd4] sm:$0x1]
      %v931 = vld [vmem:[#allocation2] sm:$0xe]
      %v932 = vld [vmem:[#allocation2 + $0xc] sm:$0xe]
      %v933 = vld [vmem:[#allocation2 + $0x18] sm:$0xe]
      %v934 = vld [vmem:[#allocation2 + $0x24] sm:$0xe]
      %v935 = vld [vmem:[#allocation2 + $0x30] sm:$0xe]
      %v936 = vld [vmem:[#allocation2 + $0x3c] sm:$0xe]
      %v937 = vld [vmem:[#allocation2 + $0x48] sm:$0xe]
      %v938 = vld [vmem:[#allocation2 + $0x54] sm:$0xe]
      %v939 = vld [vmem:[#allocation2 + $0x60] sm:$0xe]
      %v940 = vld [vmem:[#allocation2 + $0x6c] sm:$0xe]
      %v941 = vld [vmem:[#allocation2 + $0x78] sm:$0xe]
      %v942 = vld [vmem:[#allocation2 + $0x84] sm:$0xe]
      %v943 = vld [vmem:[#allocation2 + $0x90] sm:$0xe]
      %v944 = vld [vmem:[#allocation2 + $0x9c] sm:$0xe]
      %v945 = vld [vmem:[#allocation2 + $0xa8] sm:$0xe]
      %v946 = vld [vmem:[#allocation2 + $0xb4] sm:$0xe]
      %v947 = vld [vmem:[#allocation2 + $0xc0] sm:$0xe]
      %v948 = vld [vmem:[#allocation2 + $0xcc] sm:$0xe]
      %v985 = vunpack.c.l.b16 %v877
      %v986 = vunpack.c.l.b16 %v878
      %v987 = vunpack.c.l.b16 %v879
      %v988 = vunpack.c.l.b16 %v880
      %v989 = vunpack.c.l.b16 %v881
      %v990 = vunpack.c.l.b16 %v882
      %v991 = vunpack.c.l.b16 %v883
      %v992 = vunpack.c.l.b16 %v884
      %v993 = vunpack.c.l.b16 %v885
      %v994 = vunpack.c.l.b16 %v886
      %v995 = vunpack.c.l.b16 %v887
      %v996 = vunpack.c.l.b16 %v888
      %v997 = vunpack.c.l.b16 %v889
      %v998 = vunpack.c.l.b16 %v890
      %v999 = vunpack.c.l.b16 %v891
      %v1000 = vunpack.c.l.b16 %v892
      %v1001 = vunpack.c.l.b16 %v893
      %v1002 = vunpack.c.l.b16 %v894
      %v1003 = vunpack.c.l.b16 %v895
      %v1004 = vunpack.c.l.b16 %v896
      %v1005 = vunpack.c.l.b16 %v897
      %v1006 = vunpack.c.l.b16 %v898
      %v1007 = vunpack.c.l.b16 %v899
      %v1008 = vunpack.c.l.b16 %v900
      %v1009 = vunpack.c.l.b16 %v901
      %v1010 = vunpack.c.l.b16 %v902
      %v1011 = vunpack.c.l.b16 %v903
      %v1012 = vunpack.c.l.b16 %v904
      %v1013 = vunpack.c.l.b16 %v905
      %v1014 = vunpack.c.l.b16 %v906
      %v1015 = vunpack.c.l.b16 %v907
      %v1016 = vunpack.c.l.b16 %v908
      %v1017 = vunpack.c.l.b16 %v909
      %v1018 = vunpack.c.l.b16 %v910
      %v1019 = vunpack.c.l.b16 %v911
      %v1020 = vunpack.c.l.b16 %v912
      %v1021 = vpack.c.b16 %v986, %v985
      %v1022 = vpack.c.b16 %v988, %v987
      %v1023 = vpack.c.b16 %v990, %v989
      %v1024 = vpack.c.b16 %v992, %v991
      %v1025 = vpack.c.b16 %v994, %v993
      %v1026 = vpack.c.b16 %v996, %v995
      %v1027 = vpack.c.b16 %v998, %v997
      %v1028 = vpack.c.b16 %v1000, %v999
      %v1029 = vpack.c.b16 %v1002, %v1001
      %v1030 = vpack.c.b16 %v1004, %v1003
      %v1031 = vpack.c.b16 %v1006, %v1005
      %v1032 = vpack.c.b16 %v1008, %v1007
      %v1033 = vpack.c.b16 %v1010, %v1009
      %v1034 = vpack.c.b16 %v1012, %v1011
      %v1035 = vpack.c.b16 %v1014, %v1013
      %v1036 = vpack.c.b16 %v1016, %v1015
      %v1037 = vpack.c.b16 %v1018, %v1017
      %v1038 = vpack.c.b16 %v1020, %v1019
      %v1057 = vunpack.c.l.b16 %v913
      %v1058 = vunpack.c.l.b16 %v914
      %v1059 = vunpack.c.l.b16 %v915
      %v1060 = vunpack.c.l.b16 %v916
      %v1061 = vunpack.c.l.b16 %v917
      %v1062 = vunpack.c.l.b16 %v918
      %v1063 = vunpack.c.l.b16 %v919
      %v1064 = vunpack.c.l.b16 %v920
      %v1065 = vunpack.c.l.b16 %v921
      %v1066 = vunpack.c.l.b16 %v922
      %v1067 = vunpack.c.l.b16 %v923
      %v1068 = vunpack.c.l.b16 %v924
      %v1069 = vunpack.c.l.b16 %v925
      %v1070 = vunpack.c.l.b16 %v926
      %v1071 = vunpack.c.l.b16 %v927
      %v1072 = vunpack.c.l.b16 %v928
      %v1073 = vunpack.c.l.b16 %v929
      %v1074 = vunpack.c.l.b16 %v930
      %v1075 = vpack.c.b16 %v1057, %v1057
      %v1076 = vpack.c.b16 %v1058, %v1058
      %v1077 = vpack.c.b16 %v1059, %v1059
      %v1078 = vpack.c.b16 %v1060, %v1060
      %v1079 = vpack.c.b16 %v1061, %v1061
      %v1080 = vpack.c.b16 %v1062, %v1062
      %v1081 = vpack.c.b16 %v1063, %v1063
      %v1082 = vpack.c.b16 %v1064, %v1064
      %v1083 = vpack.c.b16 %v1065, %v1065
      %v1084 = vpack.c.b16 %v1066, %v1066
      %v1085 = vpack.c.b16 %v1067, %v1067
      %v1086 = vpack.c.b16 %v1068, %v1068
      %v1087 = vpack.c.b16 %v1069, %v1069
      %v1088 = vpack.c.b16 %v1070, %v1070
      %v1089 = vpack.c.b16 %v1071, %v1071
      %v1090 = vpack.c.b16 %v1072, %v1072
      %v1091 = vpack.c.b16 %v1073, %v1073
      %v1092 = vpack.c.b16 %v1074, %v1074
      %vm1093 = vsmask.f32 7424
      %v1095 = vshrl.u32 %v1021, 16
      %v1097 = vshll.u32 %v1021, 16
      %v1099 = vrot.slane %v1097, 1
      %v1100 = vor.u32 %v1095, %v1099
      %v1102 = vshll.u32 %v1075, 16
      %v1104 = vrot.slane %v1102, 1
      %v1105 = vsel %vm1093, %v1100, %v1104
      %v1107 = vshrl.u32 %v1022, 16
      %v1109 = vshll.u32 %v1022, 16
      %v1111 = vrot.slane %v1109, 1
      %v1112 = vor.u32 %v1107, %v1111
      %v1114 = vshll.u32 %v1076, 16
      %v1116 = vrot.slane %v1114, 1
      %v1117 = vsel %vm1093, %v1112, %v1116
      %v1119 = vshrl.u32 %v1023, 16
      %v1121 = vshll.u32 %v1023, 16
      %v1123 = vrot.slane %v1121, 1
      %v1124 = vor.u32 %v1119, %v1123
      %v1126 = vshll.u32 %v1077, 16
      %v1128 = vrot.slane %v1126, 1
      %v1129 = vsel %vm1093, %v1124, %v1128
      %v1131 = vshrl.u32 %v1024, 16
      %v1133 = vshll.u32 %v1024, 16
      %v1135 = vrot.slane %v1133, 1
      %v1136 = vor.u32 %v1131, %v1135
      %v1138 = vshll.u32 %v1078, 16
      %v1140 = vrot.slane %v1138, 1
      %v1141 = vsel %vm1093, %v1136, %v1140
      %v1143 = vshrl.u32 %v1025, 16
      %v1145 = vshll.u32 %v1025, 16
      %v1147 = vrot.slane %v1145, 1
      %v1148 = vor.u32 %v1143, %v1147
      %v1150 = vshll.u32 %v1079, 16
      %v1152 = vrot.slane %v1150, 1
      %v1153 = vsel %vm1093, %v1148, %v1152
      %v1155 = vshrl.u32 %v1026, 16
      %v1157 = vshll.u32 %v1026, 16
      %v1159 = vrot.slane %v1157, 1
      %v1160 = vor.u32 %v1155, %v1159
      %v1162 = vshll.u32 %v1080, 16
      %v1164 = vrot.slane %v1162, 1
      %v1165 = vsel %vm1093, %v1160, %v1164
      %v1167 = vshrl.u32 %v1027, 16
      %v1169 = vshll.u32 %v1027, 16
      %v1171 = vrot.slane %v1169, 1
      %v1172 = vor.u32 %v1167, %v1171
      %v1174 = vshll.u32 %v1081, 16
      %v1176 = vrot.slane %v1174, 1
      %v1177 = vsel %vm1093, %v1172, %v1176
      %v1179 = vshrl.u32 %v1028, 16
      %v1181 = vshll.u32 %v1028, 16
      %v1183 = vrot.slane %v1181, 1
      %v1184 = vor.u32 %v1179, %v1183
      %v1186 = vshll.u32 %v1082, 16
      %v1188 = vrot.slane %v1186, 1
      %v1189 = vsel %vm1093, %v1184, %v1188
      %v1191 = vshrl.u32 %v1029, 16
      %v1193 = vshll.u32 %v1029, 16
      %v1195 = vrot.slane %v1193, 1
      %v1196 = vor.u32 %v1191, %v1195
      %v1198 = vshll.u32 %v1083, 16
      %v1200 = vrot.slane %v1198, 1
      %v1201 = vsel %vm1093, %v1196, %v1200
      %v1203 = vshrl.u32 %v1030, 16
      %v1205 = vshll.u32 %v1030, 16
      %v1207 = vrot.slane %v1205, 1
      %v1208 = vor.u32 %v1203, %v1207
      %v1210 = vshll.u32 %v1084, 16
      %v1212 = vrot.slane %v1210, 1
      %v1213 = vsel %vm1093, %v1208, %v1212
      %v1215 = vshrl.u32 %v1031, 16
      %v1217 = vshll.u32 %v1031, 16
      %v1219 = vrot.slane %v1217, 1
      %v1220 = vor.u32 %v1215, %v1219
      %v1222 = vshll.u32 %v1085, 16
      %v1224 = vrot.slane %v1222, 1
      %v1225 = vsel %vm1093, %v1220, %v1224
      %v1227 = vshrl.u32 %v1032, 16
      %v1229 = vshll.u32 %v1032, 16
      %v1231 = vrot.slane %v1229, 1
      %v1232 = vor.u32 %v1227, %v1231
      %v1234 = vshll.u32 %v1086, 16
      %v1236 = vrot.slane %v1234, 1
      %v1237 = vsel %vm1093, %v1232, %v1236
      %v1239 = vshrl.u32 %v1033, 16
      %v1241 = vshll.u32 %v1033, 16
      %v1243 = vrot.slane %v1241, 1
      %v1244 = vor.u32 %v1239, %v1243
      %v1246 = vshll.u32 %v1087, 16
      %v1248 = vrot.slane %v1246, 1
      %v1249 = vsel %vm1093, %v1244, %v1248
      %v1251 = vshrl.u32 %v1034, 16
      %v1253 = vshll.u32 %v1034, 16
      %v1255 = vrot.slane %v1253, 1
      %v1256 = vor.u32 %v1251, %v1255
      %v1258 = vshll.u32 %v1088, 16
      %v1260 = vrot.slane %v1258, 1
      %v1261 = vsel %vm1093, %v1256, %v1260
      %v1263 = vshrl.u32 %v1035, 16
      %v1265 = vshll.u32 %v1035, 16
      %v1267 = vrot.slane %v1265, 1
      %v1268 = vor.u32 %v1263, %v1267
      %v1270 = vshll.u32 %v1089, 16
      %v1272 = vrot.slane %v1270, 1
      %v1273 = vsel %vm1093, %v1268, %v1272
      %v1275 = vshrl.u32 %v1036, 16
      %v1277 = vshll.u32 %v1036, 16
      %v1279 = vrot.slane %v1277, 1
      %v1280 = vor.u32 %v1275, %v1279
      %v1282 = vshll.u32 %v1090, 16
      %v1284 = vrot.slane %v1282, 1
      %v1285 = vsel %vm1093, %v1280, %v1284
      %v1287 = vshrl.u32 %v1037, 16
      %v1289 = vshll.u32 %v1037, 16
      %v1291 = vrot.slane %v1289, 1
      %v1292 = vor.u32 %v1287, %v1291
      %v1294 = vshll.u32 %v1091, 16
      %v1296 = vrot.slane %v1294, 1
      %v1297 = vsel %vm1093, %v1292, %v1296
      %v1299 = vshrl.u32 %v1038, 16
      %v1301 = vshll.u32 %v1038, 16
      %v1303 = vrot.slane %v1301, 1
      %v1304 = vor.u32 %v1299, %v1303
      %v1306 = vshll.u32 %v1092, 16
      %v1308 = vrot.slane %v1306, 1
      %v1309 = vsel %vm1093, %v1304, %v1308
      %1310 = vrot.lane.b32.xlu0 %v1105, 4
      %v1311 = vpop.permute.xlu0 %1310
      %1312 = vrot.lane.b32.xlu0 %v1117, 4
      %v1313 = vpop.permute.xlu0 %1312
      %1314 = vrot.lane.b32.xlu0 %v1129, 4
      %v1315 = vpop.permute.xlu0 %1314
      %1316 = vrot.lane.b32.xlu0 %v1141, 4
      %v1317 = vpop.permute.xlu0 %1316
      %1318 = vrot.lane.b32.xlu0 %v1153, 4
      %v1319 = vpop.permute.xlu0 %1318
      %1320 = vrot.lane.b32.xlu0 %v1165, 4
      %v1321 = vpop.permute.xlu0 %1320
      %1322 = vrot.lane.b32.xlu0 %v1177, 4
      %v1323 = vpop.permute.xlu0 %1322
      %1324 = vrot.lane.b32.xlu0 %v1189, 4
      %v1325 = vpop.permute.xlu0 %1324
      %1326 = vrot.lane.b32.xlu0 %v1201, 4
      %v1327 = vpop.permute.xlu0 %1326
      %1328 = vrot.lane.b32.xlu0 %v1213, 4
      %v1329 = vpop.permute.xlu0 %1328
      %1330 = vrot.lane.b32.xlu0 %v1225, 4
      %v1331 = vpop.permute.xlu0 %1330
      %1332 = vrot.lane.b32.xlu0 %v1237, 4
      %v1333 = vpop.permute.xlu0 %1332
      %1334 = vrot.lane.b32.xlu0 %v1249, 4
      %v1335 = vpop.permute.xlu0 %1334
      %1336 = vrot.lane.b32.xlu0 %v1261, 4
      %v1337 = vpop.permute.xlu0 %1336
      %1338 = vrot.lane.b32.xlu0 %v1273, 4
      %v1339 = vpop.permute.xlu0 %1338
      %1340 = vrot.lane.b32.xlu0 %v1285, 4
      %v1341 = vpop.permute.xlu0 %1340
      %1342 = vrot.lane.b32.xlu0 %v1297, 4
      %v1343 = vpop.permute.xlu0 %1342
      %1344 = vrot.lane.b32.xlu0 %v1309, 4
      %v1345 = vpop.permute.xlu0 %1344
      %v1364 = vunpack.c.l.b16 %v931
      %v1365 = vunpack.c.l.b16 %v932
      %v1366 = vunpack.c.l.b16 %v933
      %v1367 = vunpack.c.l.b16 %v934
      %v1368 = vunpack.c.l.b16 %v935
      %v1369 = vunpack.c.l.b16 %v936
      %v1370 = vunpack.c.l.b16 %v937
      %v1371 = vunpack.c.l.b16 %v938
      %v1372 = vunpack.c.l.b16 %v939
      %v1373 = vunpack.c.l.b16 %v940
      %v1374 = vunpack.c.l.b16 %v941
      %v1375 = vunpack.c.l.b16 %v942
      %v1376 = vunpack.c.l.b16 %v943
      %v1377 = vunpack.c.l.b16 %v944
      %v1378 = vunpack.c.l.b16 %v945
      %v1379 = vunpack.c.l.b16 %v946
      %v1380 = vunpack.c.l.b16 %v947
      %v1381 = vunpack.c.l.b16 %v948
      %v1382 = vpack.c.b16 %v986, %v1364
      %v1383 = vpack.c.b16 %v988, %v1365
      %v1384 = vpack.c.b16 %v990, %v1366
      %v1385 = vpack.c.b16 %v992, %v1367
      %v1386 = vpack.c.b16 %v994, %v1368
      %v1387 = vpack.c.b16 %v996, %v1369
      %v1388 = vpack.c.b16 %v998, %v1370
      %v1389 = vpack.c.b16 %v1000, %v1371
      %v1390 = vpack.c.b16 %v1002, %v1372
      %v1391 = vpack.c.b16 %v1004, %v1373
      %v1392 = vpack.c.b16 %v1006, %v1374
      %v1393 = vpack.c.b16 %v1008, %v1375
      %v1394 = vpack.c.b16 %v1010, %v1376
      %v1395 = vpack.c.b16 %v1012, %v1377
      %v1396 = vpack.c.b16 %v1014, %v1378
      %v1397 = vpack.c.b16 %v1016, %v1379
      %v1398 = vpack.c.b16 %v1018, %v1380
      %v1399 = vpack.c.b16 %v1020, %v1381
      %vm1400 = vcmask 1046528
      %v1401 = vrot.slane %v1382, 1
      %v1402 = vrot.slane %v1075, 1
      %v1403 = vsel %vm1400, %v1401, %v1402
      %v1404 = vrot.slane %v1383, 1
      %v1405 = vrot.slane %v1076, 1
      %v1406 = vsel %vm1400, %v1404, %v1405
      %v1407 = vrot.slane %v1384, 1
      %v1408 = vrot.slane %v1077, 1
      %v1409 = vsel %vm1400, %v1407, %v1408
      %v1410 = vrot.slane %v1385, 1
      %v1411 = vrot.slane %v1078, 1
      %v1412 = vsel %vm1400, %v1410, %v1411
      %v1413 = vrot.slane %v1386, 1
      %v1414 = vrot.slane %v1079, 1
      %v1415 = vsel %vm1400, %v1413, %v1414
      %v1416 = vrot.slane %v1387, 1
      %v1417 = vrot.slane %v1080, 1
      %v1418 = vsel %vm1400, %v1416, %v1417
      %v1419 = vrot.slane %v1388, 1
      %v1420 = vrot.slane %v1081, 1
      %v1421 = vsel %vm1400, %v1419, %v1420
      %v1422 = vrot.slane %v1389, 1
      %v1423 = vrot.slane %v1082, 1
      %v1424 = vsel %vm1400, %v1422, %v1423
      %v1425 = vrot.slane %v1390, 1
      %v1426 = vrot.slane %v1083, 1
      %v1427 = vsel %vm1400, %v1425, %v1426
      %v1428 = vrot.slane %v1391, 1
      %v1429 = vrot.slane %v1084, 1
      %v1430 = vsel %vm1400, %v1428, %v1429
      %v1431 = vrot.slane %v1392, 1
      %v1432 = vrot.slane %v1085, 1
      %v1433 = vsel %vm1400, %v1431, %v1432
      %v1434 = vrot.slane %v1393, 1
      %v1435 = vrot.slane %v1086, 1
      %v1436 = vsel %vm1400, %v1434, %v1435
      %v1437 = vrot.slane %v1394, 1
      %v1438 = vrot.slane %v1087, 1
      %v1439 = vsel %vm1400, %v1437, %v1438
      %v1440 = vrot.slane %v1395, 1
      %v1441 = vrot.slane %v1088, 1
      %v1442 = vsel %vm1400, %v1440, %v1441
      %v1443 = vrot.slane %v1396, 1
      %v1444 = vrot.slane %v1089, 1
      %v1445 = vsel %vm1400, %v1443, %v1444
      %v1446 = vrot.slane %v1397, 1
      %v1447 = vrot.slane %v1090, 1
      %v1448 = vsel %vm1400, %v1446, %v1447
      %v1449 = vrot.slane %v1398, 1
      %v1450 = vrot.slane %v1091, 1
      %v1451 = vsel %vm1400, %v1449, %v1450
      %v1452 = vrot.slane %v1399, 1
      %v1453 = vrot.slane %v1092, 1
      %v1454 = vsel %vm1400, %v1452, %v1453
      %1455 = vrot.lane.b32.xlu0 %v1403, 8
      %v1456 = vpop.permute.xlu0 %1455
      %1457 = vrot.lane.b32.xlu0 %v1406, 8
      %v1458 = vpop.permute.xlu0 %1457
      %1459 = vrot.lane.b32.xlu0 %v1409, 8
      %v1460 = vpop.permute.xlu0 %1459
      %1461 = vrot.lane.b32.xlu0 %v1412, 8
      %v1462 = vpop.permute.xlu0 %1461
      %1463 = vrot.lane.b32.xlu0 %v1415, 8
      %v1464 = vpop.permute.xlu0 %1463
      %1465 = vrot.lane.b32.xlu0 %v1418, 8
      %v1466 = vpop.permute.xlu0 %1465
      %1467 = vrot.lane.b32.xlu0 %v1421, 8
      %v1468 = vpop.permute.xlu0 %1467
      %1469 = vrot.lane.b32.xlu0 %v1424, 8
      %v1470 = vpop.permute.xlu0 %1469
      %1471 = vrot.lane.b32.xlu0 %v1427, 8
      %v1472 = vpop.permute.xlu0 %1471
      %1473 = vrot.lane.b32.xlu0 %v1430, 8
      %v1474 = vpop.permute.xlu0 %1473
      %1475 = vrot.lane.b32.xlu0 %v1433, 8
      %v1476 = vpop.permute.xlu0 %1475
      %1477 = vrot.lane.b32.xlu0 %v1436, 8
      %v1478 = vpop.permute.xlu0 %1477
      %1479 = vrot.lane.b32.xlu0 %v1439, 8
      %v1480 = vpop.permute.xlu0 %1479
      %1481 = vrot.lane.b32.xlu0 %v1442, 8
      %v1482 = vpop.permute.xlu0 %1481
      %1483 = vrot.lane.b32.xlu0 %v1445, 8
      %v1484 = vpop.permute.xlu0 %1483
      %1485 = vrot.lane.b32.xlu0 %v1448, 8
      %v1486 = vpop.permute.xlu0 %1485
      %1487 = vrot.lane.b32.xlu0 %v1451, 8
      %v1488 = vpop.permute.xlu0 %1487
      %1489 = vrot.lane.b32.xlu0 %v1454, 8
      %v1490 = vpop.permute.xlu0 %1489
      %vm1491 = vcmask 31744
      %v1493 = vsel %vm1491, %v1021, %v1311
      %v1495 = vsel %vm1491, %v1022, %v1313
      %v1497 = vsel %vm1491, %v1023, %v1315
      %v1499 = vsel %vm1491, %v1024, %v1317
      %v1501 = vsel %vm1491, %v1025, %v1319
      %v1503 = vsel %vm1491, %v1026, %v1321
      %v1505 = vsel %vm1491, %v1027, %v1323
      %v1507 = vsel %vm1491, %v1028, %v1325
      %v1509 = vsel %vm1491, %v1029, %v1327
      %v1511 = vsel %vm1491, %v1030, %v1329
      %v1513 = vsel %vm1491, %v1031, %v1331
      %v1515 = vsel %vm1491, %v1032, %v1333
      %v1517 = vsel %vm1491, %v1033, %v1335
      %v1519 = vsel %vm1491, %v1034, %v1337
      %v1521 = vsel %vm1491, %v1035, %v1339
      %v1523 = vsel %vm1491, %v1036, %v1341
      %v1525 = vsel %vm1491, %v1037, %v1343
      %v1527 = vsel %vm1491, %v1038, %v1345
      %vm1528 = vcmask 64512
      %v1530 = vsel %vm1528, %v1493, %v1456
      %v1532 = vsel %vm1528, %v1495, %v1458
      %v1534 = vsel %vm1528, %v1497, %v1460
      %v1536 = vsel %vm1528, %v1499, %v1462
      %v1538 = vsel %vm1528, %v1501, %v1464
      %v1540 = vsel %vm1528, %v1503, %v1466
      %v1542 = vsel %vm1528, %v1505, %v1468
      %v1544 = vsel %vm1528, %v1507, %v1470
      %v1546 = vsel %vm1528, %v1509, %v1472
      %v1548 = vsel %vm1528, %v1511, %v1474
      %v1550 = vsel %vm1528, %v1513, %v1476
      %v1552 = vsel %vm1528, %v1515, %v1478
      %v1554 = vsel %vm1528, %v1517, %v1480
      %v1556 = vsel %vm1528, %v1519, %v1482
      %v1558 = vsel %vm1528, %v1521, %v1484
      %v1560 = vsel %vm1528, %v1523, %v1486
      %v1562 = vsel %vm1528, %v1525, %v1488
      %v1564 = vsel %vm1528, %v1527, %v1490
      %v1565 = vld [vmem:[%s1] sm:$0xf]
      %v1566 = vld [vmem:[%s1 + $0x4] sm:$0x3]
      %s1567 = scalar_lea.vmem %s1, 8
      %v1568 = vld [vmem:[%s1567] sm:$0xf]
      %v1569 = vld [vmem:[%s1567 + $0x4] sm:$0x3]
      %v1572 = vunpack.c.l.b16 %v1568
      %v1573 = vunpack.c.l.b16 %v1569
      %v1574 = vpack.c.b16 %v1573, %v1572
      %vm1575 = vcmask 97280
      %v1576 = vsel %vm1575, %v1532, 0
      %v1578 = vsel %vm1575, %v1534, 0
      %v1580 = vsel %vm1575, %v1536, 0
      %v1582 = vsel %vm1575, %v1538, 0
      %v1584 = vsel %vm1575, %v1540, 0
      %v1586 = vsel %vm1575, %v1542, 0
      %v1588 = vsel %vm1575, %v1544, 0
      %v1590 = vsel %vm1575, %v1546, 0
      %v1592 = vsel %vm1575, %v1548, 0
      %v1594 = vsel %vm1575, %v1550, 0
      %v1596 = vsel %vm1575, %v1552, 0
      %v1598 = vsel %vm1575, %v1554, 0
      %v1600 = vsel %vm1575, %v1556, 0
      %v1602 = vsel %vm1575, %v1558, 0
      %v1604 = vsel %vm1575, %v1560, 0
      %v1606 = vsel %vm1575, %v1562, 0
      %vm1608 = vcmask 1045504
      %v1610 = vsel %vm1608, %v1574, 0
      %1612 = vmatprep.subr.bf16.mxu0 0
      %1613 = vmatpush1.bf16.msra.mxu0 %v1610
      %1614 = vmatprep.subr.bf16.mxu0 0
      %1615 = vmatpush1.bf16.msra.mxu0 0
      %1616 = vmatprep.subr.bf16.mxu0 0
      %1617 = vmatpush1.bf16.msra.mxu0 0
      %1618 = vmatprep.subr.bf16.mxu0 0
      %1619 = vmatpush1.bf16.msra.mxu0 0
      %1620 = vmatprep.subr.bf16.mxu0 0
      %1621 = vmatpush1.bf16.msra.mxu0 0
      %1622 = vmatprep.subr.bf16.mxu0 0
      %1623 = vmatpush1.bf16.msra.mxu0 0
      %1624 = vmatprep.subr.bf16.mxu0 0
      %1625 = vmatpush1.bf16.msra.mxu0 0
      %1626 = vmatprep.subr.bf16.mxu0 0
      %1627 = vmatpush1.bf16.msra.mxu0 0
      %1628 = vmatprep.subr.bf16.mxu0 0
      %1629 = vmatpush1.bf16.msra.mxu0 0
      %1630 = vmatprep.subr.bf16.mxu0 0
      %1631 = vmatpush1.bf16.msra.mxu0 0
      %1632 = vmatprep.subr.bf16.mxu0 0
      %1633 = vmatpush1.bf16.msra.mxu0 0
      %1634 = vmatprep.subr.bf16.mxu0 0
      %1635 = vmatpush1.bf16.msra.mxu0 0
      %1636 = vmatprep.subr.bf16.mxu0 0
      %1637 = vmatpush1.bf16.msra.mxu0 0
      %1638 = vmatprep.subr.bf16.mxu0 0
      %1639 = vmatpush1.bf16.msra.mxu0 0
      %1640 = vmatprep.subr.bf16.mxu0 0
      %1641 = vmatpush1.bf16.msra.mxu0 0
      %1642 = vmatprep.subr.bf16.mxu0 0
      %1643 = vmatpush1.bf16.msra.mxu0 0
      %1644 = vmatprep.mubr.bf16.mxu0 0
      %1645 = vmatmul.mubr.bf16.gmra.mrb[0].mxu0 %v1576
      %v1646 = vpop.f32.mrb[0].mxu0
      %v1647 = vadd.f32 0.0, %v1646
      %v1648 = vpop.f32.mrb[0].mxu0
      %v1649 = vpop.f32.mrb[0].mxu0
      %v1650 = vadd.f32 0.0, %v1649
      %v1651 = vpop.f32.mrb[0].mxu0
      %1652 = vmatprep.mubr.bf16.mxu0 0
      %1653 = vmatmul.mubr.bf16.gmra.mrb[0].mxu0 %v1578
      %v1654 = vpop.f32.mrb[0].mxu0
      %v1655 = vadd.f32 0.0, %v1654
      %v1656 = vpop.f32.mrb[0].mxu0
      %v1657 = vpop.f32.mrb[0].mxu0
      %v1658 = vadd.f32 0.0, %v1657
      %v1659 = vpop.f32.mrb[0].mxu0
      %1660 = vmatprep.mubr.bf16.mxu0 0
      %1661 = vmatmul.mubr.bf16.gmra.mrb[0].mxu0 %v1580
      %v1662 = vpop.f32.mrb[0].mxu0
      %v1663 = vadd.f32 0.0, %v1662
      %v1664 = vpop.f32.mrb[0].mxu0
      %v1665 = vpop.f32.mrb[0].mxu0
      %v1666 = vadd.f32 0.0, %v1665
      %v1667 = vpop.f32.mrb[0].mxu0
      %1668 = vmatprep.mubr.bf16.mxu0 0
      %1669 = vmatmul.mubr.bf16.gmra.mrb[0].mxu0 %v1582
      %v1670 = vpop.f32.mrb[0].mxu0
      %v1671 = vadd.f32 0.0, %v1670
      %v1672 = vpop.f32.mrb[0].mxu0
      %v1673 = vpop.f32.mrb[0].mxu0
      %v1674 = vadd.f32 0.0, %v1673
      %v1675 = vpop.f32.mrb[0].mxu0
      %1676 = vmatprep.mubr.bf16.mxu0 0
      %1677 = vmatmul.mubr.bf16.gmra.mrb[0].mxu0 %v1584
      %v1678 = vpop.f32.mrb[0].mxu0
      %v1679 = vadd.f32 0.0, %v1678
      %v1680 = vpop.f32.mrb[0].mxu0
      %v1681 = vpop.f32.mrb[0].mxu0
      %v1682 = vadd.f32 0.0, %v1681
      %v1683 = vpop.f32.mrb[0].mxu0
      %1684 = vmatprep.mubr.bf16.mxu0 0
      %1685 = vmatmul.mubr.bf16.gmra.mrb[0].mxu0 %v1586
      %v1686 = vpop.f32.mrb[0].mxu0
      %v1687 = vadd.f32 0.0, %v1686
      %v1688 = vpop.f32.mrb[0].mxu0
      %v1689 = vpop.f32.mrb[0].mxu0
      %v1690 = vadd.f32 0.0, %v1689
      %v1691 = vpop.f32.mrb[0].mxu0
      %1692 = vmatprep.mubr.bf16.mxu0 0
      %1693 = vmatmul.mubr.bf16.gmra.mrb[0].mxu0 %v1588
      %v1694 = vpop.f32.mrb[0].mxu0
      %v1695 = vadd.f32 0.0, %v1694
      %v1696 = vpop.f32.mrb[0].mxu0
      %v1697 = vpop.f32.mrb[0].mxu0
      %v1698 = vadd.f32 0.0, %v1697
      %v1699 = vpop.f32.mrb[0].mxu0
      %1700 = vmatprep.mubr.bf16.mxu0 0
      %1701 = vmatmul.mubr.bf16.gmra.mrb[0].mxu0 %v1590
      %v1702 = vpop.f32.mrb[0].mxu0
      %v1703 = vadd.f32 0.0, %v1702
      %v1704 = vpop.f32.mrb[0].mxu0
      %v1705 = vpop.f32.mrb[0].mxu0
      %v1706 = vadd.f32 0.0, %v1705
      %v1707 = vpop.f32.mrb[0].mxu0
      %1708 = vmatprep.mubr.bf16.mxu0 0
      %1709 = vmatmul.mubr.bf16.gmra.mrb[0].mxu0 %v1592
      %v1710 = vpop.f32.mrb[0].mxu0
      %v1711 = vadd.f32 0.0, %v1710
      %v1712 = vpop.f32.mrb[0].mxu0
      %v1713 = vpop.f32.mrb[0].mxu0
      %v1714 = vadd.f32 0.0, %v1713
      %v1715 = vpop.f32.mrb[0].mxu0
      %1716 = vmatprep.mubr.bf16.mxu0 0
      %1717 = vmatmul.mubr.bf16.gmra.mrb[0].mxu0 %v1594
      %v1718 = vpop.f32.mrb[0].mxu0
      %v1719 = vadd.f32 0.0, %v1718
      %v1720 = vpop.f32.mrb[0].mxu0
      %v1721 = vpop.f32.mrb[0].mxu0
      %v1722 = vadd.f32 0.0, %v1721
      %v1723 = vpop.f32.mrb[0].mxu0
      %1724 = vmatprep.mubr.bf16.mxu0 0
      %1725 = vmatmul.mubr.bf16.gmra.mrb[0].mxu0 %v1596
      %v1726 = vpop.f32.mrb[0].mxu0
      %v1727 = vadd.f32 0.0, %v1726
      %v1728 = vpop.f32.mrb[0].mxu0
      %v1729 = vpop.f32.mrb[0].mxu0
      %v1730 = vadd.f32 0.0, %v1729
      %v1731 = vpop.f32.mrb[0].mxu0
      %1732 = vmatprep.mubr.bf16.mxu0 0
      %1733 = vmatmul.mubr.bf16.gmra.mrb[0].mxu0 %v1598
      %v1734 = vpop.f32.mrb[0].mxu0
      %v1735 = vadd.f32 0.0, %v1734
      %v1736 = vpop.f32.mrb[0].mxu0
      %v1737 = vpop.f32.mrb[0].mxu0
      %v1738 = vadd.f32 0.0, %v1737
      %v1739 = vpop.f32.mrb[0].mxu0
      %1740 = vmatprep.mubr.bf16.mxu0 0
      %1741 = vmatmul.mubr.bf16.gmra.mrb[0].mxu0 %v1600
      %v1742 = vpop.f32.mrb[0].mxu0
      %v1743 = vadd.f32 0.0, %v1742
      %v1744 = vpop.f32.mrb[0].mxu0
      %v1745 = vpop.f32.mrb[0].mxu0
      %v1746 = vadd.f32 0.0, %v1745
      %v1747 = vpop.f32.mrb[0].mxu0
      %1748 = vmatprep.mubr.bf16.mxu0 0
      %1749 = vmatmul.mubr.bf16.gmra.mrb[0].mxu0 %v1602
      %v1750 = vpop.f32.mrb[0].mxu0
      %v1751 = vadd.f32 0.0, %v1750
      %v1752 = vpop.f32.mrb[0].mxu0
      %v1753 = vpop.f32.mrb[0].mxu0
      %v1754 = vadd.f32 0.0, %v1753
      %v1755 = vpop.f32.mrb[0].mxu0
      %1756 = vmatprep.mubr.bf16.mxu0 0
      %1757 = vmatmul.mubr.bf16.gmra.mrb[0].mxu0 %v1604
      %v1758 = vpop.f32.mrb[0].mxu0
      %v1759 = vadd.f32 0.0, %v1758
      %v1760 = vpop.f32.mrb[0].mxu0
      %v1761 = vpop.f32.mrb[0].mxu0
      %v1762 = vadd.f32 0.0, %v1761
      %v1763 = vpop.f32.mrb[0].mxu0
      %1764 = vmatprep.mubr.bf16.mxu0 0
      %1765 = vmatmul.mubr.bf16.gmra.mrb[0].mxu0 %v1606
      %v1766 = vpop.f32.mrb[0].mxu0
      %v1767 = vadd.f32 0.0, %v1766
      %v1768 = vpop.f32.mrb[0].mxu0
      %v1769 = vpop.f32.mrb[0].mxu0
      %v1770 = vadd.f32 0.0, %v1769
      %v1771 = vpop.f32.mrb[0].mxu0
      %1772 = vdwg.mxu0
      %v1775 = vunpack.c.l.b16 %v1565
      %v1776 = vunpack.c.l.b16 %v1566
      %v1777 = vpack.c.b16 %v1776, %v1775
      %v1778 = vsel %vm1575, %v1530, 0
      %v1781 = vsel %vm1608, %v1777, 0
      %1783 = vmatprep.subr.bf16.mxu0 0
      %1784 = vmatpush1.bf16.msra.mxu0 %v1781
      %1785 = vmatprep.subr.bf16.mxu0 0
      %1786 = vmatpush1.bf16.msra.mxu0 0
      %1787 = vmatprep.subr.bf16.mxu0 0
      %1788 = vmatpush1.bf16.msra.mxu0 0
      %1789 = vmatprep.subr.bf16.mxu0 0
      %1790 = vmatpush1.bf16.msra.mxu0 0
      %1791 = vmatprep.subr.bf16.mxu0 0
      %1792 = vmatpush1.bf16.msra.mxu0 0
      %1793 = vmatprep.subr.bf16.mxu0 0
      %1794 = vmatpush1.bf16.msra.mxu0 0
      %1795 = vmatprep.subr.bf16.mxu0 0
      %1796 = vmatpush1.bf16.msra.mxu0 0
      %1797 = vmatprep.subr.bf16.mxu0 0
      %1798 = vmatpush1.bf16.msra.mxu0 0
      %1799 = vmatprep.subr.bf16.mxu0 0
      %1800 = vmatpush1.bf16.msra.mxu0 0
      %1801 = vmatprep.subr.bf16.mxu0 0
      %1802 = vmatpush1.bf16.msra.mxu0 0
      %1803 = vmatprep.subr.bf16.mxu0 0
      %1804 = vmatpush1.bf16.msra.mxu0 0
      %1805 = vmatprep.subr.bf16.mxu0 0
      %1806 = vmatpush1.bf16.msra.mxu0 0
      %1807 = vmatprep.subr.bf16.mxu0 0
      %1808 = vmatpush1.bf16.msra.mxu0 0
      %1809 = vmatprep.subr.bf16.mxu0 0
      %1810 = vmatpush1.bf16.msra.mxu0 0
      %1811 = vmatprep.subr.bf16.mxu0 0
      %1812 = vmatpush1.bf16.msra.mxu0 0
      %1813 = vmatprep.subr.bf16.mxu0 0
      %1814 = vmatpush1.bf16.msra.mxu0 0
      %1815 = vmatprep.mubr.bf16.mxu0 0
      %1816 = vmatmul.mubr.bf16.gmra.mrb[0].mxu0 %v1778
      %v1817 = vpop.f32.mrb[0].mxu0
      %v1818 = vadd.f32 %v1647, %v1817
      %v1819 = vpop.f32.mrb[0].mxu0
      %v1820 = vpop.f32.mrb[0].mxu0
      %v1821 = vadd.f32 %v1650, %v1820
      %v1822 = vpop.f32.mrb[0].mxu0
      %1823 = vmatprep.mubr.bf16.mxu0 0
      %1824 = vmatmul.mubr.bf16.gmra.mrb[0].mxu0 %v1576
      %v1825 = vpop.f32.mrb[0].mxu0
      %v1826 = vadd.f32 %v1655, %v1825
      %v1827 = vpop.f32.mrb[0].mxu0
      %v1828 = vpop.f32.mrb[0].mxu0
      %v1829 = vadd.f32 %v1658, %v1828
      %v1830 = vpop.f32.mrb[0].mxu0
      %1831 = vmatprep.mubr.bf16.mxu0 0
      %1832 = vmatmul.mubr.bf16.gmra.mrb[0].mxu0 %v1578
      %v1833 = vpop.f32.mrb[0].mxu0
      %v1834 = vadd.f32 %v1663, %v1833
      %v1835 = vpop.f32.mrb[0].mxu0
      %v1836 = vpop.f32.mrb[0].mxu0
      %v1837 = vadd.f32 %v1666, %v1836
      %v1838 = vpop.f32.mrb[0].mxu0
      %1839 = vmatprep.mubr.bf16.mxu0 0
      %1840 = vmatmul.mubr.bf16.gmra.mrb[0].mxu0 %v1580
      %v1841 = vpop.f32.mrb[0].mxu0
      %v1842 = vadd.f32 %v1671, %v1841
      %v1843 = vpop.f32.mrb[0].mxu0
      %v1844 = vpop.f32.mrb[0].mxu0
      %v1845 = vadd.f32 %v1674, %v1844
      %v1846 = vpop.f32.mrb[0].mxu0
      %1847 = vmatprep.mubr.bf16.mxu0 0
      %1848 = vmatmul.mubr.bf16.gmra.mrb[0].mxu0 %v1582
      %v1849 = vpop.f32.mrb[0].mxu0
      %v1850 = vadd.f32 %v1679, %v1849
      %v1851 = vpop.f32.mrb[0].mxu0
      %v1852 = vpop.f32.mrb[0].mxu0
      %v1853 = vadd.f32 %v1682, %v1852
      %v1854 = vpop.f32.mrb[0].mxu0
      %1855 = vmatprep.mubr.bf16.mxu0 0
      %1856 = vmatmul.mubr.bf16.gmra.mrb[0].mxu0 %v1584
      %v1857 = vpop.f32.mrb[0].mxu0
      %v1858 = vadd.f32 %v1687, %v1857
      %v1859 = vpop.f32.mrb[0].mxu0
      %v1860 = vpop.f32.mrb[0].mxu0
      %v1861 = vadd.f32 %v1690, %v1860
      %v1862 = vpop.f32.mrb[0].mxu0
      %1863 = vmatprep.mubr.bf16.mxu0 0
      %1864 = vmatmul.mubr.bf16.gmra.mrb[0].mxu0 %v1586
      %v1865 = vpop.f32.mrb[0].mxu0
      %v1866 = vadd.f32 %v1695, %v1865
      %v1867 = vpop.f32.mrb[0].mxu0
      %v1868 = vpop.f32.mrb[0].mxu0
      %v1869 = vadd.f32 %v1698, %v1868
      %v1870 = vpop.f32.mrb[0].mxu0
      %1871 = vmatprep.mubr.bf16.mxu0 0
      %1872 = vmatmul.mubr.bf16.gmra.mrb[0].mxu0 %v1588
      %v1873 = vpop.f32.mrb[0].mxu0
      %v1874 = vadd.f32 %v1703, %v1873
      %v1875 = vpop.f32.mrb[0].mxu0
      %v1876 = vpop.f32.mrb[0].mxu0
      %v1877 = vadd.f32 %v1706, %v1876
      %v1878 = vpop.f32.mrb[0].mxu0
      %1879 = vmatprep.mubr.bf16.mxu0 0
      %1880 = vmatmul.mubr.bf16.gmra.mrb[0].mxu0 %v1590
      %v1881 = vpop.f32.mrb[0].mxu0
      %v1882 = vadd.f32 %v1711, %v1881
      %v1883 = vpop.f32.mrb[0].mxu0
      %v1884 = vpop.f32.mrb[0].mxu0
      %v1885 = vadd.f32 %v1714, %v1884
      %v1886 = vpop.f32.mrb[0].mxu0
      %1887 = vmatprep.mubr.bf16.mxu0 0
      %1888 = vmatmul.mubr.bf16.gmra.mrb[0].mxu0 %v1592
      %v1889 = vpop.f32.mrb[0].mxu0
      %v1890 = vadd.f32 %v1719, %v1889
      %v1891 = vpop.f32.mrb[0].mxu0
      %v1892 = vpop.f32.mrb[0].mxu0
      %v1893 = vadd.f32 %v1722, %v1892
      %v1894 = vpop.f32.mrb[0].mxu0
      %1895 = vmatprep.mubr.bf16.mxu0 0
      %1896 = vmatmul.mubr.bf16.gmra.mrb[0].mxu0 %v1594
      %v1897 = vpop.f32.mrb[0].mxu0
      %v1898 = vadd.f32 %v1727, %v1897
      %v1899 = vpop.f32.mrb[0].mxu0
      %v1900 = vpop.f32.mrb[0].mxu0
      %v1901 = vadd.f32 %v1730, %v1900
      %v1902 = vpop.f32.mrb[0].mxu0
      %1903 = vmatprep.mubr.bf16.mxu0 0
      %1904 = vmatmul.mubr.bf16.gmra.mrb[0].mxu0 %v1596
      %v1905 = vpop.f32.mrb[0].mxu0
      %v1906 = vadd.f32 %v1735, %v1905
      %v1907 = vpop.f32.mrb[0].mxu0
      %v1908 = vpop.f32.mrb[0].mxu0
      %v1909 = vadd.f32 %v1738, %v1908
      %v1910 = vpop.f32.mrb[0].mxu0
      %1911 = vmatprep.mubr.bf16.mxu0 0
      %1912 = vmatmul.mubr.bf16.gmra.mrb[0].mxu0 %v1598
      %v1913 = vpop.f32.mrb[0].mxu0
      %v1914 = vadd.f32 %v1743, %v1913
      %v1915 = vpop.f32.mrb[0].mxu0
      %v1916 = vpop.f32.mrb[0].mxu0
      %v1917 = vadd.f32 %v1746, %v1916
      %v1918 = vpop.f32.mrb[0].mxu0
      %1919 = vmatprep.mubr.bf16.mxu0 0
      %1920 = vmatmul.mubr.bf16.gmra.mrb[0].mxu0 %v1600
      %v1921 = vpop.f32.mrb[0].mxu0
      %v1922 = vadd.f32 %v1751, %v1921
      %v1923 = vpop.f32.mrb[0].mxu0
      %v1924 = vpop.f32.mrb[0].mxu0
      %v1925 = vadd.f32 %v1754, %v1924
      %v1926 = vpop.f32.mrb[0].mxu0
      %1927 = vmatprep.mubr.bf16.mxu0 0
      %1928 = vmatmul.mubr.bf16.gmra.mrb[0].mxu0 %v1602
      %v1929 = vpop.f32.mrb[0].mxu0
      %v1930 = vadd.f32 %v1759, %v1929
      %v1931 = vpop.f32.mrb[0].mxu0
      %v1932 = vpop.f32.mrb[0].mxu0
      %v1933 = vadd.f32 %v1762, %v1932
      %v1934 = vpop.f32.mrb[0].mxu0
      %1935 = vmatprep.mubr.bf16.mxu0 0
      %1936 = vmatmul.mubr.bf16.gmra.mrb[0].mxu0 %v1604
      %v1937 = vpop.f32.mrb[0].mxu0
      %v1938 = vadd.f32 %v1767, %v1937
      %v1939 = vpop.f32.mrb[0].mxu0
      %v1940 = vpop.f32.mrb[0].mxu0
      %v1941 = vadd.f32 %v1770, %v1940
      %v1942 = vpop.f32.mrb[0].mxu0
      %1943 = vdwg.mxu0
      %s1944 = scalar_lea.vmem %s1, 16
      %v1945 = vld [vmem:[%s1944] sm:$0xf]
      %v1946 = vld [vmem:[%s1944 + $0x4] sm:$0x3]
      %v1949 = vunpack.c.l.b16 %v1945
      %v1950 = vunpack.c.l.b16 %v1946
      %v1951 = vpack.c.b16 %v1950, %v1949
      %v1952 = vsel %vm1575, %v1564, 0
      %v1955 = vsel %vm1608, %v1951, 0
      %1957 = vmatprep.subr.bf16.mxu0 0
      %1958 = vmatpush1.bf16.msra.mxu0 %v1955
      %1959 = vmatprep.subr.bf16.mxu0 0
      %1960 = vmatpush1.bf16.msra.mxu0 0
      %1961 = vmatprep.subr.bf16.mxu0 0
      %1962 = vmatpush1.bf16.msra.mxu0 0
      %1963 = vmatprep.subr.bf16.mxu0 0
      %1964 = vmatpush1.bf16.msra.mxu0 0
      %1965 = vmatprep.subr.bf16.mxu0 0
      %1966 = vmatpush1.bf16.msra.mxu0 0
      %1967 = vmatprep.subr.bf16.mxu0 0
      %1968 = vmatpush1.bf16.msra.mxu0 0
      %1969 = vmatprep.subr.bf16.mxu0 0
      %1970 = vmatpush1.bf16.msra.mxu0 0
      %1971 = vmatprep.subr.bf16.mxu0 0
      %1972 = vmatpush1.bf16.msra.mxu0 0
      %1973 = vmatprep.subr.bf16.mxu0 0
      %1974 = vmatpush1.bf16.msra.mxu0 0
      %1975 = vmatprep.subr.bf16.mxu0 0
      %1976 = vmatpush1.bf16.msra.mxu0 0
      %1977 = vmatprep.subr.bf16.mxu0 0
      %1978 = vmatpush1.bf16.msra.mxu0 0
      %1979 = vmatprep.subr.bf16.mxu0 0
      %1980 = vmatpush1.bf16.msra.mxu0 0
      %1981 = vmatprep.subr.bf16.mxu0 0
      %1982 = vmatpush1.bf16.msra.mxu0 0
      %1983 = vmatprep.subr.bf16.mxu0 0
      %1984 = vmatpush1.bf16.msra.mxu0 0
      %1985 = vmatprep.subr.bf16.mxu0 0
      %1986 = vmatpush1.bf16.msra.mxu0 0
      %1987 = vmatprep.subr.bf16.mxu0 0
      %1988 = vmatpush1.bf16.msra.mxu0 0
      %1989 = vmatprep.mubr.bf16.mxu0 0
      %1990 = vmatmul.mubr.bf16.gmra.mrb[0].mxu0 %v1578
      %v1991 = vpop.f32.mrb[0].mxu0
      %v1992 = vadd.f32 0.0, %v1991
      %v1993 = vpop.f32.mrb[0].mxu0
      %v1994 = vpop.f32.mrb[0].mxu0
      %v1995 = vadd.f32 0.0, %v1994
      %v1996 = vpop.f32.mrb[0].mxu0
      %1997 = vmatprep.mubr.bf16.mxu0 0
      %1998 = vmatmul.mubr.bf16.gmra.mrb[0].mxu0 %v1580
      %v1999 = vpop.f32.mrb[0].mxu0
      %v2000 = vadd.f32 0.0, %v1999
      %v2001 = vpop.f32.mrb[0].mxu0
      %v2002 = vpop.f32.mrb[0].mxu0
      %v2003 = vadd.f32 0.0, %v2002
      %v2004 = vpop.f32.mrb[0].mxu0
      %2005 = vmatprep.mubr.bf16.mxu0 0
      %2006 = vmatmul.mubr.bf16.gmra.mrb[0].mxu0 %v1582
      %v2007 = vpop.f32.mrb[0].mxu0
      %v2008 = vadd.f32 0.0, %v2007
      %v2009 = vpop.f32.mrb[0].mxu0
      %v2010 = vpop.f32.mrb[0].mxu0
      %v2011 = vadd.f32 0.0, %v2010
      %v2012 = vpop.f32.mrb[0].mxu0
      %2013 = vmatprep.mubr.bf16.mxu0 0
      %2014 = vmatmul.mubr.bf16.gmra.mrb[0].mxu0 %v1584
      %v2015 = vpop.f32.mrb[0].mxu0
      %v2016 = vadd.f32 0.0, %v2015
      %v2017 = vpop.f32.mrb[0].mxu0
      %v2018 = vpop.f32.mrb[0].mxu0
      %v2019 = vadd.f32 0.0, %v2018
      %v2020 = vpop.f32.mrb[0].mxu0
      %2021 = vmatprep.mubr.bf16.mxu0 0
      %2022 = vmatmul.mubr.bf16.gmra.mrb[0].mxu0 %v1586
      %v2023 = vpop.f32.mrb[0].mxu0
      %v2024 = vadd.f32 0.0, %v2023
      %v2025 = vpop.f32.mrb[0].mxu0
      %v2026 = vpop.f32.mrb[0].mxu0
      %v2027 = vadd.f32 0.0, %v2026
      %v2028 = vpop.f32.mrb[0].mxu0
      %2029 = vmatprep.mubr.bf16.mxu0 0
      %2030 = vmatmul.mubr.bf16.gmra.mrb[0].mxu0 %v1588
      %v2031 = vpop.f32.mrb[0].mxu0
      %v2032 = vadd.f32 0.0, %v2031
      %v2033 = vpop.f32.mrb[0].mxu0
      %v2034 = vpop.f32.mrb[0].mxu0
      %v2035 = vadd.f32 0.0, %v2034
      %v2036 = vpop.f32.mrb[0].mxu0
      %2037 = vmatprep.mubr.bf16.mxu0 0
      %2038 = vmatmul.mubr.bf16.gmra.mrb[0].mxu0 %v1590
      %v2039 = vpop.f32.mrb[0].mxu0
      %v2040 = vadd.f32 0.0, %v2039
      %v2041 = vpop.f32.mrb[0].mxu0
      %v2042 = vpop.f32.mrb[0].mxu0
      %v2043 = vadd.f32 0.0, %v2042
      %v2044 = vpop.f32.mrb[0].mxu0
      %2045 = vmatprep.mubr.bf16.mxu0 0
      %2046 = vmatmul.mubr.bf16.gmra.mrb[0].mxu0 %v1592
      %v2047 = vpop.f32.mrb[0].mxu0
      %v2048 = vadd.f32 0.0, %v2047
      %v2049 = vpop.f32.mrb[0].mxu0
      %v2050 = vpop.f32.mrb[0].mxu0
      %v2051 = vadd.f32 0.0, %v2050
      %v2052 = vpop.f32.mrb[0].mxu0
      %2053 = vmatprep.mubr.bf16.mxu0 0
      %2054 = vmatmul.mubr.bf16.gmra.mrb[0].mxu0 %v1594
      %v2055 = vpop.f32.mrb[0].mxu0
      %v2056 = vadd.f32 0.0, %v2055
      %v2057 = vpop.f32.mrb[0].mxu0
      %v2058 = vpop.f32.mrb[0].mxu0
      %v2059 = vadd.f32 0.0, %v2058
      %v2060 = vpop.f32.mrb[0].mxu0
      %2061 = vmatprep.mubr.bf16.mxu0 0
      %2062 = vmatmul.mubr.bf16.gmra.mrb[0].mxu0 %v1596
      %v2063 = vpop.f32.mrb[0].mxu0
      %v2064 = vadd.f32 0.0, %v2063
      %v2065 = vpop.f32.mrb[0].mxu0
      %v2066 = vpop.f32.mrb[0].mxu0
      %v2067 = vadd.f32 0.0, %v2066
      %v2068 = vpop.f32.mrb[0].mxu0
      %2069 = vmatprep.mubr.bf16.mxu0 0
      %2070 = vmatmul.mubr.bf16.gmra.mrb[0].mxu0 %v1598
      %v2071 = vpop.f32.mrb[0].mxu0
      %v2072 = vadd.f32 0.0, %v2071
      %v2073 = vpop.f32.mrb[0].mxu0
      %v2074 = vpop.f32.mrb[0].mxu0
      %v2075 = vadd.f32 0.0, %v2074
      %v2076 = vpop.f32.mrb[0].mxu0
      %2077 = vmatprep.mubr.bf16.mxu0 0
      %2078 = vmatmul.mubr.bf16.gmra.mrb[0].mxu0 %v1600
      %v2079 = vpop.f32.mrb[0].mxu0
      %v2080 = vadd.f32 0.0, %v2079
      %v2081 = vpop.f32.mrb[0].mxu0
      %v2082 = vpop.f32.mrb[0].mxu0
      %v2083 = vadd.f32 0.0, %v2082
      %v2084 = vpop.f32.mrb[0].mxu0
      %2085 = vmatprep.mubr.bf16.mxu0 0
      %2086 = vmatmul.mubr.bf16.gmra.mrb[0].mxu0 %v1602
      %v2087 = vpop.f32.mrb[0].mxu0
      %v2088 = vadd.f32 0.0, %v2087
      %v2089 = vpop.f32.mrb[0].mxu0
      %v2090 = vpop.f32.mrb[0].mxu0
      %v2091 = vadd.f32 0.0, %v2090
      %v2092 = vpop.f32.mrb[0].mxu0
      %2093 = vmatprep.mubr.bf16.mxu0 0
      %2094 = vmatmul.mubr.bf16.gmra.mrb[0].mxu0 %v1604
      %v2095 = vpop.f32.mrb[0].mxu0
      %v2096 = vadd.f32 0.0, %v2095
      %v2097 = vpop.f32.mrb[0].mxu0
      %v2098 = vpop.f32.mrb[0].mxu0
      %v2099 = vadd.f32 0.0, %v2098
      %v2100 = vpop.f32.mrb[0].mxu0
      %2101 = vmatprep.mubr.bf16.mxu0 0
      %2102 = vmatmul.mubr.bf16.gmra.mrb[0].mxu0 %v1606
      %v2103 = vpop.f32.mrb[0].mxu0
      %v2104 = vadd.f32 0.0, %v2103
      %v2105 = vpop.f32.mrb[0].mxu0
      %v2106 = vpop.f32.mrb[0].mxu0
      %v2107 = vadd.f32 0.0, %v2106
      %v2108 = vpop.f32.mrb[0].mxu0
      %2109 = vmatprep.mubr.bf16.mxu0 0
      %2110 = vmatmul.mubr.bf16.gmra.mrb[0].mxu0 %v1952
      %v2111 = vpop.f32.mrb[0].mxu0
      %v2112 = vadd.f32 0.0, %v2111
      %v2113 = vpop.f32.mrb[0].mxu0
      %v2114 = vpop.f32.mrb[0].mxu0
      %v2115 = vadd.f32 0.0, %v2114
      %v2116 = vpop.f32.mrb[0].mxu0
      %2117 = vdwg.mxu0
      %v2118 = vadd.f32 %v1818, %v1992
      %v2119 = vadd.f32 %v1821, %v1995
      %v2120 = vadd.f32 %v1826, %v2000
      %v2121 = vadd.f32 %v1829, %v2003
      %v2122 = vadd.f32 %v1834, %v2008
      %v2123 = vadd.f32 %v1837, %v2011
      %v2124 = vadd.f32 %v1842, %v2016
      %v2125 = vadd.f32 %v1845, %v2019
      %v2126 = vadd.f32 %v1850, %v2024
      %v2127 = vadd.f32 %v1853, %v2027
      %v2128 = vadd.f32 %v1858, %v2032
      %v2129 = vadd.f32 %v1861, %v2035
      %v2130 = vadd.f32 %v1866, %v2040
      %v2131 = vadd.f32 %v1869, %v2043
      %v2132 = vadd.f32 %v1874, %v2048
      %v2133 = vadd.f32 %v1877, %v2051
      %v2134 = vadd.f32 %v1882, %v2056
      %v2135 = vadd.f32 %v1885, %v2059
      %v2136 = vadd.f32 %v1890, %v2064
      %v2137 = vadd.f32 %v1893, %v2067
      %v2138 = vadd.f32 %v1898, %v2072
      %v2139 = vadd.f32 %v1901, %v2075
      %v2140 = vadd.f32 %v1906, %v2080
      %v2141 = vadd.f32 %v1909, %v2083
      %v2142 = vadd.f32 %v1914, %v2088
      %v2143 = vadd.f32 %v1917, %v2091
      %v2144 = vadd.f32 %v1922, %v2096
      %v2145 = vadd.f32 %v1925, %v2099
      %v2146 = vadd.f32 %v1930, %v2104
      %v2147 = vadd.f32 %v1933, %v2107
      %v2148 = vadd.f32 %v1938, %v2112
      %v2149 = vadd.f32 %v1941, %v2115
      %v2150 = vpack.c.bf16 %v2119, %v2118
      %v2151 = vpack.c.bf16 %v2121, %v2120
      %v2152 = vpack.c.bf16 %v2123, %v2122
      %v2153 = vpack.c.bf16 %v2125, %v2124
      %v2154 = vpack.c.bf16 %v2127, %v2126
      %v2155 = vpack.c.bf16 %v2129, %v2128
      %v2156 = vpack.c.bf16 %v2131, %v2130
      %v2157 = vpack.c.bf16 %v2133, %v2132
      %v2158 = vpack.c.bf16 %v2135, %v2134
      %v2159 = vpack.c.bf16 %v2137, %v2136
      %v2160 = vpack.c.bf16 %v2139, %v2138
      %v2161 = vpack.c.bf16 %v2141, %v2140
      %v2162 = vpack.c.bf16 %v2143, %v2142
      %v2163 = vpack.c.bf16 %v2145, %v2144
      %v2164 = vpack.c.bf16 %v2147, %v2146
      %v2165 = vpack.c.bf16 %v2149, %v2148
      %v2182 = vunpack.c.l.b16 %v2150
      %v2183 = vunpack.c.h.b16 %v2150
      %v2184 = vunpack.c.l.b16 %v2151
      %v2185 = vunpack.c.h.b16 %v2151
      %v2186 = vunpack.c.l.b16 %v2152
      %v2187 = vunpack.c.h.b16 %v2152
      %v2188 = vunpack.c.l.b16 %v2153
      %v2189 = vunpack.c.h.b16 %v2153
      %v2190 = vunpack.c.l.b16 %v2154
      %v2191 = vunpack.c.h.b16 %v2154
      %v2192 = vunpack.c.l.b16 %v2155
      %v2193 = vunpack.c.h.b16 %v2155
      %v2194 = vunpack.c.l.b16 %v2156
      %v2195 = vunpack.c.h.b16 %v2156
      %v2196 = vunpack.c.l.b16 %v2157
      %v2197 = vunpack.c.h.b16 %v2157
      %v2198 = vunpack.c.l.b16 %v2158
      %v2199 = vunpack.c.h.b16 %v2158
      %v2200 = vunpack.c.l.b16 %v2159
      %v2201 = vunpack.c.h.b16 %v2159
      %v2202 = vunpack.c.l.b16 %v2160
      %v2203 = vunpack.c.h.b16 %v2160
      %v2204 = vunpack.c.l.b16 %v2161
      %v2205 = vunpack.c.h.b16 %v2161
      %v2206 = vunpack.c.l.b16 %v2162
      %v2207 = vunpack.c.h.b16 %v2162
      %v2208 = vunpack.c.l.b16 %v2163
      %v2209 = vunpack.c.h.b16 %v2163
      %v2210 = vunpack.c.l.b16 %v2164
      %v2211 = vunpack.c.h.b16 %v2164
      %v2212 = vunpack.c.l.b16 %v2165
      %v2213 = vunpack.c.h.b16 %v2165
      %v2214 = vpack.c.b16 %v2182, %v2182
      %v2215 = vpack.c.b16 %v2183, %v2183
      %v2216 = vpack.c.b16 %v2184, %v2184
      %v2217 = vpack.c.b16 %v2185, %v2185
      %v2218 = vpack.c.b16 %v2186, %v2186
      %v2219 = vpack.c.b16 %v2187, %v2187
      %v2220 = vpack.c.b16 %v2188, %v2188
      %v2221 = vpack.c.b16 %v2189, %v2189
      %v2222 = vpack.c.b16 %v2190, %v2190
      %v2223 = vpack.c.b16 %v2191, %v2191
      %v2224 = vpack.c.b16 %v2192, %v2192
      %v2225 = vpack.c.b16 %v2193, %v2193
      %v2226 = vpack.c.b16 %v2194, %v2194
      %v2227 = vpack.c.b16 %v2195, %v2195
      %v2228 = vpack.c.b16 %v2196, %v2196
      %v2229 = vpack.c.b16 %v2197, %v2197
      %v2230 = vpack.c.b16 %v2198, %v2198
      %v2231 = vpack.c.b16 %v2199, %v2199
      %v2232 = vpack.c.b16 %v2200, %v2200
      %v2233 = vpack.c.b16 %v2201, %v2201
      %v2234 = vpack.c.b16 %v2202, %v2202
      %v2235 = vpack.c.b16 %v2203, %v2203
      %v2236 = vpack.c.b16 %v2204, %v2204
      %v2237 = vpack.c.b16 %v2205, %v2205
      %v2238 = vpack.c.b16 %v2206, %v2206
      %v2239 = vpack.c.b16 %v2207, %v2207
      %v2240 = vpack.c.b16 %v2208, %v2208
      %v2241 = vpack.c.b16 %v2209, %v2209
      %v2242 = vpack.c.b16 %v2210, %v2210
      %v2243 = vpack.c.b16 %v2211, %v2211
      %v2244 = vpack.c.b16 %v2212, %v2212
      %v2245 = vpack.c.b16 %v2213, %v2213
      %vm2278 = vcmask 60416
      %2279 = vst.msk [vmem:[%s271] sm:$0xf] %vm2278, %v2214
      %2280 = vst.msk [vmem:[%s271 + $0x4] sm:$0xf] %vm2278, %v2215
      %2281 = vst.msk [vmem:[%s271 + $0x8] sm:$0xf] %vm2278, %v2216
      %2282 = vst.msk [vmem:[%s271 + $0xc] sm:$0xf] %vm2278, %v2217
      %2283 = vst.msk [vmem:[%s271 + $0x10] sm:$0xf] %vm2278, %v2218
      %2284 = vst.msk [vmem:[%s271 + $0x14] sm:$0xf] %vm2278, %v2219
      %2285 = vst.msk [vmem:[%s271 + $0x18] sm:$0xf] %vm2278, %v2220
      %2286 = vst.msk [vmem:[%s271 + $0x1c] sm:$0xf] %vm2278, %v2221
      %2287 = vst.msk [vmem:[%s271 + $0x20] sm:$0xf] %vm2278, %v2222
      %2288 = vst.msk [vmem:[%s271 + $0x24] sm:$0xf] %vm2278, %v2223
      %2289 = vst.msk [vmem:[%s271 + $0x28] sm:$0xf] %vm2278, %v2224
      %2290 = vst.msk [vmem:[%s271 + $0x2c] sm:$0xf] %vm2278, %v2225
      %2291 = vst.msk [vmem:[%s271 + $0x30] sm:$0xf] %vm2278, %v2226
      %2292 = vst.msk [vmem:[%s271 + $0x34] sm:$0xf] %vm2278, %v2227
      %2293 = vst.msk [vmem:[%s271 + $0x38] sm:$0xf] %vm2278, %v2228
      %2294 = vst.msk [vmem:[%s271 + $0x3c] sm:$0xf] %vm2278, %v2229
      %2295 = vst.msk [vmem:[%s271 + $0x40] sm:$0xf] %vm2278, %v2230
      %2296 = vst.msk [vmem:[%s271 + $0x44] sm:$0xf] %vm2278, %v2231
      %2297 = vst.msk [vmem:[%s271 + $0x48] sm:$0xf] %vm2278, %v2232
      %2298 = vst.msk [vmem:[%s271 + $0x4c] sm:$0xf] %vm2278, %v2233
      %2299 = vst.msk [vmem:[%s271 + $0x50] sm:$0xf] %vm2278, %v2234
      %2300 = vst.msk [vmem:[%s271 + $0x54] sm:$0xf] %vm2278, %v2235
      %2301 = vst.msk [vmem:[%s271 + $0x58] sm:$0xf] %vm2278, %v2236
      %2302 = vst.msk [vmem:[%s271 + $0x5c] sm:$0xf] %vm2278, %v2237
      %2303 = vst.msk [vmem:[%s271 + $0x60] sm:$0xf] %vm2278, %v2238
      %2304 = vst.msk [vmem:[%s271 + $0x64] sm:$0xf] %vm2278, %v2239
      %2305 = vst.msk [vmem:[%s271 + $0x68] sm:$0xf] %vm2278, %v2240
      %2306 = vst.msk [vmem:[%s271 + $0x6c] sm:$0xf] %vm2278, %v2241
      %2307 = vst.msk [vmem:[%s271 + $0x70] sm:$0xf] %vm2278, %v2242
      %2308 = vst.msk [vmem:[%s271 + $0x74] sm:$0xf] %vm2278, %v2243
      %2309 = vst.msk [vmem:[%s271 + $0x78] sm:$0xf] %vm2278, %v2244
      %2310 = vst.msk [vmem:[%s271 + $0x7c] sm:$0xf] %vm2278, %v2245
      %v2311 = vsel %vm1528, %v2118, 0.0
      %v2312 = vsel %vm1528, %v2119, 0.0
      %v2313 = vadd.f32 %v2311, %v2312
      %v2314 = vsel %vm1528, %v2120, 0.0
      %v2315 = vadd.f32 %v2313, %v2314
      %v2316 = vsel %vm1528, %v2121, 0.0
      %v2317 = vadd.f32 %v2315, %v2316
      %v2318 = vsel %vm1528, %v2122, 0.0
      %v2319 = vadd.f32 %v2317, %v2318
      %v2320 = vsel %vm1528, %v2123, 0.0
      %v2321 = vadd.f32 %v2319, %v2320
      %v2322 = vsel %vm1528, %v2124, 0.0
      %v2323 = vadd.f32 %v2321, %v2322
      %v2324 = vsel %vm1528, %v2125, 0.0
      %v2325 = vadd.f32 %v2323, %v2324
      %v2326 = vsel %vm1528, %v2126, 0.0
      %v2327 = vadd.f32 %v2325, %v2326
      %v2328 = vsel %vm1528, %v2127, 0.0
      %v2329 = vadd.f32 %v2327, %v2328
      %v2330 = vsel %vm1528, %v2128, 0.0
      %v2331 = vadd.f32 %v2329, %v2330
      %v2332 = vsel %vm1528, %v2129, 0.0
      %v2333 = vadd.f32 %v2331, %v2332
      %v2334 = vsel %vm1528, %v2130, 0.0
      %v2335 = vadd.f32 %v2333, %v2334
      %v2336 = vsel %vm1528, %v2131, 0.0
      %v2337 = vadd.f32 %v2335, %v2336
      %v2338 = vsel %vm1528, %v2132, 0.0
      %v2339 = vadd.f32 %v2337, %v2338
      %v2340 = vsel %vm1528, %v2133, 0.0
      %v2341 = vadd.f32 %v2339, %v2340
      %v2342 = vsel %vm1528, %v2134, 0.0
      %v2343 = vadd.f32 %v2341, %v2342
      %v2344 = vsel %vm1528, %v2135, 0.0
      %v2345 = vadd.f32 %v2343, %v2344
      %v2346 = vsel %vm1528, %v2136, 0.0
      %v2347 = vadd.f32 %v2345, %v2346
      %v2348 = vsel %vm1528, %v2137, 0.0
      %v2349 = vadd.f32 %v2347, %v2348
      %v2350 = vsel %vm1528, %v2138, 0.0
      %v2351 = vadd.f32 %v2349, %v2350
      %v2352 = vsel %vm1528, %v2139, 0.0
      %v2353 = vadd.f32 %v2351, %v2352
      %v2354 = vsel %vm1528, %v2140, 0.0
      %v2355 = vadd.f32 %v2353, %v2354
      %v2356 = vsel %vm1528, %v2141, 0.0
      %v2357 = vadd.f32 %v2355, %v2356
      %v2358 = vsel %vm1528, %v2142, 0.0
      %v2359 = vadd.f32 %v2357, %v2358
      %v2360 = vsel %vm1528, %v2143, 0.0
      %v2361 = vadd.f32 %v2359, %v2360
      %v2362 = vsel %vm1528, %v2144, 0.0
      %v2363 = vadd.f32 %v2361, %v2362
      %v2364 = vsel %vm1528, %v2145, 0.0
      %v2365 = vadd.f32 %v2363, %v2364
      %v2366 = vsel %vm1528, %v2146, 0.0
      %v2367 = vadd.f32 %v2365, %v2366
      %v2368 = vsel %vm1528, %v2147, 0.0
      %v2369 = vadd.f32 %v2367, %v2368
      %v2370 = vsel %vm1528, %v2148, 0.0
      %v2371 = vadd.f32 %v2369, %v2370
      %v2372 = vsel %vm1528, %v2149, 0.0
      %v2373 = vadd.f32 %v2371, %v2372
      %v2374 = vrot.slane %v2373, 4
      %v2375 = vadd.f32 %v2373, %v2374
      %v2376 = vrot.slane %v2375, 2
      %v2377 = vadd.f32 %v2375, %v2376
      %v2378 = vrot.slane %v2377, 1
      %v2379 = vadd.f32 %v2377, %v2378
      %vm2380 = vcmask 57344
      %2381 = vst.msk [vmem:[%s275] sm:$0x1] %vm2380, %v2379
      %v2382 = vmul.f32 %v2118, %v2118
      %v2383 = vmul.f32 %v2119, %v2119
      %v2384 = vmul.f32 %v2120, %v2120
      %v2385 = vmul.f32 %v2121, %v2121
      %v2386 = vmul.f32 %v2122, %v2122
      %v2387 = vmul.f32 %v2123, %v2123
      %v2388 = vmul.f32 %v2124, %v2124
      %v2389 = vmul.f32 %v2125, %v2125
      %v2390 = vmul.f32 %v2126, %v2126
      %v2391 = vmul.f32 %v2127, %v2127
      %v2392 = vmul.f32 %v2128, %v2128
      %v2393 = vmul.f32 %v2129, %v2129
      %v2394 = vmul.f32 %v2130, %v2130
      %v2395 = vmul.f32 %v2131, %v2131
      %v2396 = vmul.f32 %v2132, %v2132
      %v2397 = vmul.f32 %v2133, %v2133
      %v2398 = vmul.f32 %v2134, %v2134
      %v2399 = vmul.f32 %v2135, %v2135
      %v2400 = vmul.f32 %v2136, %v2136
      %v2401 = vmul.f32 %v2137, %v2137
      %v2402 = vmul.f32 %v2138, %v2138
      %v2403 = vmul.f32 %v2139, %v2139
      %v2404 = vmul.f32 %v2140, %v2140
      %v2405 = vmul.f32 %v2141, %v2141
      %v2406 = vmul.f32 %v2142, %v2142
      %v2407 = vmul.f32 %v2143, %v2143
      %v2408 = vmul.f32 %v2144, %v2144
      %v2409 = vmul.f32 %v2145, %v2145
      %v2410 = vmul.f32 %v2146, %v2146
      %v2411 = vmul.f32 %v2147, %v2147
      %v2412 = vmul.f32 %v2148, %v2148
      %v2413 = vmul.f32 %v2149, %v2149
      %v2414 = vsel %vm1528, %v2382, 0.0
      %v2415 = vsel %vm1528, %v2383, 0.0
      %v2416 = vadd.f32 %v2414, %v2415
      %v2417 = vsel %vm1528, %v2384, 0.0
      %v2418 = vadd.f32 %v2416, %v2417
      %v2419 = vsel %vm1528, %v2385, 0.0
      %v2420 = vadd.f32 %v2418, %v2419
      %v2421 = vsel %vm1528, %v2386, 0.0
      %v2422 = vadd.f32 %v2420, %v2421
      %v2423 = vsel %vm1528, %v2387, 0.0
      %v2424 = vadd.f32 %v2422, %v2423
      %v2425 = vsel %vm1528, %v2388, 0.0
      %v2426 = vadd.f32 %v2424, %v2425
      %v2427 = vsel %vm1528, %v2389, 0.0
      %v2428 = vadd.f32 %v2426, %v2427
      %v2429 = vsel %vm1528, %v2390, 0.0
      %v2430 = vadd.f32 %v2428, %v2429
      %v2431 = vsel %vm1528, %v2391, 0.0
      %v2432 = vadd.f32 %v2430, %v2431
      %v2433 = vsel %vm1528, %v2392, 0.0
      %v2434 = vadd.f32 %v2432, %v2433
      %v2435 = vsel %vm1528, %v2393, 0.0
      %v2436 = vadd.f32 %v2434, %v2435
      %v2437 = vsel %vm1528, %v2394, 0.0
      %v2438 = vadd.f32 %v2436, %v2437
      %v2439 = vsel %vm1528, %v2395, 0.0
      %v2440 = vadd.f32 %v2438, %v2439
      %v2441 = vsel %vm1528, %v2396, 0.0
      %v2442 = vadd.f32 %v2440, %v2441
      %v2443 = vsel %vm1528, %v2397, 0.0
      %v2444 = vadd.f32 %v2442, %v2443
      %v2445 = vsel %vm1528, %v2398, 0.0
      %v2446 = vadd.f32 %v2444, %v2445
      %v2447 = vsel %vm1528, %v2399, 0.0
      %v2448 = vadd.f32 %v2446, %v2447
      %v2449 = vsel %vm1528, %v2400, 0.0
      %v2450 = vadd.f32 %v2448, %v2449
      %v2451 = vsel %vm1528, %v2401, 0.0
      %v2452 = vadd.f32 %v2450, %v2451
      %v2453 = vsel %vm1528, %v2402, 0.0
      %v2454 = vadd.f32 %v2452, %v2453
      %v2455 = vsel %vm1528, %v2403, 0.0
      %v2456 = vadd.f32 %v2454, %v2455
      %v2457 = vsel %vm1528, %v2404, 0.0
      %v2458 = vadd.f32 %v2456, %v2457
      %v2459 = vsel %vm1528, %v2405, 0.0
      %v2460 = vadd.f32 %v2458, %v2459
      %v2461 = vsel %vm1528, %v2406, 0.0
      %v2462 = vadd.f32 %v2460, %v2461
      %v2463 = vsel %vm1528, %v2407, 0.0
      %v2464 = vadd.f32 %v2462, %v2463
      %v2465 = vsel %vm1528, %v2408, 0.0
      %v2466 = vadd.f32 %v2464, %v2465
      %v2467 = vsel %vm1528, %v2409, 0.0
      %v2468 = vadd.f32 %v2466, %v2467
      %v2469 = vsel %vm1528, %v2410, 0.0
      %v2470 = vadd.f32 %v2468, %v2469
      %v2471 = vsel %vm1528, %v2411, 0.0
      %v2472 = vadd.f32 %v2470, %v2471
      %v2473 = vsel %vm1528, %v2412, 0.0
      %v2474 = vadd.f32 %v2472, %v2473
      %v2475 = vsel %vm1528, %v2413, 0.0
      %v2476 = vadd.f32 %v2474, %v2475
      %v2477 = vrot.slane %v2476, 4
      %v2478 = vadd.f32 %v2476, %v2477
      %v2479 = vrot.slane %v2478, 2
      %v2480 = vadd.f32 %v2478, %v2479
      %v2481 = vrot.slane %v2480, 1
      %v2482 = vadd.f32 %v2480, %v2481
      %2483 = vst.msk [vmem:[%s275 + $0x1] sm:$0x1] %vm2380, %v2482
      %v2484 = vld [vmem:[%s2] sm:$0x3]
      %v2517 = vunpack.c.l.b16 %v286
      %v2518 = vunpack.c.l.b16 %v287
      %v2519 = vunpack.c.l.b16 %v288
      %v2520 = vunpack.c.l.b16 %v289
      %v2521 = vunpack.c.l.b16 %v290
      %v2522 = vunpack.c.l.b16 %v291
      %v2523 = vunpack.c.l.b16 %v292
      %v2524 = vunpack.c.l.b16 %v293
      %v2525 = vunpack.c.l.b16 %v294
      %v2526 = vunpack.c.l.b16 %v295
      %v2527 = vunpack.c.l.b16 %v296
      %v2528 = vunpack.c.l.b16 %v297
      %v2529 = vunpack.c.l.b16 %v298
      %v2530 = vunpack.c.l.b16 %v299
      %v2531 = vunpack.c.l.b16 %v300
      %v2532 = vunpack.c.l.b16 %v301
      %v2533 = vunpack.c.l.b16 %v302
      %v2534 = vunpack.c.l.b16 %v303
      %v2535 = vunpack.c.l.b16 %v304
      %v2536 = vunpack.c.l.b16 %v305
      %v2537 = vunpack.c.l.b16 %v306
      %v2538 = vunpack.c.l.b16 %v307
      %v2539 = vunpack.c.l.b16 %v308
      %v2540 = vunpack.c.l.b16 %v309
      %v2541 = vunpack.c.l.b16 %v310
      %v2542 = vunpack.c.l.b16 %v311
      %v2543 = vunpack.c.l.b16 %v312
      %v2544 = vunpack.c.l.b16 %v313
      %v2545 = vunpack.c.l.b16 %v314
      %v2546 = vunpack.c.l.b16 %v315
      %v2547 = vunpack.c.l.b16 %v316
      %v2548 = vunpack.c.l.b16 %v317
      %v2549 = vpack.c.b16 %v2518, %v2517
      %v2550 = vpack.c.b16 %v2520, %v2519
      %v2551 = vpack.c.b16 %v2522, %v2521
      %v2552 = vpack.c.b16 %v2524, %v2523
      %v2553 = vpack.c.b16 %v2526, %v2525
      %v2554 = vpack.c.b16 %v2528, %v2527
      %v2555 = vpack.c.b16 %v2530, %v2529
      %v2556 = vpack.c.b16 %v2532, %v2531
      %v2557 = vpack.c.b16 %v2534, %v2533
      %v2558 = vpack.c.b16 %v2536, %v2535
      %v2559 = vpack.c.b16 %v2538, %v2537
      %v2560 = vpack.c.b16 %v2540, %v2539
      %v2561 = vpack.c.b16 %v2542, %v2541
      %v2562 = vpack.c.b16 %v2544, %v2543
      %v2563 = vpack.c.b16 %v2546, %v2545
      %v2564 = vpack.c.b16 %v2548, %v2547
      %v2566 = vsel %vm1491, %v2549, 0
      %v2569 = vsel %vm1491, %v2550, 0
      %v2572 = vsel %vm1491, %v2551, 0
      %v2575 = vsel %vm1491, %v2552, 0
      %v2578 = vsel %vm1491, %v2553, 0
      %v2581 = vsel %vm1491, %v2554, 0
      %v2584 = vsel %vm1491, %v2555, 0
      %v2587 = vsel %vm1491, %v2556, 0
      %v2590 = vsel %vm1491, %v2557, 0
      %v2593 = vsel %vm1491, %v2558, 0
      %v2596 = vsel %vm1491, %v2559, 0
      %v2599 = vsel %vm1491, %v2560, 0
      %v2602 = vsel %vm1491, %v2561, 0
      %v2605 = vsel %vm1491, %v2562, 0
      %v2608 = vsel %vm1491, %v2563, 0
      %v2611 = vsel %vm1491, %v2564, 0
      %vm2613 = vcmask 1041408
      %v2615 = vsel %vm2613, %v2484, 0
      %2617 = vmatprep.subr.bf16.mxu0 0
      %2618 = vmatpush1.bf16.msra.mxu0 %v2615
      %2619 = vmatprep.subr.bf16.mxu0 0
      %2620 = vmatpush1.bf16.msra.mxu0 0
      %2621 = vmatprep.subr.bf16.mxu0 0
      %2622 = vmatpush1.bf16.msra.mxu0 0
      %2623 = vmatprep.subr.bf16.mxu0 0
      %2624 = vmatpush1.bf16.msra.mxu0 0
      %2625 = vmatprep.subr.bf16.mxu0 0
      %2626 = vmatpush1.bf16.msra.mxu0 0
      %2627 = vmatprep.subr.bf16.mxu0 0
      %2628 = vmatpush1.bf16.msra.mxu0 0
      %2629 = vmatprep.subr.bf16.mxu0 0
      %2630 = vmatpush1.bf16.msra.mxu0 0
      %2631 = vmatprep.subr.bf16.mxu0 0
      %2632 = vmatpush1.bf16.msra.mxu0 0
      %2633 = vmatprep.subr.bf16.mxu0 0
      %2634 = vmatpush1.bf16.msra.mxu0 0
      %2635 = vmatprep.subr.bf16.mxu0 0
      %2636 = vmatpush1.bf16.msra.mxu0 0
      %2637 = vmatprep.subr.bf16.mxu0 0
      %2638 = vmatpush1.bf16.msra.mxu0 0
      %2639 = vmatprep.subr.bf16.mxu0 0
      %2640 = vmatpush1.bf16.msra.mxu0 0
      %2641 = vmatprep.subr.bf16.mxu0 0
      %2642 = vmatpush1.bf16.msra.mxu0 0
      %2643 = vmatprep.subr.bf16.mxu0 0
      %2644 = vmatpush1.bf16.msra.mxu0 0
      %2645 = vmatprep.subr.bf16.mxu0 0
      %2646 = vmatpush1.bf16.msra.mxu0 0
      %2647 = vmatprep.subr.bf16.mxu0 0
      %2648 = vmatpush1.bf16.msra.mxu0 0
      %2649 = vmatprep.mubr.bf16.mxu0 0
      %2650 = vmatmul.mubr.bf16.gmra.mrb[0].mxu0 %v2566
      %v2651 = vpop.f32.mrb[0].mxu0
      %v2652 = vadd.f32 0.0, %v2651
      %v2653 = vpop.f32.mrb[0].mxu0
      %v2654 = vpop.f32.mrb[0].mxu0
      %v2655 = vadd.f32 0.0, %v2654
      %v2656 = vpop.f32.mrb[0].mxu0
      %2657 = vmatprep.mubr.bf16.mxu0 0
      %2658 = vmatmul.mubr.bf16.gmra.mrb[0].mxu0 %v2569
      %v2659 = vpop.f32.mrb[0].mxu0
      %v2660 = vadd.f32 0.0, %v2659
      %v2661 = vpop.f32.mrb[0].mxu0
      %v2662 = vpop.f32.mrb[0].mxu0
      %v2663 = vadd.f32 0.0, %v2662
      %v2664 = vpop.f32.mrb[0].mxu0
      %2665 = vmatprep.mubr.bf16.mxu0 0
      %2666 = vmatmul.mubr.bf16.gmra.mrb[0].mxu0 %v2572
      %v2667 = vpop.f32.mrb[0].mxu0
      %v2668 = vadd.f32 0.0, %v2667
      %v2669 = vpop.f32.mrb[0].mxu0
      %v2670 = vpop.f32.mrb[0].mxu0
      %v2671 = vadd.f32 0.0, %v2670
      %v2672 = vpop.f32.mrb[0].mxu0
      %2673 = vmatprep.mubr.bf16.mxu0 0
      %2674 = vmatmul.mubr.bf16.gmra.mrb[0].mxu0 %v2575
      %v2675 = vpop.f32.mrb[0].mxu0
      %v2676 = vadd.f32 0.0, %v2675
      %v2677 = vpop.f32.mrb[0].mxu0
      %v2678 = vpop.f32.mrb[0].mxu0
      %v2679 = vadd.f32 0.0, %v2678
      %v2680 = vpop.f32.mrb[0].mxu0
      %2681 = vmatprep.mubr.bf16.mxu0 0
      %2682 = vmatmul.mubr.bf16.gmra.mrb[0].mxu0 %v2578
      %v2683 = vpop.f32.mrb[0].mxu0
      %v2684 = vadd.f32 0.0, %v2683
      %v2685 = vpop.f32.mrb[0].mxu0
      %v2686 = vpop.f32.mrb[0].mxu0
      %v2687 = vadd.f32 0.0, %v2686
      %v2688 = vpop.f32.mrb[0].mxu0
      %2689 = vmatprep.mubr.bf16.mxu0 0
      %2690 = vmatmul.mubr.bf16.gmra.mrb[0].mxu0 %v2581
      %v2691 = vpop.f32.mrb[0].mxu0
      %v2692 = vadd.f32 0.0, %v2691
      %v2693 = vpop.f32.mrb[0].mxu0
      %v2694 = vpop.f32.mrb[0].mxu0
      %v2695 = vadd.f32 0.0, %v2694
      %v2696 = vpop.f32.mrb[0].mxu0
      %2697 = vmatprep.mubr.bf16.mxu0 0
      %2698 = vmatmul.mubr.bf16.gmra.mrb[0].mxu0 %v2584
      %v2699 = vpop.f32.mrb[0].mxu0
      %v2700 = vadd.f32 0.0, %v2699
      %v2701 = vpop.f32.mrb[0].mxu0
      %v2702 = vpop.f32.mrb[0].mxu0
      %v2703 = vadd.f32 0.0, %v2702
      %v2704 = vpop.f32.mrb[0].mxu0
      %2705 = vmatprep.mubr.bf16.mxu0 0
      %2706 = vmatmul.mubr.bf16.gmra.mrb[0].mxu0 %v2587
      %v2707 = vpop.f32.mrb[0].mxu0
      %v2708 = vadd.f32 0.0, %v2707
      %v2709 = vpop.f32.mrb[0].mxu0
      %v2710 = vpop.f32.mrb[0].mxu0
      %v2711 = vadd.f32 0.0, %v2710
      %v2712 = vpop.f32.mrb[0].mxu0
      %2713 = vmatprep.mubr.bf16.mxu0 0
      %2714 = vmatmul.mubr.bf16.gmra.mrb[0].mxu0 %v2590
      %v2715 = vpop.f32.mrb[0].mxu0
      %v2716 = vadd.f32 0.0, %v2715
      %v2717 = vpop.f32.mrb[0].mxu0
      %v2718 = vpop.f32.mrb[0].mxu0
      %v2719 = vadd.f32 0.0, %v2718
      %v2720 = vpop.f32.mrb[0].mxu0
      %2721 = vmatprep.mubr.bf16.mxu0 0
      %2722 = vmatmul.mubr.bf16.gmra.mrb[0].mxu0 %v2593
      %v2723 = vpop.f32.mrb[0].mxu0
      %v2724 = vadd.f32 0.0, %v2723
      %v2725 = vpop.f32.mrb[0].mxu0
      %v2726 = vpop.f32.mrb[0].mxu0
      %v2727 = vadd.f32 0.0, %v2726
      %v2728 = vpop.f32.mrb[0].mxu0
      %2729 = vmatprep.mubr.bf16.mxu0 0
      %2730 = vmatmul.mubr.bf16.gmra.mrb[0].mxu0 %v2596
      %v2731 = vpop.f32.mrb[0].mxu0
      %v2732 = vadd.f32 0.0, %v2731
      %v2733 = vpop.f32.mrb[0].mxu0
      %v2734 = vpop.f32.mrb[0].mxu0
      %v2735 = vadd.f32 0.0, %v2734
      %v2736 = vpop.f32.mrb[0].mxu0
      %2737 = vmatprep.mubr.bf16.mxu0 0
      %2738 = vmatmul.mubr.bf16.gmra.mrb[0].mxu0 %v2599
      %v2739 = vpop.f32.mrb[0].mxu0
      %v2740 = vadd.f32 0.0, %v2739
      %v2741 = vpop.f32.mrb[0].mxu0
      %v2742 = vpop.f32.mrb[0].mxu0
      %v2743 = vadd.f32 0.0, %v2742
      %v2744 = vpop.f32.mrb[0].mxu0
      %2745 = vmatprep.mubr.bf16.mxu0 0
      %2746 = vmatmul.mubr.bf16.gmra.mrb[0].mxu0 %v2602
      %v2747 = vpop.f32.mrb[0].mxu0
      %v2748 = vadd.f32 0.0, %v2747
      %v2749 = vpop.f32.mrb[0].mxu0
      %v2750 = vpop.f32.mrb[0].mxu0
      %v2751 = vadd.f32 0.0, %v2750
      %v2752 = vpop.f32.mrb[0].mxu0
      %2753 = vmatprep.mubr.bf16.mxu0 0
      %2754 = vmatmul.mubr.bf16.gmra.mrb[0].mxu0 %v2605
      %v2755 = vpop.f32.mrb[0].mxu0
      %v2756 = vadd.f32 0.0, %v2755
      %v2757 = vpop.f32.mrb[0].mxu0
      %v2758 = vpop.f32.mrb[0].mxu0
      %v2759 = vadd.f32 0.0, %v2758
      %v2760 = vpop.f32.mrb[0].mxu0
      %2761 = vmatprep.mubr.bf16.mxu0 0
      %2762 = vmatmul.mubr.bf16.gmra.mrb[0].mxu0 %v2608
      %v2763 = vpop.f32.mrb[0].mxu0
      %v2764 = vadd.f32 0.0, %v2763
      %v2765 = vpop.f32.mrb[0].mxu0
      %v2766 = vpop.f32.mrb[0].mxu0
      %v2767 = vadd.f32 0.0, %v2766
      %v2768 = vpop.f32.mrb[0].mxu0
      %2769 = vmatprep.mubr.bf16.mxu0 0
      %2770 = vmatmul.mubr.bf16.gmra.mrb[0].mxu0 %v2611
      %v2771 = vpop.f32.mrb[0].mxu0
      %v2772 = vadd.f32 0.0, %v2771
      %v2773 = vpop.f32.mrb[0].mxu0
      %v2774 = vpop.f32.mrb[0].mxu0
      %v2775 = vadd.f32 0.0, %v2774
      %v2776 = vpop.f32.mrb[0].mxu0
      %2777 = vdwg.mxu0
      %v2778 = vpack.c.bf16 %v2655, %v2652
      %v2779 = vpack.c.bf16 %v2663, %v2660
      %v2780 = vpack.c.bf16 %v2671, %v2668
      %v2781 = vpack.c.bf16 %v2679, %v2676
      %v2782 = vpack.c.bf16 %v2687, %v2684
      %v2783 = vpack.c.bf16 %v2695, %v2692
      %v2784 = vpack.c.bf16 %v2703, %v2700
      %v2785 = vpack.c.bf16 %v2711, %v2708
      %v2786 = vpack.c.bf16 %v2719, %v2716
      %v2787 = vpack.c.bf16 %v2727, %v2724
      %v2788 = vpack.c.bf16 %v2735, %v2732
      %v2789 = vpack.c.bf16 %v2743, %v2740
      %v2790 = vpack.c.bf16 %v2751, %v2748
      %v2791 = vpack.c.bf16 %v2759, %v2756
      %v2792 = vpack.c.bf16 %v2767, %v2764
      %v2793 = vpack.c.bf16 %v2775, %v2772
      %v2810 = vunpack.c.l.b16 %v2778
      %v2811 = vunpack.c.h.b16 %v2778
      %v2812 = vunpack.c.l.b16 %v2779
      %v2813 = vunpack.c.h.b16 %v2779
      %v2814 = vunpack.c.l.b16 %v2780
      %v2815 = vunpack.c.h.b16 %v2780
      %v2816 = vunpack.c.l.b16 %v2781
      %v2817 = vunpack.c.h.b16 %v2781
      %v2818 = vunpack.c.l.b16 %v2782
      %v2819 = vunpack.c.h.b16 %v2782
      %v2820 = vunpack.c.l.b16 %v2783
      %v2821 = vunpack.c.h.b16 %v2783
      %v2822 = vunpack.c.l.b16 %v2784
      %v2823 = vunpack.c.h.b16 %v2784
      %v2824 = vunpack.c.l.b16 %v2785
      %v2825 = vunpack.c.h.b16 %v2785
      %v2826 = vunpack.c.l.b16 %v2786
      %v2827 = vunpack.c.h.b16 %v2786
      %v2828 = vunpack.c.l.b16 %v2787
      %v2829 = vunpack.c.h.b16 %v2787
      %v2830 = vunpack.c.l.b16 %v2788
      %v2831 = vunpack.c.h.b16 %v2788
      %v2832 = vunpack.c.l.b16 %v2789
      %v2833 = vunpack.c.h.b16 %v2789
      %v2834 = vunpack.c.l.b16 %v2790
      %v2835 = vunpack.c.h.b16 %v2790
      %v2836 = vunpack.c.l.b16 %v2791
      %v2837 = vunpack.c.h.b16 %v2791
      %v2838 = vunpack.c.l.b16 %v2792
      %v2839 = vunpack.c.h.b16 %v2792
      %v2840 = vunpack.c.l.b16 %v2793
      %v2841 = vunpack.c.h.b16 %v2793
      %v2842 = vpack.c.b16 %v2810, %v2810
      %v2843 = vpack.c.b16 %v2811, %v2811
      %v2844 = vpack.c.b16 %v2812, %v2812
      %v2845 = vpack.c.b16 %v2813, %v2813
      %v2846 = vpack.c.b16 %v2814, %v2814
      %v2847 = vpack.c.b16 %v2815, %v2815
      %v2848 = vpack.c.b16 %v2816, %v2816
      %v2849 = vpack.c.b16 %v2817, %v2817
      %v2850 = vpack.c.b16 %v2818, %v2818
      %v2851 = vpack.c.b16 %v2819, %v2819
      %v2852 = vpack.c.b16 %v2820, %v2820
      %v2853 = vpack.c.b16 %v2821, %v2821
      %v2854 = vpack.c.b16 %v2822, %v2822
      %v2855 = vpack.c.b16 %v2823, %v2823
      %v2856 = vpack.c.b16 %v2824, %v2824
      %v2857 = vpack.c.b16 %v2825, %v2825
      %v2858 = vpack.c.b16 %v2826, %v2826
      %v2859 = vpack.c.b16 %v2827, %v2827
      %v2860 = vpack.c.b16 %v2828, %v2828
      %v2861 = vpack.c.b16 %v2829, %v2829
      %v2862 = vpack.c.b16 %v2830, %v2830
      %v2863 = vpack.c.b16 %v2831, %v2831
      %v2864 = vpack.c.b16 %v2832, %v2832
      %v2865 = vpack.c.b16 %v2833, %v2833
      %v2866 = vpack.c.b16 %v2834, %v2834
      %v2867 = vpack.c.b16 %v2835, %v2835
      %v2868 = vpack.c.b16 %v2836, %v2836
      %v2869 = vpack.c.b16 %v2837, %v2837
      %v2870 = vpack.c.b16 %v2838, %v2838
      %v2871 = vpack.c.b16 %v2839, %v2839
      %v2872 = vpack.c.b16 %v2840, %v2840
      %v2873 = vpack.c.b16 %v2841, %v2841
      %2906 = vst.msk [vmem:[%s280] sm:$0xf] %vm2278, %v2842
      %2907 = vst.msk [vmem:[%s280 + $0x4] sm:$0xf] %vm2278, %v2843
      %2908 = vst.msk [vmem:[%s280 + $0x8] sm:$0xf] %vm2278, %v2844
      %2909 = vst.msk [vmem:[%s280 + $0xc] sm:$0xf] %vm2278, %v2845
      %2910 = vst.msk [vmem:[%s280 + $0x10] sm:$0xf] %vm2278, %v2846
      %2911 = vst.msk [vmem:[%s280 + $0x14] sm:$0xf] %vm2278, %v2847
      %2912 = vst.msk [vmem:[%s280 + $0x18] sm:$0xf] %vm2278, %v2848
      %2913 = vst.msk [vmem:[%s280 + $0x1c] sm:$0xf] %vm2278, %v2849
      %2914 = vst.msk [vmem:[%s280 + $0x20] sm:$0xf] %vm2278, %v2850
      %2915 = vst.msk [vmem:[%s280 + $0x24] sm:$0xf] %vm2278, %v2851
      %2916 = vst.msk [vmem:[%s280 + $0x28] sm:$0xf] %vm2278, %v2852
      %2917 = vst.msk [vmem:[%s280 + $0x2c] sm:$0xf] %vm2278, %v2853
      %2918 = vst.msk [vmem:[%s280 + $0x30] sm:$0xf] %vm2278, %v2854
      %2919 = vst.msk [vmem:[%s280 + $0x34] sm:$0xf] %vm2278, %v2855
      %2920 = vst.msk [vmem:[%s280 + $0x38] sm:$0xf] %vm2278, %v2856
      %2921 = vst.msk [vmem:[%s280 + $0x3c] sm:$0xf] %vm2278, %v2857
      %2922 = vst.msk [vmem:[%s280 + $0x40] sm:$0xf] %vm2278, %v2858
      %2923 = vst.msk [vmem:[%s280 + $0x44] sm:$0xf] %vm2278, %v2859
      %2924 = vst.msk [vmem:[%s280 + $0x48] sm:$0xf] %vm2278, %v2860
      %2925 = vst.msk [vmem:[%s280 + $0x4c] sm:$0xf] %vm2278, %v2861
      %2926 = vst.msk [vmem:[%s280 + $0x50] sm:$0xf] %vm2278, %v2862
      %2927 = vst.msk [vmem:[%s280 + $0x54] sm:$0xf] %vm2278, %v2863
      %2928 = vst.msk [vmem:[%s280 + $0x58] sm:$0xf] %vm2278, %v2864
      %2929 = vst.msk [vmem:[%s280 + $0x5c] sm:$0xf] %vm2278, %v2865
      %2930 = vst.msk [vmem:[%s280 + $0x60] sm:$0xf] %vm2278, %v2866
      %2931 = vst.msk [vmem:[%s280 + $0x64] sm:$0xf] %vm2278, %v2867
      %2932 = vst.msk [vmem:[%s280 + $0x68] sm:$0xf] %vm2278, %v2868
      %2933 = vst.msk [vmem:[%s280 + $0x6c] sm:$0xf] %vm2278, %v2869
      %2934 = vst.msk [vmem:[%s280 + $0x70] sm:$0xf] %vm2278, %v2870
      %2935 = vst.msk [vmem:[%s280 + $0x74] sm:$0xf] %vm2278, %v2871
      %2936 = vst.msk [vmem:[%s280 + $0x78] sm:$0xf] %vm2278, %v2872
      %2937 = vst.msk [vmem:[%s280 + $0x7c] sm:$0xf] %vm2278, %v2873
      %v2938 = vsel %vm1528, %v2652, 0.0
      %v2939 = vsel %vm1528, %v2655, 0.0
      %v2940 = vadd.f32 %v2938, %v2939
      %v2941 = vsel %vm1528, %v2660, 0.0
      %v2942 = vadd.f32 %v2940, %v2941
      %v2943 = vsel %vm1528, %v2663, 0.0
      %v2944 = vadd.f32 %v2942, %v2943
      %v2945 = vsel %vm1528, %v2668, 0.0
      %v2946 = vadd.f32 %v2944, %v2945
      %v2947 = vsel %vm1528, %v2671, 0.0
      %v2948 = vadd.f32 %v2946, %v2947
      %v2949 = vsel %vm1528, %v2676, 0.0
      %v2950 = vadd.f32 %v2948, %v2949
      %v2951 = vsel %vm1528, %v2679, 0.0
      %v2952 = vadd.f32 %v2950, %v2951
      %v2953 = vsel %vm1528, %v2684, 0.0
      %v2954 = vadd.f32 %v2952, %v2953
      %v2955 = vsel %vm1528, %v2687, 0.0
      %v2956 = vadd.f32 %v2954, %v2955
      %v2957 = vsel %vm1528, %v2692, 0.0
      %v2958 = vadd.f32 %v2956, %v2957
      %v2959 = vsel %vm1528, %v2695, 0.0
      %v2960 = vadd.f32 %v2958, %v2959
      %v2961 = vsel %vm1528, %v2700, 0.0
      %v2962 = vadd.f32 %v2960, %v2961
      %v2963 = vsel %vm1528, %v2703, 0.0
      %v2964 = vadd.f32 %v2962, %v2963
      %v2965 = vsel %vm1528, %v2708, 0.0
      %v2966 = vadd.f32 %v2964, %v2965
      %v2967 = vsel %vm1528, %v2711, 0.0
      %v2968 = vadd.f32 %v2966, %v2967
      %v2969 = vsel %vm1528, %v2716, 0.0
      %v2970 = vadd.f32 %v2968, %v2969
      %v2971 = vsel %vm1528, %v2719, 0.0
      %v2972 = vadd.f32 %v2970, %v2971
      %v2973 = vsel %vm1528, %v2724, 0.0
      %v2974 = vadd.f32 %v2972, %v2973
      %v2975 = vsel %vm1528, %v2727, 0.0
      %v2976 = vadd.f32 %v2974, %v2975
      %v2977 = vsel %vm1528, %v2732, 0.0
      %v2978 = vadd.f32 %v2976, %v2977
      %v2979 = vsel %vm1528, %v2735, 0.0
      %v2980 = vadd.f32 %v2978, %v2979
      %v2981 = vsel %vm1528, %v2740, 0.0
      %v2982 = vadd.f32 %v2980, %v2981
      %v2983 = vsel %vm1528, %v2743, 0.0
      %v2984 = vadd.f32 %v2982, %v2983
      %v2985 = vsel %vm1528, %v2748, 0.0
      %v2986 = vadd.f32 %v2984, %v2985
      %v2987 = vsel %vm1528, %v2751, 0.0
      %v2988 = vadd.f32 %v2986, %v2987
      %v2989 = vsel %vm1528, %v2756, 0.0
      %v2990 = vadd.f32 %v2988, %v2989
      %v2991 = vsel %vm1528, %v2759, 0.0
      %v2992 = vadd.f32 %v2990, %v2991
      %v2993 = vsel %vm1528, %v2764, 0.0
      %v2994 = vadd.f32 %v2992, %v2993
      %v2995 = vsel %vm1528, %v2767, 0.0
      %v2996 = vadd.f32 %v2994, %v2995
      %v2997 = vsel %vm1528, %v2772, 0.0
      %v2998 = vadd.f32 %v2996, %v2997
      %v2999 = vsel %vm1528, %v2775, 0.0
      %v3000 = vadd.f32 %v2998, %v2999
      %v3001 = vrot.slane %v3000, 4
      %v3002 = vadd.f32 %v3000, %v3001
      %v3003 = vrot.slane %v3002, 2
      %v3004 = vadd.f32 %v3002, %v3003
      %v3005 = vrot.slane %v3004, 1
      %v3006 = vadd.f32 %v3004, %v3005
      %3007 = vst.msk [vmem:[%s284] sm:$0x1] %vm2380, %v3006
      %v3008 = vmul.f32 %v2652, %v2652
      %v3009 = vmul.f32 %v2655, %v2655
      %v3010 = vmul.f32 %v2660, %v2660
      %v3011 = vmul.f32 %v2663, %v2663
      %v3012 = vmul.f32 %v2668, %v2668
      %v3013 = vmul.f32 %v2671, %v2671
      %v3014 = vmul.f32 %v2676, %v2676
      %v3015 = vmul.f32 %v2679, %v2679
      %v3016 = vmul.f32 %v2684, %v2684
      %v3017 = vmul.f32 %v2687, %v2687
      %v3018 = vmul.f32 %v2692, %v2692
      %v3019 = vmul.f32 %v2695, %v2695
      %v3020 = vmul.f32 %v2700, %v2700
      %v3021 = vmul.f32 %v2703, %v2703
      %v3022 = vmul.f32 %v2708, %v2708
      %v3023 = vmul.f32 %v2711, %v2711
      %v3024 = vmul.f32 %v2716, %v2716
      %v3025 = vmul.f32 %v2719, %v2719
      %v3026 = vmul.f32 %v2724, %v2724
      %v3027 = vmul.f32 %v2727, %v2727
      %v3028 = vmul.f32 %v2732, %v2732
      %v3029 = vmul.f32 %v2735, %v2735
      %v3030 = vmul.f32 %v2740, %v2740
      %v3031 = vmul.f32 %v2743, %v2743
      %v3032 = vmul.f32 %v2748, %v2748
      %v3033 = vmul.f32 %v2751, %v2751
      %v3034 = vmul.f32 %v2756, %v2756
      %v3035 = vmul.f32 %v2759, %v2759
      %v3036 = vmul.f32 %v2764, %v2764
      %v3037 = vmul.f32 %v2767, %v2767
      %v3038 = vmul.f32 %v2772, %v2772
      %v3039 = vmul.f32 %v2775, %v2775
      %v3040 = vsel %vm1528, %v3008, 0.0
      %v3041 = vsel %vm1528, %v3009, 0.0
      %v3042 = vadd.f32 %v3040, %v3041
      %v3043 = vsel %vm1528, %v3010, 0.0
      %v3044 = vadd.f32 %v3042, %v3043
      %v3045 = vsel %vm1528, %v3011, 0.0
      %v3046 = vadd.f32 %v3044, %v3045
      %v3047 = vsel %vm1528, %v3012, 0.0
      %v3048 = vadd.f32 %v3046, %v3047
      %v3049 = vsel %vm1528, %v3013, 0.0
      %v3050 = vadd.f32 %v3048, %v3049
      %v3051 = vsel %vm1528, %v3014, 0.0
      %v3052 = vadd.f32 %v3050, %v3051
      %v3053 = vsel %vm1528, %v3015, 0.0
      %v3054 = vadd.f32 %v3052, %v3053
      %v3055 = vsel %vm1528, %v3016, 0.0
      %v3056 = vadd.f32 %v3054, %v3055
      %v3057 = vsel %vm1528, %v3017, 0.0
      %v3058 = vadd.f32 %v3056, %v3057
      %v3059 = vsel %vm1528, %v3018, 0.0
      %v3060 = vadd.f32 %v3058, %v3059
      %v3061 = vsel %vm1528, %v3019, 0.0
      %v3062 = vadd.f32 %v3060, %v3061
      %v3063 = vsel %vm1528, %v3020, 0.0
      %v3064 = vadd.f32 %v3062, %v3063
      %v3065 = vsel %vm1528, %v3021, 0.0
      %v3066 = vadd.f32 %v3064, %v3065
      %v3067 = vsel %vm1528, %v3022, 0.0
      %v3068 = vadd.f32 %v3066, %v3067
      %v3069 = vsel %vm1528, %v3023, 0.0
      %v3070 = vadd.f32 %v3068, %v3069
      %v3071 = vsel %vm1528, %v3024, 0.0
      %v3072 = vadd.f32 %v3070, %v3071
      %v3073 = vsel %vm1528, %v3025, 0.0
      %v3074 = vadd.f32 %v3072, %v3073
      %v3075 = vsel %vm1528, %v3026, 0.0
      %v3076 = vadd.f32 %v3074, %v3075
      %v3077 = vsel %vm1528, %v3027, 0.0
      %v3078 = vadd.f32 %v3076, %v3077
      %v3079 = vsel %vm1528, %v3028, 0.0
      %v3080 = vadd.f32 %v3078, %v3079
      %v3081 = vsel %vm1528, %v3029, 0.0
      %v3082 = vadd.f32 %v3080, %v3081
      %v3083 = vsel %vm1528, %v3030, 0.0
      %v3084 = vadd.f32 %v3082, %v3083
      %v3085 = vsel %vm1528, %v3031, 0.0
      %v3086 = vadd.f32 %v3084, %v3085
      %v3087 = vsel %vm1528, %v3032, 0.0
      %v3088 = vadd.f32 %v3086, %v3087
      %v3089 = vsel %vm1528, %v3033, 0.0
      %v3090 = vadd.f32 %v3088, %v3089
      %v3091 = vsel %vm1528, %v3034, 0.0
      %v3092 = vadd.f32 %v3090, %v3091
      %v3093 = vsel %vm1528, %v3035, 0.0
      %v3094 = vadd.f32 %v3092, %v3093
      %v3095 = vsel %vm1528, %v3036, 0.0
      %v3096 = vadd.f32 %v3094, %v3095
      %v3097 = vsel %vm1528, %v3037, 0.0
      %v3098 = vadd.f32 %v3096, %v3097
      %v3099 = vsel %vm1528, %v3038, 0.0
      %v3100 = vadd.f32 %v3098, %v3099
      %v3101 = vsel %vm1528, %v3039, 0.0
      %v3102 = vadd.f32 %v3100, %v3101
      %v3103 = vrot.slane %v3102, 4
      %v3104 = vadd.f32 %v3102, %v3103
      %v3105 = vrot.slane %v3104, 2
      %v3106 = vadd.f32 %v3104, %v3105
      %v3107 = vrot.slane %v3106, 1
      %v3108 = vadd.f32 %v3106, %v3107
      %3109 = vst.msk [vmem:[%s284 + $0x1] sm:$0x1] %vm2380, %v3108
      %p3110 = scmp.lt.s32.totalorder %s18, 1
      %s3111 = scalar_select %p3110, %s18, 1
      %s3112 = smul.addr %s3111, 32
      %s3113 = smul.addr %s3112, 4
      %s3114 = scalar_lea.vmem %s3, %s3113
      %p3115 = scmp.lt.s32.totalorder %s18, 1
      %s3116 = scalar_select %p3115, %s18, 1
      %s3117 = smul.addr %s3116, 2
      %s3118 = scalar_lea.vmem %s4, %s3117
      %p3119 = scmp.lt.s32.totalorder %s18, 1
      %s3120 = scalar_select %p3119, %s18, 1
      %s3121 = smul.addr %s3120, 32
      %s3122 = smul.addr %s3121, 4
      %s3123 = scalar_lea.vmem %s5, %s3122
      %p3124 = scmp.lt.s32.totalorder %s18, 1
      %s3125 = scalar_select %p3124, %s18, 1
      %s3126 = smul.addr %s3125, 2
      %s3127 = scalar_lea.vmem %s6, %s3126
      // Predicated region
      $region33: #{basic_block.3} parent=31 // pred_check
        %p3128 = pneg %p104
      $region34: #{basic_block.3} parent=31 // pred_check_branch
        %3130 = sbr.rel (%p3128) target = $region36
      $region35: #{basic_block.3} parent=31 // pred_region
        _
      $region36: #{basic_block.3} parent=31 // pred_fallthru
        _
      // Predicated region
      $region37: #{basic_block.3} parent=31 // pred_check
        %p3131 = pneg %p130
      $region38: #{basic_block.3} parent=31 // pred_check_branch
        %3133 = sbr.rel (%p3131) target = $region40
      $region39: #{basic_block.3} parent=31 // pred_region
        _
      $region40: #{basic_block.3} parent=31 // pred_fallthru
        _
      // Predicated region
      $region41: #{basic_block.3} parent=31 // pred_check
        %p3134 = pneg %p156
      $region42: #{basic_block.3} parent=31 // pred_check_branch
        %3136 = sbr.rel (%p3134) target = $region44
      $region43: #{basic_block.3} parent=31 // pred_region
        _
      $region44: #{basic_block.3} parent=31 // pred_fallthru
        _
      // Predicated region
      $region45: #{basic_block.3} parent=31 // pred_check
        %p3137 = pneg %p182
      $region46: #{basic_block.3} parent=31 // pred_check_branch
        %3139 = sbr.rel (%p3137) target = $region48
      $region47: #{basic_block.3} parent=31 // pred_region
        _
      $region48: #{basic_block.3} parent=31 // pred_fallthru
        _
    $region32: #{basic_block.3} parent=5 // pred_fallthru
      _
    %p3140 = scmp.le.s32.totalorder 2, %s13
    // Predicated region
    $region49: #{basic_block.3} parent=5 // pred_check
      %p3141 = pneg %p3140
    $region50: #{basic_block.3} parent=5 // pred_check_branch
      %3143 = sbr.rel (%p3141) target = $region52
    $region51: #{basic_block.3} parent=5 // pred_region
      %s3144 = ssub.s32 %s13, 2
      // Predicated region
      $region53: #{basic_block.3} parent=51 // pred_check
        %p3145 = pneg %p110
      $region54: #{basic_block.3} parent=51 // pred_check_branch
        %3147 = sbr.rel (%p3145) target = $region56
      $region55: #{basic_block.3} parent=51 // pred_region
        %p3148 = scmp.lt.s32.totalorder %s19, 1
        %s3149 = scalar_select %p3148, %s19, 1
        %s3150 = smul.addr %s3149, 32
        %s3151 = smul.addr %s3150, 4
        %s3152 = scalar_lea.vmem %s3, %s3151
      $region56: #{basic_block.3} parent=51 // pred_fallthru
        _
      // Predicated region
      $region57: #{basic_block.3} parent=51 // pred_check
        %p3153 = pneg %p136
      $region58: #{basic_block.3} parent=51 // pred_check_branch
        %3155 = sbr.rel (%p3153) target = $region60
      $region59: #{basic_block.3} parent=51 // pred_region
        %p3156 = scmp.lt.s32.totalorder %s19, 1
        %s3157 = scalar_select %p3156, %s19, 1
        %s3158 = smul.addr %s3157, 2
        %s3159 = scalar_lea.vmem %s4, %s3158
      $region60: #{basic_block.3} parent=51 // pred_fallthru
        _
      // Predicated region
      $region61: #{basic_block.3} parent=51 // pred_check
        %p3160 = pneg %p162
      $region62: #{basic_block.3} parent=51 // pred_check_branch
        %3162 = sbr.rel (%p3160) target = $region64
      $region63: #{basic_block.3} parent=51 // pred_region
        %p3163 = scmp.lt.s32.totalorder %s19, 1
        %s3164 = scalar_select %p3163, %s19, 1
        %s3165 = smul.addr %s3164, 32
        %s3166 = smul.addr %s3165, 4
        %s3167 = scalar_lea.vmem %s5, %s3166
      $region64: #{basic_block.3} parent=51 // pred_fallthru
        _
      // Predicated region
      $region65: #{basic_block.3} parent=51 // pred_check
        %p3168 = pneg %p188
      $region66: #{basic_block.3} parent=51 // pred_check_branch
        %3170 = sbr.rel (%p3168) target = $region68
      $region67: #{basic_block.3} parent=51 // pred_region
        %p3171 = scmp.lt.s32.totalorder %s19, 1
        %s3172 = scalar_select %p3171, %s19, 1
        %s3173 = smul.addr %s3172, 2
        %s3174 = scalar_lea.vmem %s6, %s3173
      $region68: #{basic_block.3} parent=51 // pred_fallthru
        _
    $region52: #{basic_block.3} parent=5 // pred_fallthru
      _
  $region6: #{basic_block.3} parent=0 // loop_footer
    %s17 = sadd.s32 1, %s13
  $region7: #{basic_block.3} parent=0 // loop_footer_branch
    %12 = sbr.rel target = $region3
  $region8: #{basic_block.3} parent=0 // loop_exit
    _

</llo_original>
